<compile_context>
chip_gen: v7x
topology: tpu7x:2x2x1
jax: 0.10.0
libtpu: 0.0.40
codegen_flags: <defaults>
</compile_context>

<pallas_src>
import functools

import jax
import jax.numpy as jnp
from jax import lax
from jax.experimental import pallas as pl
from jax.experimental.pallas import tpu as pltpu


_LANE = 128
_SUBLANE = 8
# Above v5e's 16 MiB default scoped VMEM, below v7x's 64 MiB physical per-TC.
_VMEM_LIMIT_BYTES = 48 * 1024 * 1024


# ---------------------------------------------------------------------------
# Tiling helpers
# ---------------------------------------------------------------------------
def _round_up(x, m):
    return (x + m - 1) // m * m


def _pick_row_tile(m, cap=512):
    """Largest row tile <= cap that divides m (m is always a multiple of 8)."""
    if m <= cap:
        return m
    for t in (cap, 256, 128, 64, 32, 16, 8):
        if m % t == 0:
            return t
    return m


def _pick_col_tile(n, cap=512):
    """Output-column tile (keeps resident weight blocks small on v7x)."""
    if n <= cap:
        return n
    for t in (cap, 256, 128):
        if n % t == 0:
            return t
    return n


def _pick_time_chunk(t_len, b, h4, budget_bytes=8 * 1024 * 1024):
    """Time-chunk size from a VMEM budget (2 dirs x 2 buffers x (gates + out))."""
    per_step = 2 * 2 * (b * h4 * 2 + b * (h4 // 4) * 2)   # bf16 bytes
    cap = max(1, min(budget_bytes // per_step, 256, t_len))
    while t_len % cap:
        cap -= 1
    return cap


# ---------------------------------------------------------------------------
# Pallas kernels
# ---------------------------------------------------------------------------
def _in_proj_kernel(x_ref, w_ref, b_ref, o_ref):
    """One (TM,K)x(K,TN) tile of the hoisted input projection (+ folded bias)."""
    acc = jnp.dot(x_ref[...], w_ref[...], preferred_element_type=jnp.float32)
    o_ref[...] = (acc + b_ref[...]).astype(o_ref.dtype)


def _dual_proj_kernel(xf_ref, xb_ref, w_ref, b_ref, o_ref):
    """Projection consuming fwd/bwd halves separately (no (., 2H) concat)."""
    acc = jnp.dot(xf_ref[...], w_ref[0], preferred_element_type=jnp.float32)
    acc = acc + jnp.dot(xb_ref[...], w_ref[1], preferred_element_type=jnp.float32)
    o_ref[...] = (acc + b_ref[...]).astype(o_ref.dtype)


def _fused_lstm_chunk_kernel(gf_ref, gb_ref, whh_ref, of_ref, ob_ref,
                             hf_s, cf_s, hb_s, cb_s, *, tc, hidden):
    """Recurrent part only, both directions fused in one body.

    gf_ref / gb_ref: (tc, Bp, 4Hp) bf16 precomputed x@W_ih + b for the forward
                     chunk c and the backward chunk nc-1-c (via index_map).
    whh_ref:         (2, Hp, 4Hp) bf16 hidden->gate weights (fwd, bwd).
    of_ref / ob_ref: (tc, Bp, Hp) bf16 hidden-state outputs.
    hf_s/cf_s/hb_s/cb_s: (Bp, Hp) f32 carries, persist across time chunks.
    """
    c = pl.program_id(0)

    @pl.when(c == 0)
    def _():
        for r in (hf_s, cf_s, hb_s, cb_s):
            r[...] = jnp.zeros_like(r)

    whh_f = whh_ref[0]
    whh_b = whh_ref[1]
    H = hidden

    def cell(g_t, h_prev, c_prev, whh):
        gates = g_t.astype(jnp.float32) + jnp.dot(
            h_prev.astype(jnp.bfloat16), whh, preferred_element_type=jnp.float32)
        i = jax.nn.sigmoid(gates[:, 0 * H:1 * H])
        f = jax.nn.sigmoid(gates[:, 1 * H:2 * H])
        g = jnp.tanh(gates[:, 2 * H:3 * H])
        o = jax.nn.sigmoid(gates[:, 3 * H:4 * H])
        c_new = f * c_prev + i * g
        return o * jnp.tanh(c_new), c_new

    def step(s, carry):
        # Forward walks 0..tc-1 inside its chunk; backward walks tc-1..0 inside
        # its (already reversed) chunk.  The two chains are independent, so the
        # back-to-back dots/EUP ops of one hide under the other's latency.
        sb = tc - 1 - s

        h_new, c_new = cell(gf_ref[s], hf_s[...], cf_s[...], whh_f)
        hf_s[...] = h_new
        cf_s[...] = c_new
        of_ref[s] = h_new.astype(of_ref.dtype)

        h_new, c_new = cell(gb_ref[sb], hb_s[...], cb_s[...], whh_b)
        hb_s[...] = h_new
        cb_s[...] = c_new
        ob_ref[sb] = h_new.astype(ob_ref.dtype)
        return carry

    lax.fori_loop(0, tc, step, 0, unroll=min(tc, 8))


# ---------------------------------------------------------------------------
# pallas_call wrappers
# ---------------------------------------------------------------------------
def input_projection(x, w, b, out_dtype=jnp.bfloat16):
    """x: (M,K) bf16; w: (ND,K,N) bf16; b: (ND,1,N) f32 -> (ND,M,N)."""
    M, K = x.shape
    ND, _, N = w.shape
    TM = _pick_row_tile(M)
    TN = _pick_col_tile(N)
    return pl.pallas_call(
        _in_proj_kernel,
        out_shape=jax.ShapeDtypeStruct((ND, M, N), out_dtype),
        grid_spec=pltpu.PrefetchScalarGridSpec(
            num_scalar_prefetch=0,
            grid=(ND, N // TN, M // TM),      # m innermost: weight block stays resident
            in_specs=[
                pl.BlockSpec((TM, K), lambda d, n, m: (m, 0)),
                pl.BlockSpec((None, K, TN), lambda d, n, m: (d, 0, n)),
                pl.BlockSpec((None, 1, TN), lambda d, n, m: (d, 0, n)),
            ],
            out_specs=pl.BlockSpec((None, TM, TN), lambda d, n, m: (d, m, n)),
        ),
        compiler_params=pltpu.CompilerParams(
            dimension_semantics=("parallel", "parallel", "parallel"),
            vmem_limit_bytes=_VMEM_LIMIT_BYTES),
    )(x, w, b)


def dual_projection(xf, xb, w, b, out_dtype=jnp.bfloat16):
    """xf/xb: (M,K) bf16 fwd/bwd halves; w: (ND,2,K,N) bf16; b: (ND,1,N) f32."""
    M, K = xf.shape
    ND, _, _, N = w.shape
    TM = _pick_row_tile(M)
    TN = _pick_col_tile(N)
    return pl.pallas_call(
        _dual_proj_kernel,
        out_shape=jax.ShapeDtypeStruct((ND, M, N), out_dtype),
        grid_spec=pltpu.PrefetchScalarGridSpec(
            num_scalar_prefetch=0,
            grid=(ND, N // TN, M // TM),
            in_specs=[
                pl.BlockSpec((TM, K), lambda d, n, m: (m, 0)),
                pl.BlockSpec((TM, K), lambda d, n, m: (m, 0)),
                pl.BlockSpec((None, 2, K, TN), lambda d, n, m: (d, 0, 0, n)),
                pl.BlockSpec((None, 1, TN), lambda d, n, m: (d, 0, n)),
            ],
            out_specs=pl.BlockSpec((None, TM, TN), lambda d, n, m: (d, m, n)),
        ),
        compiler_params=pltpu.CompilerParams(
            dimension_semantics=("parallel", "parallel", "parallel"),
            vmem_limit_bytes=_VMEM_LIMIT_BYTES),
    )(xf, xb, w, b)


def bidir_lstm_layer(g, w_hh, *, tc):
    """g: (2,T,Bp,4Hp) bf16 precomputed gates; w_hh: (2,Hp,4Hp) bf16.

    Returns (h_fwd, h_bwd), each (T, Bp, Hp) bf16.  Backward-direction time
    reversal is expressed purely in the index_maps (no data reversal in HBM).
    """
    _, T, Bp, G4 = g.shape
    Hp = G4 // 4
    nc = T // tc
    kernel = functools.partial(_fused_lstm_chunk_kernel, tc=tc, hidden=Hp)
    return pl.pallas_call(
        kernel,
        out_shape=(jax.ShapeDtypeStruct((T, Bp, Hp), jnp.bfloat16),
                   jax.ShapeDtypeStruct((T, Bp, Hp), jnp.bfloat16)),
        grid_spec=pltpu.PrefetchScalarGridSpec(
            num_scalar_prefetch=0,
            grid=(nc,),
            in_specs=[
                pl.BlockSpec((None, tc, Bp, G4), lambda c: (0, c, 0, 0)),
                pl.BlockSpec((None, tc, Bp, G4), lambda c: (1, nc - 1 - c, 0, 0)),
                pl.BlockSpec((2, Hp, G4), lambda c: (0, 0, 0)),
            ],
            out_specs=(
                pl.BlockSpec((tc, Bp, Hp), lambda c: (c, 0, 0)),
                pl.BlockSpec((tc, Bp, Hp), lambda c: (nc - 1 - c, 0, 0)),
            ),
            scratch_shapes=[pltpu.VMEM((Bp, Hp), jnp.float32) for _ in range(4)],
        ),
        compiler_params=pltpu.CompilerParams(
            dimension_semantics=("arbitrary",),   # serial recurrence over time
            vmem_limit_bytes=_VMEM_LIMIT_BYTES),
    )(g, g, w_hh)


# ---------------------------------------------------------------------------
# Full model forward
# ---------------------------------------------------------------------------
def lstm_model_forward(tokens, kp, *, out_size):
    """tokens: (B, T) int32, kp: packed/padded bf16 params -> (B, T, out_size) f32."""
    B, T = tokens.shape
    Bp = _round_up(B, _SUBLANE)
    Ep = kp["embedding"].shape[1]
    Hp = kp["l0_w_hh"].shape[1]

    tok = jnp.pad(tokens, ((0, Bp - B), (0, 0)))
    # Gather directly in time-major order (only the tiny index array is transposed).
    x0 = kp["embedding"][tok.T].reshape(T * Bp, Ep)          # (T*Bp, Ep) bf16

    tc = _pick_time_chunk(T, Bp, 4 * Hp)

    # Layer 0: hoisted input projection, then recurrence (h @ W_hh only).
    g0 = input_projection(x0, kp["l0_w_in"], kp["l0_b"])
    hf, hb = bidir_lstm_layer(g0.reshape(2, T, Bp, 4 * Hp), kp["l0_w_hh"], tc=tc)

    # Layer 1: dual-input projection consumes the fwd/bwd halves directly.
    g1 = dual_projection(hf.reshape(T * Bp, Hp), hb.reshape(T * Bp, Hp),
                         kp["l1_w_in"], kp["l1_b"])
    hf, hb = bidir_lstm_layer(g1.reshape(2, T, Bp, 4 * Hp), kp["l1_w_hh"], tc=tc)

    # Dropout = identity (eval mode).  FC output is lane-padded to Op=128k.
    out = dual_projection(hf.reshape(T * Bp, Hp), hb.reshape(T * Bp, Hp),
                          kp["fc_w"], kp["fc_b"], out_dtype=jnp.float32)
    out = out.reshape(T, Bp, -1)
    return jnp.transpose(out, (1, 0, 2))[:B, :, :out_size]   # (B, T, O)


# ---------------------------------------------------------------------------
# Parameters: logical (PyTorch-equivalent, f32) + packed/padded bf16 for kernels
# ---------------------------------------------------------------------------
def make_params(key, vocab_size, emb_size, hidden_size, output_size):
    """Logical parameters. Weights are snapped to bf16-representable values so
    the kernel's bf16 cast is lossless and the f32 reference uses identical
    weight values (biases stay full f32; they are added in f32 in both paths)."""
    H = hidden_size
    k = 1.0 / jnp.sqrt(jnp.float32(H))
    keys = jax.random.split(key, 32)
    it = iter(keys)

    def snap(x):
        return x.astype(jnp.bfloat16).astype(jnp.float32)

    def uni(shape):
        return snap(jax.random.uniform(next(it), shape, jnp.float32, -k, k))

    def direction(in_size):
        w_ih = uni((4 * H, in_size))                      # PyTorch (4H, D)
        w_hh = uni((4 * H, H))                            # PyTorch (4H, H)
        b_ih = jax.random.uniform(next(it), (4 * H,), jnp.float32, -k, k)
        b_hh = jax.random.uniform(next(it), (4 * H,), jnp.float32, -k, k)
        return {"w_in": w_ih.T, "w_hh": w_hh.T, "b": b_ih + b_hh}

    return {
        "embedding": snap(jax.random.normal(next(it), (vocab_size, emb_size),
                                            jnp.float32)),
        "layers": [
            {"fwd": direction(emb_size), "bwd": direction(emb_size)},
            {"fwd": direction(2 * H), "bwd": direction(2 * H)},
        ],
        "fc_w": uni((output_size, 2 * H)).T,              # (2H, O)
        "fc_b": jax.random.uniform(next(it), (output_size,), jnp.float32, -k, k),
    }


def pack_kernel_params(params):
    """Pad to lane/sublane-friendly shapes and cast MXU inputs to bf16.

    Padding is numerically exact: gate blocks are padded independently with
    zero weight columns / zero bias, and padded hidden rows of W_hh are zero,
    so padded hidden/cell entries stay identically 0 through the recurrence.
    """
    E = params["embedding"].shape[1]
    H = params["layers"][0]["fwd"]["w_hh"].shape[0]
    O = params["fc_b"].shape[0]
    Ep = _round_up(E, _LANE)
    Hp = _round_up(H, _LANE)
    Op = _round_up(O, _LANE)

    def pad_axis(x, axis, new):
        pad = [(0, 0)] * x.ndim
        pad[axis] = (0, new - x.shape[axis])
        return jnp.pad(x, pad)

    def pad_gate_cols(w):
        lead = w.shape[:-1]
        w4 = w.reshape(lead + (4, H))
        return pad_axis(w4, -1, Hp).reshape(lead + (4 * Hp,))

    kp = {"embedding": pad_axis(params["embedding"], 1, Ep).astype(jnp.bfloat16)}

    def pack_whh(layer):
        return jnp.stack([pad_axis(pad_gate_cols(layer[d]["w_hh"]), 0, Hp)
                          for d in ("fwd", "bwd")]).astype(jnp.bfloat16)

    def pack_bias(layer):
        return jnp.stack([pad_gate_cols(layer[d]["b"])[None, :]
                          for d in ("fwd", "bwd")])          # f32 (2, 1, 4Hp)

    # Layer 0
    l0 = params["layers"][0]
    kp["l0_w_in"] = jnp.stack([pad_axis(pad_gate_cols(l0[d]["w_in"]), 0, Ep)
                               for d in ("fwd", "bwd")]).astype(jnp.bfloat16)
    kp["l0_w_hh"] = pack_whh(l0)
    kp["l0_b"] = pack_bias(l0)

    # Layer 1: split the (2H, 4H) input weights into fwd-half / bwd-half rows.
    l1 = params["layers"][1]

    def split_halves(w_in):
        return jnp.stack([pad_axis(pad_gate_cols(w_in[:H]), 0, Hp),
                          pad_axis(pad_gate_cols(w_in[H:]), 0, Hp)])

    kp["l1_w_in"] = jnp.stack([split_halves(l1[d]["w_in"])
                               for d in ("fwd", "bwd")]).astype(jnp.bfloat16)
    kp["l1_w_hh"] = pack_whh(l1)
    kp["l1_b"] = pack_bias(l1)

    # FC: (2H, O) -> (1, 2, Hp, Op), bias (O,) -> (1, 1, Op)
    fcw = params["fc_w"]
    fc_halves = jnp.stack([pad_axis(pad_axis(fcw[:H], 0, Hp), 1, Op),
                           pad_axis(pad_axis(fcw[H:], 0, Hp), 1, Op)])
    kp["fc_w"] = fc_halves[None].astype(jnp.bfloat16)
    kp["fc_b"] = pad_axis(params["fc_b"], 0, Op)[None, None, :]
    return kp


# ---------------------------------------------------------------------------
# Pure-JAX f32 reference (lax.scan) for validation
# ---------------------------------------------------------------------------
def _ref_direction(x_tbd, w_in, w_hh, b):
    H = w_hh.shape[0]
    B = x_tbd.shape[1]
    hi = lax.Precision.HIGHEST

    def step(carry, x_t):
        h, c = carry
        gates = (jnp.dot(x_t, w_in, precision=hi)
                 + jnp.dot(h, w_hh, precision=hi) + b)
        i = jax.nn.sigmoid(gates[:, 0 * H:1 * H])
        f = jax.nn.sigmoid(gates[:, 1 * H:2 * H])
        g = jnp.tanh(gates[:, 2 * H:3 * H])
        o = jax.nn.sigmoid(gates[:, 3 * H:4 * H])
        c = f * c + i * g
        h = o * jnp.tanh(c)
        return (h, c), h

    init = (jnp.zeros((B, H), jnp.float32), jnp.zeros((B, H), jnp.float32))
    _, ys = lax.scan(step, init, x_tbd)
    return ys


def reference_forward(tokens, params):
    hi = lax.Precision.HIGHEST
    x = jnp.transpose(params["embedding"][tokens], (1, 0, 2))   # (T, B, E)
    for layer in params["layers"]:
        fw, bw = layer["fwd"], layer["bwd"]
        of = _ref_direction(x, fw["w_in"], fw["w_hh"], fw["b"])
        ob = _ref_direction(x[::-1], bw["w_in"], bw["w_hh"], bw["b"])[::-1]
        x = jnp.concatenate([of, ob], axis=-1)
    out = jnp.dot(x, params["fc_w"], precision=hi) + params["fc_b"]
    return jnp.transpose(out, (1, 0, 2))


# ---------------------------------------------------------------------------
if __name__ == "__main__":
    vocab_size = 50
    emb_size = 128
    hidden_size = 32
    output_size = 10
    B, T = 2, 8

    key = jax.random.PRNGKey(0)
    k_params, k_tokens = jax.random.split(key)
    params = make_params(k_params, vocab_size, emb_size, hidden_size, output_size)
    kparams = pack_kernel_params(params)
    tokens = jax.random.randint(k_tokens, (B, T), 0, vocab_size, dtype=jnp.int32)

    forward = jax.jit(functools.partial(lstm_model_forward, out_size=output_size))
    out = jax.block_until_ready(forward(tokens, kparams))

    ref = reference_forward(tokens, params)
    assert out.shape == (B, T, output_size), out.shape
    max_err = float(jnp.max(jnp.abs(out - ref)))
    mean_err = float(jnp.mean(jnp.abs(out - ref)))
    # bf16 MXU inputs + bf16 gate/hidden buffers vs. an f32 HIGHEST-precision
    # reference -> expect O(1e-3..1e-2) absolute deviation; structural bugs
    # (gate order, direction reversal, padding) produce O(1e-1..1) errors.
    assert max_err < 4e-2, f"mismatch vs reference, max abs err = {max_err}"
    assert mean_err < 1e-2, f"mismatch vs reference, mean abs err = {mean_err}"

    print("KERNEL_OK")
</pallas_src>

<mosaic_0001>
module attributes {stable_mosaic.version = 11 : i64} {
  func.func @_dual_proj_kernel(%arg0: i32, %arg1: i32, %arg2: i32, %arg3: memref<64x128xbf16, #tpu.memory_space<vmem>>, %arg4: memref<64x128xbf16, #tpu.memory_space<vmem>>, %arg5: memref<1x2x128x512xbf16, #tpu.memory_space<vmem>>, %arg6: memref<1x1x512xf32, #tpu.memory_space<vmem>>, %arg7: memref<1x64x512xbf16, #tpu.memory_space<vmem>>) attributes {dimension_semantics = [#tpu.dimension_semantics<parallel>, #tpu.dimension_semantics<parallel>, #tpu.dimension_semantics<parallel>], iteration_bounds = array<i64: 2, 1, 1>, scalar_prefetch = 0 : i64, scratch_operands = 0 : i64, tpu.core_type = #tpu.core_type<tc>, window_params = [{transform_indices = @transform_0, window_bounds = array<i64: 64, 128>}, {transform_indices = @transform_1, window_bounds = array<i64: 64, 128>}, {transform_indices = @transform_2, window_bounds = array<i64: 1, 2, 128, 512>}, {transform_indices = @transform_3, window_bounds = array<i64: 1, 1, 512>}, {transform_indices = @transform_4, window_bounds = array<i64: 1, 64, 512>}]} {
    %c0 = arith.constant 0 : index
    %c0_0 = arith.constant 0 : index
    %0 = vector.load %arg3[%c0, %c0_0] : memref<64x128xbf16, #tpu.memory_space<vmem>>, vector<64x128xbf16>
    %c0_1 = arith.constant 0 : index
    %c0_2 = arith.constant 0 : index
    %c0_3 = arith.constant 0 : index
    %c0_4 = arith.constant 0 : index
    %1 = vector.load %arg5[%c0_1, %c0_2, %c0_3, %c0_4] : memref<1x2x128x512xbf16, #tpu.memory_space<vmem>>, vector<1x1x128x512xbf16>
    %2 = vector.shape_cast %1 : vector<1x1x128x512xbf16> to vector<128x512xbf16>
    %cst = arith.constant dense<0.000000e+00> : vector<64x512xf32>
    %3 = tpu.matmul %0, %2, %cst {dimension_numbers = #tpu.dot_dimension_numbers<[1], [0], [0], [1], [0, 0, 1, 1], [], []>} : vector<64x128xbf16>, vector<128x512xbf16>, vector<64x512xf32> -> vector<64x512xf32>
    %c0_5 = arith.constant 0 : index
    %c0_6 = arith.constant 0 : index
    %4 = vector.load %arg4[%c0_5, %c0_6] : memref<64x128xbf16, #tpu.memory_space<vmem>>, vector<64x128xbf16>
    %c0_7 = arith.constant 0 : index
    %c1 = arith.constant 1 : index
    %c0_8 = arith.constant 0 : index
    %c0_9 = arith.constant 0 : index
    %5 = vector.load %arg5[%c0_7, %c1, %c0_8, %c0_9] : memref<1x2x128x512xbf16, #tpu.memory_space<vmem>>, vector<1x1x128x512xbf16>
    %6 = vector.shape_cast %5 : vector<1x1x128x512xbf16> to vector<128x512xbf16>
    %cst_10 = arith.constant dense<0.000000e+00> : vector<64x512xf32>
    %7 = tpu.matmul %4, %6, %cst_10 {dimension_numbers = #tpu.dot_dimension_numbers<[1], [0], [0], [1], [0, 0, 1, 1], [], []>} : vector<64x128xbf16>, vector<128x512xbf16>, vector<64x512xf32> -> vector<64x512xf32>
    %8 = arith.addf %3, %7 : vector<64x512xf32>
    %c0_11 = arith.constant 0 : index
    %c0_12 = arith.constant 0 : index
    %c0_13 = arith.constant 0 : index
    %9 = vector.load %arg6[%c0_11, %c0_12, %c0_13] : memref<1x1x512xf32, #tpu.memory_space<vmem>>, vector<1x1x512xf32>
    %10 = vector.shape_cast %9 : vector<1x1x512xf32> to vector<1x512xf32>
    %11 = vector.broadcast %10 : vector<1x512xf32> to vector<64x512xf32>
    %12 = arith.addf %8, %11 : vector<64x512xf32>
    %13 = arith.truncf %12 : vector<64x512xf32> to vector<64x512xbf16>
    %c0_14 = arith.constant 0 : index
    %c0_15 = arith.constant 0 : index
    %c0_16 = arith.constant 0 : index
    %14 = vector.load %arg7[%c0_14, %c0_15, %c0_16] : memref<1x64x512xbf16, #tpu.memory_space<vmem>>, vector<1x64x512xbf16>
    %15 = vector.shape_cast %14 : vector<1x64x512xbf16> to vector<64x512xbf16>
    %16 = vector.shape_cast %13 : vector<64x512xbf16> to vector<1x64x512xbf16>
    tpu.vector_store %arg7[%c0_14, %c0_15, %c0_16], %16 {strides = array<i32>} : memref<1x64x512xbf16, #tpu.memory_space<vmem>>, vector<1x64x512xbf16>,
    return
  }
  func.func @transform_0(%arg0: i32, %arg1: i32, %arg2: i32) -> (i32, i32) {
    %c0_i32 = arith.constant 0 : i32
    %c0_i32_0 = arith.constant 0 : i32
    return %arg2, %c0_i32 : i32, i32
  }
  func.func @transform_1(%arg0: i32, %arg1: i32, %arg2: i32) -> (i32, i32) {
    %c0_i32 = arith.constant 0 : i32
    %c0_i32_0 = arith.constant 0 : i32
    return %arg2, %c0_i32 : i32, i32
  }
  func.func @transform_2(%arg0: i32, %arg1: i32, %arg2: i32) -> (i32, i32, i32, i32) {
    %c0_i32 = arith.constant 0 : i32
    %c0_i32_0 = arith.constant 0 : i32
    %c0_i32_1 = arith.constant 0 : i32
    return %arg0, %c0_i32, %c0_i32_0, %arg1 : i32, i32, i32, i32
  }
  func.func @transform_3(%arg0: i32, %arg1: i32, %arg2: i32) -> (i32, i32, i32) {
    %c0_i32 = arith.constant 0 : i32
    %c0_i32_0 = arith.constant 0 : i32
    return %arg0, %c0_i32, %arg1 : i32, i32, i32
  }
  func.func @transform_4(%arg0: i32, %arg1: i32, %arg2: i32) -> (i32, i32, i32) {
    %c0_i32 = arith.constant 0 : i32
    return %arg0, %arg2, %arg1 : i32, i32, i32
  }
}

module attributes {stable_mosaic.version = 11 : i64} {
  func.func @_in_proj_kernel(%arg0: i32, %arg1: i32, %arg2: i32, %arg3: memref<64x128xbf16, #tpu.memory_space<vmem>>, %arg4: memref<1x128x512xbf16, #tpu.memory_space<vmem>>, %arg5: memref<1x1x512xf32, #tpu.memory_space<vmem>>, %arg6: memref<1x64x512xbf16, #tpu.memory_space<vmem>>) attributes {dimension_semantics = [#tpu.dimension_semantics<parallel>, #tpu.dimension_semantics<parallel>, #tpu.dimension_semantics<parallel>], iteration_bounds = array<i64: 2, 1, 1>, scalar_prefetch = 0 : i64, scratch_operands = 0 : i64, tpu.core_type = #tpu.core_type<tc>, window_params = [{transform_indices = @transform_0, window_bounds = array<i64: 64, 128>}, {transform_indices = @transform_1, window_bounds = array<i64: 1, 128, 512>}, {transform_indices = @transform_2, window_bounds = array<i64: 1, 1, 512>}, {transform_indices = @transform_3, window_bounds = array<i64: 1, 64, 512>}]} {
    %c0 = arith.constant 0 : index
    %c0_0 = arith.constant 0 : index
    %0 = vector.load %arg3[%c0, %c0_0] : memref<64x128xbf16, #tpu.memory_space<vmem>>, vector<64x128xbf16>
    %c0_1 = arith.constant 0 : index
    %c0_2 = arith.constant 0 : index
    %c0_3 = arith.constant 0 : index
    %1 = vector.load %arg4[%c0_1, %c0_2, %c0_3] : memref<1x128x512xbf16, #tpu.memory_space<vmem>>, vector<1x128x512xbf16>
    %2 = vector.shape_cast %1 : vector<1x128x512xbf16> to vector<128x512xbf16>
    %cst = arith.constant dense<0.000000e+00> : vector<64x512xf32>
    %3 = tpu.matmul %0, %2, %cst {dimension_numbers = #tpu.dot_dimension_numbers<[1], [0], [0], [1], [0, 0, 1, 1], [], []>} : vector<64x128xbf16>, vector<128x512xbf16>, vector<64x512xf32> -> vector<64x512xf32>
    %c0_4 = arith.constant 0 : index
    %c0_5 = arith.constant 0 : index
    %c0_6 = arith.constant 0 : index
    %4 = vector.load %arg5[%c0_4, %c0_5, %c0_6] : memref<1x1x512xf32, #tpu.memory_space<vmem>>, vector<1x1x512xf32>
    %5 = vector.shape_cast %4 : vector<1x1x512xf32> to vector<1x512xf32>
    %6 = vector.broadcast %5 : vector<1x512xf32> to vector<64x512xf32>
    %7 = arith.addf %3, %6 : vector<64x512xf32>
    %8 = arith.truncf %7 : vector<64x512xf32> to vector<64x512xbf16>
    %c0_7 = arith.constant 0 : index
    %c0_8 = arith.constant 0 : index
    %c0_9 = arith.constant 0 : index
    %9 = vector.load %arg6[%c0_7, %c0_8, %c0_9] : memref<1x64x512xbf16, #tpu.memory_space<vmem>>, vector<1x64x512xbf16>
    %10 = vector.shape_cast %9 : vector<1x64x512xbf16> to vector<64x512xbf16>
    %11 = vector.shape_cast %8 : vector<64x512xbf16> to vector<1x64x512xbf16>
    tpu.vector_store %arg6[%c0_7, %c0_8, %c0_9], %11 {strides = array<i32>} : memref<1x64x512xbf16, #tpu.memory_space<vmem>>, vector<1x64x512xbf16>,
    return
  }
  func.func @transform_0(%arg0: i32, %arg1: i32, %arg2: i32) -> (i32, i32) {
    %c0_i32 = arith.constant 0 : i32
    %c0_i32_0 = arith.constant 0 : i32
    return %arg2, %c0_i32 : i32, i32
  }
  func.func @transform_1(%arg0: i32, %arg1: i32, %arg2: i32) -> (i32, i32, i32) {
    %c0_i32 = arith.constant 0 : i32
    %c0_i32_0 = arith.constant 0 : i32
    return %arg0, %c0_i32, %arg1 : i32, i32, i32
  }
  func.func @transform_2(%arg0: i32, %arg1: i32, %arg2: i32) -> (i32, i32, i32) {
    %c0_i32 = arith.constant 0 : i32
    %c0_i32_0 = arith.constant 0 : i32
    return %arg0, %c0_i32, %arg1 : i32, i32, i32
  }
  func.func @transform_3(%arg0: i32, %arg1: i32, %arg2: i32) -> (i32, i32, i32) {
    %c0_i32 = arith.constant 0 : i32
    return %arg0, %arg2, %arg1 : i32, i32, i32
  }
}

module attributes {stable_mosaic.version = 11 : i64} {
  func.func @_dual_proj_kernel(%arg0: i32, %arg1: i32, %arg2: i32, %arg3: memref<64x128xbf16, #tpu.memory_space<vmem>>, %arg4: memref<64x128xbf16, #tpu.memory_space<vmem>>, %arg5: memref<1x2x128x128xbf16, #tpu.memory_space<vmem>>, %arg6: memref<1x1x128xf32, #tpu.memory_space<vmem>>, %arg7: memref<1x64x128xf32, #tpu.memory_space<vmem>>) attributes {dimension_semantics = [#tpu.dimension_semantics<parallel>, #tpu.dimension_semantics<parallel>, #tpu.dimension_semantics<parallel>], iteration_bounds = array<i64: 1, 1, 1>, scalar_prefetch = 0 : i64, scratch_operands = 0 : i64, tpu.core_type = #tpu.core_type<tc>, window_params = [{transform_indices = @transform_0, window_bounds = array<i64: 64, 128>}, {transform_indices = @transform_1, window_bounds = array<i64: 64, 128>}, {transform_indices = @transform_2, window_bounds = array<i64: 1, 2, 128, 128>}, {transform_indices = @transform_3, window_bounds = array<i64: 1, 1, 128>}, {transform_indices = @transform_4, window_bounds = array<i64: 1, 64, 128>}]} {
    %c0 = arith.constant 0 : index
    %c0_0 = arith.constant 0 : index
    %0 = vector.load %arg3[%c0, %c0_0] : memref<64x128xbf16, #tpu.memory_space<vmem>>, vector<64x128xbf16>
    %c0_1 = arith.constant 0 : index
    %c0_2 = arith.constant 0 : index
    %c0_3 = arith.constant 0 : index
    %c0_4 = arith.constant 0 : index
    %1 = vector.load %arg5[%c0_1, %c0_2, %c0_3, %c0_4] : memref<1x2x128x128xbf16, #tpu.memory_space<vmem>>, vector<1x1x128x128xbf16>
    %2 = vector.shape_cast %1 : vector<1x1x128x128xbf16> to vector<128x128xbf16>
    %cst = arith.constant dense<0.000000e+00> : vector<64x128xf32>
    %3 = tpu.matmul %0, %2, %cst {dimension_numbers = #tpu.dot_dimension_numbers<[1], [0], [0], [1], [0, 0, 1, 1], [], []>} : vector<64x128xbf16>, vector<128x128xbf16>, vector<64x128xf32> -> vector<64x128xf32>
    %c0_5 = arith.constant 0 : index
    %c0_6 = arith.constant 0 : index
    %4 = vector.load %arg4[%c0_5, %c0_6] : memref<64x128xbf16, #tpu.memory_space<vmem>>, vector<64x128xbf16>
    %c0_7 = arith.constant 0 : index
    %c1 = arith.constant 1 : index
    %c0_8 = arith.constant 0 : index
    %c0_9 = arith.constant 0 : index
    %5 = vector.load %arg5[%c0_7, %c1, %c0_8, %c0_9] : memref<1x2x128x128xbf16, #tpu.memory_space<vmem>>, vector<1x1x128x128xbf16>
    %6 = vector.shape_cast %5 : vector<1x1x128x128xbf16> to vector<128x128xbf16>
    %cst_10 = arith.constant dense<0.000000e+00> : vector<64x128xf32>
    %7 = tpu.matmul %4, %6, %cst_10 {dimension_numbers = #tpu.dot_dimension_numbers<[1], [0], [0], [1], [0, 0, 1, 1], [], []>} : vector<64x128xbf16>, vector<128x128xbf16>, vector<64x128xf32> -> vector<64x128xf32>
    %8 = arith.addf %3, %7 : vector<64x128xf32>
    %c0_11 = arith.constant 0 : index
    %c0_12 = arith.constant 0 : index
    %c0_13 = arith.constant 0 : index
    %9 = vector.load %arg6[%c0_11, %c0_12, %c0_13] : memref<1x1x128xf32, #tpu.memory_space<vmem>>, vector<1x1x128xf32>
    %10 = vector.shape_cast %9 : vector<1x1x128xf32> to vector<1x128xf32>
    %11 = vector.broadcast %10 : vector<1x128xf32> to vector<64x128xf32>
    %12 = arith.addf %8, %11 : vector<64x128xf32>
    %c0_14 = arith.constant 0 : index
    %c0_15 = arith.constant 0 : index
    %c0_16 = arith.constant 0 : index
    %13 = vector.load %arg7[%c0_14, %c0_15, %c0_16] : memref<1x64x128xf32, #tpu.memory_space<vmem>>, vector<1x64x128xf32>
    %14 = vector.shape_cast %13 : vector<1x64x128xf32> to vector<64x128xf32>
    %15 = vector.shape_cast %12 : vector<64x128xf32> to vector<1x64x128xf32>
    tpu.vector_store %arg7[%c0_14, %c0_15, %c0_16], %15 {strides = array<i32>} : memref<1x64x128xf32, #tpu.memory_space<vmem>>, vector<1x64x128xf32>,
    return
  }
  func.func @transform_0(%arg0: i32, %arg1: i32, %arg2: i32) -> (i32, i32) {
    %c0_i32 = arith.constant 0 : i32
    %c0_i32_0 = arith.constant 0 : i32
    return %arg2, %c0_i32 : i32, i32
  }
  func.func @transform_1(%arg0: i32, %arg1: i32, %arg2: i32) -> (i32, i32) {
    %c0_i32 = arith.constant 0 : i32
    %c0_i32_0 = arith.constant 0 : i32
    return %arg2, %c0_i32 : i32, i32
  }
  func.func @transform_2(%arg0: i32, %arg1: i32, %arg2: i32) -> (i32, i32, i32, i32) {
    %c0_i32 = arith.constant 0 : i32
    %c0_i32_0 = arith.constant 0 : i32
    %c0_i32_1 = arith.constant 0 : i32
    return %arg0, %c0_i32, %c0_i32_0, %arg1 : i32, i32, i32, i32
  }
  func.func @transform_3(%arg0: i32, %arg1: i32, %arg2: i32) -> (i32, i32, i32) {
    %c0_i32 = arith.constant 0 : i32
    %c0_i32_0 = arith.constant 0 : i32
    return %arg0, %c0_i32, %arg1 : i32, i32, i32
  }
  func.func @transform_4(%arg0: i32, %arg1: i32, %arg2: i32) -> (i32, i32, i32) {
    %c0_i32 = arith.constant 0 : i32
    return %arg0, %arg2, %arg1 : i32, i32, i32
  }
}

module attributes {stable_mosaic.version = 11 : i64} {
  func.func @_fused_lstm_chunk_kernel(%arg0: i32, %arg1: memref<1x8x8x512xbf16, #tpu.memory_space<vmem>>, %arg2: memref<1x8x8x512xbf16, #tpu.memory_space<vmem>>, %arg3: memref<2x128x512xbf16, #tpu.memory_space<vmem>>, %arg4: memref<8x8x128xbf16, #tpu.memory_space<vmem>>, %arg5: memref<8x8x128xbf16, #tpu.memory_space<vmem>>, %arg6: memref<8x128xf32, #tpu.memory_space<vmem>>, %arg7: memref<8x128xf32, #tpu.memory_space<vmem>>, %arg8: memref<8x128xf32, #tpu.memory_space<vmem>>, %arg9: memref<8x128xf32, #tpu.memory_space<vmem>>) attributes {dimension_semantics = [#tpu.dimension_semantics<arbitrary>], iteration_bounds = array<i64: 1>, scalar_prefetch = 0 : i64, scratch_operands = 4 : i64, tpu.core_type = #tpu.core_type<tc>, window_params = [{transform_indices = @transform_0, window_bounds = array<i64: 1, 8, 8, 512>}, {transform_indices = @transform_1, window_bounds = array<i64: 1, 8, 8, 512>}, {pipeline_mode = #tpu.pipeline_mode<synchronous>, transform_indices = @transform_2, window_bounds = array<i64: 2, 128, 512>}, {transform_indices = @transform_3, window_bounds = array<i64: 8, 8, 128>}, {transform_indices = @transform_4, window_bounds = array<i64: 8, 8, 128>}]} {
    %c0_i32 = arith.constant 0 : i32
    %0 = arith.cmpi eq, %arg0, %c0_i32 : i32
    %1 = arith.extui %0 : i1 to i32
    %c0_i32_0 = arith.constant 0 : i32
    %2 = arith.cmpi ne, %1, %c0_i32_0 : i32
    scf.if %2 {
      %cst_285 = arith.constant 0.000000e+00 : f32
      %671 = vector.broadcast %cst_285 : f32 to vector<8x128xf32>
      %c0_286 = arith.constant 0 : index
      %c0_287 = arith.constant 0 : index
      %672 = vector.load %arg6[%c0_286, %c0_287] : memref<8x128xf32, #tpu.memory_space<vmem>>, vector<8x128xf32>
      tpu.vector_store %arg6[%c0_286, %c0_287], %671 {strides = array<i32>} : memref<8x128xf32, #tpu.memory_space<vmem>>, vector<8x128xf32>,
      %cst_288 = arith.constant 0.000000e+00 : f32
      %673 = vector.broadcast %cst_288 : f32 to vector<8x128xf32>
      %c0_289 = arith.constant 0 : index
      %c0_290 = arith.constant 0 : index
      %674 = vector.load %arg7[%c0_289, %c0_290] : memref<8x128xf32, #tpu.memory_space<vmem>>, vector<8x128xf32>
      tpu.vector_store %arg7[%c0_289, %c0_290], %673 {strides = array<i32>} : memref<8x128xf32, #tpu.memory_space<vmem>>, vector<8x128xf32>,
      %cst_291 = arith.constant 0.000000e+00 : f32
      %675 = vector.broadcast %cst_291 : f32 to vector<8x128xf32>
      %c0_292 = arith.constant 0 : index
      %c0_293 = arith.constant 0 : index
      %676 = vector.load %arg8[%c0_292, %c0_293] : memref<8x128xf32, #tpu.memory_space<vmem>>, vector<8x128xf32>
      tpu.vector_store %arg8[%c0_292, %c0_293], %675 {strides = array<i32>} : memref<8x128xf32, #tpu.memory_space<vmem>>, vector<8x128xf32>,
      %cst_294 = arith.constant 0.000000e+00 : f32
      %677 = vector.broadcast %cst_294 : f32 to vector<8x128xf32>
      %c0_295 = arith.constant 0 : index
      %c0_296 = arith.constant 0 : index
      %678 = vector.load %arg9[%c0_295, %c0_296] : memref<8x128xf32, #tpu.memory_space<vmem>>, vector<8x128xf32>
      tpu.vector_store %arg9[%c0_295, %c0_296], %677 {strides = array<i32>} : memref<8x128xf32, #tpu.memory_space<vmem>>, vector<8x128xf32>,
    } else {
    }
    %c0 = arith.constant 0 : index
    %c0_1 = arith.constant 0 : index
    %c0_2 = arith.constant 0 : index
    %3 = vector.load %arg3[%c0, %c0_1, %c0_2] : memref<2x128x512xbf16, #tpu.memory_space<vmem>>, vector<1x128x512xbf16>
    %4 = vector.shape_cast %3 : vector<1x128x512xbf16> to vector<128x512xbf16>
    %c1 = arith.constant 1 : index
    %c0_3 = arith.constant 0 : index
    %c0_4 = arith.constant 0 : index
    %5 = vector.load %arg3[%c1, %c0_3, %c0_4] : memref<2x128x512xbf16, #tpu.memory_space<vmem>>, vector<1x128x512xbf16>
    %6 = vector.shape_cast %5 : vector<1x128x512xbf16> to vector<128x512xbf16>
    %c0_i32_5 = arith.constant 0 : i32
    %c7_i32 = arith.constant 7 : i32
    %7 = arith.subi %c7_i32, %c0_i32_5 : i32
    %c0_6 = arith.constant 0 : index
    %8 = arith.index_cast %c0_i32_5 : i32 to index
    %c0_7 = arith.constant 0 : index
    %c0_8 = arith.constant 0 : index
    %9 = vector.load %arg1[%c0_6, %8, %c0_7, %c0_8] : memref<1x8x8x512xbf16, #tpu.memory_space<vmem>>, vector<1x1x8x512xbf16>
    %10 = vector.shape_cast %9 : vector<1x1x8x512xbf16> to vector<8x512xbf16>
    %c0_9 = arith.constant 0 : index
    %c0_10 = arith.constant 0 : index
    %11 = vector.load %arg6[%c0_9, %c0_10] : memref<8x128xf32, #tpu.memory_space<vmem>>, vector<8x128xf32>
    %c0_11 = arith.constant 0 : index
    %c0_12 = arith.constant 0 : index
    %12 = vector.load %arg7[%c0_11, %c0_12] : memref<8x128xf32, #tpu.memory_space<vmem>>, vector<8x128xf32>
    %13 = arith.extf %10 : vector<8x512xbf16> to vector<8x512xf32>
    %14 = arith.truncf %11 : vector<8x128xf32> to vector<8x128xbf16>
    %cst = arith.constant dense<0.000000e+00> : vector<8x512xf32>
    %15 = tpu.matmul %14, %4, %cst {dimension_numbers = #tpu.dot_dimension_numbers<[1], [0], [0], [1], [0, 0, 1, 1], [], []>} : vector<8x128xbf16>, vector<128x512xbf16>, vector<8x512xf32> -> vector<8x512xf32>
    %16 = arith.addf %13, %15 : vector<8x512xf32>
    %17 = vector.extract_strided_slice %16 {offsets = [0, 0], sizes = [8, 128], strides = [1, 1]} : vector<8x512xf32> to vector<8x128xf32>
    %18 = arith.negf %17 : vector<8x128xf32>
    %19 = math.exp %18 : vector<8x128xf32>
    %cst_13 = arith.constant 1.000000e+00 : f32
    %20 = vector.broadcast %cst_13 : f32 to vector<8x128xf32>
    %21 = arith.addf %20, %19 : vector<8x128xf32>
    %22 = arith.divf %20, %21 : vector<8x128xf32>
    %23 = vector.extract_strided_slice %16 {offsets = [0, 128], sizes = [8, 128], strides = [1, 1]} : vector<8x512xf32> to vector<8x128xf32>
    %24 = arith.negf %23 : vector<8x128xf32>
    %25 = math.exp %24 : vector<8x128xf32>
    %cst_14 = arith.constant 1.000000e+00 : f32
    %26 = vector.broadcast %cst_14 : f32 to vector<8x128xf32>
    %27 = arith.addf %26, %25 : vector<8x128xf32>
    %28 = arith.divf %26, %27 : vector<8x128xf32>
    %29 = vector.extract_strided_slice %16 {offsets = [0, 256], sizes = [8, 128], strides = [1, 1]} : vector<8x512xf32> to vector<8x128xf32>
    %30 = math.tanh %29 : vector<8x128xf32>
    %31 = vector.extract_strided_slice %16 {offsets = [0, 384], sizes = [8, 128], strides = [1, 1]} : vector<8x512xf32> to vector<8x128xf32>
    %32 = arith.negf %31 : vector<8x128xf32>
    %33 = math.exp %32 : vector<8x128xf32>
    %cst_15 = arith.constant 1.000000e+00 : f32
    %34 = vector.broadcast %cst_15 : f32 to vector<8x128xf32>
    %35 = arith.addf %34, %33 : vector<8x128xf32>
    %36 = arith.divf %34, %35 : vector<8x128xf32>
    %37 = arith.mulf %28, %12 : vector<8x128xf32>
    %38 = arith.mulf %22, %30 : vector<8x128xf32>
    %39 = arith.addf %37, %38 : vector<8x128xf32>
    %40 = math.tanh %39 : vector<8x128xf32>
    %41 = arith.mulf %36, %40 : vector<8x128xf32>
    %c0_16 = arith.constant 0 : index
    %c0_17 = arith.constant 0 : index
    %42 = vector.load %arg6[%c0_16, %c0_17] : memref<8x128xf32, #tpu.memory_space<vmem>>, vector<8x128xf32>
    tpu.vector_store %arg6[%c0_16, %c0_17], %41 {strides = array<i32>} : memref<8x128xf32, #tpu.memory_space<vmem>>, vector<8x128xf32>,
    %c0_18 = arith.constant 0 : index
    %c0_19 = arith.constant 0 : index
    %43 = vector.load %arg7[%c0_18, %c0_19] : memref<8x128xf32, #tpu.memory_space<vmem>>, vector<8x128xf32>
    tpu.vector_store %arg7[%c0_18, %c0_19], %39 {strides = array<i32>} : memref<8x128xf32, #tpu.memory_space<vmem>>, vector<8x128xf32>,
    %44 = arith.truncf %41 : vector<8x128xf32> to vector<8x128xbf16>
    %45 = arith.index_cast %c0_i32_5 : i32 to index
    %c0_20 = arith.constant 0 : index
    %c0_21 = arith.constant 0 : index
    %46 = vector.load %arg4[%45, %c0_20, %c0_21] : memref<8x8x128xbf16, #tpu.memory_space<vmem>>, vector<1x8x128xbf16>
    %47 = vector.shape_cast %46 : vector<1x8x128xbf16> to vector<8x128xbf16>
    %48 = vector.shape_cast %44 : vector<8x128xbf16> to vector<1x8x128xbf16>
    tpu.vector_store %arg4[%45, %c0_20, %c0_21], %48 {strides = array<i32>} : memref<8x8x128xbf16, #tpu.memory_space<vmem>>, vector<1x8x128xbf16>,
    %c0_22 = arith.constant 0 : index
    %49 = arith.index_cast %7 : i32 to index
    %c0_23 = arith.constant 0 : index
    %c0_24 = arith.constant 0 : index
    %50 = vector.load %arg2[%c0_22, %49, %c0_23, %c0_24] : memref<1x8x8x512xbf16, #tpu.memory_space<vmem>>, vector<1x1x8x512xbf16>
    %51 = vector.shape_cast %50 : vector<1x1x8x512xbf16> to vector<8x512xbf16>
    %c0_25 = arith.constant 0 : index
    %c0_26 = arith.constant 0 : index
    %52 = vector.load %arg8[%c0_25, %c0_26] : memref<8x128xf32, #tpu.memory_space<vmem>>, vector<8x128xf32>
    %c0_27 = arith.constant 0 : index
    %c0_28 = arith.constant 0 : index
    %53 = vector.load %arg9[%c0_27, %c0_28] : memref<8x128xf32, #tpu.memory_space<vmem>>, vector<8x128xf32>
    %54 = arith.extf %51 : vector<8x512xbf16> to vector<8x512xf32>
    %55 = arith.truncf %52 : vector<8x128xf32> to vector<8x128xbf16>
    %cst_29 = arith.constant dense<0.000000e+00> : vector<8x512xf32>
    %56 = tpu.matmul %55, %6, %cst_29 {dimension_numbers = #tpu.dot_dimension_numbers<[1], [0], [0], [1], [0, 0, 1, 1], [], []>} : vector<8x128xbf16>, vector<128x512xbf16>, vector<8x512xf32> -> vector<8x512xf32>
    %57 = arith.addf %54, %56 : vector<8x512xf32>
    %58 = vector.extract_strided_slice %57 {offsets = [0, 0], sizes = [8, 128], strides = [1, 1]} : vector<8x512xf32> to vector<8x128xf32>
    %59 = arith.negf %58 : vector<8x128xf32>
    %60 = math.exp %59 : vector<8x128xf32>
    %cst_30 = arith.constant 1.000000e+00 : f32
    %61 = vector.broadcast %cst_30 : f32 to vector<8x128xf32>
    %62 = arith.addf %61, %60 : vector<8x128xf32>
    %63 = arith.divf %61, %62 : vector<8x128xf32>
    %64 = vector.extract_strided_slice %57 {offsets = [0, 128], sizes = [8, 128], strides = [1, 1]} : vector<8x512xf32> to vector<8x128xf32>
    %65 = arith.negf %64 : vector<8x128xf32>
    %66 = math.exp %65 : vector<8x128xf32>
    %cst_31 = arith.constant 1.000000e+00 : f32
    %67 = vector.broadcast %cst_31 : f32 to vector<8x128xf32>
    %68 = arith.addf %67, %66 : vector<8x128xf32>
    %69 = arith.divf %67, %68 : vector<8x128xf32>
    %70 = vector.extract_strided_slice %57 {offsets = [0, 256], sizes = [8, 128], strides = [1, 1]} : vector<8x512xf32> to vector<8x128xf32>
    %71 = math.tanh %70 : vector<8x128xf32>
    %72 = vector.extract_strided_slice %57 {offsets = [0, 384], sizes = [8, 128], strides = [1, 1]} : vector<8x512xf32> to vector<8x128xf32>
    %73 = arith.negf %72 : vector<8x128xf32>
    %74 = math.exp %73 : vector<8x128xf32>
    %cst_32 = arith.constant 1.000000e+00 : f32
    %75 = vector.broadcast %cst_32 : f32 to vector<8x128xf32>
    %76 = arith.addf %75, %74 : vector<8x128xf32>
    %77 = arith.divf %75, %76 : vector<8x128xf32>
    %78 = arith.mulf %69, %53 : vector<8x128xf32>
    %79 = arith.mulf %63, %71 : vector<8x128xf32>
    %80 = arith.addf %78, %79 : vector<8x128xf32>
    %81 = math.tanh %80 : vector<8x128xf32>
    %82 = arith.mulf %77, %81 : vector<8x128xf32>
    %c0_33 = arith.constant 0 : index
    %c0_34 = arith.constant 0 : index
    %83 = vector.load %arg8[%c0_33, %c0_34] : memref<8x128xf32, #tpu.memory_space<vmem>>, vector<8x128xf32>
    tpu.vector_store %arg8[%c0_33, %c0_34], %82 {strides = array<i32>} : memref<8x128xf32, #tpu.memory_space<vmem>>, vector<8x128xf32>,
    %c0_35 = arith.constant 0 : index
    %c0_36 = arith.constant 0 : index
    %84 = vector.load %arg9[%c0_35, %c0_36] : memref<8x128xf32, #tpu.memory_space<vmem>>, vector<8x128xf32>
    tpu.vector_store %arg9[%c0_35, %c0_36], %80 {strides = array<i32>} : memref<8x128xf32, #tpu.memory_space<vmem>>, vector<8x128xf32>,
    %85 = arith.truncf %82 : vector<8x128xf32> to vector<8x128xbf16>
    %86 = arith.index_cast %7 : i32 to index
    %c0_37 = arith.constant 0 : index
    %c0_38 = arith.constant 0 : index
    %87 = vector.load %arg5[%86, %c0_37, %c0_38] : memref<8x8x128xbf16, #tpu.memory_space<vmem>>, vector<1x8x128xbf16>
    %88 = vector.shape_cast %87 : vector<1x8x128xbf16> to vector<8x128xbf16>
    %89 = vector.shape_cast %85 : vector<8x128xbf16> to vector<1x8x128xbf16>
    tpu.vector_store %arg5[%86, %c0_37, %c0_38], %89 {strides = array<i32>} : memref<8x8x128xbf16, #tpu.memory_space<vmem>>, vector<1x8x128xbf16>,
    %c1_i32 = arith.constant 1 : i32
    %c7_i32_39 = arith.constant 7 : i32
    %90 = arith.subi %c7_i32_39, %c1_i32 : i32
    %c0_40 = arith.constant 0 : index
    %91 = arith.index_cast %c1_i32 : i32 to index
    %c0_41 = arith.constant 0 : index
    %c0_42 = arith.constant 0 : index
    %92 = vector.load %arg1[%c0_40, %91, %c0_41, %c0_42] : memref<1x8x8x512xbf16, #tpu.memory_space<vmem>>, vector<1x1x8x512xbf16>
    %93 = vector.shape_cast %92 : vector<1x1x8x512xbf16> to vector<8x512xbf16>
    %c0_43 = arith.constant 0 : index
    %c0_44 = arith.constant 0 : index
    %94 = vector.load %arg6[%c0_43, %c0_44] : memref<8x128xf32, #tpu.memory_space<vmem>>, vector<8x128xf32>
    %c0_45 = arith.constant 0 : index
    %c0_46 = arith.constant 0 : index
    %95 = vector.load %arg7[%c0_45, %c0_46] : memref<8x128xf32, #tpu.memory_space<vmem>>, vector<8x128xf32>
    %96 = arith.extf %93 : vector<8x512xbf16> to vector<8x512xf32>
    %97 = arith.truncf %94 : vector<8x128xf32> to vector<8x128xbf16>
    %cst_47 = arith.constant dense<0.000000e+00> : vector<8x512xf32>
    %98 = tpu.matmul %97, %4, %cst_47 {dimension_numbers = #tpu.dot_dimension_numbers<[1], [0], [0], [1], [0, 0, 1, 1], [], []>} : vector<8x128xbf16>, vector<128x512xbf16>, vector<8x512xf32> -> vector<8x512xf32>
    %99 = arith.addf %96, %98 : vector<8x512xf32>
    %100 = vector.extract_strided_slice %99 {offsets = [0, 0], sizes = [8, 128], strides = [1, 1]} : vector<8x512xf32> to vector<8x128xf32>
    %101 = arith.negf %100 : vector<8x128xf32>
    %102 = math.exp %101 : vector<8x128xf32>
    %cst_48 = arith.constant 1.000000e+00 : f32
    %103 = vector.broadcast %cst_48 : f32 to vector<8x128xf32>
    %104 = arith.addf %103, %102 : vector<8x128xf32>
    %105 = arith.divf %103, %104 : vector<8x128xf32>
    %106 = vector.extract_strided_slice %99 {offsets = [0, 128], sizes = [8, 128], strides = [1, 1]} : vector<8x512xf32> to vector<8x128xf32>
    %107 = arith.negf %106 : vector<8x128xf32>
    %108 = math.exp %107 : vector<8x128xf32>
    %cst_49 = arith.constant 1.000000e+00 : f32
    %109 = vector.broadcast %cst_49 : f32 to vector<8x128xf32>
    %110 = arith.addf %109, %108 : vector<8x128xf32>
    %111 = arith.divf %109, %110 : vector<8x128xf32>
    %112 = vector.extract_strided_slice %99 {offsets = [0, 256], sizes = [8, 128], strides = [1, 1]} : vector<8x512xf32> to vector<8x128xf32>
    %113 = math.tanh %112 : vector<8x128xf32>
    %114 = vector.extract_strided_slice %99 {offsets = [0, 384], sizes = [8, 128], strides = [1, 1]} : vector<8x512xf32> to vector<8x128xf32>
    %115 = arith.negf %114 : vector<8x128xf32>
    %116 = math.exp %115 : vector<8x128xf32>
    %cst_50 = arith.constant 1.000000e+00 : f32
    %117 = vector.broadcast %cst_50 : f32 to vector<8x128xf32>
    %118 = arith.addf %117, %116 : vector<8x128xf32>
    %119 = arith.divf %117, %118 : vector<8x128xf32>
    %120 = arith.mulf %111, %95 : vector<8x128xf32>
    %121 = arith.mulf %105, %113 : vector<8x128xf32>
    %122 = arith.addf %120, %121 : vector<8x128xf32>
    %123 = math.tanh %122 : vector<8x128xf32>
    %124 = arith.mulf %119, %123 : vector<8x128xf32>
    %c0_51 = arith.constant 0 : index
    %c0_52 = arith.constant 0 : index
    %125 = vector.load %arg6[%c0_51, %c0_52] : memref<8x128xf32, #tpu.memory_space<vmem>>, vector<8x128xf32>
    tpu.vector_store %arg6[%c0_51, %c0_52], %124 {strides = array<i32>} : memref<8x128xf32, #tpu.memory_space<vmem>>, vector<8x128xf32>,
    %c0_53 = arith.constant 0 : index
    %c0_54 = arith.constant 0 : index
    %126 = vector.load %arg7[%c0_53, %c0_54] : memref<8x128xf32, #tpu.memory_space<vmem>>, vector<8x128xf32>
    tpu.vector_store %arg7[%c0_53, %c0_54], %122 {strides = array<i32>} : memref<8x128xf32, #tpu.memory_space<vmem>>, vector<8x128xf32>,
    %127 = arith.truncf %124 : vector<8x128xf32> to vector<8x128xbf16>
    %128 = arith.index_cast %c1_i32 : i32 to index
    %c0_55 = arith.constant 0 : index
    %c0_56 = arith.constant 0 : index
    %129 = vector.load %arg4[%128, %c0_55, %c0_56] : memref<8x8x128xbf16, #tpu.memory_space<vmem>>, vector<1x8x128xbf16>
    %130 = vector.shape_cast %129 : vector<1x8x128xbf16> to vector<8x128xbf16>
    %131 = vector.shape_cast %127 : vector<8x128xbf16> to vector<1x8x128xbf16>
    tpu.vector_store %arg4[%128, %c0_55, %c0_56], %131 {strides = array<i32>} : memref<8x8x128xbf16, #tpu.memory_space<vmem>>, vector<1x8x128xbf16>,
    %c0_57 = arith.constant 0 : index
    %132 = arith.index_cast %90 : i32 to index
    %c0_58 = arith.constant 0 : index
    %c0_59 = arith.constant 0 : index
    %133 = vector.load %arg2[%c0_57, %132, %c0_58, %c0_59] : memref<1x8x8x512xbf16, #tpu.memory_space<vmem>>, vector<1x1x8x512xbf16>
    %134 = vector.shape_cast %133 : vector<1x1x8x512xbf16> to vector<8x512xbf16>
    %c0_60 = arith.constant 0 : index
    %c0_61 = arith.constant 0 : index
    %135 = vector.load %arg8[%c0_60, %c0_61] : memref<8x128xf32, #tpu.memory_space<vmem>>, vector<8x128xf32>
    %c0_62 = arith.constant 0 : index
    %c0_63 = arith.constant 0 : index
    %136 = vector.load %arg9[%c0_62, %c0_63] : memref<8x128xf32, #tpu.memory_space<vmem>>, vector<8x128xf32>
    %137 = arith.extf %134 : vector<8x512xbf16> to vector<8x512xf32>
    %138 = arith.truncf %135 : vector<8x128xf32> to vector<8x128xbf16>
    %cst_64 = arith.constant dense<0.000000e+00> : vector<8x512xf32>
    %139 = tpu.matmul %138, %6, %cst_64 {dimension_numbers = #tpu.dot_dimension_numbers<[1], [0], [0], [1], [0, 0, 1, 1], [], []>} : vector<8x128xbf16>, vector<128x512xbf16>, vector<8x512xf32> -> vector<8x512xf32>
    %140 = arith.addf %137, %139 : vector<8x512xf32>
    %141 = vector.extract_strided_slice %140 {offsets = [0, 0], sizes = [8, 128], strides = [1, 1]} : vector<8x512xf32> to vector<8x128xf32>
    %142 = arith.negf %141 : vector<8x128xf32>
    %143 = math.exp %142 : vector<8x128xf32>
    %cst_65 = arith.constant 1.000000e+00 : f32
    %144 = vector.broadcast %cst_65 : f32 to vector<8x128xf32>
    %145 = arith.addf %144, %143 : vector<8x128xf32>
    %146 = arith.divf %144, %145 : vector<8x128xf32>
    %147 = vector.extract_strided_slice %140 {offsets = [0, 128], sizes = [8, 128], strides = [1, 1]} : vector<8x512xf32> to vector<8x128xf32>
    %148 = arith.negf %147 : vector<8x128xf32>
    %149 = math.exp %148 : vector<8x128xf32>
    %cst_66 = arith.constant 1.000000e+00 : f32
    %150 = vector.broadcast %cst_66 : f32 to vector<8x128xf32>
    %151 = arith.addf %150, %149 : vector<8x128xf32>
    %152 = arith.divf %150, %151 : vector<8x128xf32>
    %153 = vector.extract_strided_slice %140 {offsets = [0, 256], sizes = [8, 128], strides = [1, 1]} : vector<8x512xf32> to vector<8x128xf32>
    %154 = math.tanh %153 : vector<8x128xf32>
    %155 = vector.extract_strided_slice %140 {offsets = [0, 384], sizes = [8, 128], strides = [1, 1]} : vector<8x512xf32> to vector<8x128xf32>
    %156 = arith.negf %155 : vector<8x128xf32>
    %157 = math.exp %156 : vector<8x128xf32>
    %cst_67 = arith.constant 1.000000e+00 : f32
    %158 = vector.broadcast %cst_67 : f32 to vector<8x128xf32>
    %159 = arith.addf %158, %157 : vector<8x128xf32>
    %160 = arith.divf %158, %159 : vector<8x128xf32>
    %161 = arith.mulf %152, %136 : vector<8x128xf32>
    %162 = arith.mulf %146, %154 : vector<8x128xf32>
    %163 = arith.addf %161, %162 : vector<8x128xf32>
    %164 = math.tanh %163 : vector<8x128xf32>
    %165 = arith.mulf %160, %164 : vector<8x128xf32>
    %c0_68 = arith.constant 0 : index
    %c0_69 = arith.constant 0 : index
    %166 = vector.load %arg8[%c0_68, %c0_69] : memref<8x128xf32, #tpu.memory_space<vmem>>, vector<8x128xf32>
    tpu.vector_store %arg8[%c0_68, %c0_69], %165 {strides = array<i32>} : memref<8x128xf32, #tpu.memory_space<vmem>>, vector<8x128xf32>,
    %c0_70 = arith.constant 0 : index
    %c0_71 = arith.constant 0 : index
    %167 = vector.load %arg9[%c0_70, %c0_71] : memref<8x128xf32, #tpu.memory_space<vmem>>, vector<8x128xf32>
    tpu.vector_store %arg9[%c0_70, %c0_71], %163 {strides = array<i32>} : memref<8x128xf32, #tpu.memory_space<vmem>>, vector<8x128xf32>,
    %168 = arith.truncf %165 : vector<8x128xf32> to vector<8x128xbf16>
    %169 = arith.index_cast %90 : i32 to index
    %c0_72 = arith.constant 0 : index
    %c0_73 = arith.constant 0 : index
    %170 = vector.load %arg5[%169, %c0_72, %c0_73] : memref<8x8x128xbf16, #tpu.memory_space<vmem>>, vector<1x8x128xbf16>
    %171 = vector.shape_cast %170 : vector<1x8x128xbf16> to vector<8x128xbf16>
    %172 = vector.shape_cast %168 : vector<8x128xbf16> to vector<1x8x128xbf16>
    tpu.vector_store %arg5[%169, %c0_72, %c0_73], %172 {strides = array<i32>} : memref<8x8x128xbf16, #tpu.memory_space<vmem>>, vector<1x8x128xbf16>,
    %c2_i32 = arith.constant 2 : i32
    %c7_i32_74 = arith.constant 7 : i32
    %173 = arith.subi %c7_i32_74, %c2_i32 : i32
    %c0_75 = arith.constant 0 : index
    %174 = arith.index_cast %c2_i32 : i32 to index
    %c0_76 = arith.constant 0 : index
    %c0_77 = arith.constant 0 : index
    %175 = vector.load %arg1[%c0_75, %174, %c0_76, %c0_77] : memref<1x8x8x512xbf16, #tpu.memory_space<vmem>>, vector<1x1x8x512xbf16>
    %176 = vector.shape_cast %175 : vector<1x1x8x512xbf16> to vector<8x512xbf16>
    %c0_78 = arith.constant 0 : index
    %c0_79 = arith.constant 0 : index
    %177 = vector.load %arg6[%c0_78, %c0_79] : memref<8x128xf32, #tpu.memory_space<vmem>>, vector<8x128xf32>
    %c0_80 = arith.constant 0 : index
    %c0_81 = arith.constant 0 : index
    %178 = vector.load %arg7[%c0_80, %c0_81] : memref<8x128xf32, #tpu.memory_space<vmem>>, vector<8x128xf32>
    %179 = arith.extf %176 : vector<8x512xbf16> to vector<8x512xf32>
    %180 = arith.truncf %177 : vector<8x128xf32> to vector<8x128xbf16>
    %cst_82 = arith.constant dense<0.000000e+00> : vector<8x512xf32>
    %181 = tpu.matmul %180, %4, %cst_82 {dimension_numbers = #tpu.dot_dimension_numbers<[1], [0], [0], [1], [0, 0, 1, 1], [], []>} : vector<8x128xbf16>, vector<128x512xbf16>, vector<8x512xf32> -> vector<8x512xf32>
    %182 = arith.addf %179, %181 : vector<8x512xf32>
    %183 = vector.extract_strided_slice %182 {offsets = [0, 0], sizes = [8, 128], strides = [1, 1]} : vector<8x512xf32> to vector<8x128xf32>
    %184 = arith.negf %183 : vector<8x128xf32>
    %185 = math.exp %184 : vector<8x128xf32>
    %cst_83 = arith.constant 1.000000e+00 : f32
    %186 = vector.broadcast %cst_83 : f32 to vector<8x128xf32>
    %187 = arith.addf %186, %185 : vector<8x128xf32>
    %188 = arith.divf %186, %187 : vector<8x128xf32>
    %189 = vector.extract_strided_slice %182 {offsets = [0, 128], sizes = [8, 128], strides = [1, 1]} : vector<8x512xf32> to vector<8x128xf32>
    %190 = arith.negf %189 : vector<8x128xf32>
    %191 = math.exp %190 : vector<8x128xf32>
    %cst_84 = arith.constant 1.000000e+00 : f32
    %192 = vector.broadcast %cst_84 : f32 to vector<8x128xf32>
    %193 = arith.addf %192, %191 : vector<8x128xf32>
    %194 = arith.divf %192, %193 : vector<8x128xf32>
    %195 = vector.extract_strided_slice %182 {offsets = [0, 256], sizes = [8, 128], strides = [1, 1]} : vector<8x512xf32> to vector<8x128xf32>
    %196 = math.tanh %195 : vector<8x128xf32>
    %197 = vector.extract_strided_slice %182 {offsets = [0, 384], sizes = [8, 128], strides = [1, 1]} : vector<8x512xf32> to vector<8x128xf32>
    %198 = arith.negf %197 : vector<8x128xf32>
    %199 = math.exp %198 : vector<8x128xf32>
    %cst_85 = arith.constant 1.000000e+00 : f32
    %200 = vector.broadcast %cst_85 : f32 to vector<8x128xf32>
    %201 = arith.addf %200, %199 : vector<8x128xf32>
    %202 = arith.divf %200, %201 : vector<8x128xf32>
    %203 = arith.mulf %194, %178 : vector<8x128xf32>
    %204 = arith.mulf %188, %196 : vector<8x128xf32>
    %205 = arith.addf %203, %204 : vector<8x128xf32>
    %206 = math.tanh %205 : vector<8x128xf32>
    %207 = arith.mulf %202, %206 : vector<8x128xf32>
    %c0_86 = arith.constant 0 : index
    %c0_87 = arith.constant 0 : index
    %208 = vector.load %arg6[%c0_86, %c0_87] : memref<8x128xf32, #tpu.memory_space<vmem>>, vector<8x128xf32>
    tpu.vector_store %arg6[%c0_86, %c0_87], %207 {strides = array<i32>} : memref<8x128xf32, #tpu.memory_space<vmem>>, vector<8x128xf32>,
    %c0_88 = arith.constant 0 : index
    %c0_89 = arith.constant 0 : index
    %209 = vector.load %arg7[%c0_88, %c0_89] : memref<8x128xf32, #tpu.memory_space<vmem>>, vector<8x128xf32>
    tpu.vector_store %arg7[%c0_88, %c0_89], %205 {strides = array<i32>} : memref<8x128xf32, #tpu.memory_space<vmem>>, vector<8x128xf32>,
    %210 = arith.truncf %207 : vector<8x128xf32> to vector<8x128xbf16>
    %211 = arith.index_cast %c2_i32 : i32 to index
    %c0_90 = arith.constant 0 : index
    %c0_91 = arith.constant 0 : index
    %212 = vector.load %arg4[%211, %c0_90, %c0_91] : memref<8x8x128xbf16, #tpu.memory_space<vmem>>, vector<1x8x128xbf16>
    %213 = vector.shape_cast %212 : vector<1x8x128xbf16> to vector<8x128xbf16>
    %214 = vector.shape_cast %210 : vector<8x128xbf16> to vector<1x8x128xbf16>
    tpu.vector_store %arg4[%211, %c0_90, %c0_91], %214 {strides = array<i32>} : memref<8x8x128xbf16, #tpu.memory_space<vmem>>, vector<1x8x128xbf16>,
    %c0_92 = arith.constant 0 : index
    %215 = arith.index_cast %173 : i32 to index
    %c0_93 = arith.constant 0 : index
    %c0_94 = arith.constant 0 : index
    %216 = vector.load %arg2[%c0_92, %215, %c0_93, %c0_94] : memref<1x8x8x512xbf16, #tpu.memory_space<vmem>>, vector<1x1x8x512xbf16>
    %217 = vector.shape_cast %216 : vector<1x1x8x512xbf16> to vector<8x512xbf16>
    %c0_95 = arith.constant 0 : index
    %c0_96 = arith.constant 0 : index
    %218 = vector.load %arg8[%c0_95, %c0_96] : memref<8x128xf32, #tpu.memory_space<vmem>>, vector<8x128xf32>
    %c0_97 = arith.constant 0 : index
    %c0_98 = arith.constant 0 : index
    %219 = vector.load %arg9[%c0_97, %c0_98] : memref<8x128xf32, #tpu.memory_space<vmem>>, vector<8x128xf32>
    %220 = arith.extf %217 : vector<8x512xbf16> to vector<8x512xf32>
    %221 = arith.truncf %218 : vector<8x128xf32> to vector<8x128xbf16>
    %cst_99 = arith.constant dense<0.000000e+00> : vector<8x512xf32>
    %222 = tpu.matmul %221, %6, %cst_99 {dimension_numbers = #tpu.dot_dimension_numbers<[1], [0], [0], [1], [0, 0, 1, 1], [], []>} : vector<8x128xbf16>, vector<128x512xbf16>, vector<8x512xf32> -> vector<8x512xf32>
    %223 = arith.addf %220, %222 : vector<8x512xf32>
    %224 = vector.extract_strided_slice %223 {offsets = [0, 0], sizes = [8, 128], strides = [1, 1]} : vector<8x512xf32> to vector<8x128xf32>
    %225 = arith.negf %224 : vector<8x128xf32>
    %226 = math.exp %225 : vector<8x128xf32>
    %cst_100 = arith.constant 1.000000e+00 : f32
    %227 = vector.broadcast %cst_100 : f32 to vector<8x128xf32>
    %228 = arith.addf %227, %226 : vector<8x128xf32>
    %229 = arith.divf %227, %228 : vector<8x128xf32>
    %230 = vector.extract_strided_slice %223 {offsets = [0, 128], sizes = [8, 128], strides = [1, 1]} : vector<8x512xf32> to vector<8x128xf32>
    %231 = arith.negf %230 : vector<8x128xf32>
    %232 = math.exp %231 : vector<8x128xf32>
    %cst_101 = arith.constant 1.000000e+00 : f32
    %233 = vector.broadcast %cst_101 : f32 to vector<8x128xf32>
    %234 = arith.addf %233, %232 : vector<8x128xf32>
    %235 = arith.divf %233, %234 : vector<8x128xf32>
    %236 = vector.extract_strided_slice %223 {offsets = [0, 256], sizes = [8, 128], strides = [1, 1]} : vector<8x512xf32> to vector<8x128xf32>
    %237 = math.tanh %236 : vector<8x128xf32>
    %238 = vector.extract_strided_slice %223 {offsets = [0, 384], sizes = [8, 128], strides = [1, 1]} : vector<8x512xf32> to vector<8x128xf32>
    %239 = arith.negf %238 : vector<8x128xf32>
    %240 = math.exp %239 : vector<8x128xf32>
    %cst_102 = arith.constant 1.000000e+00 : f32
    %241 = vector.broadcast %cst_102 : f32 to vector<8x128xf32>
    %242 = arith.addf %241, %240 : vector<8x128xf32>
    %243 = arith.divf %241, %242 : vector<8x128xf32>
    %244 = arith.mulf %235, %219 : vector<8x128xf32>
    %245 = arith.mulf %229, %237 : vector<8x128xf32>
    %246 = arith.addf %244, %245 : vector<8x128xf32>
    %247 = math.tanh %246 : vector<8x128xf32>
    %248 = arith.mulf %243, %247 : vector<8x128xf32>
    %c0_103 = arith.constant 0 : index
    %c0_104 = arith.constant 0 : index
    %249 = vector.load %arg8[%c0_103, %c0_104] : memref<8x128xf32, #tpu.memory_space<vmem>>, vector<8x128xf32>
    tpu.vector_store %arg8[%c0_103, %c0_104], %248 {strides = array<i32>} : memref<8x128xf32, #tpu.memory_space<vmem>>, vector<8x128xf32>,
    %c0_105 = arith.constant 0 : index
    %c0_106 = arith.constant 0 : index
    %250 = vector.load %arg9[%c0_105, %c0_106] : memref<8x128xf32, #tpu.memory_space<vmem>>, vector<8x128xf32>
    tpu.vector_store %arg9[%c0_105, %c0_106], %246 {strides = array<i32>} : memref<8x128xf32, #tpu.memory_space<vmem>>, vector<8x128xf32>,
    %251 = arith.truncf %248 : vector<8x128xf32> to vector<8x128xbf16>
    %252 = arith.index_cast %173 : i32 to index
    %c0_107 = arith.constant 0 : index
    %c0_108 = arith.constant 0 : index
    %253 = vector.load %arg5[%252, %c0_107, %c0_108] : memref<8x8x128xbf16, #tpu.memory_space<vmem>>, vector<1x8x128xbf16>
    %254 = vector.shape_cast %253 : vector<1x8x128xbf16> to vector<8x128xbf16>
    %255 = vector.shape_cast %251 : vector<8x128xbf16> to vector<1x8x128xbf16>
    tpu.vector_store %arg5[%252, %c0_107, %c0_108], %255 {strides = array<i32>} : memref<8x8x128xbf16, #tpu.memory_space<vmem>>, vector<1x8x128xbf16>,
    %c3_i32 = arith.constant 3 : i32
    %c7_i32_109 = arith.constant 7 : i32
    %256 = arith.subi %c7_i32_109, %c3_i32 : i32
    %c0_110 = arith.constant 0 : index
    %257 = arith.index_cast %c3_i32 : i32 to index
    %c0_111 = arith.constant 0 : index
    %c0_112 = arith.constant 0 : index
    %258 = vector.load %arg1[%c0_110, %257, %c0_111, %c0_112] : memref<1x8x8x512xbf16, #tpu.memory_space<vmem>>, vector<1x1x8x512xbf16>
    %259 = vector.shape_cast %258 : vector<1x1x8x512xbf16> to vector<8x512xbf16>
    %c0_113 = arith.constant 0 : index
    %c0_114 = arith.constant 0 : index
    %260 = vector.load %arg6[%c0_113, %c0_114] : memref<8x128xf32, #tpu.memory_space<vmem>>, vector<8x128xf32>
    %c0_115 = arith.constant 0 : index
    %c0_116 = arith.constant 0 : index
    %261 = vector.load %arg7[%c0_115, %c0_116] : memref<8x128xf32, #tpu.memory_space<vmem>>, vector<8x128xf32>
    %262 = arith.extf %259 : vector<8x512xbf16> to vector<8x512xf32>
    %263 = arith.truncf %260 : vector<8x128xf32> to vector<8x128xbf16>
    %cst_117 = arith.constant dense<0.000000e+00> : vector<8x512xf32>
    %264 = tpu.matmul %263, %4, %cst_117 {dimension_numbers = #tpu.dot_dimension_numbers<[1], [0], [0], [1], [0, 0, 1, 1], [], []>} : vector<8x128xbf16>, vector<128x512xbf16>, vector<8x512xf32> -> vector<8x512xf32>
    %265 = arith.addf %262, %264 : vector<8x512xf32>
    %266 = vector.extract_strided_slice %265 {offsets = [0, 0], sizes = [8, 128], strides = [1, 1]} : vector<8x512xf32> to vector<8x128xf32>
    %267 = arith.negf %266 : vector<8x128xf32>
    %268 = math.exp %267 : vector<8x128xf32>
    %cst_118 = arith.constant 1.000000e+00 : f32
    %269 = vector.broadcast %cst_118 : f32 to vector<8x128xf32>
    %270 = arith.addf %269, %268 : vector<8x128xf32>
    %271 = arith.divf %269, %270 : vector<8x128xf32>
    %272 = vector.extract_strided_slice %265 {offsets = [0, 128], sizes = [8, 128], strides = [1, 1]} : vector<8x512xf32> to vector<8x128xf32>
    %273 = arith.negf %272 : vector<8x128xf32>
    %274 = math.exp %273 : vector<8x128xf32>
    %cst_119 = arith.constant 1.000000e+00 : f32
    %275 = vector.broadcast %cst_119 : f32 to vector<8x128xf32>
    %276 = arith.addf %275, %274 : vector<8x128xf32>
    %277 = arith.divf %275, %276 : vector<8x128xf32>
    %278 = vector.extract_strided_slice %265 {offsets = [0, 256], sizes = [8, 128], strides = [1, 1]} : vector<8x512xf32> to vector<8x128xf32>
    %279 = math.tanh %278 : vector<8x128xf32>
    %280 = vector.extract_strided_slice %265 {offsets = [0, 384], sizes = [8, 128], strides = [1, 1]} : vector<8x512xf32> to vector<8x128xf32>
    %281 = arith.negf %280 : vector<8x128xf32>
    %282 = math.exp %281 : vector<8x128xf32>
    %cst_120 = arith.constant 1.000000e+00 : f32
    %283 = vector.broadcast %cst_120 : f32 to vector<8x128xf32>
    %284 = arith.addf %283, %282 : vector<8x128xf32>
    %285 = arith.divf %283, %284 : vector<8x128xf32>
    %286 = arith.mulf %277, %261 : vector<8x128xf32>
    %287 = arith.mulf %271, %279 : vector<8x128xf32>
    %288 = arith.addf %286, %287 : vector<8x128xf32>
    %289 = math.tanh %288 : vector<8x128xf32>
    %290 = arith.mulf %285, %289 : vector<8x128xf32>
    %c0_121 = arith.constant 0 : index
    %c0_122 = arith.constant 0 : index
    %291 = vector.load %arg6[%c0_121, %c0_122] : memref<8x128xf32, #tpu.memory_space<vmem>>, vector<8x128xf32>
    tpu.vector_store %arg6[%c0_121, %c0_122], %290 {strides = array<i32>} : memref<8x128xf32, #tpu.memory_space<vmem>>, vector<8x128xf32>,
    %c0_123 = arith.constant 0 : index
    %c0_124 = arith.constant 0 : index
    %292 = vector.load %arg7[%c0_123, %c0_124] : memref<8x128xf32, #tpu.memory_space<vmem>>, vector<8x128xf32>
    tpu.vector_store %arg7[%c0_123, %c0_124], %288 {strides = array<i32>} : memref<8x128xf32, #tpu.memory_space<vmem>>, vector<8x128xf32>,
    %293 = arith.truncf %290 : vector<8x128xf32> to vector<8x128xbf16>
    %294 = arith.index_cast %c3_i32 : i32 to index
    %c0_125 = arith.constant 0 : index
    %c0_126 = arith.constant 0 : index
    %295 = vector.load %arg4[%294, %c0_125, %c0_126] : memref<8x8x128xbf16, #tpu.memory_space<vmem>>, vector<1x8x128xbf16>
    %296 = vector.shape_cast %295 : vector<1x8x128xbf16> to vector<8x128xbf16>
    %297 = vector.shape_cast %293 : vector<8x128xbf16> to vector<1x8x128xbf16>
    tpu.vector_store %arg4[%294, %c0_125, %c0_126], %297 {strides = array<i32>} : memref<8x8x128xbf16, #tpu.memory_space<vmem>>, vector<1x8x128xbf16>,
    %c0_127 = arith.constant 0 : index
    %298 = arith.index_cast %256 : i32 to index
    %c0_128 = arith.constant 0 : index
    %c0_129 = arith.constant 0 : index
    %299 = vector.load %arg2[%c0_127, %298, %c0_128, %c0_129] : memref<1x8x8x512xbf16, #tpu.memory_space<vmem>>, vector<1x1x8x512xbf16>
    %300 = vector.shape_cast %299 : vector<1x1x8x512xbf16> to vector<8x512xbf16>
    %c0_130 = arith.constant 0 : index
    %c0_131 = arith.constant 0 : index
    %301 = vector.load %arg8[%c0_130, %c0_131] : memref<8x128xf32, #tpu.memory_space<vmem>>, vector<8x128xf32>
    %c0_132 = arith.constant 0 : index
    %c0_133 = arith.constant 0 : index
    %302 = vector.load %arg9[%c0_132, %c0_133] : memref<8x128xf32, #tpu.memory_space<vmem>>, vector<8x128xf32>
    %303 = arith.extf %300 : vector<8x512xbf16> to vector<8x512xf32>
    %304 = arith.truncf %301 : vector<8x128xf32> to vector<8x128xbf16>
    %cst_134 = arith.constant dense<0.000000e+00> : vector<8x512xf32>
    %305 = tpu.matmul %304, %6, %cst_134 {dimension_numbers = #tpu.dot_dimension_numbers<[1], [0], [0], [1], [0, 0, 1, 1], [], []>} : vector<8x128xbf16>, vector<128x512xbf16>, vector<8x512xf32> -> vector<8x512xf32>
    %306 = arith.addf %303, %305 : vector<8x512xf32>
    %307 = vector.extract_strided_slice %306 {offsets = [0, 0], sizes = [8, 128], strides = [1, 1]} : vector<8x512xf32> to vector<8x128xf32>
    %308 = arith.negf %307 : vector<8x128xf32>
    %309 = math.exp %308 : vector<8x128xf32>
    %cst_135 = arith.constant 1.000000e+00 : f32
    %310 = vector.broadcast %cst_135 : f32 to vector<8x128xf32>
    %311 = arith.addf %310, %309 : vector<8x128xf32>
    %312 = arith.divf %310, %311 : vector<8x128xf32>
    %313 = vector.extract_strided_slice %306 {offsets = [0, 128], sizes = [8, 128], strides = [1, 1]} : vector<8x512xf32> to vector<8x128xf32>
    %314 = arith.negf %313 : vector<8x128xf32>
    %315 = math.exp %314 : vector<8x128xf32>
    %cst_136 = arith.constant 1.000000e+00 : f32
    %316 = vector.broadcast %cst_136 : f32 to vector<8x128xf32>
    %317 = arith.addf %316, %315 : vector<8x128xf32>
    %318 = arith.divf %316, %317 : vector<8x128xf32>
    %319 = vector.extract_strided_slice %306 {offsets = [0, 256], sizes = [8, 128], strides = [1, 1]} : vector<8x512xf32> to vector<8x128xf32>
    %320 = math.tanh %319 : vector<8x128xf32>
    %321 = vector.extract_strided_slice %306 {offsets = [0, 384], sizes = [8, 128], strides = [1, 1]} : vector<8x512xf32> to vector<8x128xf32>
    %322 = arith.negf %321 : vector<8x128xf32>
    %323 = math.exp %322 : vector<8x128xf32>
    %cst_137 = arith.constant 1.000000e+00 : f32
    %324 = vector.broadcast %cst_137 : f32 to vector<8x128xf32>
    %325 = arith.addf %324, %323 : vector<8x128xf32>
    %326 = arith.divf %324, %325 : vector<8x128xf32>
    %327 = arith.mulf %318, %302 : vector<8x128xf32>
    %328 = arith.mulf %312, %320 : vector<8x128xf32>
    %329 = arith.addf %327, %328 : vector<8x128xf32>
    %330 = math.tanh %329 : vector<8x128xf32>
    %331 = arith.mulf %326, %330 : vector<8x128xf32>
    %c0_138 = arith.constant 0 : index
    %c0_139 = arith.constant 0 : index
    %332 = vector.load %arg8[%c0_138, %c0_139] : memref<8x128xf32, #tpu.memory_space<vmem>>, vector<8x128xf32>
    tpu.vector_store %arg8[%c0_138, %c0_139], %331 {strides = array<i32>} : memref<8x128xf32, #tpu.memory_space<vmem>>, vector<8x128xf32>,
    %c0_140 = arith.constant 0 : index
    %c0_141 = arith.constant 0 : index
    %333 = vector.load %arg9[%c0_140, %c0_141] : memref<8x128xf32, #tpu.memory_space<vmem>>, vector<8x128xf32>
    tpu.vector_store %arg9[%c0_140, %c0_141], %329 {strides = array<i32>} : memref<8x128xf32, #tpu.memory_space<vmem>>, vector<8x128xf32>,
    %334 = arith.truncf %331 : vector<8x128xf32> to vector<8x128xbf16>
    %335 = arith.index_cast %256 : i32 to index
    %c0_142 = arith.constant 0 : index
    %c0_143 = arith.constant 0 : index
    %336 = vector.load %arg5[%335, %c0_142, %c0_143] : memref<8x8x128xbf16, #tpu.memory_space<vmem>>, vector<1x8x128xbf16>
    %337 = vector.shape_cast %336 : vector<1x8x128xbf16> to vector<8x128xbf16>
    %338 = vector.shape_cast %334 : vector<8x128xbf16> to vector<1x8x128xbf16>
    tpu.vector_store %arg5[%335, %c0_142, %c0_143], %338 {strides = array<i32>} : memref<8x8x128xbf16, #tpu.memory_space<vmem>>, vector<1x8x128xbf16>,
    %c4_i32 = arith.constant 4 : i32
    %c7_i32_144 = arith.constant 7 : i32
    %339 = arith.subi %c7_i32_144, %c4_i32 : i32
    %c0_145 = arith.constant 0 : index
    %340 = arith.index_cast %c4_i32 : i32 to index
    %c0_146 = arith.constant 0 : index
    %c0_147 = arith.constant 0 : index
    %341 = vector.load %arg1[%c0_145, %340, %c0_146, %c0_147] : memref<1x8x8x512xbf16, #tpu.memory_space<vmem>>, vector<1x1x8x512xbf16>
    %342 = vector.shape_cast %341 : vector<1x1x8x512xbf16> to vector<8x512xbf16>
    %c0_148 = arith.constant 0 : index
    %c0_149 = arith.constant 0 : index
    %343 = vector.load %arg6[%c0_148, %c0_149] : memref<8x128xf32, #tpu.memory_space<vmem>>, vector<8x128xf32>
    %c0_150 = arith.constant 0 : index
    %c0_151 = arith.constant 0 : index
    %344 = vector.load %arg7[%c0_150, %c0_151] : memref<8x128xf32, #tpu.memory_space<vmem>>, vector<8x128xf32>
    %345 = arith.extf %342 : vector<8x512xbf16> to vector<8x512xf32>
    %346 = arith.truncf %343 : vector<8x128xf32> to vector<8x128xbf16>
    %cst_152 = arith.constant dense<0.000000e+00> : vector<8x512xf32>
    %347 = tpu.matmul %346, %4, %cst_152 {dimension_numbers = #tpu.dot_dimension_numbers<[1], [0], [0], [1], [0, 0, 1, 1], [], []>} : vector<8x128xbf16>, vector<128x512xbf16>, vector<8x512xf32> -> vector<8x512xf32>
    %348 = arith.addf %345, %347 : vector<8x512xf32>
    %349 = vector.extract_strided_slice %348 {offsets = [0, 0], sizes = [8, 128], strides = [1, 1]} : vector<8x512xf32> to vector<8x128xf32>
    %350 = arith.negf %349 : vector<8x128xf32>
    %351 = math.exp %350 : vector<8x128xf32>
    %cst_153 = arith.constant 1.000000e+00 : f32
    %352 = vector.broadcast %cst_153 : f32 to vector<8x128xf32>
    %353 = arith.addf %352, %351 : vector<8x128xf32>
    %354 = arith.divf %352, %353 : vector<8x128xf32>
    %355 = vector.extract_strided_slice %348 {offsets = [0, 128], sizes = [8, 128], strides = [1, 1]} : vector<8x512xf32> to vector<8x128xf32>
    %356 = arith.negf %355 : vector<8x128xf32>
    %357 = math.exp %356 : vector<8x128xf32>
    %cst_154 = arith.constant 1.000000e+00 : f32
    %358 = vector.broadcast %cst_154 : f32 to vector<8x128xf32>
    %359 = arith.addf %358, %357 : vector<8x128xf32>
    %360 = arith.divf %358, %359 : vector<8x128xf32>
    %361 = vector.extract_strided_slice %348 {offsets = [0, 256], sizes = [8, 128], strides = [1, 1]} : vector<8x512xf32> to vector<8x128xf32>
    %362 = math.tanh %361 : vector<8x128xf32>
    %363 = vector.extract_strided_slice %348 {offsets = [0, 384], sizes = [8, 128], strides = [1, 1]} : vector<8x512xf32> to vector<8x128xf32>
    %364 = arith.negf %363 : vector<8x128xf32>
    %365 = math.exp %364 : vector<8x128xf32>
    %cst_155 = arith.constant 1.000000e+00 : f32
    %366 = vector.broadcast %cst_155 : f32 to vector<8x128xf32>
    %367 = arith.addf %366, %365 : vector<8x128xf32>
    %368 = arith.divf %366, %367 : vector<8x128xf32>
    %369 = arith.mulf %360, %344 : vector<8x128xf32>
    %370 = arith.mulf %354, %362 : vector<8x128xf32>
    %371 = arith.addf %369, %370 : vector<8x128xf32>
    %372 = math.tanh %371 : vector<8x128xf32>
    %373 = arith.mulf %368, %372 : vector<8x128xf32>
    %c0_156 = arith.constant 0 : index
    %c0_157 = arith.constant 0 : index
    %374 = vector.load %arg6[%c0_156, %c0_157] : memref<8x128xf32, #tpu.memory_space<vmem>>, vector<8x128xf32>
    tpu.vector_store %arg6[%c0_156, %c0_157], %373 {strides = array<i32>} : memref<8x128xf32, #tpu.memory_space<vmem>>, vector<8x128xf32>,
    %c0_158 = arith.constant 0 : index
    %c0_159 = arith.constant 0 : index
    %375 = vector.load %arg7[%c0_158, %c0_159] : memref<8x128xf32, #tpu.memory_space<vmem>>, vector<8x128xf32>
    tpu.vector_store %arg7[%c0_158, %c0_159], %371 {strides = array<i32>} : memref<8x128xf32, #tpu.memory_space<vmem>>, vector<8x128xf32>,
    %376 = arith.truncf %373 : vector<8x128xf32> to vector<8x128xbf16>
    %377 = arith.index_cast %c4_i32 : i32 to index
    %c0_160 = arith.constant 0 : index
    %c0_161 = arith.constant 0 : index
    %378 = vector.load %arg4[%377, %c0_160, %c0_161] : memref<8x8x128xbf16, #tpu.memory_space<vmem>>, vector<1x8x128xbf16>
    %379 = vector.shape_cast %378 : vector<1x8x128xbf16> to vector<8x128xbf16>
    %380 = vector.shape_cast %376 : vector<8x128xbf16> to vector<1x8x128xbf16>
    tpu.vector_store %arg4[%377, %c0_160, %c0_161], %380 {strides = array<i32>} : memref<8x8x128xbf16, #tpu.memory_space<vmem>>, vector<1x8x128xbf16>,
    %c0_162 = arith.constant 0 : index
    %381 = arith.index_cast %339 : i32 to index
    %c0_163 = arith.constant 0 : index
    %c0_164 = arith.constant 0 : index
    %382 = vector.load %arg2[%c0_162, %381, %c0_163, %c0_164] : memref<1x8x8x512xbf16, #tpu.memory_space<vmem>>, vector<1x1x8x512xbf16>
    %383 = vector.shape_cast %382 : vector<1x1x8x512xbf16> to vector<8x512xbf16>
    %c0_165 = arith.constant 0 : index
    %c0_166 = arith.constant 0 : index
    %384 = vector.load %arg8[%c0_165, %c0_166] : memref<8x128xf32, #tpu.memory_space<vmem>>, vector<8x128xf32>
    %c0_167 = arith.constant 0 : index
    %c0_168 = arith.constant 0 : index
    %385 = vector.load %arg9[%c0_167, %c0_168] : memref<8x128xf32, #tpu.memory_space<vmem>>, vector<8x128xf32>
    %386 = arith.extf %383 : vector<8x512xbf16> to vector<8x512xf32>
    %387 = arith.truncf %384 : vector<8x128xf32> to vector<8x128xbf16>
    %cst_169 = arith.constant dense<0.000000e+00> : vector<8x512xf32>
    %388 = tpu.matmul %387, %6, %cst_169 {dimension_numbers = #tpu.dot_dimension_numbers<[1], [0], [0], [1], [0, 0, 1, 1], [], []>} : vector<8x128xbf16>, vector<128x512xbf16>, vector<8x512xf32> -> vector<8x512xf32>
    %389 = arith.addf %386, %388 : vector<8x512xf32>
    %390 = vector.extract_strided_slice %389 {offsets = [0, 0], sizes = [8, 128], strides = [1, 1]} : vector<8x512xf32> to vector<8x128xf32>
    %391 = arith.negf %390 : vector<8x128xf32>
    %392 = math.exp %391 : vector<8x128xf32>
    %cst_170 = arith.constant 1.000000e+00 : f32
    %393 = vector.broadcast %cst_170 : f32 to vector<8x128xf32>
    %394 = arith.addf %393, %392 : vector<8x128xf32>
    %395 = arith.divf %393, %394 : vector<8x128xf32>
    %396 = vector.extract_strided_slice %389 {offsets = [0, 128], sizes = [8, 128], strides = [1, 1]} : vector<8x512xf32> to vector<8x128xf32>
    %397 = arith.negf %396 : vector<8x128xf32>
    %398 = math.exp %397 : vector<8x128xf32>
    %cst_171 = arith.constant 1.000000e+00 : f32
    %399 = vector.broadcast %cst_171 : f32 to vector<8x128xf32>
    %400 = arith.addf %399, %398 : vector<8x128xf32>
    %401 = arith.divf %399, %400 : vector<8x128xf32>
    %402 = vector.extract_strided_slice %389 {offsets = [0, 256], sizes = [8, 128], strides = [1, 1]} : vector<8x512xf32> to vector<8x128xf32>
    %403 = math.tanh %402 : vector<8x128xf32>
    %404 = vector.extract_strided_slice %389 {offsets = [0, 384], sizes = [8, 128], strides = [1, 1]} : vector<8x512xf32> to vector<8x128xf32>
    %405 = arith.negf %404 : vector<8x128xf32>
    %406 = math.exp %405 : vector<8x128xf32>
    %cst_172 = arith.constant 1.000000e+00 : f32
    %407 = vector.broadcast %cst_172 : f32 to vector<8x128xf32>
    %408 = arith.addf %407, %406 : vector<8x128xf32>
    %409 = arith.divf %407, %408 : vector<8x128xf32>
    %410 = arith.mulf %401, %385 : vector<8x128xf32>
    %411 = arith.mulf %395, %403 : vector<8x128xf32>
    %412 = arith.addf %410, %411 : vector<8x128xf32>
    %413 = math.tanh %412 : vector<8x128xf32>
    %414 = arith.mulf %409, %413 : vector<8x128xf32>
    %c0_173 = arith.constant 0 : index
    %c0_174 = arith.constant 0 : index
    %415 = vector.load %arg8[%c0_173, %c0_174] : memref<8x128xf32, #tpu.memory_space<vmem>>, vector<8x128xf32>
    tpu.vector_store %arg8[%c0_173, %c0_174], %414 {strides = array<i32>} : memref<8x128xf32, #tpu.memory_space<vmem>>, vector<8x128xf32>,
    %c0_175 = arith.constant 0 : index
    %c0_176 = arith.constant 0 : index
    %416 = vector.load %arg9[%c0_175, %c0_176] : memref<8x128xf32, #tpu.memory_space<vmem>>, vector<8x128xf32>
    tpu.vector_store %arg9[%c0_175, %c0_176], %412 {strides = array<i32>} : memref<8x128xf32, #tpu.memory_space<vmem>>, vector<8x128xf32>,
    %417 = arith.truncf %414 : vector<8x128xf32> to vector<8x128xbf16>
    %418 = arith.index_cast %339 : i32 to index
    %c0_177 = arith.constant 0 : index
    %c0_178 = arith.constant 0 : index
    %419 = vector.load %arg5[%418, %c0_177, %c0_178] : memref<8x8x128xbf16, #tpu.memory_space<vmem>>, vector<1x8x128xbf16>
    %420 = vector.shape_cast %419 : vector<1x8x128xbf16> to vector<8x128xbf16>
    %421 = vector.shape_cast %417 : vector<8x128xbf16> to vector<1x8x128xbf16>
    tpu.vector_store %arg5[%418, %c0_177, %c0_178], %421 {strides = array<i32>} : memref<8x8x128xbf16, #tpu.memory_space<vmem>>, vector<1x8x128xbf16>,
    %c5_i32 = arith.constant 5 : i32
    %c7_i32_179 = arith.constant 7 : i32
    %422 = arith.subi %c7_i32_179, %c5_i32 : i32
    %c0_180 = arith.constant 0 : index
    %423 = arith.index_cast %c5_i32 : i32 to index
    %c0_181 = arith.constant 0 : index
    %c0_182 = arith.constant 0 : index
    %424 = vector.load %arg1[%c0_180, %423, %c0_181, %c0_182] : memref<1x8x8x512xbf16, #tpu.memory_space<vmem>>, vector<1x1x8x512xbf16>
    %425 = vector.shape_cast %424 : vector<1x1x8x512xbf16> to vector<8x512xbf16>
    %c0_183 = arith.constant 0 : index
    %c0_184 = arith.constant 0 : index
    %426 = vector.load %arg6[%c0_183, %c0_184] : memref<8x128xf32, #tpu.memory_space<vmem>>, vector<8x128xf32>
    %c0_185 = arith.constant 0 : index
    %c0_186 = arith.constant 0 : index
    %427 = vector.load %arg7[%c0_185, %c0_186] : memref<8x128xf32, #tpu.memory_space<vmem>>, vector<8x128xf32>
    %428 = arith.extf %425 : vector<8x512xbf16> to vector<8x512xf32>
    %429 = arith.truncf %426 : vector<8x128xf32> to vector<8x128xbf16>
    %cst_187 = arith.constant dense<0.000000e+00> : vector<8x512xf32>
    %430 = tpu.matmul %429, %4, %cst_187 {dimension_numbers = #tpu.dot_dimension_numbers<[1], [0], [0], [1], [0, 0, 1, 1], [], []>} : vector<8x128xbf16>, vector<128x512xbf16>, vector<8x512xf32> -> vector<8x512xf32>
    %431 = arith.addf %428, %430 : vector<8x512xf32>
    %432 = vector.extract_strided_slice %431 {offsets = [0, 0], sizes = [8, 128], strides = [1, 1]} : vector<8x512xf32> to vector<8x128xf32>
    %433 = arith.negf %432 : vector<8x128xf32>
    %434 = math.exp %433 : vector<8x128xf32>
    %cst_188 = arith.constant 1.000000e+00 : f32
    %435 = vector.broadcast %cst_188 : f32 to vector<8x128xf32>
    %436 = arith.addf %435, %434 : vector<8x128xf32>
    %437 = arith.divf %435, %436 : vector<8x128xf32>
    %438 = vector.extract_strided_slice %431 {offsets = [0, 128], sizes = [8, 128], strides = [1, 1]} : vector<8x512xf32> to vector<8x128xf32>
    %439 = arith.negf %438 : vector<8x128xf32>
    %440 = math.exp %439 : vector<8x128xf32>
    %cst_189 = arith.constant 1.000000e+00 : f32
    %441 = vector.broadcast %cst_189 : f32 to vector<8x128xf32>
    %442 = arith.addf %441, %440 : vector<8x128xf32>
    %443 = arith.divf %441, %442 : vector<8x128xf32>
    %444 = vector.extract_strided_slice %431 {offsets = [0, 256], sizes = [8, 128], strides = [1, 1]} : vector<8x512xf32> to vector<8x128xf32>
    %445 = math.tanh %444 : vector<8x128xf32>
    %446 = vector.extract_strided_slice %431 {offsets = [0, 384], sizes = [8, 128], strides = [1, 1]} : vector<8x512xf32> to vector<8x128xf32>
    %447 = arith.negf %446 : vector<8x128xf32>
    %448 = math.exp %447 : vector<8x128xf32>
    %cst_190 = arith.constant 1.000000e+00 : f32
    %449 = vector.broadcast %cst_190 : f32 to vector<8x128xf32>
    %450 = arith.addf %449, %448 : vector<8x128xf32>
    %451 = arith.divf %449, %450 : vector<8x128xf32>
    %452 = arith.mulf %443, %427 : vector<8x128xf32>
    %453 = arith.mulf %437, %445 : vector<8x128xf32>
    %454 = arith.addf %452, %453 : vector<8x128xf32>
    %455 = math.tanh %454 : vector<8x128xf32>
    %456 = arith.mulf %451, %455 : vector<8x128xf32>
    %c0_191 = arith.constant 0 : index
    %c0_192 = arith.constant 0 : index
    %457 = vector.load %arg6[%c0_191, %c0_192] : memref<8x128xf32, #tpu.memory_space<vmem>>, vector<8x128xf32>
    tpu.vector_store %arg6[%c0_191, %c0_192], %456 {strides = array<i32>} : memref<8x128xf32, #tpu.memory_space<vmem>>, vector<8x128xf32>,
    %c0_193 = arith.constant 0 : index
    %c0_194 = arith.constant 0 : index
    %458 = vector.load %arg7[%c0_193, %c0_194] : memref<8x128xf32, #tpu.memory_space<vmem>>, vector<8x128xf32>
    tpu.vector_store %arg7[%c0_193, %c0_194], %454 {strides = array<i32>} : memref<8x128xf32, #tpu.memory_space<vmem>>, vector<8x128xf32>,
    %459 = arith.truncf %456 : vector<8x128xf32> to vector<8x128xbf16>
    %460 = arith.index_cast %c5_i32 : i32 to index
    %c0_195 = arith.constant 0 : index
    %c0_196 = arith.constant 0 : index
    %461 = vector.load %arg4[%460, %c0_195, %c0_196] : memref<8x8x128xbf16, #tpu.memory_space<vmem>>, vector<1x8x128xbf16>
    %462 = vector.shape_cast %461 : vector<1x8x128xbf16> to vector<8x128xbf16>
    %463 = vector.shape_cast %459 : vector<8x128xbf16> to vector<1x8x128xbf16>
    tpu.vector_store %arg4[%460, %c0_195, %c0_196], %463 {strides = array<i32>} : memref<8x8x128xbf16, #tpu.memory_space<vmem>>, vector<1x8x128xbf16>,
    %c0_197 = arith.constant 0 : index
    %464 = arith.index_cast %422 : i32 to index
    %c0_198 = arith.constant 0 : index
    %c0_199 = arith.constant 0 : index
    %465 = vector.load %arg2[%c0_197, %464, %c0_198, %c0_199] : memref<1x8x8x512xbf16, #tpu.memory_space<vmem>>, vector<1x1x8x512xbf16>
    %466 = vector.shape_cast %465 : vector<1x1x8x512xbf16> to vector<8x512xbf16>
    %c0_200 = arith.constant 0 : index
    %c0_201 = arith.constant 0 : index
    %467 = vector.load %arg8[%c0_200, %c0_201] : memref<8x128xf32, #tpu.memory_space<vmem>>, vector<8x128xf32>
    %c0_202 = arith.constant 0 : index
    %c0_203 = arith.constant 0 : index
    %468 = vector.load %arg9[%c0_202, %c0_203] : memref<8x128xf32, #tpu.memory_space<vmem>>, vector<8x128xf32>
    %469 = arith.extf %466 : vector<8x512xbf16> to vector<8x512xf32>
    %470 = arith.truncf %467 : vector<8x128xf32> to vector<8x128xbf16>
    %cst_204 = arith.constant dense<0.000000e+00> : vector<8x512xf32>
    %471 = tpu.matmul %470, %6, %cst_204 {dimension_numbers = #tpu.dot_dimension_numbers<[1], [0], [0], [1], [0, 0, 1, 1], [], []>} : vector<8x128xbf16>, vector<128x512xbf16>, vector<8x512xf32> -> vector<8x512xf32>
    %472 = arith.addf %469, %471 : vector<8x512xf32>
    %473 = vector.extract_strided_slice %472 {offsets = [0, 0], sizes = [8, 128], strides = [1, 1]} : vector<8x512xf32> to vector<8x128xf32>
    %474 = arith.negf %473 : vector<8x128xf32>
    %475 = math.exp %474 : vector<8x128xf32>
    %cst_205 = arith.constant 1.000000e+00 : f32
    %476 = vector.broadcast %cst_205 : f32 to vector<8x128xf32>
    %477 = arith.addf %476, %475 : vector<8x128xf32>
    %478 = arith.divf %476, %477 : vector<8x128xf32>
    %479 = vector.extract_strided_slice %472 {offsets = [0, 128], sizes = [8, 128], strides = [1, 1]} : vector<8x512xf32> to vector<8x128xf32>
    %480 = arith.negf %479 : vector<8x128xf32>
    %481 = math.exp %480 : vector<8x128xf32>
    %cst_206 = arith.constant 1.000000e+00 : f32
    %482 = vector.broadcast %cst_206 : f32 to vector<8x128xf32>
    %483 = arith.addf %482, %481 : vector<8x128xf32>
    %484 = arith.divf %482, %483 : vector<8x128xf32>
    %485 = vector.extract_strided_slice %472 {offsets = [0, 256], sizes = [8, 128], strides = [1, 1]} : vector<8x512xf32> to vector<8x128xf32>
    %486 = math.tanh %485 : vector<8x128xf32>
    %487 = vector.extract_strided_slice %472 {offsets = [0, 384], sizes = [8, 128], strides = [1, 1]} : vector<8x512xf32> to vector<8x128xf32>
    %488 = arith.negf %487 : vector<8x128xf32>
    %489 = math.exp %488 : vector<8x128xf32>
    %cst_207 = arith.constant 1.000000e+00 : f32
    %490 = vector.broadcast %cst_207 : f32 to vector<8x128xf32>
    %491 = arith.addf %490, %489 : vector<8x128xf32>
    %492 = arith.divf %490, %491 : vector<8x128xf32>
    %493 = arith.mulf %484, %468 : vector<8x128xf32>
    %494 = arith.mulf %478, %486 : vector<8x128xf32>
    %495 = arith.addf %493, %494 : vector<8x128xf32>
    %496 = math.tanh %495 : vector<8x128xf32>
    %497 = arith.mulf %492, %496 : vector<8x128xf32>
    %c0_208 = arith.constant 0 : index
    %c0_209 = arith.constant 0 : index
    %498 = vector.load %arg8[%c0_208, %c0_209] : memref<8x128xf32, #tpu.memory_space<vmem>>, vector<8x128xf32>
    tpu.vector_store %arg8[%c0_208, %c0_209], %497 {strides = array<i32>} : memref<8x128xf32, #tpu.memory_space<vmem>>, vector<8x128xf32>,
    %c0_210 = arith.constant 0 : index
    %c0_211 = arith.constant 0 : index
    %499 = vector.load %arg9[%c0_210, %c0_211] : memref<8x128xf32, #tpu.memory_space<vmem>>, vector<8x128xf32>
    tpu.vector_store %arg9[%c0_210, %c0_211], %495 {strides = array<i32>} : memref<8x128xf32, #tpu.memory_space<vmem>>, vector<8x128xf32>,
    %500 = arith.truncf %497 : vector<8x128xf32> to vector<8x128xbf16>
    %501 = arith.index_cast %422 : i32 to index
    %c0_212 = arith.constant 0 : index
    %c0_213 = arith.constant 0 : index
    %502 = vector.load %arg5[%501, %c0_212, %c0_213] : memref<8x8x128xbf16, #tpu.memory_space<vmem>>, vector<1x8x128xbf16>
    %503 = vector.shape_cast %502 : vector<1x8x128xbf16> to vector<8x128xbf16>
    %504 = vector.shape_cast %500 : vector<8x128xbf16> to vector<1x8x128xbf16>
    tpu.vector_store %arg5[%501, %c0_212, %c0_213], %504 {strides = array<i32>} : memref<8x8x128xbf16, #tpu.memory_space<vmem>>, vector<1x8x128xbf16>,
    %c6_i32 = arith.constant 6 : i32
    %c7_i32_214 = arith.constant 7 : i32
    %505 = arith.subi %c7_i32_214, %c6_i32 : i32
    %c0_215 = arith.constant 0 : index
    %506 = arith.index_cast %c6_i32 : i32 to index
    %c0_216 = arith.constant 0 : index
    %c0_217 = arith.constant 0 : index
    %507 = vector.load %arg1[%c0_215, %506, %c0_216, %c0_217] : memref<1x8x8x512xbf16, #tpu.memory_space<vmem>>, vector<1x1x8x512xbf16>
    %508 = vector.shape_cast %507 : vector<1x1x8x512xbf16> to vector<8x512xbf16>
    %c0_218 = arith.constant 0 : index
    %c0_219 = arith.constant 0 : index
    %509 = vector.load %arg6[%c0_218, %c0_219] : memref<8x128xf32, #tpu.memory_space<vmem>>, vector<8x128xf32>
    %c0_220 = arith.constant 0 : index
    %c0_221 = arith.constant 0 : index
    %510 = vector.load %arg7[%c0_220, %c0_221] : memref<8x128xf32, #tpu.memory_space<vmem>>, vector<8x128xf32>
    %511 = arith.extf %508 : vector<8x512xbf16> to vector<8x512xf32>
    %512 = arith.truncf %509 : vector<8x128xf32> to vector<8x128xbf16>
    %cst_222 = arith.constant dense<0.000000e+00> : vector<8x512xf32>
    %513 = tpu.matmul %512, %4, %cst_222 {dimension_numbers = #tpu.dot_dimension_numbers<[1], [0], [0], [1], [0, 0, 1, 1], [], []>} : vector<8x128xbf16>, vector<128x512xbf16>, vector<8x512xf32> -> vector<8x512xf32>
    %514 = arith.addf %511, %513 : vector<8x512xf32>
    %515 = vector.extract_strided_slice %514 {offsets = [0, 0], sizes = [8, 128], strides = [1, 1]} : vector<8x512xf32> to vector<8x128xf32>
    %516 = arith.negf %515 : vector<8x128xf32>
    %517 = math.exp %516 : vector<8x128xf32>
    %cst_223 = arith.constant 1.000000e+00 : f32
    %518 = vector.broadcast %cst_223 : f32 to vector<8x128xf32>
    %519 = arith.addf %518, %517 : vector<8x128xf32>
    %520 = arith.divf %518, %519 : vector<8x128xf32>
    %521 = vector.extract_strided_slice %514 {offsets = [0, 128], sizes = [8, 128], strides = [1, 1]} : vector<8x512xf32> to vector<8x128xf32>
    %522 = arith.negf %521 : vector<8x128xf32>
    %523 = math.exp %522 : vector<8x128xf32>
    %cst_224 = arith.constant 1.000000e+00 : f32
    %524 = vector.broadcast %cst_224 : f32 to vector<8x128xf32>
    %525 = arith.addf %524, %523 : vector<8x128xf32>
    %526 = arith.divf %524, %525 : vector<8x128xf32>
    %527 = vector.extract_strided_slice %514 {offsets = [0, 256], sizes = [8, 128], strides = [1, 1]} : vector<8x512xf32> to vector<8x128xf32>
    %528 = math.tanh %527 : vector<8x128xf32>
    %529 = vector.extract_strided_slice %514 {offsets = [0, 384], sizes = [8, 128], strides = [1, 1]} : vector<8x512xf32> to vector<8x128xf32>
    %530 = arith.negf %529 : vector<8x128xf32>
    %531 = math.exp %530 : vector<8x128xf32>
    %cst_225 = arith.constant 1.000000e+00 : f32
    %532 = vector.broadcast %cst_225 : f32 to vector<8x128xf32>
    %533 = arith.addf %532, %531 : vector<8x128xf32>
    %534 = arith.divf %532, %533 : vector<8x128xf32>
    %535 = arith.mulf %526, %510 : vector<8x128xf32>
    %536 = arith.mulf %520, %528 : vector<8x128xf32>
    %537 = arith.addf %535, %536 : vector<8x128xf32>
    %538 = math.tanh %537 : vector<8x128xf32>
    %539 = arith.mulf %534, %538 : vector<8x128xf32>
    %c0_226 = arith.constant 0 : index
    %c0_227 = arith.constant 0 : index
    %540 = vector.load %arg6[%c0_226, %c0_227] : memref<8x128xf32, #tpu.memory_space<vmem>>, vector<8x128xf32>
    tpu.vector_store %arg6[%c0_226, %c0_227], %539 {strides = array<i32>} : memref<8x128xf32, #tpu.memory_space<vmem>>, vector<8x128xf32>,
    %c0_228 = arith.constant 0 : index
    %c0_229 = arith.constant 0 : index
    %541 = vector.load %arg7[%c0_228, %c0_229] : memref<8x128xf32, #tpu.memory_space<vmem>>, vector<8x128xf32>
    tpu.vector_store %arg7[%c0_228, %c0_229], %537 {strides = array<i32>} : memref<8x128xf32, #tpu.memory_space<vmem>>, vector<8x128xf32>,
    %542 = arith.truncf %539 : vector<8x128xf32> to vector<8x128xbf16>
    %543 = arith.index_cast %c6_i32 : i32 to index
    %c0_230 = arith.constant 0 : index
    %c0_231 = arith.constant 0 : index
    %544 = vector.load %arg4[%543, %c0_230, %c0_231] : memref<8x8x128xbf16, #tpu.memory_space<vmem>>, vector<1x8x128xbf16>
    %545 = vector.shape_cast %544 : vector<1x8x128xbf16> to vector<8x128xbf16>
    %546 = vector.shape_cast %542 : vector<8x128xbf16> to vector<1x8x128xbf16>
    tpu.vector_store %arg4[%543, %c0_230, %c0_231], %546 {strides = array<i32>} : memref<8x8x128xbf16, #tpu.memory_space<vmem>>, vector<1x8x128xbf16>,
    %c0_232 = arith.constant 0 : index
    %547 = arith.index_cast %505 : i32 to index
    %c0_233 = arith.constant 0 : index
    %c0_234 = arith.constant 0 : index
    %548 = vector.load %arg2[%c0_232, %547, %c0_233, %c0_234] : memref<1x8x8x512xbf16, #tpu.memory_space<vmem>>, vector<1x1x8x512xbf16>
    %549 = vector.shape_cast %548 : vector<1x1x8x512xbf16> to vector<8x512xbf16>
    %c0_235 = arith.constant 0 : index
    %c0_236 = arith.constant 0 : index
    %550 = vector.load %arg8[%c0_235, %c0_236] : memref<8x128xf32, #tpu.memory_space<vmem>>, vector<8x128xf32>
    %c0_237 = arith.constant 0 : index
    %c0_238 = arith.constant 0 : index
    %551 = vector.load %arg9[%c0_237, %c0_238] : memref<8x128xf32, #tpu.memory_space<vmem>>, vector<8x128xf32>
    %552 = arith.extf %549 : vector<8x512xbf16> to vector<8x512xf32>
    %553 = arith.truncf %550 : vector<8x128xf32> to vector<8x128xbf16>
    %cst_239 = arith.constant dense<0.000000e+00> : vector<8x512xf32>
    %554 = tpu.matmul %553, %6, %cst_239 {dimension_numbers = #tpu.dot_dimension_numbers<[1], [0], [0], [1], [0, 0, 1, 1], [], []>} : vector<8x128xbf16>, vector<128x512xbf16>, vector<8x512xf32> -> vector<8x512xf32>
    %555 = arith.addf %552, %554 : vector<8x512xf32>
    %556 = vector.extract_strided_slice %555 {offsets = [0, 0], sizes = [8, 128], strides = [1, 1]} : vector<8x512xf32> to vector<8x128xf32>
    %557 = arith.negf %556 : vector<8x128xf32>
    %558 = math.exp %557 : vector<8x128xf32>
    %cst_240 = arith.constant 1.000000e+00 : f32
    %559 = vector.broadcast %cst_240 : f32 to vector<8x128xf32>
    %560 = arith.addf %559, %558 : vector<8x128xf32>
    %561 = arith.divf %559, %560 : vector<8x128xf32>
    %562 = vector.extract_strided_slice %555 {offsets = [0, 128], sizes = [8, 128], strides = [1, 1]} : vector<8x512xf32> to vector<8x128xf32>
    %563 = arith.negf %562 : vector<8x128xf32>
    %564 = math.exp %563 : vector<8x128xf32>
    %cst_241 = arith.constant 1.000000e+00 : f32
    %565 = vector.broadcast %cst_241 : f32 to vector<8x128xf32>
    %566 = arith.addf %565, %564 : vector<8x128xf32>
    %567 = arith.divf %565, %566 : vector<8x128xf32>
    %568 = vector.extract_strided_slice %555 {offsets = [0, 256], sizes = [8, 128], strides = [1, 1]} : vector<8x512xf32> to vector<8x128xf32>
    %569 = math.tanh %568 : vector<8x128xf32>
    %570 = vector.extract_strided_slice %555 {offsets = [0, 384], sizes = [8, 128], strides = [1, 1]} : vector<8x512xf32> to vector<8x128xf32>
    %571 = arith.negf %570 : vector<8x128xf32>
    %572 = math.exp %571 : vector<8x128xf32>
    %cst_242 = arith.constant 1.000000e+00 : f32
    %573 = vector.broadcast %cst_242 : f32 to vector<8x128xf32>
    %574 = arith.addf %573, %572 : vector<8x128xf32>
    %575 = arith.divf %573, %574 : vector<8x128xf32>
    %576 = arith.mulf %567, %551 : vector<8x128xf32>
    %577 = arith.mulf %561, %569 : vector<8x128xf32>
    %578 = arith.addf %576, %577 : vector<8x128xf32>
    %579 = math.tanh %578 : vector<8x128xf32>
    %580 = arith.mulf %575, %579 : vector<8x128xf32>
    %c0_243 = arith.constant 0 : index
    %c0_244 = arith.constant 0 : index
    %581 = vector.load %arg8[%c0_243, %c0_244] : memref<8x128xf32, #tpu.memory_space<vmem>>, vector<8x128xf32>
    tpu.vector_store %arg8[%c0_243, %c0_244], %580 {strides = array<i32>} : memref<8x128xf32, #tpu.memory_space<vmem>>, vector<8x128xf32>,
    %c0_245 = arith.constant 0 : index
    %c0_246 = arith.constant 0 : index
    %582 = vector.load %arg9[%c0_245, %c0_246] : memref<8x128xf32, #tpu.memory_space<vmem>>, vector<8x128xf32>
    tpu.vector_store %arg9[%c0_245, %c0_246], %578 {strides = array<i32>} : memref<8x128xf32, #tpu.memory_space<vmem>>, vector<8x128xf32>,
    %583 = arith.truncf %580 : vector<8x128xf32> to vector<8x128xbf16>
    %584 = arith.index_cast %505 : i32 to index
    %c0_247 = arith.constant 0 : index
    %c0_248 = arith.constant 0 : index
    %585 = vector.load %arg5[%584, %c0_247, %c0_248] : memref<8x8x128xbf16, #tpu.memory_space<vmem>>, vector<1x8x128xbf16>
    %586 = vector.shape_cast %585 : vector<1x8x128xbf16> to vector<8x128xbf16>
    %587 = vector.shape_cast %583 : vector<8x128xbf16> to vector<1x8x128xbf16>
    tpu.vector_store %arg5[%584, %c0_247, %c0_248], %587 {strides = array<i32>} : memref<8x8x128xbf16, #tpu.memory_space<vmem>>, vector<1x8x128xbf16>,
    %c7_i32_249 = arith.constant 7 : i32
    %c7_i32_250 = arith.constant 7 : i32
    %588 = arith.subi %c7_i32_250, %c7_i32_249 : i32
    %c0_251 = arith.constant 0 : index
    %589 = arith.index_cast %c7_i32_249 : i32 to index
    %c0_252 = arith.constant 0 : index
    %c0_253 = arith.constant 0 : index
    %590 = vector.load %arg1[%c0_251, %589, %c0_252, %c0_253] : memref<1x8x8x512xbf16, #tpu.memory_space<vmem>>, vector<1x1x8x512xbf16>
    %591 = vector.shape_cast %590 : vector<1x1x8x512xbf16> to vector<8x512xbf16>
    %c0_254 = arith.constant 0 : index
    %c0_255 = arith.constant 0 : index
    %592 = vector.load %arg6[%c0_254, %c0_255] : memref<8x128xf32, #tpu.memory_space<vmem>>, vector<8x128xf32>
    %c0_256 = arith.constant 0 : index
    %c0_257 = arith.constant 0 : index
    %593 = vector.load %arg7[%c0_256, %c0_257] : memref<8x128xf32, #tpu.memory_space<vmem>>, vector<8x128xf32>
    %594 = arith.extf %591 : vector<8x512xbf16> to vector<8x512xf32>
    %595 = arith.truncf %592 : vector<8x128xf32> to vector<8x128xbf16>
    %cst_258 = arith.constant dense<0.000000e+00> : vector<8x512xf32>
    %596 = tpu.matmul %595, %4, %cst_258 {dimension_numbers = #tpu.dot_dimension_numbers<[1], [0], [0], [1], [0, 0, 1, 1], [], []>} : vector<8x128xbf16>, vector<128x512xbf16>, vector<8x512xf32> -> vector<8x512xf32>
    %597 = arith.addf %594, %596 : vector<8x512xf32>
    %598 = vector.extract_strided_slice %597 {offsets = [0, 0], sizes = [8, 128], strides = [1, 1]} : vector<8x512xf32> to vector<8x128xf32>
    %599 = arith.negf %598 : vector<8x128xf32>
    %600 = math.exp %599 : vector<8x128xf32>
    %cst_259 = arith.constant 1.000000e+00 : f32
    %601 = vector.broadcast %cst_259 : f32 to vector<8x128xf32>
    %602 = arith.addf %601, %600 : vector<8x128xf32>
    %603 = arith.divf %601, %602 : vector<8x128xf32>
    %604 = vector.extract_strided_slice %597 {offsets = [0, 128], sizes = [8, 128], strides = [1, 1]} : vector<8x512xf32> to vector<8x128xf32>
    %605 = arith.negf %604 : vector<8x128xf32>
    %606 = math.exp %605 : vector<8x128xf32>
    %cst_260 = arith.constant 1.000000e+00 : f32
    %607 = vector.broadcast %cst_260 : f32 to vector<8x128xf32>
    %608 = arith.addf %607, %606 : vector<8x128xf32>
    %609 = arith.divf %607, %608 : vector<8x128xf32>
    %610 = vector.extract_strided_slice %597 {offsets = [0, 256], sizes = [8, 128], strides = [1, 1]} : vector<8x512xf32> to vector<8x128xf32>
    %611 = math.tanh %610 : vector<8x128xf32>
    %612 = vector.extract_strided_slice %597 {offsets = [0, 384], sizes = [8, 128], strides = [1, 1]} : vector<8x512xf32> to vector<8x128xf32>
    %613 = arith.negf %612 : vector<8x128xf32>
    %614 = math.exp %613 : vector<8x128xf32>
    %cst_261 = arith.constant 1.000000e+00 : f32
    %615 = vector.broadcast %cst_261 : f32 to vector<8x128xf32>
    %616 = arith.addf %615, %614 : vector<8x128xf32>
    %617 = arith.divf %615, %616 : vector<8x128xf32>
    %618 = arith.mulf %609, %593 : vector<8x128xf32>
    %619 = arith.mulf %603, %611 : vector<8x128xf32>
    %620 = arith.addf %618, %619 : vector<8x128xf32>
    %621 = math.tanh %620 : vector<8x128xf32>
    %622 = arith.mulf %617, %621 : vector<8x128xf32>
    %c0_262 = arith.constant 0 : index
    %c0_263 = arith.constant 0 : index
    %623 = vector.load %arg6[%c0_262, %c0_263] : memref<8x128xf32, #tpu.memory_space<vmem>>, vector<8x128xf32>
    tpu.vector_store %arg6[%c0_262, %c0_263], %622 {strides = array<i32>} : memref<8x128xf32, #tpu.memory_space<vmem>>, vector<8x128xf32>,
    %c0_264 = arith.constant 0 : index
    %c0_265 = arith.constant 0 : index
    %624 = vector.load %arg7[%c0_264, %c0_265] : memref<8x128xf32, #tpu.memory_space<vmem>>, vector<8x128xf32>
    tpu.vector_store %arg7[%c0_264, %c0_265], %620 {strides = array<i32>} : memref<8x128xf32, #tpu.memory_space<vmem>>, vector<8x128xf32>,
    %625 = arith.truncf %622 : vector<8x128xf32> to vector<8x128xbf16>
    %626 = arith.index_cast %c7_i32_249 : i32 to index
    %c0_266 = arith.constant 0 : index
    %c0_267 = arith.constant 0 : index
    %627 = vector.load %arg4[%626, %c0_266, %c0_267] : memref<8x8x128xbf16, #tpu.memory_space<vmem>>, vector<1x8x128xbf16>
    %628 = vector.shape_cast %627 : vector<1x8x128xbf16> to vector<8x128xbf16>
    %629 = vector.shape_cast %625 : vector<8x128xbf16> to vector<1x8x128xbf16>
    tpu.vector_store %arg4[%626, %c0_266, %c0_267], %629 {strides = array<i32>} : memref<8x8x128xbf16, #tpu.memory_space<vmem>>, vector<1x8x128xbf16>,
    %c0_268 = arith.constant 0 : index
    %630 = arith.index_cast %588 : i32 to index
    %c0_269 = arith.constant 0 : index
    %c0_270 = arith.constant 0 : index
    %631 = vector.load %arg2[%c0_268, %630, %c0_269, %c0_270] : memref<1x8x8x512xbf16, #tpu.memory_space<vmem>>, vector<1x1x8x512xbf16>
    %632 = vector.shape_cast %631 : vector<1x1x8x512xbf16> to vector<8x512xbf16>
    %c0_271 = arith.constant 0 : index
    %c0_272 = arith.constant 0 : index
    %633 = vector.load %arg8[%c0_271, %c0_272] : memref<8x128xf32, #tpu.memory_space<vmem>>, vector<8x128xf32>
    %c0_273 = arith.constant 0 : index
    %c0_274 = arith.constant 0 : index
    %634 = vector.load %arg9[%c0_273, %c0_274] : memref<8x128xf32, #tpu.memory_space<vmem>>, vector<8x128xf32>
    %635 = arith.extf %632 : vector<8x512xbf16> to vector<8x512xf32>
    %636 = arith.truncf %633 : vector<8x128xf32> to vector<8x128xbf16>
    %cst_275 = arith.constant dense<0.000000e+00> : vector<8x512xf32>
    %637 = tpu.matmul %636, %6, %cst_275 {dimension_numbers = #tpu.dot_dimension_numbers<[1], [0], [0], [1], [0, 0, 1, 1], [], []>} : vector<8x128xbf16>, vector<128x512xbf16>, vector<8x512xf32> -> vector<8x512xf32>
    %638 = arith.addf %635, %637 : vector<8x512xf32>
    %639 = vector.extract_strided_slice %638 {offsets = [0, 0], sizes = [8, 128], strides = [1, 1]} : vector<8x512xf32> to vector<8x128xf32>
    %640 = arith.negf %639 : vector<8x128xf32>
    %641 = math.exp %640 : vector<8x128xf32>
    %cst_276 = arith.constant 1.000000e+00 : f32
    %642 = vector.broadcast %cst_276 : f32 to vector<8x128xf32>
    %643 = arith.addf %642, %641 : vector<8x128xf32>
    %644 = arith.divf %642, %643 : vector<8x128xf32>
    %645 = vector.extract_strided_slice %638 {offsets = [0, 128], sizes = [8, 128], strides = [1, 1]} : vector<8x512xf32> to vector<8x128xf32>
    %646 = arith.negf %645 : vector<8x128xf32>
    %647 = math.exp %646 : vector<8x128xf32>
    %cst_277 = arith.constant 1.000000e+00 : f32
    %648 = vector.broadcast %cst_277 : f32 to vector<8x128xf32>
    %649 = arith.addf %648, %647 : vector<8x128xf32>
    %650 = arith.divf %648, %649 : vector<8x128xf32>
    %651 = vector.extract_strided_slice %638 {offsets = [0, 256], sizes = [8, 128], strides = [1, 1]} : vector<8x512xf32> to vector<8x128xf32>
    %652 = math.tanh %651 : vector<8x128xf32>
    %653 = vector.extract_strided_slice %638 {offsets = [0, 384], sizes = [8, 128], strides = [1, 1]} : vector<8x512xf32> to vector<8x128xf32>
    %654 = arith.negf %653 : vector<8x128xf32>
    %655 = math.exp %654 : vector<8x128xf32>
    %cst_278 = arith.constant 1.000000e+00 : f32
    %656 = vector.broadcast %cst_278 : f32 to vector<8x128xf32>
    %657 = arith.addf %656, %655 : vector<8x128xf32>
    %658 = arith.divf %656, %657 : vector<8x128xf32>
    %659 = arith.mulf %650, %634 : vector<8x128xf32>
    %660 = arith.mulf %644, %652 : vector<8x128xf32>
    %661 = arith.addf %659, %660 : vector<8x128xf32>
    %662 = math.tanh %661 : vector<8x128xf32>
    %663 = arith.mulf %658, %662 : vector<8x128xf32>
    %c0_279 = arith.constant 0 : index
    %c0_280 = arith.constant 0 : index
    %664 = vector.load %arg8[%c0_279, %c0_280] : memref<8x128xf32, #tpu.memory_space<vmem>>, vector<8x128xf32>
    tpu.vector_store %arg8[%c0_279, %c0_280], %663 {strides = array<i32>} : memref<8x128xf32, #tpu.memory_space<vmem>>, vector<8x128xf32>,
    %c0_281 = arith.constant 0 : index
    %c0_282 = arith.constant 0 : index
    %665 = vector.load %arg9[%c0_281, %c0_282] : memref<8x128xf32, #tpu.memory_space<vmem>>, vector<8x128xf32>
    tpu.vector_store %arg9[%c0_281, %c0_282], %661 {strides = array<i32>} : memref<8x128xf32, #tpu.memory_space<vmem>>, vector<8x128xf32>,
    %666 = arith.truncf %663 : vector<8x128xf32> to vector<8x128xbf16>
    %667 = arith.index_cast %588 : i32 to index
    %c0_283 = arith.constant 0 : index
    %c0_284 = arith.constant 0 : index
    %668 = vector.load %arg5[%667, %c0_283, %c0_284] : memref<8x8x128xbf16, #tpu.memory_space<vmem>>, vector<1x8x128xbf16>
    %669 = vector.shape_cast %668 : vector<1x8x128xbf16> to vector<8x128xbf16>
    %670 = vector.shape_cast %666 : vector<8x128xbf16> to vector<1x8x128xbf16>
    tpu.vector_store %arg5[%667, %c0_283, %c0_284], %670 {strides = array<i32>} : memref<8x8x128xbf16, #tpu.memory_space<vmem>>, vector<1x8x128xbf16>,
    %c8_i32 = arith.constant 8 : i32
    return
  }
  func.func @transform_0(%arg0: i32) -> (i32, i32, i32, i32) {
    %c0_i32 = arith.constant 0 : i32
    %c0_i32_0 = arith.constant 0 : i32
    %c0_i32_1 = arith.constant 0 : i32
    %c0_i32_2 = arith.constant 0 : i32
    return %c0_i32, %arg0, %c0_i32_0, %c0_i32_1 : i32, i32, i32, i32
  }
  func.func @transform_1(%arg0: i32) -> (i32, i32, i32, i32) {
    %c0_i32 = arith.constant 0 : i32
    %0 = arith.subi %c0_i32, %arg0 : i32
    %c1_i32 = arith.constant 1 : i32
    %c0_i32_0 = arith.constant 0 : i32
    %c0_i32_1 = arith.constant 0 : i32
    %c0_i32_2 = arith.constant 0 : i32
    return %c1_i32, %0, %c0_i32_0, %c0_i32_1 : i32, i32, i32, i32
  }
  func.func @transform_2(%arg0: i32) -> (i32, i32, i32) {
    %c0_i32 = arith.constant 0 : i32
    %c0_i32_0 = arith.constant 0 : i32
    %c0_i32_1 = arith.constant 0 : i32
    %c0_i32_2 = arith.constant 0 : i32
    return %c0_i32, %c0_i32_0, %c0_i32_1 : i32, i32, i32
  }
  func.func @transform_3(%arg0: i32) -> (i32, i32, i32) {
    %c0_i32 = arith.constant 0 : i32
    %c0_i32_0 = arith.constant 0 : i32
    %c0_i32_1 = arith.constant 0 : i32
    return %arg0, %c0_i32, %c0_i32_0 : i32, i32, i32
  }
  func.func @transform_4(%arg0: i32) -> (i32, i32, i32) {
    %c0_i32 = arith.constant 0 : i32
    %0 = arith.subi %c0_i32, %arg0 : i32
    %c0_i32_0 = arith.constant 0 : i32
    %c0_i32_1 = arith.constant 0 : i32
    %c0_i32_2 = arith.constant 0 : i32
    return %0, %c0_i32_0, %c0_i32_1 : i32, i32, i32
  }
}

</mosaic_0001>

<llo_original>
// kernel: lstm_model_forward.9
$region0: #{lstm_model_forward.9}
  #allocation0 [shape = 'u32[]', space=smem, size = 0x4, offset = 0x4, fixed_abs, tag = 'smem constant byte address 0x4 - core index']
  #allocation1 [shape = 'u32[144,128]{1,0:T(1,128)}', space=vmem, size = 0x12000, scoped, tag = 'internal scratch']
  %s0 = inlined_call_operand.vmem [shape: bf16[64,128], index: 0, kind: input, shape index: {}]
  %s1 = inlined_call_operand.vmem [shape: bf16[64,128], index: 1, kind: input, shape index: {}]
  %s2 = inlined_call_operand.vmem [shape: bf16[1,2,128,128], index: 2, kind: input, shape index: {}]
  %s3 = inlined_call_operand.vmem [shape: f32[1,1,128], index: 3, kind: input, shape index: {}]
  %s4 = inlined_call_operand.vmem [shape: f32[1,64,128], index: 4, kind: output, shape index: {}]
  %s5 = sld [smem:[#allocation0]]
  $region26: #{lstm_model_forward.9} parent=0
    _
  %s7 = ssub.s32 1, %s5
  %s8 = scalar_select 0, %s7, %s5
  // Predicated region
  $region2: #{lstm_model_forward.9} parent=0 // pred_check
    _
  $region3: #{lstm_model_forward.9} parent=0 // pred_check_branch
    %10 = sbr.rel (0) target = $region5
  $region4: #{lstm_model_forward.9} parent=0 // pred_region
    _
  $region5: #{lstm_model_forward.9} parent=0 // pred_fallthru
    _
  // Predicated region
  $region6: #{lstm_model_forward.9} parent=0 // pred_check
    _
  $region7: #{lstm_model_forward.9} parent=0 // pred_check_branch
    %12 = sbr.rel (0) target = $region9
  $region8: #{lstm_model_forward.9} parent=0 // pred_region
    _
  $region9: #{lstm_model_forward.9} parent=0 // pred_fallthru
    _
  // Predicated region
  $region10: #{lstm_model_forward.9} parent=0 // pred_check
    _
  $region11: #{lstm_model_forward.9} parent=0 // pred_check_branch
    %14 = sbr.rel (0) target = $region13
  $region12: #{lstm_model_forward.9} parent=0 // pred_region
    _
  $region13: #{lstm_model_forward.9} parent=0 // pred_fallthru
    _
  // Predicated region
  $region14: #{lstm_model_forward.9} parent=0 // pred_check
    _
  $region15: #{lstm_model_forward.9} parent=0 // pred_check_branch
    %16 = sbr.rel (0) target = $region17
  $region16: #{lstm_model_forward.9} parent=0 // pred_region
    _
  $region17: #{lstm_model_forward.9} parent=0 // pred_fallthru
    _
  %v18 = vld [vmem:[%s0] sm:$0xf]
  %v19 = vld [vmem:[%s0 + $0x4] sm:$0xf]
  %v20 = vld [vmem:[%s0 + $0x8] sm:$0xf]
  %v21 = vld [vmem:[%s0 + $0xc] sm:$0xf]
  %v22 = vld [vmem:[%s0 + $0x10] sm:$0xf]
  %v23 = vld [vmem:[%s0 + $0x14] sm:$0xf]
  %v24 = vld [vmem:[%s0 + $0x18] sm:$0xf]
  %v25 = vld [vmem:[%s0 + $0x1c] sm:$0xf]
  %v26 = vld [vmem:[%s2] sm:$0xf]
  %v27 = vld [vmem:[%s2 + $0x4] sm:$0xf]
  %v28 = vld [vmem:[%s2 + $0x8] sm:$0xf]
  %v29 = vld [vmem:[%s2 + $0xc] sm:$0xf]
  %v30 = vld [vmem:[%s2 + $0x10] sm:$0xf]
  %v31 = vld [vmem:[%s2 + $0x14] sm:$0xf]
  %v32 = vld [vmem:[%s2 + $0x18] sm:$0xf]
  %v33 = vld [vmem:[%s2 + $0x1c] sm:$0xf]
  %v34 = vld [vmem:[%s2 + $0x20] sm:$0xf]
  %v35 = vld [vmem:[%s2 + $0x24] sm:$0xf]
  %v36 = vld [vmem:[%s2 + $0x28] sm:$0xf]
  %v37 = vld [vmem:[%s2 + $0x2c] sm:$0xf]
  %v38 = vld [vmem:[%s2 + $0x30] sm:$0xf]
  %v39 = vld [vmem:[%s2 + $0x34] sm:$0xf]
  %v40 = vld [vmem:[%s2 + $0x38] sm:$0xf]
  %v41 = vld [vmem:[%s2 + $0x3c] sm:$0xf]
  %v42 = vld [vmem:[%s1] sm:$0xf]
  %v43 = vld [vmem:[%s1 + $0x4] sm:$0xf]
  %v44 = vld [vmem:[%s1 + $0x8] sm:$0xf]
  %v45 = vld [vmem:[%s1 + $0xc] sm:$0xf]
  %v46 = vld [vmem:[%s1 + $0x10] sm:$0xf]
  %v47 = vld [vmem:[%s1 + $0x14] sm:$0xf]
  %v48 = vld [vmem:[%s1 + $0x18] sm:$0xf]
  %v49 = vld [vmem:[%s1 + $0x1c] sm:$0xf]
  %s50 = scalar_lea.vmem %s2, 64
  %v51 = vld [vmem:[%s50] sm:$0xf]
  %v52 = vld [vmem:[%s50 + $0x4] sm:$0xf]
  %v53 = vld [vmem:[%s50 + $0x8] sm:$0xf]
  %v54 = vld [vmem:[%s50 + $0xc] sm:$0xf]
  %v55 = vld [vmem:[%s50 + $0x10] sm:$0xf]
  %v56 = vld [vmem:[%s50 + $0x14] sm:$0xf]
  %v57 = vld [vmem:[%s50 + $0x18] sm:$0xf]
  %v58 = vld [vmem:[%s50 + $0x1c] sm:$0xf]
  %v59 = vld [vmem:[%s50 + $0x20] sm:$0xf]
  %v60 = vld [vmem:[%s50 + $0x24] sm:$0xf]
  %v61 = vld [vmem:[%s50 + $0x28] sm:$0xf]
  %v62 = vld [vmem:[%s50 + $0x2c] sm:$0xf]
  %v63 = vld [vmem:[%s50 + $0x30] sm:$0xf]
  %v64 = vld [vmem:[%s50 + $0x34] sm:$0xf]
  %v65 = vld [vmem:[%s50 + $0x38] sm:$0xf]
  %v66 = vld [vmem:[%s50 + $0x3c] sm:$0xf]
  %v75 = vunpack.c.l.b16 %v42
  %v76 = vunpack.c.l.b16 %v43
  %v77 = vunpack.c.l.b16 %v44
  %v78 = vunpack.c.l.b16 %v45
  %v79 = vunpack.c.l.b16 %v46
  %v80 = vunpack.c.l.b16 %v47
  %v81 = vunpack.c.l.b16 %v48
  %v82 = vunpack.c.l.b16 %v49
  %v83 = vpack.c.b16 %v76, %v75
  %v84 = vpack.c.b16 %v78, %v77
  %v85 = vpack.c.b16 %v80, %v79
  %v86 = vpack.c.b16 %v82, %v81
  %v107 = vunpack.c.l.b16 %v51
  %v108 = vunpack.c.l.b16 %v52
  %v109 = vunpack.c.l.b16 %v53
  %v110 = vunpack.c.l.b16 %v54
  %v111 = vunpack.c.l.b16 %v55
  %v112 = vunpack.c.l.b16 %v56
  %v113 = vunpack.c.l.b16 %v57
  %v114 = vunpack.c.l.b16 %v58
  %v115 = vunpack.c.l.b16 %v59
  %v116 = vunpack.c.l.b16 %v60
  %v117 = vunpack.c.l.b16 %v61
  %v118 = vunpack.c.l.b16 %v62
  %v119 = vunpack.c.l.b16 %v63
  %v120 = vunpack.c.l.b16 %v64
  %v121 = vunpack.c.l.b16 %v65
  %v122 = vunpack.c.l.b16 %v66
  %v123 = vpack.c.b16 %v108, %v107
  %v124 = vpack.c.b16 %v110, %v109
  %v125 = vpack.c.b16 %v112, %v111
  %v126 = vpack.c.b16 %v114, %v113
  %v127 = vpack.c.b16 %v116, %v115
  %v128 = vpack.c.b16 %v118, %v117
  %v129 = vpack.c.b16 %v120, %v119
  %v130 = vpack.c.b16 %v122, %v121
  %139 = vmatprep.subr.bf16.mxu0 0
  %140 = vmatpush1.bf16.msra.mxu0 %v123
  %141 = vmatprep.subr.bf16.mxu0 0
  %142 = vmatpush1.bf16.msra.mxu0 %v124
  %143 = vmatprep.subr.bf16.mxu0 0
  %144 = vmatpush1.bf16.msra.mxu0 %v125
  %145 = vmatprep.subr.bf16.mxu0 0
  %146 = vmatpush1.bf16.msra.mxu0 %v126
  %147 = vmatprep.subr.bf16.mxu0 0
  %148 = vmatpush1.bf16.msra.mxu0 %v127
  %149 = vmatprep.subr.bf16.mxu0 0
  %150 = vmatpush1.bf16.msra.mxu0 %v128
  %151 = vmatprep.subr.bf16.mxu0 0
  %152 = vmatpush1.bf16.msra.mxu0 %v129
  %153 = vmatprep.subr.bf16.mxu0 0
  %154 = vmatpush1.bf16.msra.mxu0 %v130
  %155 = vmatprep.subr.bf16.mxu0 0
  %156 = vmatpush1.bf16.msra.mxu0 0
  %157 = vmatprep.subr.bf16.mxu0 0
  %158 = vmatpush1.bf16.msra.mxu0 0
  %159 = vmatprep.subr.bf16.mxu0 0
  %160 = vmatpush1.bf16.msra.mxu0 0
  %161 = vmatprep.subr.bf16.mxu0 0
  %162 = vmatpush1.bf16.msra.mxu0 0
  %163 = vmatprep.subr.bf16.mxu0 0
  %164 = vmatpush1.bf16.msra.mxu0 0
  %165 = vmatprep.subr.bf16.mxu0 0
  %166 = vmatpush1.bf16.msra.mxu0 0
  %167 = vmatprep.subr.bf16.mxu0 0
  %168 = vmatpush1.bf16.msra.mxu0 0
  %169 = vmatprep.subr.bf16.mxu0 0
  %170 = vmatpush1.bf16.msra.mxu0 0
  %171 = vmatprep.mubr.bf16.mxu0 0
  %172 = vmatmul.mubr.bf16.gmra.mrb[0].mxu0 %v83
  %v173 = vpop.f32.mrb[0].mxu0
  %v174 = vadd.f32 0.0, %v173
  %v175 = vpop.f32.mrb[0].mxu0
  %v176 = vpop.f32.mrb[0].mxu0
  %v177 = vadd.f32 0.0, %v176
  %v178 = vpop.f32.mrb[0].mxu0
  %179 = vmatprep.mubr.bf16.mxu0 0
  %180 = vmatmul.mubr.bf16.gmra.mrb[0].mxu0 %v84
  %v181 = vpop.f32.mrb[0].mxu0
  %v182 = vadd.f32 0.0, %v181
  %v183 = vpop.f32.mrb[0].mxu0
  %v184 = vpop.f32.mrb[0].mxu0
  %v185 = vadd.f32 0.0, %v184
  %v186 = vpop.f32.mrb[0].mxu0
  %187 = vmatprep.mubr.bf16.mxu0 0
  %188 = vmatmul.mubr.bf16.gmra.mrb[0].mxu0 %v85
  %v189 = vpop.f32.mrb[0].mxu0
  %v190 = vadd.f32 0.0, %v189
  %v191 = vpop.f32.mrb[0].mxu0
  %v192 = vpop.f32.mrb[0].mxu0
  %v193 = vadd.f32 0.0, %v192
  %v194 = vpop.f32.mrb[0].mxu0
  %195 = vmatprep.mubr.bf16.mxu0 0
  %196 = vmatmul.mubr.bf16.gmra.mrb[0].mxu0 %v86
  %v197 = vpop.f32.mrb[0].mxu0
  %v198 = vadd.f32 0.0, %v197
  %v199 = vpop.f32.mrb[0].mxu0
  %v200 = vpop.f32.mrb[0].mxu0
  %v201 = vadd.f32 0.0, %v200
  %v202 = vpop.f32.mrb[0].mxu0
  %203 = vdwg.mxu0
  %v212 = vunpack.c.l.b16 %v18
  %v213 = vunpack.c.l.b16 %v19
  %v214 = vunpack.c.l.b16 %v20
  %v215 = vunpack.c.l.b16 %v21
  %v216 = vunpack.c.l.b16 %v22
  %v217 = vunpack.c.l.b16 %v23
  %v218 = vunpack.c.l.b16 %v24
  %v219 = vunpack.c.l.b16 %v25
  %v220 = vpack.c.b16 %v213, %v212
  %v221 = vpack.c.b16 %v215, %v214
  %v222 = vpack.c.b16 %v217, %v216
  %v223 = vpack.c.b16 %v219, %v218
  %v244 = vunpack.c.l.b16 %v26
  %v245 = vunpack.c.l.b16 %v27
  %v246 = vunpack.c.l.b16 %v28
  %v247 = vunpack.c.l.b16 %v29
  %v248 = vunpack.c.l.b16 %v30
  %v249 = vunpack.c.l.b16 %v31
  %v250 = vunpack.c.l.b16 %v32
  %v251 = vunpack.c.l.b16 %v33
  %v252 = vunpack.c.l.b16 %v34
  %v253 = vunpack.c.l.b16 %v35
  %v254 = vunpack.c.l.b16 %v36
  %v255 = vunpack.c.l.b16 %v37
  %v256 = vunpack.c.l.b16 %v38
  %v257 = vunpack.c.l.b16 %v39
  %v258 = vunpack.c.l.b16 %v40
  %v259 = vunpack.c.l.b16 %v41
  %v260 = vpack.c.b16 %v245, %v244
  %v261 = vpack.c.b16 %v247, %v246
  %v262 = vpack.c.b16 %v249, %v248
  %v263 = vpack.c.b16 %v251, %v250
  %v264 = vpack.c.b16 %v253, %v252
  %v265 = vpack.c.b16 %v255, %v254
  %v266 = vpack.c.b16 %v257, %v256
  %v267 = vpack.c.b16 %v259, %v258
  %276 = vmatprep.subr.bf16.mxu0 0
  %277 = vmatpush1.bf16.msra.mxu0 %v260
  %278 = vmatprep.subr.bf16.mxu0 0
  %279 = vmatpush1.bf16.msra.mxu0 %v261
  %280 = vmatprep.subr.bf16.mxu0 0
  %281 = vmatpush1.bf16.msra.mxu0 %v262
  %282 = vmatprep.subr.bf16.mxu0 0
  %283 = vmatpush1.bf16.msra.mxu0 %v263
  %284 = vmatprep.subr.bf16.mxu0 0
  %285 = vmatpush1.bf16.msra.mxu0 %v264
  %286 = vmatprep.subr.bf16.mxu0 0
  %287 = vmatpush1.bf16.msra.mxu0 %v265
  %288 = vmatprep.subr.bf16.mxu0 0
  %289 = vmatpush1.bf16.msra.mxu0 %v266
  %290 = vmatprep.subr.bf16.mxu0 0
  %291 = vmatpush1.bf16.msra.mxu0 %v267
  %292 = vmatprep.subr.bf16.mxu0 0
  %293 = vmatpush1.bf16.msra.mxu0 0
  %294 = vmatprep.subr.bf16.mxu0 0
  %295 = vmatpush1.bf16.msra.mxu0 0
  %296 = vmatprep.subr.bf16.mxu0 0
  %297 = vmatpush1.bf16.msra.mxu0 0
  %298 = vmatprep.subr.bf16.mxu0 0
  %299 = vmatpush1.bf16.msra.mxu0 0
  %300 = vmatprep.subr.bf16.mxu0 0
  %301 = vmatpush1.bf16.msra.mxu0 0
  %302 = vmatprep.subr.bf16.mxu0 0
  %303 = vmatpush1.bf16.msra.mxu0 0
  %304 = vmatprep.subr.bf16.mxu0 0
  %305 = vmatpush1.bf16.msra.mxu0 0
  %306 = vmatprep.subr.bf16.mxu0 0
  %307 = vmatpush1.bf16.msra.mxu0 0
  %308 = vmatprep.mubr.bf16.mxu0 0
  %309 = vmatmul.mubr.bf16.gmra.mrb[0].mxu0 %v220
  %v310 = vpop.f32.mrb[0].mxu0
  %v311 = vadd.f32 %v174, %v310
  %v312 = vpop.f32.mrb[0].mxu0
  %v313 = vpop.f32.mrb[0].mxu0
  %v314 = vadd.f32 %v177, %v313
  %v315 = vpop.f32.mrb[0].mxu0
  %316 = vmatprep.mubr.bf16.mxu0 0
  %317 = vmatmul.mubr.bf16.gmra.mrb[0].mxu0 %v221
  %v318 = vpop.f32.mrb[0].mxu0
  %v319 = vadd.f32 %v182, %v318
  %v320 = vpop.f32.mrb[0].mxu0
  %v321 = vpop.f32.mrb[0].mxu0
  %v322 = vadd.f32 %v185, %v321
  %v323 = vpop.f32.mrb[0].mxu0
  %324 = vmatprep.mubr.bf16.mxu0 0
  %325 = vmatmul.mubr.bf16.gmra.mrb[0].mxu0 %v222
  %v326 = vpop.f32.mrb[0].mxu0
  %v327 = vadd.f32 %v190, %v326
  %v328 = vpop.f32.mrb[0].mxu0
  %v329 = vpop.f32.mrb[0].mxu0
  %v330 = vadd.f32 %v193, %v329
  %v331 = vpop.f32.mrb[0].mxu0
  %332 = vmatprep.mubr.bf16.mxu0 0
  %333 = vmatmul.mubr.bf16.gmra.mrb[0].mxu0 %v223
  %v334 = vpop.f32.mrb[0].mxu0
  %v335 = vadd.f32 %v198, %v334
  %v336 = vpop.f32.mrb[0].mxu0
  %v337 = vpop.f32.mrb[0].mxu0
  %v338 = vadd.f32 %v201, %v337
  %v339 = vpop.f32.mrb[0].mxu0
  %340 = vdwg.mxu0
  %v341 = vld [vmem:[%s3] sm:$0x1]
  %v343 = vlaneseq
  %v344 = vshrl.u32 %v343, 7
  %v345 = vsub.s32 0, %v344
  %v346 = vrot.slane %v341, %v345
  %v348 = vadd.f32 %v311, %v346
  %v349 = vadd.f32 %v314, %v346
  %v350 = vadd.f32 %v319, %v346
  %v351 = vadd.f32 %v322, %v346
  %v352 = vadd.f32 %v327, %v346
  %v353 = vadd.f32 %v330, %v346
  %v354 = vadd.f32 %v335, %v346
  %v355 = vadd.f32 %v338, %v346
  %356 = vst [vmem:[%s4] sm:$0xff] %v348
  %357 = vst [vmem:[%s4 + $0x8] sm:$0xff] %v349
  %358 = vst [vmem:[%s4 + $0x10] sm:$0xff] %v350
  %359 = vst [vmem:[%s4 + $0x18] sm:$0xff] %v351
  %360 = vst [vmem:[%s4 + $0x20] sm:$0xff] %v352
  %361 = vst [vmem:[%s4 + $0x28] sm:$0xff] %v353
  %362 = vst [vmem:[%s4 + $0x30] sm:$0xff] %v354
  %363 = vst [vmem:[%s4 + $0x38] sm:$0xff] %v355
  // Predicated region
  $region18: #{lstm_model_forward.9} parent=0 // pred_check
    _
  $region19: #{lstm_model_forward.9} parent=0 // pred_check_branch
    %365 = sbr.rel (0) target = $region21
  $region20: #{lstm_model_forward.9} parent=0 // pred_region
    _
  $region21: #{lstm_model_forward.9} parent=0 // pred_fallthru
    _
  // Predicated region
  $region22: #{lstm_model_forward.9} parent=0 // pred_check
    _
  $region23: #{lstm_model_forward.9} parent=0 // pred_check_branch
    %367 = sbr.rel (0) target = $region25
  $region24: #{lstm_model_forward.9} parent=0 // pred_region
    _
  $region25: #{lstm_model_forward.9} parent=0 // pred_fallthru
    _

// kernel: lstm_model_forward.5
$region0: #{lstm_model_forward.5}
  #allocation0 [shape = 'u32[]', space=smem, size = 0x4, offset = 0x4, fixed_abs, tag = 'smem constant byte address 0x4 - core index']
  #allocation1 [shape = 'u32[144,128]{1,0:T(1,128)}', space=vmem, size = 0x12000, scoped, tag = 'internal scratch']
  %s0 = inlined_call_operand.vmem [shape: bf16[64,128], index: 0, kind: input, shape index: {}]
  %s1 = inlined_call_operand.hbm [shape: bf16[2,128,512], index: 1, kind: input, shape index: {}]
  %s2 = inlined_call_operand.vmem [shape: f32[2,1,512], index: 2, kind: input, shape index: {}]
  %s3 = inlined_call_operand.vmem [shape: bf16[2,64,512], index: 3, kind: output, shape index: {}]
  %s4 = sld [smem:[#allocation0]]
  $region49: #{lstm_model_forward.5} parent=0
    _
  %s6 = ssub.s32 1, %s4
  %s7 = scalar_select 0, %s6, %s4
  $region1: #{lstm_model_forward.5} parent=0
    #allocation2 [shape = 'u8[262144]{0}', space=vmem, size = 0x40000, scoped, tag = 'input window, operand 1']
    #allocation3 [shape = 's32[2]{0}', space=sflag, size = 0x8, scoped, tag = 'scoped memory for lstm_model_forward.5']
    %8 = vsyncpa [#allocation3], 0
    %s9 = scalar_lea.sflag [#allocation3], 1
    %10 = vsyncpa %s9, 0
    loop: start=0, step=1, limit=4
    $region2: #{lstm_model_forward.5} parent=1 // loop_pre_header
      _
    $region3: #{lstm_model_forward.5} parent=1 // loop_header
      %s12 = sphi 0, %s16
      %p13 = scmp.ge.s32.totalorder %s12, 4
      %s19 = sphi 0, %s38
      %s20 = sphi 0, %s34
      %s21 = sphi 0, %s30
      %s22 = sphi 0, %s19
      %s23 = sphi 0, %s20
      %s24 = sphi 0, %s21
      %s25 = sphi 0, %s22
      %s26 = sphi 0, %s23
      %s27 = sphi 0, %s24
      %s41 = sphi 0, %s43
      %s44 = sphi 0, %s41
      %s45 = sphi 0, %s44
      %s61 = sphi 0, %s45
      %s69 = sphi 0, %s71
      %s72 = sphi 0, %s69
      %s73 = sphi 0, %s72
      %s89 = sphi 0, %s73
      %s97 = sphi 0, %s99
      %s100 = sphi 0, %s97
      %s101 = sphi 0, %s100
      %s117 = sphi 0, %s101
      %s127 = sphi 0, %s129
      %s130 = sphi 0, %s127
      %s131 = sphi 0, %s130
      %s147 = sphi 0, %s131
    $region4: #{lstm_model_forward.5} parent=1 // loop_header_branch
      %15 = sbr.rel (%p13) target = $region8
    $region5: #{lstm_model_forward.5} parent=1 // loop_body
      %s17 = ssub.s32 %s12, 1
      %s18 = ssub.s32 %s12, 2
      %s28 = sadd.s32 1, %s21
      %p29 = scmp.ge.s32.totalorder %s28, 1
      %s30 = scalar_select %p29, 0, %s28
      %s31 = sadd.s32 1, %s20
      %s32 = scalar_select %p29, %s31, %s20
      %p33 = scmp.ge.s32.totalorder %s32, 1
      %s34 = scalar_select %p33, 0, %s32
      %s35 = sadd.s32 1, %s19
      %s36 = scalar_select %p33, %s35, %s19
      %p37 = scmp.ge.s32.totalorder %s36, 2
      %s38 = scalar_select %p37, 0, %s36
      %s39 = ssub.s32 %s21, %s30
      %p40 = scmp.eq.s32.totalorder %s39, 0
      %s42 = sadd.s32 %s41, 1
      %s43 = scalar_select %p40, %s41, %s42
      %p46 = pneg %p40
      %p47 = scmp.eq.s32.totalorder %s12, 1
      %p48 = por %p46, %p47
      %p49 = scmp.ne.s32.totalorder %s41, %s44
      %p50 = scmp.eq.s32.totalorder %s12, 0
      %p51 = por %p49, %p50
      %p52 = scmp.ne.s32.totalorder %s41, %s44
      %p53 = scmp.eq.s32.totalorder %s17, 1
      %p54 = por %p52, %p53
      %p55 = scmp.ne.s32.totalorder %s44, %s45
      %p56 = scmp.eq.s32.totalorder %s17, 0
      %p57 = por %p55, %p56
      %p58 = scmp.ne.s32.totalorder %s44, %s45
      %p59 = scmp.eq.s32.totalorder %s18, 1
      %p60 = por %p58, %p59
      %p62 = scmp.ne.s32.totalorder %s45, %s61
      %p63 = scmp.eq.s32.totalorder %s18, 0
      %p64 = por %p62, %p63
      %s65 = ssub.s32 %s19, %s38
      %s66 = ssub.s32 %s20, %s34
      %s67 = sor.u32 %s65, %s66
      %p68 = scmp.eq.s32.totalorder %s67, 0
      %s70 = sadd.s32 %s69, 1
      %s71 = scalar_select %p68, %s69, %s70
      %p74 = pneg %p68
      %p75 = scmp.eq.s32.totalorder %s12, 1
      %p76 = por %p74, %p75
      %p77 = scmp.ne.s32.totalorder %s69, %s72
      %p78 = scmp.eq.s32.totalorder %s12, 0
      %p79 = por %p77, %p78
      %p80 = scmp.ne.s32.totalorder %s69, %s72
      %p81 = scmp.eq.s32.totalorder %s17, 1
      %p82 = por %p80, %p81
      %p83 = scmp.ne.s32.totalorder %s72, %s73
      %p84 = scmp.eq.s32.totalorder %s17, 0
      %p85 = por %p83, %p84
      %p86 = scmp.ne.s32.totalorder %s72, %s73
      %p87 = scmp.eq.s32.totalorder %s18, 1
      %p88 = por %p86, %p87
      %p90 = scmp.ne.s32.totalorder %s73, %s89
      %p91 = scmp.eq.s32.totalorder %s18, 0
      %p92 = por %p90, %p91
      %s93 = ssub.s32 %s19, %s38
      %s94 = ssub.s32 %s20, %s34
      %s95 = sor.u32 %s93, %s94
      %p96 = scmp.eq.s32.totalorder %s95, 0
      %s98 = sadd.s32 %s97, 1
      %s99 = scalar_select %p96, %s97, %s98
      %p102 = pneg %p96
      %p103 = scmp.eq.s32.totalorder %s12, 1
      %p104 = por %p102, %p103
      %p105 = scmp.ne.s32.totalorder %s97, %s100
      %p106 = scmp.eq.s32.totalorder %s12, 0
      %p107 = por %p105, %p106
      %p108 = scmp.ne.s32.totalorder %s97, %s100
      %p109 = scmp.eq.s32.totalorder %s17, 1
      %p110 = por %p108, %p109
      %p111 = scmp.ne.s32.totalorder %s100, %s101
      %p112 = scmp.eq.s32.totalorder %s17, 0
      %p113 = por %p111, %p112
      %p114 = scmp.ne.s32.totalorder %s100, %s101
      %p115 = scmp.eq.s32.totalorder %s18, 1
      %p116 = por %p114, %p115
      %p118 = scmp.ne.s32.totalorder %s101, %s117
      %p119 = scmp.eq.s32.totalorder %s18, 0
      %p120 = por %p118, %p119
      %s121 = ssub.s32 %s19, %s38
      %s122 = ssub.s32 %s21, %s30
      %s123 = sor.u32 %s121, %s122
      %s124 = ssub.s32 %s20, %s34
      %s125 = sor.u32 %s123, %s124
      %p126 = scmp.eq.s32.totalorder %s125, 0
      %s128 = sadd.s32 %s127, 1
      %s129 = scalar_select %p126, %s127, %s128
      %p132 = pneg %p126
      %p133 = scmp.eq.s32.totalorder %s12, 1
      %p134 = por %p132, %p133
      %p135 = scmp.ne.s32.totalorder %s127, %s130
      %p136 = scmp.eq.s32.totalorder %s12, 0
      %p137 = por %p135, %p136
      %p138 = scmp.ne.s32.totalorder %s127, %s130
      %p139 = scmp.eq.s32.totalorder %s17, 1
      %p140 = por %p138, %p139
      %p141 = scmp.ne.s32.totalorder %s130, %s131
      %p142 = scmp.eq.s32.totalorder %s17, 0
      %p143 = por %p141, %p142
      %p144 = scmp.ne.s32.totalorder %s130, %s131
      %p145 = scmp.eq.s32.totalorder %s18, 1
      %p146 = por %p144, %p145
      %p148 = scmp.ne.s32.totalorder %s131, %s147
      %p149 = scmp.eq.s32.totalorder %s18, 0
      %p150 = por %p148, %p149
      %p151 = scmp.le.s32.totalorder 1, %s12
      %p152 = scmp.lt.s32.totalorder %s12, 3
      %p153 = pnand %p151, %p152
      %p154 = pneg %p153
      // Predicated region
      $region9: #{lstm_model_forward.5} parent=5 // pred_check
        _
      $region10: #{lstm_model_forward.5} parent=5 // pred_check_branch
        %156 = sbr.rel (%p153) target = $region12
      $region11: #{lstm_model_forward.5} parent=5 // pred_region
        %s157 = ssub.s32 %s12, 1
        // Predicated region
        $region13: #{lstm_model_forward.5} parent=11 // pred_check
          %p158 = pneg %p57
        $region14: #{lstm_model_forward.5} parent=11 // pred_check_branch
          %160 = sbr.rel (%p158) target = $region16
        $region15: #{lstm_model_forward.5} parent=11 // pred_region
          %s161 = smul.u32 8, %s24
          %p162 = scmp.lt.s32.totalorder %s161, 7
          %s163 = scalar_select %p162, %s161, 7
          %s164 = smul.addr %s163, 4
          %s165 = scalar_lea.vmem %s0, %s164
          %s166 = smul.u32 8, %s24
        $region16: #{lstm_model_forward.5} parent=11 // pred_fallthru
          _
      $region12: #{lstm_model_forward.5} parent=5 // pred_fallthru
        _
      %p167 = scmp.lt.s32.totalorder %s12, 2
      // Predicated region
      $region17: #{lstm_model_forward.5} parent=5 // pred_check
        %p168 = pneg %p167
      $region18: #{lstm_model_forward.5} parent=5 // pred_check_branch
        %170 = sbr.rel (%p168) target = $region20
      $region19: #{lstm_model_forward.5} parent=5 // pred_region
        // Predicated region
        $region21: #{lstm_model_forward.5} parent=19 // pred_check
          %p171 = pneg %p79
        $region22: #{lstm_model_forward.5} parent=19 // pred_check_branch
          %173 = sbr.rel (%p171) target = $region24
        $region23: #{lstm_model_forward.5} parent=19 // pred_region
          %s174 = sand.u32 %s69, 1
          %s175 = scalar_lea.sflag [#allocation3], %s174
          %s176 = sand.u32 %s69, 1
          %s177 = smul.addr %s176, 256
          %s178 = scalar_lea.vmem [#allocation2], %s177
          %s179 = smul.u32 4, %s20
          %s181 = ssub.s32 4096, 4096
          %182 = vsyncadd %s175, %s181
          %s183 = smul.addr %s19, 64
          %s184 = sadd.s32 %s179, %s183
          %s185 = smul.addr %s184, 64
          %s186 = scalar_lea.hbm %s1, %s185
          %s187 = sshll.u32 %s178, 4
          %s188 = int_to_ptr.vmem [resolvable:$true] %s187
          %193 = dma.hbm_to_vmem [thread:$0]  %s186, 4096, %s188, %s175, 256, 256, 16
        $region24: #{lstm_model_forward.5} parent=19 // pred_fallthru
          _
        // Predicated region
        $region25: #{lstm_model_forward.5} parent=19 // pred_check
          %p194 = pneg %p107
        $region26: #{lstm_model_forward.5} parent=19 // pred_check_branch
          %196 = sbr.rel (%p194) target = $region28
        $region27: #{lstm_model_forward.5} parent=19 // pred_region
          %s197 = smul.u32 4, %s20
          %p198 = scmp.lt.s32.totalorder %s19, 1
          %s199 = scalar_select %p198, %s19, 1
          %p200 = scmp.lt.s32.totalorder %s197, 3
          %s201 = scalar_select %p200, %s197, 3
          %s202 = smul.addr %s199, 4
          %s203 = sadd.s32 %s201, %s202
          %s204 = scalar_lea.vmem %s2, %s203
          %s205 = smul.u32 4, %s20
        $region28: #{lstm_model_forward.5} parent=19 // pred_fallthru
          _
      $region20: #{lstm_model_forward.5} parent=5 // pred_fallthru
        _
      %p206 = scmp.le.s32.totalorder 1, %s12
      %p207 = scmp.lt.s32.totalorder %s12, 3
      %p208 = pnand %p206, %p207
      %p209 = pneg %p208
      // Predicated region
      $region29: #{lstm_model_forward.5} parent=5 // pred_check
        _
      $region30: #{lstm_model_forward.5} parent=5 // pred_check_branch
        %211 = sbr.rel (%p208) target = $region32
      $region31: #{lstm_model_forward.5} parent=5 // pred_region
        %s212 = ssub.s32 %s12, 1
        %s213 = sand.u32 %s72, 1
        %s214 = scalar_lea.sflag [#allocation3], %s213
        %s215 = sand.u32 %s72, 1
        %s216 = smul.addr %s215, 256
        %s217 = scalar_lea.vmem [#allocation2], %s216
        // Predicated region
        $region33: #{lstm_model_forward.5} parent=31 // pred_check
          %p218 = pneg %p85
        $region34: #{lstm_model_forward.5} parent=31 // pred_check_branch
          %220 = sbr.rel (%p218) target = $region36
        $region35: #{lstm_model_forward.5} parent=31 // pred_region
          %221 = dma.done %s214, 4096
        $region36: #{lstm_model_forward.5} parent=31 // pred_fallthru
          _
        %s222 = smul.u32 8, %s24
        %p223 = scmp.lt.s32.totalorder %s222, 7
        %s224 = scalar_select %p223, %s222, 7
        %s225 = smul.addr %s224, 4
        %s226 = scalar_lea.vmem %s0, %s225
        %p227 = pneg %p57
        %p228 = pneg %p54
        %s229 = sand.u32 %s72, 1
        %s230 = scalar_lea.sflag [#allocation3], %s229
        %s231 = sand.u32 %s72, 1
        %s232 = smul.addr %s231, 256
        %s233 = scalar_lea.vmem [#allocation2], %s232
        %p234 = pneg %p85
        %p235 = pneg %p82
        %s236 = smul.u32 4, %s23
        %p237 = scmp.lt.s32.totalorder %s22, 1
        %s238 = scalar_select %p237, %s22, 1
        %p239 = scmp.lt.s32.totalorder %s236, 3
        %s240 = scalar_select %p239, %s236, 3
        %s241 = smul.addr %s238, 4
        %s242 = sadd.s32 %s240, %s241
        %s243 = scalar_lea.vmem %s2, %s242
        %p244 = pneg %p113
        %p245 = pneg %p110
        %p246 = pneg %p143
        %p247 = pneg %p140
        %s248 = smul.u32 8, %s24
        %s249 = smul.u32 4, %s23
        %p250 = scmp.lt.s32.totalorder %s22, 1
        %s251 = scalar_select %p250, %s22, 1
        %p252 = scmp.lt.s32.totalorder %s248, 7
        %s253 = scalar_select %p252, %s248, 7
        %p254 = scmp.lt.s32.totalorder %s249, 3
        %s255 = scalar_select %p254, %s249, 3
        %s256 = smul.addr %s253, 4
        %s257 = sadd.s32 %s255, %s256
        %s258 = smul.addr %s251, 32
        %s259 = sadd.s32 %s257, %s258
        %s260 = smul.addr %s259, 4
        %s261 = scalar_lea.vmem %s3, %s260
        %s262 = smul.u32 8, %s24
        %p263 = scmp.lt.s32.totalorder %s262, 7
        %s264 = scalar_select %p263, %s262, 7
        %s265 = smul.addr %s264, 4
        %s266 = scalar_lea.vmem %s0, %s265
        %s267 = smul.u32 8, %s24
        %s268 = smul.u32 4, %s23
        %s269 = smul.u32 4, %s23
        %p270 = scmp.lt.s32.totalorder %s22, 1
        %s271 = scalar_select %p270, %s22, 1
        %p272 = scmp.lt.s32.totalorder %s269, 3
        %s273 = scalar_select %p272, %s269, 3
        %s274 = smul.addr %s271, 4
        %s275 = sadd.s32 %s273, %s274
        %s276 = scalar_lea.vmem %s2, %s275
        %s277 = smul.u32 4, %s23
        %s278 = smul.u32 8, %s24
        %s279 = smul.u32 4, %s23
        %p280 = scmp.lt.s32.totalorder %s22, 1
        %s281 = scalar_select %p280, %s22, 1
        %p282 = scmp.lt.s32.totalorder %s278, 7
        %s283 = scalar_select %p282, %s278, 7
        %p284 = scmp.lt.s32.totalorder %s279, 3
        %s285 = scalar_select %p284, %s279, 3
        %s286 = smul.addr %s283, 4
        %s287 = sadd.s32 %s285, %s286
        %s288 = smul.addr %s281, 32
        %s289 = sadd.s32 %s287, %s288
        %s290 = smul.addr %s289, 4
        %s291 = scalar_lea.vmem %s3, %s290
        %s292 = smul.u32 8, %s24
        %s293 = smul.u32 4, %s23
        %v295 = vld [vmem:[%s266] sm:$0xf]
        %v296 = vld [vmem:[%s266 + $0x4] sm:$0xf]
        %v297 = vld [vmem:[%s266 + $0x8] sm:$0xf]
        %v298 = vld [vmem:[%s266 + $0xc] sm:$0xf]
        %v299 = vld [vmem:[%s266 + $0x10] sm:$0xf]
        %v300 = vld [vmem:[%s266 + $0x14] sm:$0xf]
        %v301 = vld [vmem:[%s266 + $0x18] sm:$0xf]
        %v302 = vld [vmem:[%s266 + $0x1c] sm:$0xf]
        %v303 = vld [vmem:[%s217] sm:$0xff]
        %v304 = vld [vmem:[%s217 + $0x8] sm:$0xff]
        %v305 = vld [vmem:[%s217 + $0x10] sm:$0xff]
        %v306 = vld [vmem:[%s217 + $0x18] sm:$0xff]
        %v307 = vld [vmem:[%s217 + $0x20] sm:$0xff]
        %v308 = vld [vmem:[%s217 + $0x28] sm:$0xff]
        %v309 = vld [vmem:[%s217 + $0x30] sm:$0xff]
        %v310 = vld [vmem:[%s217 + $0x38] sm:$0xff]
        %v311 = vld [vmem:[%s217 + $0x40] sm:$0xff]
        %v312 = vld [vmem:[%s217 + $0x48] sm:$0xff]
        %v313 = vld [vmem:[%s217 + $0x50] sm:$0xff]
        %v314 = vld [vmem:[%s217 + $0x58] sm:$0xff]
        %v315 = vld [vmem:[%s217 + $0x60] sm:$0xff]
        %v316 = vld [vmem:[%s217 + $0x68] sm:$0xff]
        %v317 = vld [vmem:[%s217 + $0x70] sm:$0xff]
        %v318 = vld [vmem:[%s217 + $0x78] sm:$0xff]
        %v319 = vld [vmem:[%s217 + $0x80] sm:$0xff]
        %v320 = vld [vmem:[%s217 + $0x88] sm:$0xff]
        %v321 = vld [vmem:[%s217 + $0x90] sm:$0xff]
        %v322 = vld [vmem:[%s217 + $0x98] sm:$0xff]
        %v323 = vld [vmem:[%s217 + $0xa0] sm:$0xff]
        %v324 = vld [vmem:[%s217 + $0xa8] sm:$0xff]
        %v325 = vld [vmem:[%s217 + $0xb0] sm:$0xff]
        %v326 = vld [vmem:[%s217 + $0xb8] sm:$0xff]
        %v327 = vld [vmem:[%s217 + $0xc0] sm:$0xff]
        %v328 = vld [vmem:[%s217 + $0xc8] sm:$0xff]
        %v329 = vld [vmem:[%s217 + $0xd0] sm:$0xff]
        %v330 = vld [vmem:[%s217 + $0xd8] sm:$0xff]
        %v331 = vld [vmem:[%s217 + $0xe0] sm:$0xff]
        %v332 = vld [vmem:[%s217 + $0xe8] sm:$0xff]
        %v333 = vld [vmem:[%s217 + $0xf0] sm:$0xff]
        %v334 = vld [vmem:[%s217 + $0xf8] sm:$0xff]
        %v335 = vld [vmem:[%s276] sm:$0xf]
        %v337 = vlaneseq
        %v338 = vshrl.u32 %v337, 7
        %v339 = vsub.s32 0, %v338
        %v340 = vrot.slane %v335, %v339
        %v341 = vlaneseq
        %v342 = vshrl.u32 %v341, 7
        %v343 = vsub.s32 1, %v342
        %v344 = vrot.slane %v335, %v343
        %v345 = vlaneseq
        %v346 = vshrl.u32 %v345, 7
        %v347 = vsub.s32 2, %v346
        %v348 = vrot.slane %v335, %v347
        %v349 = vlaneseq
        %v350 = vshrl.u32 %v349, 7
        %v351 = vsub.s32 3, %v350
        %v352 = vrot.slane %v335, %v351
        %v365 = vunpack.c.l.b16 %v295
        %v366 = vunpack.c.l.b16 %v296
        %v367 = vunpack.c.l.b16 %v297
        %v368 = vunpack.c.l.b16 %v298
        %v369 = vunpack.c.l.b16 %v299
        %v370 = vunpack.c.l.b16 %v300
        %v371 = vunpack.c.l.b16 %v301
        %v372 = vunpack.c.l.b16 %v302
        %v373 = vpack.c.b16 %v366, %v365
        %v374 = vpack.c.b16 %v368, %v367
        %v375 = vpack.c.b16 %v370, %v369
        %v376 = vpack.c.b16 %v372, %v371
        %v413 = vunpack.c.l.b16 %v303
        %v414 = vunpack.c.h.b16 %v303
        %v415 = vunpack.c.l.b16 %v304
        %v416 = vunpack.c.h.b16 %v304
        %v417 = vunpack.c.l.b16 %v305
        %v418 = vunpack.c.h.b16 %v305
        %v419 = vunpack.c.l.b16 %v306
        %v420 = vunpack.c.h.b16 %v306
        %v421 = vunpack.c.l.b16 %v307
        %v422 = vunpack.c.h.b16 %v307
        %v423 = vunpack.c.l.b16 %v308
        %v424 = vunpack.c.h.b16 %v308
        %v425 = vunpack.c.l.b16 %v309
        %v426 = vunpack.c.h.b16 %v309
        %v427 = vunpack.c.l.b16 %v310
        %v428 = vunpack.c.h.b16 %v310
        %v429 = vunpack.c.l.b16 %v311
        %v430 = vunpack.c.h.b16 %v311
        %v431 = vunpack.c.l.b16 %v312
        %v432 = vunpack.c.h.b16 %v312
        %v433 = vunpack.c.l.b16 %v313
        %v434 = vunpack.c.h.b16 %v313
        %v435 = vunpack.c.l.b16 %v314
        %v436 = vunpack.c.h.b16 %v314
        %v437 = vunpack.c.l.b16 %v315
        %v438 = vunpack.c.h.b16 %v315
        %v439 = vunpack.c.l.b16 %v316
        %v440 = vunpack.c.h.b16 %v316
        %v441 = vunpack.c.l.b16 %v317
        %v442 = vunpack.c.h.b16 %v317
        %v443 = vunpack.c.l.b16 %v318
        %v444 = vunpack.c.h.b16 %v318
        %v445 = vunpack.c.l.b16 %v319
        %v446 = vunpack.c.h.b16 %v319
        %v447 = vunpack.c.l.b16 %v320
        %v448 = vunpack.c.h.b16 %v320
        %v449 = vunpack.c.l.b16 %v321
        %v450 = vunpack.c.h.b16 %v321
        %v451 = vunpack.c.l.b16 %v322
        %v452 = vunpack.c.h.b16 %v322
        %v453 = vunpack.c.l.b16 %v323
        %v454 = vunpack.c.h.b16 %v323
        %v455 = vunpack.c.l.b16 %v324
        %v456 = vunpack.c.h.b16 %v324
        %v457 = vunpack.c.l.b16 %v325
        %v458 = vunpack.c.h.b16 %v325
        %v459 = vunpack.c.l.b16 %v326
        %v460 = vunpack.c.h.b16 %v326
        %v461 = vunpack.c.l.b16 %v327
        %v462 = vunpack.c.h.b16 %v327
        %v463 = vunpack.c.l.b16 %v328
        %v464 = vunpack.c.h.b16 %v328
        %v465 = vunpack.c.l.b16 %v329
        %v466 = vunpack.c.h.b16 %v329
        %v467 = vunpack.c.l.b16 %v330
        %v468 = vunpack.c.h.b16 %v330
        %v469 = vunpack.c.l.b16 %v331
        %v470 = vunpack.c.h.b16 %v331
        %v471 = vunpack.c.l.b16 %v332
        %v472 = vunpack.c.h.b16 %v332
        %v473 = vunpack.c.l.b16 %v333
        %v474 = vunpack.c.h.b16 %v333
        %v475 = vunpack.c.l.b16 %v334
        %v476 = vunpack.c.h.b16 %v334
        %v477 = vpack.c.b16 %v417, %v413
        %v478 = vpack.c.b16 %v418, %v414
        %v479 = vpack.c.b16 %v419, %v415
        %v480 = vpack.c.b16 %v420, %v416
        %v481 = vpack.c.b16 %v425, %v421
        %v482 = vpack.c.b16 %v426, %v422
        %v483 = vpack.c.b16 %v427, %v423
        %v484 = vpack.c.b16 %v428, %v424
        %v485 = vpack.c.b16 %v433, %v429
        %v486 = vpack.c.b16 %v434, %v430
        %v487 = vpack.c.b16 %v435, %v431
        %v488 = vpack.c.b16 %v436, %v432
        %v489 = vpack.c.b16 %v441, %v437
        %v490 = vpack.c.b16 %v442, %v438
        %v491 = vpack.c.b16 %v443, %v439
        %v492 = vpack.c.b16 %v444, %v440
        %v493 = vpack.c.b16 %v449, %v445
        %v494 = vpack.c.b16 %v450, %v446
        %v495 = vpack.c.b16 %v451, %v447
        %v496 = vpack.c.b16 %v452, %v448
        %v497 = vpack.c.b16 %v457, %v453
        %v498 = vpack.c.b16 %v458, %v454
        %v499 = vpack.c.b16 %v459, %v455
        %v500 = vpack.c.b16 %v460, %v456
        %v501 = vpack.c.b16 %v465, %v461
        %v502 = vpack.c.b16 %v466, %v462
        %v503 = vpack.c.b16 %v467, %v463
        %v504 = vpack.c.b16 %v468, %v464
        %v505 = vpack.c.b16 %v473, %v469
        %v506 = vpack.c.b16 %v474, %v470
        %v507 = vpack.c.b16 %v475, %v471
        %v508 = vpack.c.b16 %v476, %v472
        %541 = vmatprep.subr.bf16.mxu0 %v478
        %542 = vmatpush1.bf16.msra.mxu0 %v477
        %543 = vmatprep.subr.bf16.mxu0 %v482
        %544 = vmatpush1.bf16.msra.mxu0 %v481
        %545 = vmatprep.subr.bf16.mxu0 %v486
        %546 = vmatpush1.bf16.msra.mxu0 %v485
        %547 = vmatprep.subr.bf16.mxu0 %v490
        %548 = vmatpush1.bf16.msra.mxu0 %v489
        %549 = vmatprep.subr.bf16.mxu0 %v494
        %550 = vmatpush1.bf16.msra.mxu0 %v493
        %551 = vmatprep.subr.bf16.mxu0 %v498
        %552 = vmatpush1.bf16.msra.mxu0 %v497
        %553 = vmatprep.subr.bf16.mxu0 %v502
        %554 = vmatpush1.bf16.msra.mxu0 %v501
        %555 = vmatprep.subr.bf16.mxu0 %v506
        %556 = vmatpush1.bf16.msra.mxu0 %v505
        %557 = vmatprep.subr.bf16.mxu0 0
        %558 = vmatpush1.bf16.msra.mxu0 0
        %559 = vmatprep.subr.bf16.mxu0 0
        %560 = vmatpush1.bf16.msra.mxu0 0
        %561 = vmatprep.subr.bf16.mxu0 0
        %562 = vmatpush1.bf16.msra.mxu0 0
        %563 = vmatprep.subr.bf16.mxu0 0
        %564 = vmatpush1.bf16.msra.mxu0 0
        %565 = vmatprep.subr.bf16.mxu0 0
        %566 = vmatpush1.bf16.msra.mxu0 0
        %567 = vmatprep.subr.bf16.mxu0 0
        %568 = vmatpush1.bf16.msra.mxu0 0
        %569 = vmatprep.subr.bf16.mxu0 0
        %570 = vmatpush1.bf16.msra.mxu0 0
        %571 = vmatprep.subr.bf16.mxu0 0
        %572 = vmatpush1.bf16.msra.mxu0 0
        %573 = vmatprep.mubr.bf16.mxu0 0
        %574 = vmatmul.mubr.bf16.gmra.mrb[0].mxu0 %v373
        %v575 = vpop.f32.mrb[0].mxu0
        %v576 = vadd.f32 %v340, %v575
        %v577 = vpop.f32.mrb[0].mxu0
        %v578 = vadd.f32 %v344, %v577
        %v579 = vpop.f32.mrb[0].mxu0
        %v580 = vadd.f32 %v340, %v579
        %v581 = vpop.f32.mrb[0].mxu0
        %v582 = vadd.f32 %v344, %v581
        %583 = vmatprep.mubr.bf16.mxu0 0
        %584 = vmatmul.mubr.bf16.gmra.mrb[0].mxu0 %v374
        %v585 = vpop.f32.mrb[0].mxu0
        %v586 = vadd.f32 %v340, %v585
        %v587 = vpop.f32.mrb[0].mxu0
        %v588 = vadd.f32 %v344, %v587
        %v589 = vpop.f32.mrb[0].mxu0
        %v590 = vadd.f32 %v340, %v589
        %v591 = vpop.f32.mrb[0].mxu0
        %v592 = vadd.f32 %v344, %v591
        %593 = vmatprep.mubr.bf16.mxu0 0
        %594 = vmatmul.mubr.bf16.gmra.mrb[0].mxu0 %v375
        %v595 = vpop.f32.mrb[0].mxu0
        %v596 = vadd.f32 %v340, %v595
        %v597 = vpop.f32.mrb[0].mxu0
        %v598 = vadd.f32 %v344, %v597
        %v599 = vpop.f32.mrb[0].mxu0
        %v600 = vadd.f32 %v340, %v599
        %v601 = vpop.f32.mrb[0].mxu0
        %v602 = vadd.f32 %v344, %v601
        %603 = vmatprep.mubr.bf16.mxu0 0
        %604 = vmatmul.mubr.bf16.gmra.mrb[0].mxu0 %v376
        %v605 = vpop.f32.mrb[0].mxu0
        %v606 = vadd.f32 %v340, %v605
        %v607 = vpop.f32.mrb[0].mxu0
        %v608 = vadd.f32 %v344, %v607
        %v609 = vpop.f32.mrb[0].mxu0
        %v610 = vadd.f32 %v340, %v609
        %v611 = vpop.f32.mrb[0].mxu0
        %v612 = vadd.f32 %v344, %v611
        %613 = vdwg.mxu0
        %614 = vmatprep.subr.bf16.mxu0 %v480
        %615 = vmatpush1.bf16.msra.mxu0 %v479
        %616 = vmatprep.subr.bf16.mxu0 %v484
        %617 = vmatpush1.bf16.msra.mxu0 %v483
        %618 = vmatprep.subr.bf16.mxu0 %v488
        %619 = vmatpush1.bf16.msra.mxu0 %v487
        %620 = vmatprep.subr.bf16.mxu0 %v492
        %621 = vmatpush1.bf16.msra.mxu0 %v491
        %622 = vmatprep.subr.bf16.mxu0 %v496
        %623 = vmatpush1.bf16.msra.mxu0 %v495
        %624 = vmatprep.subr.bf16.mxu0 %v500
        %625 = vmatpush1.bf16.msra.mxu0 %v499
        %626 = vmatprep.subr.bf16.mxu0 %v504
        %627 = vmatpush1.bf16.msra.mxu0 %v503
        %628 = vmatprep.subr.bf16.mxu0 %v508
        %629 = vmatpush1.bf16.msra.mxu0 %v507
        %630 = vmatprep.subr.bf16.mxu0 0
        %631 = vmatpush1.bf16.msra.mxu0 0
        %632 = vmatprep.subr.bf16.mxu0 0
        %633 = vmatpush1.bf16.msra.mxu0 0
        %634 = vmatprep.subr.bf16.mxu0 0
        %635 = vmatpush1.bf16.msra.mxu0 0
        %636 = vmatprep.subr.bf16.mxu0 0
        %637 = vmatpush1.bf16.msra.mxu0 0
        %638 = vmatprep.subr.bf16.mxu0 0
        %639 = vmatpush1.bf16.msra.mxu0 0
        %640 = vmatprep.subr.bf16.mxu0 0
        %641 = vmatpush1.bf16.msra.mxu0 0
        %642 = vmatprep.subr.bf16.mxu0 0
        %643 = vmatpush1.bf16.msra.mxu0 0
        %644 = vmatprep.subr.bf16.mxu0 0
        %645 = vmatpush1.bf16.msra.mxu0 0
        %646 = vmatprep.mubr.bf16.mxu0 0
        %647 = vmatmul.mubr.bf16.gmra.mrb[0].mxu0 %v373
        %v648 = vpop.f32.mrb[0].mxu0
        %v649 = vadd.f32 %v348, %v648
        %v650 = vpop.f32.mrb[0].mxu0
        %v651 = vadd.f32 %v352, %v650
        %v652 = vpop.f32.mrb[0].mxu0
        %v653 = vadd.f32 %v348, %v652
        %v654 = vpop.f32.mrb[0].mxu0
        %v655 = vadd.f32 %v352, %v654
        %656 = vmatprep.mubr.bf16.mxu0 0
        %657 = vmatmul.mubr.bf16.gmra.mrb[0].mxu0 %v374
        %v658 = vpop.f32.mrb[0].mxu0
        %v659 = vadd.f32 %v348, %v658
        %v660 = vpop.f32.mrb[0].mxu0
        %v661 = vadd.f32 %v352, %v660
        %v662 = vpop.f32.mrb[0].mxu0
        %v663 = vadd.f32 %v348, %v662
        %v664 = vpop.f32.mrb[0].mxu0
        %v665 = vadd.f32 %v352, %v664
        %666 = vmatprep.mubr.bf16.mxu0 0
        %667 = vmatmul.mubr.bf16.gmra.mrb[0].mxu0 %v375
        %v668 = vpop.f32.mrb[0].mxu0
        %v669 = vadd.f32 %v348, %v668
        %v670 = vpop.f32.mrb[0].mxu0
        %v671 = vadd.f32 %v352, %v670
        %v672 = vpop.f32.mrb[0].mxu0
        %v673 = vadd.f32 %v348, %v672
        %v674 = vpop.f32.mrb[0].mxu0
        %v675 = vadd.f32 %v352, %v674
        %676 = vmatprep.mubr.bf16.mxu0 0
        %677 = vmatmul.mubr.bf16.gmra.mrb[0].mxu0 %v376
        %v678 = vpop.f32.mrb[0].mxu0
        %v679 = vadd.f32 %v348, %v678
        %v680 = vpop.f32.mrb[0].mxu0
        %v681 = vadd.f32 %v352, %v680
        %v682 = vpop.f32.mrb[0].mxu0
        %v683 = vadd.f32 %v348, %v682
        %v684 = vpop.f32.mrb[0].mxu0
        %v685 = vadd.f32 %v352, %v684
        %686 = vdwg.mxu0
        %v687 = vpack.c.bf16 %v580, %v576
        %v688 = vpack.c.bf16 %v582, %v578
        %v689 = vpack.c.bf16 %v653, %v649
        %v690 = vpack.c.bf16 %v655, %v651
        %v691 = vpack.c.bf16 %v590, %v586
        %v692 = vpack.c.bf16 %v592, %v588
        %v693 = vpack.c.bf16 %v663, %v659
        %v694 = vpack.c.bf16 %v665, %v661
        %v695 = vpack.c.bf16 %v600, %v596
        %v696 = vpack.c.bf16 %v602, %v598
        %v697 = vpack.c.bf16 %v673, %v669
        %v698 = vpack.c.bf16 %v675, %v671
        %v699 = vpack.c.bf16 %v610, %v606
        %v700 = vpack.c.bf16 %v612, %v608
        %v701 = vpack.c.bf16 %v683, %v679
        %v702 = vpack.c.bf16 %v685, %v681
        %v719 = vunpack.c.l.b16 %v687
        %v720 = vunpack.c.l.b16 %v688
        %v721 = vunpack.c.l.b16 %v689
        %v722 = vunpack.c.l.b16 %v690
        %v723 = vunpack.c.h.b16 %v687
        %v724 = vunpack.c.h.b16 %v688
        %v725 = vunpack.c.h.b16 %v689
        %v726 = vunpack.c.h.b16 %v690
        %v727 = vunpack.c.l.b16 %v691
        %v728 = vunpack.c.l.b16 %v692
        %v729 = vunpack.c.l.b16 %v693
        %v730 = vunpack.c.l.b16 %v694
        %v731 = vunpack.c.h.b16 %v691
        %v732 = vunpack.c.h.b16 %v692
        %v733 = vunpack.c.h.b16 %v693
        %v734 = vunpack.c.h.b16 %v694
        %v735 = vunpack.c.l.b16 %v695
        %v736 = vunpack.c.l.b16 %v696
        %v737 = vunpack.c.l.b16 %v697
        %v738 = vunpack.c.l.b16 %v698
        %v739 = vunpack.c.h.b16 %v695
        %v740 = vunpack.c.h.b16 %v696
        %v741 = vunpack.c.h.b16 %v697
        %v742 = vunpack.c.h.b16 %v698
        %v743 = vunpack.c.l.b16 %v699
        %v744 = vunpack.c.l.b16 %v700
        %v745 = vunpack.c.l.b16 %v701
        %v746 = vunpack.c.l.b16 %v702
        %v747 = vunpack.c.h.b16 %v699
        %v748 = vunpack.c.h.b16 %v700
        %v749 = vunpack.c.h.b16 %v701
        %v750 = vunpack.c.h.b16 %v702
        %v751 = vpack.c.b16 %v720, %v719
        %v752 = vpack.c.b16 %v722, %v721
        %v753 = vpack.c.b16 %v724, %v723
        %v754 = vpack.c.b16 %v726, %v725
        %v755 = vpack.c.b16 %v728, %v727
        %v756 = vpack.c.b16 %v730, %v729
        %v757 = vpack.c.b16 %v732, %v731
        %v758 = vpack.c.b16 %v734, %v733
        %v759 = vpack.c.b16 %v736, %v735
        %v760 = vpack.c.b16 %v738, %v737
        %v761 = vpack.c.b16 %v740, %v739
        %v762 = vpack.c.b16 %v742, %v741
        %v763 = vpack.c.b16 %v744, %v743
        %v764 = vpack.c.b16 %v746, %v745
        %v765 = vpack.c.b16 %v748, %v747
        %v766 = vpack.c.b16 %v750, %v749
        %783 = vst [vmem:[%s291] sm:$0xff] %v751
        %784 = vst [vmem:[%s291 + $0x8] sm:$0xff] %v752
        %785 = vst [vmem:[%s291 + $0x10] sm:$0xff] %v753
        %786 = vst [vmem:[%s291 + $0x18] sm:$0xff] %v754
        %787 = vst [vmem:[%s291 + $0x20] sm:$0xff] %v755
        %788 = vst [vmem:[%s291 + $0x28] sm:$0xff] %v756
        %789 = vst [vmem:[%s291 + $0x30] sm:$0xff] %v757
        %790 = vst [vmem:[%s291 + $0x38] sm:$0xff] %v758
        %791 = vst [vmem:[%s291 + $0x40] sm:$0xff] %v759
        %792 = vst [vmem:[%s291 + $0x48] sm:$0xff] %v760
        %793 = vst [vmem:[%s291 + $0x50] sm:$0xff] %v761
        %794 = vst [vmem:[%s291 + $0x58] sm:$0xff] %v762
        %795 = vst [vmem:[%s291 + $0x60] sm:$0xff] %v763
        %796 = vst [vmem:[%s291 + $0x68] sm:$0xff] %v764
        %797 = vst [vmem:[%s291 + $0x70] sm:$0xff] %v765
        %798 = vst [vmem:[%s291 + $0x78] sm:$0xff] %v766
        %s799 = smul.u32 8, %s24
        %s800 = smul.u32 4, %s23
        %p801 = scmp.lt.s32.totalorder %s22, 1
        %s802 = scalar_select %p801, %s22, 1
        %p803 = scmp.lt.s32.totalorder %s799, 7
        %s804 = scalar_select %p803, %s799, 7
        %p805 = scmp.lt.s32.totalorder %s800, 3
        %s806 = scalar_select %p805, %s800, 3
        %s807 = smul.addr %s804, 4
        %s808 = sadd.s32 %s806, %s807
        %s809 = smul.addr %s802, 32
        %s810 = sadd.s32 %s808, %s809
        %s811 = smul.addr %s810, 4
        %s812 = scalar_lea.vmem %s3, %s811
        // Predicated region
        $region37: #{lstm_model_forward.5} parent=31 // pred_check
          %p813 = pneg %p140
        $region38: #{lstm_model_forward.5} parent=31 // pred_check_branch
          %815 = sbr.rel (%p813) target = $region40
        $region39: #{lstm_model_forward.5} parent=31 // pred_region
          %s816 = smul.u32 8, %s24
          %s817 = smul.u32 4, %s23
        $region40: #{lstm_model_forward.5} parent=31 // pred_fallthru
          _
      $region32: #{lstm_model_forward.5} parent=5 // pred_fallthru
        _
      %p818 = scmp.le.s32.totalorder 2, %s12
      // Predicated region
      $region41: #{lstm_model_forward.5} parent=5 // pred_check
        %p819 = pneg %p818
      $region42: #{lstm_model_forward.5} parent=5 // pred_check_branch
        %821 = sbr.rel (%p819) target = $region44
      $region43: #{lstm_model_forward.5} parent=5 // pred_region
        %s822 = ssub.s32 %s12, 2
        // Predicated region
        $region45: #{lstm_model_forward.5} parent=43 // pred_check
          %p823 = pneg %p146
        $region46: #{lstm_model_forward.5} parent=43 // pred_check_branch
          %825 = sbr.rel (%p823) target = $region48
        $region47: #{lstm_model_forward.5} parent=43 // pred_region
          %s826 = smul.u32 8, %s27
          %s827 = smul.u32 4, %s26
          %p828 = scmp.lt.s32.totalorder %s25, 1
          %s829 = scalar_select %p828, %s25, 1
          %p830 = scmp.lt.s32.totalorder %s826, 7
          %s831 = scalar_select %p830, %s826, 7
          %p832 = scmp.lt.s32.totalorder %s827, 3
          %s833 = scalar_select %p832, %s827, 3
          %s834 = smul.addr %s831, 4
          %s835 = sadd.s32 %s833, %s834
          %s836 = smul.addr %s829, 32
          %s837 = sadd.s32 %s835, %s836
          %s838 = smul.addr %s837, 4
          %s839 = scalar_lea.vmem %s3, %s838
        $region48: #{lstm_model_forward.5} parent=43 // pred_fallthru
          _
      $region44: #{lstm_model_forward.5} parent=5 // pred_fallthru
        _
    $region6: #{lstm_model_forward.5} parent=1 // loop_footer
      %s16 = sadd.s32 1, %s12
    $region7: #{lstm_model_forward.5} parent=1 // loop_footer_branch
      %11 = sbr.rel target = $region3
    $region8: #{lstm_model_forward.5} parent=1 // loop_exit
      _
    %840 = vsyncpa [#allocation3], 1
    %s841 = scalar_lea.sflag [#allocation3], 1
    %842 = vsyncpa %s841, 1

// kernel: lstm_model_forward.7
$region0: #{lstm_model_forward.7}
  #allocation0 [shape = 'u32[]', space=smem, size = 0x4, offset = 0x4, fixed_abs, tag = 'smem constant byte address 0x4 - core index']
  #allocation1 [shape = 'u32[144,128]{1,0:T(1,128)}', space=vmem, size = 0x12000, scoped, tag = 'internal scratch']
  %s0 = inlined_call_operand.vmem [shape: bf16[64,128], index: 0, kind: input, shape index: {}]
  %s1 = inlined_call_operand.vmem [shape: bf16[64,128], index: 1, kind: input, shape index: {}]
  %s2 = inlined_call_operand.vmem [shape: bf16[2,2,128,512], index: 2, kind: input, shape index: {}]
  %s3 = inlined_call_operand.vmem [shape: f32[2,1,512], index: 3, kind: input, shape index: {}]
  %s4 = inlined_call_operand.vmem [shape: bf16[2,64,512], index: 4, kind: output, shape index: {}]
  %s5 = sld [smem:[#allocation0]]
  $region49: #{lstm_model_forward.7} parent=0
    _
  %s7 = ssub.s32 1, %s5
  %s8 = scalar_select 0, %s7, %s5
  loop: start=0, step=1, limit=4
  $region2: #{lstm_model_forward.7} parent=0 // loop_pre_header
    _
  $region3: #{lstm_model_forward.7} parent=0 // loop_header
    %s10 = sphi 0, %s14
    %p11 = scmp.ge.s32.totalorder %s10, 4
    %s17 = sphi 0, %s36
    %s18 = sphi 0, %s32
    %s19 = sphi 0, %s28
    %s20 = sphi 0, %s17
    %s21 = sphi 0, %s18
    %s22 = sphi 0, %s19
    %s23 = sphi 0, %s20
    %s24 = sphi 0, %s21
    %s25 = sphi 0, %s22
    %s39 = sphi 0, %s41
    %s42 = sphi 0, %s39
    %s43 = sphi 0, %s42
    %s59 = sphi 0, %s43
    %s65 = sphi 0, %s67
    %s68 = sphi 0, %s65
    %s69 = sphi 0, %s68
    %s85 = sphi 0, %s69
    %s93 = sphi 0, %s95
    %s96 = sphi 0, %s93
    %s97 = sphi 0, %s96
    %s113 = sphi 0, %s97
    %s121 = sphi 0, %s123
    %s124 = sphi 0, %s121
    %s125 = sphi 0, %s124
    %s141 = sphi 0, %s125
    %s151 = sphi 0, %s153
    %s154 = sphi 0, %s151
    %s155 = sphi 0, %s154
    %s171 = sphi 0, %s155
  $region4: #{lstm_model_forward.7} parent=0 // loop_header_branch
    %13 = sbr.rel (%p11) target = $region8
  $region5: #{lstm_model_forward.7} parent=0 // loop_body
    %s15 = ssub.s32 %s10, 1
    %s16 = ssub.s32 %s10, 2
    %s26 = sadd.s32 1, %s19
    %p27 = scmp.ge.s32.totalorder %s26, 1
    %s28 = scalar_select %p27, 0, %s26
    %s29 = sadd.s32 1, %s18
    %s30 = scalar_select %p27, %s29, %s18
    %p31 = scmp.ge.s32.totalorder %s30, 1
    %s32 = scalar_select %p31, 0, %s30
    %s33 = sadd.s32 1, %s17
    %s34 = scalar_select %p31, %s33, %s17
    %p35 = scmp.ge.s32.totalorder %s34, 2
    %s36 = scalar_select %p35, 0, %s34
    %s37 = ssub.s32 %s19, %s28
    %p38 = scmp.eq.s32.totalorder %s37, 0
    %s40 = sadd.s32 %s39, 1
    %s41 = scalar_select %p38, %s39, %s40
    %p44 = pneg %p38
    %p45 = scmp.eq.s32.totalorder %s10, 1
    %p46 = por %p44, %p45
    %p47 = scmp.ne.s32.totalorder %s39, %s42
    %p48 = scmp.eq.s32.totalorder %s10, 0
    %p49 = por %p47, %p48
    %p50 = scmp.ne.s32.totalorder %s39, %s42
    %p51 = scmp.eq.s32.totalorder %s15, 1
    %p52 = por %p50, %p51
    %p53 = scmp.ne.s32.totalorder %s42, %s43
    %p54 = scmp.eq.s32.totalorder %s15, 0
    %p55 = por %p53, %p54
    %p56 = scmp.ne.s32.totalorder %s42, %s43
    %p57 = scmp.eq.s32.totalorder %s16, 1
    %p58 = por %p56, %p57
    %p60 = scmp.ne.s32.totalorder %s43, %s59
    %p61 = scmp.eq.s32.totalorder %s16, 0
    %p62 = por %p60, %p61
    %s63 = ssub.s32 %s19, %s28
    %p64 = scmp.eq.s32.totalorder %s63, 0
    %s66 = sadd.s32 %s65, 1
    %s67 = scalar_select %p64, %s65, %s66
    %p70 = pneg %p64
    %p71 = scmp.eq.s32.totalorder %s10, 1
    %p72 = por %p70, %p71
    %p73 = scmp.ne.s32.totalorder %s65, %s68
    %p74 = scmp.eq.s32.totalorder %s10, 0
    %p75 = por %p73, %p74
    %p76 = scmp.ne.s32.totalorder %s65, %s68
    %p77 = scmp.eq.s32.totalorder %s15, 1
    %p78 = por %p76, %p77
    %p79 = scmp.ne.s32.totalorder %s68, %s69
    %p80 = scmp.eq.s32.totalorder %s15, 0
    %p81 = por %p79, %p80
    %p82 = scmp.ne.s32.totalorder %s68, %s69
    %p83 = scmp.eq.s32.totalorder %s16, 1
    %p84 = por %p82, %p83
    %p86 = scmp.ne.s32.totalorder %s69, %s85
    %p87 = scmp.eq.s32.totalorder %s16, 0
    %p88 = por %p86, %p87
    %s89 = ssub.s32 %s17, %s36
    %s90 = ssub.s32 %s18, %s32
    %s91 = sor.u32 %s89, %s90
    %p92 = scmp.eq.s32.totalorder %s91, 0
    %s94 = sadd.s32 %s93, 1
    %s95 = scalar_select %p92, %s93, %s94
    %p98 = pneg %p92
    %p99 = scmp.eq.s32.totalorder %s10, 1
    %p100 = por %p98, %p99
    %p101 = scmp.ne.s32.totalorder %s93, %s96
    %p102 = scmp.eq.s32.totalorder %s10, 0
    %p103 = por %p101, %p102
    %p104 = scmp.ne.s32.totalorder %s93, %s96
    %p105 = scmp.eq.s32.totalorder %s15, 1
    %p106 = por %p104, %p105
    %p107 = scmp.ne.s32.totalorder %s96, %s97
    %p108 = scmp.eq.s32.totalorder %s15, 0
    %p109 = por %p107, %p108
    %p110 = scmp.ne.s32.totalorder %s96, %s97
    %p111 = scmp.eq.s32.totalorder %s16, 1
    %p112 = por %p110, %p111
    %p114 = scmp.ne.s32.totalorder %s97, %s113
    %p115 = scmp.eq.s32.totalorder %s16, 0
    %p116 = por %p114, %p115
    %s117 = ssub.s32 %s17, %s36
    %s118 = ssub.s32 %s18, %s32
    %s119 = sor.u32 %s117, %s118
    %p120 = scmp.eq.s32.totalorder %s119, 0
    %s122 = sadd.s32 %s121, 1
    %s123 = scalar_select %p120, %s121, %s122
    %p126 = pneg %p120
    %p127 = scmp.eq.s32.totalorder %s10, 1
    %p128 = por %p126, %p127
    %p129 = scmp.ne.s32.totalorder %s121, %s124
    %p130 = scmp.eq.s32.totalorder %s10, 0
    %p131 = por %p129, %p130
    %p132 = scmp.ne.s32.totalorder %s121, %s124
    %p133 = scmp.eq.s32.totalorder %s15, 1
    %p134 = por %p132, %p133
    %p135 = scmp.ne.s32.totalorder %s124, %s125
    %p136 = scmp.eq.s32.totalorder %s15, 0
    %p137 = por %p135, %p136
    %p138 = scmp.ne.s32.totalorder %s124, %s125
    %p139 = scmp.eq.s32.totalorder %s16, 1
    %p140 = por %p138, %p139
    %p142 = scmp.ne.s32.totalorder %s125, %s141
    %p143 = scmp.eq.s32.totalorder %s16, 0
    %p144 = por %p142, %p143
    %s145 = ssub.s32 %s17, %s36
    %s146 = ssub.s32 %s19, %s28
    %s147 = sor.u32 %s145, %s146
    %s148 = ssub.s32 %s18, %s32
    %s149 = sor.u32 %s147, %s148
    %p150 = scmp.eq.s32.totalorder %s149, 0
    %s152 = sadd.s32 %s151, 1
    %s153 = scalar_select %p150, %s151, %s152
    %p156 = pneg %p150
    %p157 = scmp.eq.s32.totalorder %s10, 1
    %p158 = por %p156, %p157
    %p159 = scmp.ne.s32.totalorder %s151, %s154
    %p160 = scmp.eq.s32.totalorder %s10, 0
    %p161 = por %p159, %p160
    %p162 = scmp.ne.s32.totalorder %s151, %s154
    %p163 = scmp.eq.s32.totalorder %s15, 1
    %p164 = por %p162, %p163
    %p165 = scmp.ne.s32.totalorder %s154, %s155
    %p166 = scmp.eq.s32.totalorder %s15, 0
    %p167 = por %p165, %p166
    %p168 = scmp.ne.s32.totalorder %s154, %s155
    %p169 = scmp.eq.s32.totalorder %s16, 1
    %p170 = por %p168, %p169
    %p172 = scmp.ne.s32.totalorder %s155, %s171
    %p173 = scmp.eq.s32.totalorder %s16, 0
    %p174 = por %p172, %p173
    %p175 = scmp.le.s32.totalorder 1, %s10
    %p176 = scmp.lt.s32.totalorder %s10, 3
    %p177 = pnand %p175, %p176
    %p178 = pneg %p177
    // Predicated region
    $region9: #{lstm_model_forward.7} parent=5 // pred_check
      _
    $region10: #{lstm_model_forward.7} parent=5 // pred_check_branch
      %180 = sbr.rel (%p177) target = $region12
    $region11: #{lstm_model_forward.7} parent=5 // pred_region
      %s181 = ssub.s32 %s10, 1
      // Predicated region
      $region13: #{lstm_model_forward.7} parent=11 // pred_check
        %p182 = pneg %p55
      $region14: #{lstm_model_forward.7} parent=11 // pred_check_branch
        %184 = sbr.rel (%p182) target = $region16
      $region15: #{lstm_model_forward.7} parent=11 // pred_region
        %s185 = smul.u32 8, %s22
        %p186 = scmp.lt.s32.totalorder %s185, 7
        %s187 = scalar_select %p186, %s185, 7
        %s188 = smul.addr %s187, 4
        %s189 = scalar_lea.vmem %s0, %s188
        %s190 = smul.u32 8, %s22
      $region16: #{lstm_model_forward.7} parent=11 // pred_fallthru
        _
      // Predicated region
      $region17: #{lstm_model_forward.7} parent=11 // pred_check
        %p191 = pneg %p81
      $region18: #{lstm_model_forward.7} parent=11 // pred_check_branch
        %193 = sbr.rel (%p191) target = $region20
      $region19: #{lstm_model_forward.7} parent=11 // pred_region
        %s194 = smul.u32 8, %s22
        %p195 = scmp.lt.s32.totalorder %s194, 7
        %s196 = scalar_select %p195, %s194, 7
        %s197 = smul.addr %s196, 4
        %s198 = scalar_lea.vmem %s1, %s197
        %s199 = smul.u32 8, %s22
      $region20: #{lstm_model_forward.7} parent=11 // pred_fallthru
        _
    $region12: #{lstm_model_forward.7} parent=5 // pred_fallthru
      _
    %p200 = scmp.lt.s32.totalorder %s10, 2
    // Predicated region
    $region21: #{lstm_model_forward.7} parent=5 // pred_check
      %p201 = pneg %p200
    $region22: #{lstm_model_forward.7} parent=5 // pred_check_branch
      %203 = sbr.rel (%p201) target = $region24
    $region23: #{lstm_model_forward.7} parent=5 // pred_region
      // Predicated region
      $region25: #{lstm_model_forward.7} parent=23 // pred_check
        %p204 = pneg %p103
      $region26: #{lstm_model_forward.7} parent=23 // pred_check_branch
        %206 = sbr.rel (%p204) target = $region28
      $region27: #{lstm_model_forward.7} parent=23 // pred_region
        %s207 = smul.u32 4, %s18
        %p208 = scmp.lt.s32.totalorder %s17, 1
        %s209 = scalar_select %p208, %s17, 1
        %p210 = scmp.lt.s32.totalorder %s207, 3
        %s211 = scalar_select %p210, %s207, 3
        %s212 = smul.addr %s209, 128
        %s213 = sadd.s32 %s211, %s212
        %s214 = smul.addr %s213, 4
        %s215 = scalar_lea.vmem %s2, %s214
        %s216 = smul.u32 4, %s18
      $region28: #{lstm_model_forward.7} parent=23 // pred_fallthru
        _
      // Predicated region
      $region29: #{lstm_model_forward.7} parent=23 // pred_check
        %p217 = pneg %p131
      $region30: #{lstm_model_forward.7} parent=23 // pred_check_branch
        %219 = sbr.rel (%p217) target = $region32
      $region31: #{lstm_model_forward.7} parent=23 // pred_region
        %s220 = smul.u32 4, %s18
        %p221 = scmp.lt.s32.totalorder %s17, 1
        %s222 = scalar_select %p221, %s17, 1
        %p223 = scmp.lt.s32.totalorder %s220, 3
        %s224 = scalar_select %p223, %s220, 3
        %s225 = smul.addr %s222, 4
        %s226 = sadd.s32 %s224, %s225
        %s227 = scalar_lea.vmem %s3, %s226
        %s228 = smul.u32 4, %s18
      $region32: #{lstm_model_forward.7} parent=23 // pred_fallthru
        _
    $region24: #{lstm_model_forward.7} parent=5 // pred_fallthru
      _
    %p229 = scmp.le.s32.totalorder 1, %s10
    %p230 = scmp.lt.s32.totalorder %s10, 3
    %p231 = pnand %p229, %p230
    %p232 = pneg %p231
    // Predicated region
    $region33: #{lstm_model_forward.7} parent=5 // pred_check
      _
    $region34: #{lstm_model_forward.7} parent=5 // pred_check_branch
      %234 = sbr.rel (%p231) target = $region36
    $region35: #{lstm_model_forward.7} parent=5 // pred_region
      %s235 = ssub.s32 %s10, 1
      %s236 = smul.u32 8, %s22
      %p237 = scmp.lt.s32.totalorder %s236, 7
      %s238 = scalar_select %p237, %s236, 7
      %s239 = smul.addr %s238, 4
      %s240 = scalar_lea.vmem %s0, %s239
      %p241 = pneg %p55
      %p242 = pneg %p52
      %s243 = smul.u32 8, %s22
      %p244 = scmp.lt.s32.totalorder %s243, 7
      %s245 = scalar_select %p244, %s243, 7
      %s246 = smul.addr %s245, 4
      %s247 = scalar_lea.vmem %s1, %s246
      %p248 = pneg %p81
      %p249 = pneg %p78
      %s250 = smul.u32 4, %s21
      %p251 = scmp.lt.s32.totalorder %s20, 1
      %s252 = scalar_select %p251, %s20, 1
      %p253 = scmp.lt.s32.totalorder %s250, 3
      %s254 = scalar_select %p253, %s250, 3
      %s255 = smul.addr %s252, 128
      %s256 = sadd.s32 %s254, %s255
      %s257 = smul.addr %s256, 4
      %s258 = scalar_lea.vmem %s2, %s257
      %p259 = pneg %p109
      %p260 = pneg %p106
      %s261 = smul.u32 4, %s21
      %p262 = scmp.lt.s32.totalorder %s20, 1
      %s263 = scalar_select %p262, %s20, 1
      %p264 = scmp.lt.s32.totalorder %s261, 3
      %s265 = scalar_select %p264, %s261, 3
      %s266 = smul.addr %s263, 4
      %s267 = sadd.s32 %s265, %s266
      %s268 = scalar_lea.vmem %s3, %s267
      %p269 = pneg %p137
      %p270 = pneg %p134
      %p271 = pneg %p167
      %p272 = pneg %p164
      %s273 = smul.u32 8, %s22
      %s274 = smul.u32 4, %s21
      %p275 = scmp.lt.s32.totalorder %s20, 1
      %s276 = scalar_select %p275, %s20, 1
      %p277 = scmp.lt.s32.totalorder %s273, 7
      %s278 = scalar_select %p277, %s273, 7
      %p279 = scmp.lt.s32.totalorder %s274, 3
      %s280 = scalar_select %p279, %s274, 3
      %s281 = smul.addr %s278, 4
      %s282 = sadd.s32 %s280, %s281
      %s283 = smul.addr %s276, 32
      %s284 = sadd.s32 %s282, %s283
      %s285 = smul.addr %s284, 4
      %s286 = scalar_lea.vmem %s4, %s285
      %s287 = smul.u32 8, %s22
      %p288 = scmp.lt.s32.totalorder %s287, 7
      %s289 = scalar_select %p288, %s287, 7
      %s290 = smul.addr %s289, 4
      %s291 = scalar_lea.vmem %s0, %s290
      %s292 = smul.u32 8, %s22
      %s293 = smul.u32 8, %s22
      %p294 = scmp.lt.s32.totalorder %s293, 7
      %s295 = scalar_select %p294, %s293, 7
      %s296 = smul.addr %s295, 4
      %s297 = scalar_lea.vmem %s1, %s296
      %s298 = smul.u32 8, %s22
      %s299 = smul.u32 4, %s21
      %p300 = scmp.lt.s32.totalorder %s20, 1
      %s301 = scalar_select %p300, %s20, 1
      %p302 = scmp.lt.s32.totalorder %s299, 3
      %s303 = scalar_select %p302, %s299, 3
      %s304 = smul.addr %s301, 128
      %s305 = sadd.s32 %s303, %s304
      %s306 = smul.addr %s305, 4
      %s307 = scalar_lea.vmem %s2, %s306
      %s308 = smul.u32 4, %s21
      %s309 = smul.u32 4, %s21
      %p310 = scmp.lt.s32.totalorder %s20, 1
      %s311 = scalar_select %p310, %s20, 1
      %p312 = scmp.lt.s32.totalorder %s309, 3
      %s313 = scalar_select %p312, %s309, 3
      %s314 = smul.addr %s311, 4
      %s315 = sadd.s32 %s313, %s314
      %s316 = scalar_lea.vmem %s3, %s315
      %s317 = smul.u32 4, %s21
      %s318 = smul.u32 8, %s22
      %s319 = smul.u32 4, %s21
      %p320 = scmp.lt.s32.totalorder %s20, 1
      %s321 = scalar_select %p320, %s20, 1
      %p322 = scmp.lt.s32.totalorder %s318, 7
      %s323 = scalar_select %p322, %s318, 7
      %p324 = scmp.lt.s32.totalorder %s319, 3
      %s325 = scalar_select %p324, %s319, 3
      %s326 = smul.addr %s323, 4
      %s327 = sadd.s32 %s325, %s326
      %s328 = smul.addr %s321, 32
      %s329 = sadd.s32 %s327, %s328
      %s330 = smul.addr %s329, 4
      %s331 = scalar_lea.vmem %s4, %s330
      %s332 = smul.u32 8, %s22
      %s333 = smul.u32 4, %s21
      %v335 = vld [vmem:[%s291] sm:$0xf]
      %v336 = vld [vmem:[%s291 + $0x4] sm:$0xf]
      %v337 = vld [vmem:[%s291 + $0x8] sm:$0xf]
      %v338 = vld [vmem:[%s291 + $0xc] sm:$0xf]
      %v339 = vld [vmem:[%s291 + $0x10] sm:$0xf]
      %v340 = vld [vmem:[%s291 + $0x14] sm:$0xf]
      %v341 = vld [vmem:[%s291 + $0x18] sm:$0xf]
      %v342 = vld [vmem:[%s291 + $0x1c] sm:$0xf]
      %v343 = vld [vmem:[%s307] sm:$0xff]
      %v344 = vld [vmem:[%s307 + $0x8] sm:$0xff]
      %v345 = vld [vmem:[%s307 + $0x10] sm:$0xff]
      %v346 = vld [vmem:[%s307 + $0x18] sm:$0xff]
      %v347 = vld [vmem:[%s307 + $0x20] sm:$0xff]
      %v348 = vld [vmem:[%s307 + $0x28] sm:$0xff]
      %v349 = vld [vmem:[%s307 + $0x30] sm:$0xff]
      %v350 = vld [vmem:[%s307 + $0x38] sm:$0xff]
      %v351 = vld [vmem:[%s307 + $0x40] sm:$0xff]
      %v352 = vld [vmem:[%s307 + $0x48] sm:$0xff]
      %v353 = vld [vmem:[%s307 + $0x50] sm:$0xff]
      %v354 = vld [vmem:[%s307 + $0x58] sm:$0xff]
      %v355 = vld [vmem:[%s307 + $0x60] sm:$0xff]
      %v356 = vld [vmem:[%s307 + $0x68] sm:$0xff]
      %v357 = vld [vmem:[%s307 + $0x70] sm:$0xff]
      %v358 = vld [vmem:[%s307 + $0x78] sm:$0xff]
      %v359 = vld [vmem:[%s307 + $0x80] sm:$0xff]
      %v360 = vld [vmem:[%s307 + $0x88] sm:$0xff]
      %v361 = vld [vmem:[%s307 + $0x90] sm:$0xff]
      %v362 = vld [vmem:[%s307 + $0x98] sm:$0xff]
      %v363 = vld [vmem:[%s307 + $0xa0] sm:$0xff]
      %v364 = vld [vmem:[%s307 + $0xa8] sm:$0xff]
      %v365 = vld [vmem:[%s307 + $0xb0] sm:$0xff]
      %v366 = vld [vmem:[%s307 + $0xb8] sm:$0xff]
      %v367 = vld [vmem:[%s307 + $0xc0] sm:$0xff]
      %v368 = vld [vmem:[%s307 + $0xc8] sm:$0xff]
      %v369 = vld [vmem:[%s307 + $0xd0] sm:$0xff]
      %v370 = vld [vmem:[%s307 + $0xd8] sm:$0xff]
      %v371 = vld [vmem:[%s307 + $0xe0] sm:$0xff]
      %v372 = vld [vmem:[%s307 + $0xe8] sm:$0xff]
      %v373 = vld [vmem:[%s307 + $0xf0] sm:$0xff]
      %v374 = vld [vmem:[%s307 + $0xf8] sm:$0xff]
      %v375 = vld [vmem:[%s297] sm:$0xf]
      %v376 = vld [vmem:[%s297 + $0x4] sm:$0xf]
      %v377 = vld [vmem:[%s297 + $0x8] sm:$0xf]
      %v378 = vld [vmem:[%s297 + $0xc] sm:$0xf]
      %v379 = vld [vmem:[%s297 + $0x10] sm:$0xf]
      %v380 = vld [vmem:[%s297 + $0x14] sm:$0xf]
      %v381 = vld [vmem:[%s297 + $0x18] sm:$0xf]
      %v382 = vld [vmem:[%s297 + $0x1c] sm:$0xf]
      %s383 = scalar_lea.vmem %s307, 256
      %v384 = vld [vmem:[%s383] sm:$0xff]
      %v385 = vld [vmem:[%s383 + $0x8] sm:$0xff]
      %v386 = vld [vmem:[%s383 + $0x10] sm:$0xff]
      %v387 = vld [vmem:[%s383 + $0x18] sm:$0xff]
      %v388 = vld [vmem:[%s383 + $0x20] sm:$0xff]
      %v389 = vld [vmem:[%s383 + $0x28] sm:$0xff]
      %v390 = vld [vmem:[%s383 + $0x30] sm:$0xff]
      %v391 = vld [vmem:[%s383 + $0x38] sm:$0xff]
      %v392 = vld [vmem:[%s383 + $0x40] sm:$0xff]
      %v393 = vld [vmem:[%s383 + $0x48] sm:$0xff]
      %v394 = vld [vmem:[%s383 + $0x50] sm:$0xff]
      %v395 = vld [vmem:[%s383 + $0x58] sm:$0xff]
      %v396 = vld [vmem:[%s383 + $0x60] sm:$0xff]
      %v397 = vld [vmem:[%s383 + $0x68] sm:$0xff]
      %v398 = vld [vmem:[%s383 + $0x70] sm:$0xff]
      %v399 = vld [vmem:[%s383 + $0x78] sm:$0xff]
      %v400 = vld [vmem:[%s383 + $0x80] sm:$0xff]
      %v401 = vld [vmem:[%s383 + $0x88] sm:$0xff]
      %v402 = vld [vmem:[%s383 + $0x90] sm:$0xff]
      %v403 = vld [vmem:[%s383 + $0x98] sm:$0xff]
      %v404 = vld [vmem:[%s383 + $0xa0] sm:$0xff]
      %v405 = vld [vmem:[%s383 + $0xa8] sm:$0xff]
      %v406 = vld [vmem:[%s383 + $0xb0] sm:$0xff]
      %v407 = vld [vmem:[%s383 + $0xb8] sm:$0xff]
      %v408 = vld [vmem:[%s383 + $0xc0] sm:$0xff]
      %v409 = vld [vmem:[%s383 + $0xc8] sm:$0xff]
      %v410 = vld [vmem:[%s383 + $0xd0] sm:$0xff]
      %v411 = vld [vmem:[%s383 + $0xd8] sm:$0xff]
      %v412 = vld [vmem:[%s383 + $0xe0] sm:$0xff]
      %v413 = vld [vmem:[%s383 + $0xe8] sm:$0xff]
      %v414 = vld [vmem:[%s383 + $0xf0] sm:$0xff]
      %v415 = vld [vmem:[%s383 + $0xf8] sm:$0xff]
      %v424 = vunpack.c.l.b16 %v375
      %v425 = vunpack.c.l.b16 %v376
      %v426 = vunpack.c.l.b16 %v377
      %v427 = vunpack.c.l.b16 %v378
      %v428 = vunpack.c.l.b16 %v379
      %v429 = vunpack.c.l.b16 %v380
      %v430 = vunpack.c.l.b16 %v381
      %v431 = vunpack.c.l.b16 %v382
      %v432 = vpack.c.b16 %v425, %v424
      %v433 = vpack.c.b16 %v427, %v426
      %v434 = vpack.c.b16 %v429, %v428
      %v435 = vpack.c.b16 %v431, %v430
      %v472 = vunpack.c.l.b16 %v384
      %v473 = vunpack.c.h.b16 %v384
      %v474 = vunpack.c.l.b16 %v385
      %v475 = vunpack.c.h.b16 %v385
      %v476 = vunpack.c.l.b16 %v386
      %v477 = vunpack.c.h.b16 %v386
      %v478 = vunpack.c.l.b16 %v387
      %v479 = vunpack.c.h.b16 %v387
      %v480 = vunpack.c.l.b16 %v388
      %v481 = vunpack.c.h.b16 %v388
      %v482 = vunpack.c.l.b16 %v389
      %v483 = vunpack.c.h.b16 %v389
      %v484 = vunpack.c.l.b16 %v390
      %v485 = vunpack.c.h.b16 %v390
      %v486 = vunpack.c.l.b16 %v391
      %v487 = vunpack.c.h.b16 %v391
      %v488 = vunpack.c.l.b16 %v392
      %v489 = vunpack.c.h.b16 %v392
      %v490 = vunpack.c.l.b16 %v393
      %v491 = vunpack.c.h.b16 %v393
      %v492 = vunpack.c.l.b16 %v394
      %v493 = vunpack.c.h.b16 %v394
      %v494 = vunpack.c.l.b16 %v395
      %v495 = vunpack.c.h.b16 %v395
      %v496 = vunpack.c.l.b16 %v396
      %v497 = vunpack.c.h.b16 %v396
      %v498 = vunpack.c.l.b16 %v397
      %v499 = vunpack.c.h.b16 %v397
      %v500 = vunpack.c.l.b16 %v398
      %v501 = vunpack.c.h.b16 %v398
      %v502 = vunpack.c.l.b16 %v399
      %v503 = vunpack.c.h.b16 %v399
      %v504 = vunpack.c.l.b16 %v400
      %v505 = vunpack.c.h.b16 %v400
      %v506 = vunpack.c.l.b16 %v401
      %v507 = vunpack.c.h.b16 %v401
      %v508 = vunpack.c.l.b16 %v402
      %v509 = vunpack.c.h.b16 %v402
      %v510 = vunpack.c.l.b16 %v403
      %v511 = vunpack.c.h.b16 %v403
      %v512 = vunpack.c.l.b16 %v404
      %v513 = vunpack.c.h.b16 %v404
      %v514 = vunpack.c.l.b16 %v405
      %v515 = vunpack.c.h.b16 %v405
      %v516 = vunpack.c.l.b16 %v406
      %v517 = vunpack.c.h.b16 %v406
      %v518 = vunpack.c.l.b16 %v407
      %v519 = vunpack.c.h.b16 %v407
      %v520 = vunpack.c.l.b16 %v408
      %v521 = vunpack.c.h.b16 %v408
      %v522 = vunpack.c.l.b16 %v409
      %v523 = vunpack.c.h.b16 %v409
      %v524 = vunpack.c.l.b16 %v410
      %v525 = vunpack.c.h.b16 %v410
      %v526 = vunpack.c.l.b16 %v411
      %v527 = vunpack.c.h.b16 %v411
      %v528 = vunpack.c.l.b16 %v412
      %v529 = vunpack.c.h.b16 %v412
      %v530 = vunpack.c.l.b16 %v413
      %v531 = vunpack.c.h.b16 %v413
      %v532 = vunpack.c.l.b16 %v414
      %v533 = vunpack.c.h.b16 %v414
      %v534 = vunpack.c.l.b16 %v415
      %v535 = vunpack.c.h.b16 %v415
      %v536 = vpack.c.b16 %v476, %v472
      %v537 = vpack.c.b16 %v477, %v473
      %v538 = vpack.c.b16 %v478, %v474
      %v539 = vpack.c.b16 %v479, %v475
      %v540 = vpack.c.b16 %v484, %v480
      %v541 = vpack.c.b16 %v485, %v481
      %v542 = vpack.c.b16 %v486, %v482
      %v543 = vpack.c.b16 %v487, %v483
      %v544 = vpack.c.b16 %v492, %v488
      %v545 = vpack.c.b16 %v493, %v489
      %v546 = vpack.c.b16 %v494, %v490
      %v547 = vpack.c.b16 %v495, %v491
      %v548 = vpack.c.b16 %v500, %v496
      %v549 = vpack.c.b16 %v501, %v497
      %v550 = vpack.c.b16 %v502, %v498
      %v551 = vpack.c.b16 %v503, %v499
      %v552 = vpack.c.b16 %v508, %v504
      %v553 = vpack.c.b16 %v509, %v505
      %v554 = vpack.c.b16 %v510, %v506
      %v555 = vpack.c.b16 %v511, %v507
      %v556 = vpack.c.b16 %v516, %v512
      %v557 = vpack.c.b16 %v517, %v513
      %v558 = vpack.c.b16 %v518, %v514
      %v559 = vpack.c.b16 %v519, %v515
      %v560 = vpack.c.b16 %v524, %v520
      %v561 = vpack.c.b16 %v525, %v521
      %v562 = vpack.c.b16 %v526, %v522
      %v563 = vpack.c.b16 %v527, %v523
      %v564 = vpack.c.b16 %v532, %v528
      %v565 = vpack.c.b16 %v533, %v529
      %v566 = vpack.c.b16 %v534, %v530
      %v567 = vpack.c.b16 %v535, %v531
      %600 = vmatprep.subr.bf16.mxu0 %v537
      %601 = vmatpush1.bf16.msra.mxu0 %v536
      %602 = vmatprep.subr.bf16.mxu0 %v541
      %603 = vmatpush1.bf16.msra.mxu0 %v540
      %604 = vmatprep.subr.bf16.mxu0 %v545
      %605 = vmatpush1.bf16.msra.mxu0 %v544
      %606 = vmatprep.subr.bf16.mxu0 %v549
      %607 = vmatpush1.bf16.msra.mxu0 %v548
      %608 = vmatprep.subr.bf16.mxu0 %v553
      %609 = vmatpush1.bf16.msra.mxu0 %v552
      %610 = vmatprep.subr.bf16.mxu0 %v557
      %611 = vmatpush1.bf16.msra.mxu0 %v556
      %612 = vmatprep.subr.bf16.mxu0 %v561
      %613 = vmatpush1.bf16.msra.mxu0 %v560
      %614 = vmatprep.subr.bf16.mxu0 %v565
      %615 = vmatpush1.bf16.msra.mxu0 %v564
      %616 = vmatprep.subr.bf16.mxu0 0
      %617 = vmatpush1.bf16.msra.mxu0 0
      %618 = vmatprep.subr.bf16.mxu0 0
      %619 = vmatpush1.bf16.msra.mxu0 0
      %620 = vmatprep.subr.bf16.mxu0 0
      %621 = vmatpush1.bf16.msra.mxu0 0
      %622 = vmatprep.subr.bf16.mxu0 0
      %623 = vmatpush1.bf16.msra.mxu0 0
      %624 = vmatprep.subr.bf16.mxu0 0
      %625 = vmatpush1.bf16.msra.mxu0 0
      %626 = vmatprep.subr.bf16.mxu0 0
      %627 = vmatpush1.bf16.msra.mxu0 0
      %628 = vmatprep.subr.bf16.mxu0 0
      %629 = vmatpush1.bf16.msra.mxu0 0
      %630 = vmatprep.subr.bf16.mxu0 0
      %631 = vmatpush1.bf16.msra.mxu0 0
      %632 = vmatprep.mubr.bf16.mxu0 0
      %633 = vmatmul.mubr.bf16.gmra.mrb[0].mxu0 %v432
      %v634 = vpop.f32.mrb[0].mxu0
      %v635 = vadd.f32 0.0, %v634
      %v636 = vpop.f32.mrb[0].mxu0
      %v637 = vadd.f32 0.0, %v636
      %v638 = vpop.f32.mrb[0].mxu0
      %v639 = vadd.f32 0.0, %v638
      %v640 = vpop.f32.mrb[0].mxu0
      %v641 = vadd.f32 0.0, %v640
      %642 = vmatprep.mubr.bf16.mxu0 0
      %643 = vmatmul.mubr.bf16.gmra.mrb[0].mxu0 %v433
      %v644 = vpop.f32.mrb[0].mxu0
      %v645 = vadd.f32 0.0, %v644
      %v646 = vpop.f32.mrb[0].mxu0
      %v647 = vadd.f32 0.0, %v646
      %v648 = vpop.f32.mrb[0].mxu0
      %v649 = vadd.f32 0.0, %v648
      %v650 = vpop.f32.mrb[0].mxu0
      %v651 = vadd.f32 0.0, %v650
      %652 = vmatprep.mubr.bf16.mxu0 0
      %653 = vmatmul.mubr.bf16.gmra.mrb[0].mxu0 %v434
      %v654 = vpop.f32.mrb[0].mxu0
      %v655 = vadd.f32 0.0, %v654
      %v656 = vpop.f32.mrb[0].mxu0
      %v657 = vadd.f32 0.0, %v656
      %v658 = vpop.f32.mrb[0].mxu0
      %v659 = vadd.f32 0.0, %v658
      %v660 = vpop.f32.mrb[0].mxu0
      %v661 = vadd.f32 0.0, %v660
      %662 = vmatprep.mubr.bf16.mxu0 0
      %663 = vmatmul.mubr.bf16.gmra.mrb[0].mxu0 %v435
      %v664 = vpop.f32.mrb[0].mxu0
      %v665 = vadd.f32 0.0, %v664
      %v666 = vpop.f32.mrb[0].mxu0
      %v667 = vadd.f32 0.0, %v666
      %v668 = vpop.f32.mrb[0].mxu0
      %v669 = vadd.f32 0.0, %v668
      %v670 = vpop.f32.mrb[0].mxu0
      %v671 = vadd.f32 0.0, %v670
      %672 = vdwg.mxu0
      %673 = vmatprep.subr.bf16.mxu0 %v539
      %674 = vmatpush1.bf16.msra.mxu0 %v538
      %675 = vmatprep.subr.bf16.mxu0 %v543
      %676 = vmatpush1.bf16.msra.mxu0 %v542
      %677 = vmatprep.subr.bf16.mxu0 %v547
      %678 = vmatpush1.bf16.msra.mxu0 %v546
      %679 = vmatprep.subr.bf16.mxu0 %v551
      %680 = vmatpush1.bf16.msra.mxu0 %v550
      %681 = vmatprep.subr.bf16.mxu0 %v555
      %682 = vmatpush1.bf16.msra.mxu0 %v554
      %683 = vmatprep.subr.bf16.mxu0 %v559
      %684 = vmatpush1.bf16.msra.mxu0 %v558
      %685 = vmatprep.subr.bf16.mxu0 %v563
      %686 = vmatpush1.bf16.msra.mxu0 %v562
      %687 = vmatprep.subr.bf16.mxu0 %v567
      %688 = vmatpush1.bf16.msra.mxu0 %v566
      %689 = vmatprep.subr.bf16.mxu0 0
      %690 = vmatpush1.bf16.msra.mxu0 0
      %691 = vmatprep.subr.bf16.mxu0 0
      %692 = vmatpush1.bf16.msra.mxu0 0
      %693 = vmatprep.subr.bf16.mxu0 0
      %694 = vmatpush1.bf16.msra.mxu0 0
      %695 = vmatprep.subr.bf16.mxu0 0
      %696 = vmatpush1.bf16.msra.mxu0 0
      %697 = vmatprep.subr.bf16.mxu0 0
      %698 = vmatpush1.bf16.msra.mxu0 0
      %699 = vmatprep.subr.bf16.mxu0 0
      %700 = vmatpush1.bf16.msra.mxu0 0
      %701 = vmatprep.subr.bf16.mxu0 0
      %702 = vmatpush1.bf16.msra.mxu0 0
      %703 = vmatprep.subr.bf16.mxu0 0
      %704 = vmatpush1.bf16.msra.mxu0 0
      %705 = vmatprep.mubr.bf16.mxu0 0
      %706 = vmatmul.mubr.bf16.gmra.mrb[0].mxu0 %v432
      %v707 = vpop.f32.mrb[0].mxu0
      %v708 = vadd.f32 0.0, %v707
      %v709 = vpop.f32.mrb[0].mxu0
      %v710 = vadd.f32 0.0, %v709
      %v711 = vpop.f32.mrb[0].mxu0
      %v712 = vadd.f32 0.0, %v711
      %v713 = vpop.f32.mrb[0].mxu0
      %v714 = vadd.f32 0.0, %v713
      %715 = vmatprep.mubr.bf16.mxu0 0
      %716 = vmatmul.mubr.bf16.gmra.mrb[0].mxu0 %v433
      %v717 = vpop.f32.mrb[0].mxu0
      %v718 = vadd.f32 0.0, %v717
      %v719 = vpop.f32.mrb[0].mxu0
      %v720 = vadd.f32 0.0, %v719
      %v721 = vpop.f32.mrb[0].mxu0
      %v722 = vadd.f32 0.0, %v721
      %v723 = vpop.f32.mrb[0].mxu0
      %v724 = vadd.f32 0.0, %v723
      %725 = vmatprep.mubr.bf16.mxu0 0
      %726 = vmatmul.mubr.bf16.gmra.mrb[0].mxu0 %v434
      %v727 = vpop.f32.mrb[0].mxu0
      %v728 = vadd.f32 0.0, %v727
      %v729 = vpop.f32.mrb[0].mxu0
      %v730 = vadd.f32 0.0, %v729
      %v731 = vpop.f32.mrb[0].mxu0
      %v732 = vadd.f32 0.0, %v731
      %v733 = vpop.f32.mrb[0].mxu0
      %v734 = vadd.f32 0.0, %v733
      %735 = vmatprep.mubr.bf16.mxu0 0
      %736 = vmatmul.mubr.bf16.gmra.mrb[0].mxu0 %v435
      %v737 = vpop.f32.mrb[0].mxu0
      %v738 = vadd.f32 0.0, %v737
      %v739 = vpop.f32.mrb[0].mxu0
      %v740 = vadd.f32 0.0, %v739
      %v741 = vpop.f32.mrb[0].mxu0
      %v742 = vadd.f32 0.0, %v741
      %v743 = vpop.f32.mrb[0].mxu0
      %v744 = vadd.f32 0.0, %v743
      %745 = vdwg.mxu0
      %v754 = vunpack.c.l.b16 %v335
      %v755 = vunpack.c.l.b16 %v336
      %v756 = vunpack.c.l.b16 %v337
      %v757 = vunpack.c.l.b16 %v338
      %v758 = vunpack.c.l.b16 %v339
      %v759 = vunpack.c.l.b16 %v340
      %v760 = vunpack.c.l.b16 %v341
      %v761 = vunpack.c.l.b16 %v342
      %v762 = vpack.c.b16 %v755, %v754
      %v763 = vpack.c.b16 %v757, %v756
      %v764 = vpack.c.b16 %v759, %v758
      %v765 = vpack.c.b16 %v761, %v760
      %v802 = vunpack.c.l.b16 %v343
      %v803 = vunpack.c.h.b16 %v343
      %v804 = vunpack.c.l.b16 %v344
      %v805 = vunpack.c.h.b16 %v344
      %v806 = vunpack.c.l.b16 %v345
      %v807 = vunpack.c.h.b16 %v345
      %v808 = vunpack.c.l.b16 %v346
      %v809 = vunpack.c.h.b16 %v346
      %v810 = vunpack.c.l.b16 %v347
      %v811 = vunpack.c.h.b16 %v347
      %v812 = vunpack.c.l.b16 %v348
      %v813 = vunpack.c.h.b16 %v348
      %v814 = vunpack.c.l.b16 %v349
      %v815 = vunpack.c.h.b16 %v349
      %v816 = vunpack.c.l.b16 %v350
      %v817 = vunpack.c.h.b16 %v350
      %v818 = vunpack.c.l.b16 %v351
      %v819 = vunpack.c.h.b16 %v351
      %v820 = vunpack.c.l.b16 %v352
      %v821 = vunpack.c.h.b16 %v352
      %v822 = vunpack.c.l.b16 %v353
      %v823 = vunpack.c.h.b16 %v353
      %v824 = vunpack.c.l.b16 %v354
      %v825 = vunpack.c.h.b16 %v354
      %v826 = vunpack.c.l.b16 %v355
      %v827 = vunpack.c.h.b16 %v355
      %v828 = vunpack.c.l.b16 %v356
      %v829 = vunpack.c.h.b16 %v356
      %v830 = vunpack.c.l.b16 %v357
      %v831 = vunpack.c.h.b16 %v357
      %v832 = vunpack.c.l.b16 %v358
      %v833 = vunpack.c.h.b16 %v358
      %v834 = vunpack.c.l.b16 %v359
      %v835 = vunpack.c.h.b16 %v359
      %v836 = vunpack.c.l.b16 %v360
      %v837 = vunpack.c.h.b16 %v360
      %v838 = vunpack.c.l.b16 %v361
      %v839 = vunpack.c.h.b16 %v361
      %v840 = vunpack.c.l.b16 %v362
      %v841 = vunpack.c.h.b16 %v362
      %v842 = vunpack.c.l.b16 %v363
      %v843 = vunpack.c.h.b16 %v363
      %v844 = vunpack.c.l.b16 %v364
      %v845 = vunpack.c.h.b16 %v364
      %v846 = vunpack.c.l.b16 %v365
      %v847 = vunpack.c.h.b16 %v365
      %v848 = vunpack.c.l.b16 %v366
      %v849 = vunpack.c.h.b16 %v366
      %v850 = vunpack.c.l.b16 %v367
      %v851 = vunpack.c.h.b16 %v367
      %v852 = vunpack.c.l.b16 %v368
      %v853 = vunpack.c.h.b16 %v368
      %v854 = vunpack.c.l.b16 %v369
      %v855 = vunpack.c.h.b16 %v369
      %v856 = vunpack.c.l.b16 %v370
      %v857 = vunpack.c.h.b16 %v370
      %v858 = vunpack.c.l.b16 %v371
      %v859 = vunpack.c.h.b16 %v371
      %v860 = vunpack.c.l.b16 %v372
      %v861 = vunpack.c.h.b16 %v372
      %v862 = vunpack.c.l.b16 %v373
      %v863 = vunpack.c.h.b16 %v373
      %v864 = vunpack.c.l.b16 %v374
      %v865 = vunpack.c.h.b16 %v374
      %v866 = vpack.c.b16 %v806, %v802
      %v867 = vpack.c.b16 %v807, %v803
      %v868 = vpack.c.b16 %v808, %v804
      %v869 = vpack.c.b16 %v809, %v805
      %v870 = vpack.c.b16 %v814, %v810
      %v871 = vpack.c.b16 %v815, %v811
      %v872 = vpack.c.b16 %v816, %v812
      %v873 = vpack.c.b16 %v817, %v813
      %v874 = vpack.c.b16 %v822, %v818
      %v875 = vpack.c.b16 %v823, %v819
      %v876 = vpack.c.b16 %v824, %v820
      %v877 = vpack.c.b16 %v825, %v821
      %v878 = vpack.c.b16 %v830, %v826
      %v879 = vpack.c.b16 %v831, %v827
      %v880 = vpack.c.b16 %v832, %v828
      %v881 = vpack.c.b16 %v833, %v829
      %v882 = vpack.c.b16 %v838, %v834
      %v883 = vpack.c.b16 %v839, %v835
      %v884 = vpack.c.b16 %v840, %v836
      %v885 = vpack.c.b16 %v841, %v837
      %v886 = vpack.c.b16 %v846, %v842
      %v887 = vpack.c.b16 %v847, %v843
      %v888 = vpack.c.b16 %v848, %v844
      %v889 = vpack.c.b16 %v849, %v845
      %v890 = vpack.c.b16 %v854, %v850
      %v891 = vpack.c.b16 %v855, %v851
      %v892 = vpack.c.b16 %v856, %v852
      %v893 = vpack.c.b16 %v857, %v853
      %v894 = vpack.c.b16 %v862, %v858
      %v895 = vpack.c.b16 %v863, %v859
      %v896 = vpack.c.b16 %v864, %v860
      %v897 = vpack.c.b16 %v865, %v861
      %930 = vmatprep.subr.bf16.mxu0 %v867
      %931 = vmatpush1.bf16.msra.mxu0 %v866
      %932 = vmatprep.subr.bf16.mxu0 %v871
      %933 = vmatpush1.bf16.msra.mxu0 %v870
      %934 = vmatprep.subr.bf16.mxu0 %v875
      %935 = vmatpush1.bf16.msra.mxu0 %v874
      %936 = vmatprep.subr.bf16.mxu0 %v879
      %937 = vmatpush1.bf16.msra.mxu0 %v878
      %938 = vmatprep.subr.bf16.mxu0 %v883
      %939 = vmatpush1.bf16.msra.mxu0 %v882
      %940 = vmatprep.subr.bf16.mxu0 %v887
      %941 = vmatpush1.bf16.msra.mxu0 %v886
      %942 = vmatprep.subr.bf16.mxu0 %v891
      %943 = vmatpush1.bf16.msra.mxu0 %v890
      %944 = vmatprep.subr.bf16.mxu0 %v895
      %945 = vmatpush1.bf16.msra.mxu0 %v894
      %946 = vmatprep.subr.bf16.mxu0 0
      %947 = vmatpush1.bf16.msra.mxu0 0
      %948 = vmatprep.subr.bf16.mxu0 0
      %949 = vmatpush1.bf16.msra.mxu0 0
      %950 = vmatprep.subr.bf16.mxu0 0
      %951 = vmatpush1.bf16.msra.mxu0 0
      %952 = vmatprep.subr.bf16.mxu0 0
      %953 = vmatpush1.bf16.msra.mxu0 0
      %954 = vmatprep.subr.bf16.mxu0 0
      %955 = vmatpush1.bf16.msra.mxu0 0
      %956 = vmatprep.subr.bf16.mxu0 0
      %957 = vmatpush1.bf16.msra.mxu0 0
      %958 = vmatprep.subr.bf16.mxu0 0
      %959 = vmatpush1.bf16.msra.mxu0 0
      %960 = vmatprep.subr.bf16.mxu0 0
      %961 = vmatpush1.bf16.msra.mxu0 0
      %962 = vmatprep.mubr.bf16.mxu0 0
      %963 = vmatmul.mubr.bf16.gmra.mrb[0].mxu0 %v762
      %v964 = vpop.f32.mrb[0].mxu0
      %v965 = vadd.f32 %v635, %v964
      %v966 = vpop.f32.mrb[0].mxu0
      %v967 = vadd.f32 %v637, %v966
      %v968 = vpop.f32.mrb[0].mxu0
      %v969 = vadd.f32 %v639, %v968
      %v970 = vpop.f32.mrb[0].mxu0
      %v971 = vadd.f32 %v641, %v970
      %972 = vmatprep.mubr.bf16.mxu0 0
      %973 = vmatmul.mubr.bf16.gmra.mrb[0].mxu0 %v763
      %v974 = vpop.f32.mrb[0].mxu0
      %v975 = vadd.f32 %v645, %v974
      %v976 = vpop.f32.mrb[0].mxu0
      %v977 = vadd.f32 %v647, %v976
      %v978 = vpop.f32.mrb[0].mxu0
      %v979 = vadd.f32 %v649, %v978
      %v980 = vpop.f32.mrb[0].mxu0
      %v981 = vadd.f32 %v651, %v980
      %982 = vmatprep.mubr.bf16.mxu0 0
      %983 = vmatmul.mubr.bf16.gmra.mrb[0].mxu0 %v764
      %v984 = vpop.f32.mrb[0].mxu0
      %v985 = vadd.f32 %v655, %v984
      %v986 = vpop.f32.mrb[0].mxu0
      %v987 = vadd.f32 %v657, %v986
      %v988 = vpop.f32.mrb[0].mxu0
      %v989 = vadd.f32 %v659, %v988
      %v990 = vpop.f32.mrb[0].mxu0
      %v991 = vadd.f32 %v661, %v990
      %992 = vmatprep.mubr.bf16.mxu0 0
      %993 = vmatmul.mubr.bf16.gmra.mrb[0].mxu0 %v765
      %v994 = vpop.f32.mrb[0].mxu0
      %v995 = vadd.f32 %v665, %v994
      %v996 = vpop.f32.mrb[0].mxu0
      %v997 = vadd.f32 %v667, %v996
      %v998 = vpop.f32.mrb[0].mxu0
      %v999 = vadd.f32 %v669, %v998
      %v1000 = vpop.f32.mrb[0].mxu0
      %v1001 = vadd.f32 %v671, %v1000
      %1002 = vdwg.mxu0
      %1003 = vmatprep.subr.bf16.mxu0 %v869
      %1004 = vmatpush1.bf16.msra.mxu0 %v868
      %1005 = vmatprep.subr.bf16.mxu0 %v873
      %1006 = vmatpush1.bf16.msra.mxu0 %v872
      %1007 = vmatprep.subr.bf16.mxu0 %v877
      %1008 = vmatpush1.bf16.msra.mxu0 %v876
      %1009 = vmatprep.subr.bf16.mxu0 %v881
      %1010 = vmatpush1.bf16.msra.mxu0 %v880
      %1011 = vmatprep.subr.bf16.mxu0 %v885
      %1012 = vmatpush1.bf16.msra.mxu0 %v884
      %1013 = vmatprep.subr.bf16.mxu0 %v889
      %1014 = vmatpush1.bf16.msra.mxu0 %v888
      %1015 = vmatprep.subr.bf16.mxu0 %v893
      %1016 = vmatpush1.bf16.msra.mxu0 %v892
      %1017 = vmatprep.subr.bf16.mxu0 %v897
      %1018 = vmatpush1.bf16.msra.mxu0 %v896
      %1019 = vmatprep.subr.bf16.mxu0 0
      %1020 = vmatpush1.bf16.msra.mxu0 0
      %1021 = vmatprep.subr.bf16.mxu0 0
      %1022 = vmatpush1.bf16.msra.mxu0 0
      %1023 = vmatprep.subr.bf16.mxu0 0
      %1024 = vmatpush1.bf16.msra.mxu0 0
      %1025 = vmatprep.subr.bf16.mxu0 0
      %1026 = vmatpush1.bf16.msra.mxu0 0
      %1027 = vmatprep.subr.bf16.mxu0 0
      %1028 = vmatpush1.bf16.msra.mxu0 0
      %1029 = vmatprep.subr.bf16.mxu0 0
      %1030 = vmatpush1.bf16.msra.mxu0 0
      %1031 = vmatprep.subr.bf16.mxu0 0
      %1032 = vmatpush1.bf16.msra.mxu0 0
      %1033 = vmatprep.subr.bf16.mxu0 0
      %1034 = vmatpush1.bf16.msra.mxu0 0
      %1035 = vmatprep.mubr.bf16.mxu0 0
      %1036 = vmatmul.mubr.bf16.gmra.mrb[0].mxu0 %v762
      %v1037 = vpop.f32.mrb[0].mxu0
      %v1038 = vadd.f32 %v708, %v1037
      %v1039 = vpop.f32.mrb[0].mxu0
      %v1040 = vadd.f32 %v710, %v1039
      %v1041 = vpop.f32.mrb[0].mxu0
      %v1042 = vadd.f32 %v712, %v1041
      %v1043 = vpop.f32.mrb[0].mxu0
      %v1044 = vadd.f32 %v714, %v1043
      %1045 = vmatprep.mubr.bf16.mxu0 0
      %1046 = vmatmul.mubr.bf16.gmra.mrb[0].mxu0 %v763
      %v1047 = vpop.f32.mrb[0].mxu0
      %v1048 = vadd.f32 %v718, %v1047
      %v1049 = vpop.f32.mrb[0].mxu0
      %v1050 = vadd.f32 %v720, %v1049
      %v1051 = vpop.f32.mrb[0].mxu0
      %v1052 = vadd.f32 %v722, %v1051
      %v1053 = vpop.f32.mrb[0].mxu0
      %v1054 = vadd.f32 %v724, %v1053
      %1055 = vmatprep.mubr.bf16.mxu0 0
      %1056 = vmatmul.mubr.bf16.gmra.mrb[0].mxu0 %v764
      %v1057 = vpop.f32.mrb[0].mxu0
      %v1058 = vadd.f32 %v728, %v1057
      %v1059 = vpop.f32.mrb[0].mxu0
      %v1060 = vadd.f32 %v730, %v1059
      %v1061 = vpop.f32.mrb[0].mxu0
      %v1062 = vadd.f32 %v732, %v1061
      %v1063 = vpop.f32.mrb[0].mxu0
      %v1064 = vadd.f32 %v734, %v1063
      %1065 = vmatprep.mubr.bf16.mxu0 0
      %1066 = vmatmul.mubr.bf16.gmra.mrb[0].mxu0 %v765
      %v1067 = vpop.f32.mrb[0].mxu0
      %v1068 = vadd.f32 %v738, %v1067
      %v1069 = vpop.f32.mrb[0].mxu0
      %v1070 = vadd.f32 %v740, %v1069
      %v1071 = vpop.f32.mrb[0].mxu0
      %v1072 = vadd.f32 %v742, %v1071
      %v1073 = vpop.f32.mrb[0].mxu0
      %v1074 = vadd.f32 %v744, %v1073
      %1075 = vdwg.mxu0
      %v1076 = vld [vmem:[%s316] sm:$0xf]
      %v1078 = vlaneseq
      %v1079 = vshrl.u32 %v1078, 7
      %v1080 = vsub.s32 0, %v1079
      %v1081 = vrot.slane %v1076, %v1080
      %v1082 = vlaneseq
      %v1083 = vshrl.u32 %v1082, 7
      %v1084 = vsub.s32 1, %v1083
      %v1085 = vrot.slane %v1076, %v1084
      %v1086 = vlaneseq
      %v1087 = vshrl.u32 %v1086, 7
      %v1088 = vsub.s32 2, %v1087
      %v1089 = vrot.slane %v1076, %v1088
      %v1090 = vlaneseq
      %v1091 = vshrl.u32 %v1090, 7
      %v1092 = vsub.s32 3, %v1091
      %v1093 = vrot.slane %v1076, %v1092
      %v1098 = vadd.f32 %v965, %v1081
      %v1099 = vadd.f32 %v967, %v1085
      %v1100 = vadd.f32 %v1038, %v1089
      %v1101 = vadd.f32 %v1040, %v1093
      %v1102 = vadd.f32 %v969, %v1081
      %v1103 = vadd.f32 %v971, %v1085
      %v1104 = vadd.f32 %v1042, %v1089
      %v1105 = vadd.f32 %v1044, %v1093
      %v1106 = vadd.f32 %v975, %v1081
      %v1107 = vadd.f32 %v977, %v1085
      %v1108 = vadd.f32 %v1048, %v1089
      %v1109 = vadd.f32 %v1050, %v1093
      %v1110 = vadd.f32 %v979, %v1081
      %v1111 = vadd.f32 %v981, %v1085
      %v1112 = vadd.f32 %v1052, %v1089
      %v1113 = vadd.f32 %v1054, %v1093
      %v1114 = vadd.f32 %v985, %v1081
      %v1115 = vadd.f32 %v987, %v1085
      %v1116 = vadd.f32 %v1058, %v1089
      %v1117 = vadd.f32 %v1060, %v1093
      %v1118 = vadd.f32 %v989, %v1081
      %v1119 = vadd.f32 %v991, %v1085
      %v1120 = vadd.f32 %v1062, %v1089
      %v1121 = vadd.f32 %v1064, %v1093
      %v1122 = vadd.f32 %v995, %v1081
      %v1123 = vadd.f32 %v997, %v1085
      %v1124 = vadd.f32 %v1068, %v1089
      %v1125 = vadd.f32 %v1070, %v1093
      %v1126 = vadd.f32 %v999, %v1081
      %v1127 = vadd.f32 %v1001, %v1085
      %v1128 = vadd.f32 %v1072, %v1089
      %v1129 = vadd.f32 %v1074, %v1093
      %v1130 = vpack.c.bf16 %v1102, %v1098
      %v1131 = vpack.c.bf16 %v1103, %v1099
      %v1132 = vpack.c.bf16 %v1104, %v1100
      %v1133 = vpack.c.bf16 %v1105, %v1101
      %v1134 = vpack.c.bf16 %v1110, %v1106
      %v1135 = vpack.c.bf16 %v1111, %v1107
      %v1136 = vpack.c.bf16 %v1112, %v1108
      %v1137 = vpack.c.bf16 %v1113, %v1109
      %v1138 = vpack.c.bf16 %v1118, %v1114
      %v1139 = vpack.c.bf16 %v1119, %v1115
      %v1140 = vpack.c.bf16 %v1120, %v1116
      %v1141 = vpack.c.bf16 %v1121, %v1117
      %v1142 = vpack.c.bf16 %v1126, %v1122
      %v1143 = vpack.c.bf16 %v1127, %v1123
      %v1144 = vpack.c.bf16 %v1128, %v1124
      %v1145 = vpack.c.bf16 %v1129, %v1125
      %v1162 = vunpack.c.l.b16 %v1130
      %v1163 = vunpack.c.l.b16 %v1131
      %v1164 = vunpack.c.l.b16 %v1132
      %v1165 = vunpack.c.l.b16 %v1133
      %v1166 = vunpack.c.h.b16 %v1130
      %v1167 = vunpack.c.h.b16 %v1131
      %v1168 = vunpack.c.h.b16 %v1132
      %v1169 = vunpack.c.h.b16 %v1133
      %v1170 = vunpack.c.l.b16 %v1134
      %v1171 = vunpack.c.l.b16 %v1135
      %v1172 = vunpack.c.l.b16 %v1136
      %v1173 = vunpack.c.l.b16 %v1137
      %v1174 = vunpack.c.h.b16 %v1134
      %v1175 = vunpack.c.h.b16 %v1135
      %v1176 = vunpack.c.h.b16 %v1136
      %v1177 = vunpack.c.h.b16 %v1137
      %v1178 = vunpack.c.l.b16 %v1138
      %v1179 = vunpack.c.l.b16 %v1139
      %v1180 = vunpack.c.l.b16 %v1140
      %v1181 = vunpack.c.l.b16 %v1141
      %v1182 = vunpack.c.h.b16 %v1138
      %v1183 = vunpack.c.h.b16 %v1139
      %v1184 = vunpack.c.h.b16 %v1140
      %v1185 = vunpack.c.h.b16 %v1141
      %v1186 = vunpack.c.l.b16 %v1142
      %v1187 = vunpack.c.l.b16 %v1143
      %v1188 = vunpack.c.l.b16 %v1144
      %v1189 = vunpack.c.l.b16 %v1145
      %v1190 = vunpack.c.h.b16 %v1142
      %v1191 = vunpack.c.h.b16 %v1143
      %v1192 = vunpack.c.h.b16 %v1144
      %v1193 = vunpack.c.h.b16 %v1145
      %v1194 = vpack.c.b16 %v1163, %v1162
      %v1195 = vpack.c.b16 %v1165, %v1164
      %v1196 = vpack.c.b16 %v1167, %v1166
      %v1197 = vpack.c.b16 %v1169, %v1168
      %v1198 = vpack.c.b16 %v1171, %v1170
      %v1199 = vpack.c.b16 %v1173, %v1172
      %v1200 = vpack.c.b16 %v1175, %v1174
      %v1201 = vpack.c.b16 %v1177, %v1176
      %v1202 = vpack.c.b16 %v1179, %v1178
      %v1203 = vpack.c.b16 %v1181, %v1180
      %v1204 = vpack.c.b16 %v1183, %v1182
      %v1205 = vpack.c.b16 %v1185, %v1184
      %v1206 = vpack.c.b16 %v1187, %v1186
      %v1207 = vpack.c.b16 %v1189, %v1188
      %v1208 = vpack.c.b16 %v1191, %v1190
      %v1209 = vpack.c.b16 %v1193, %v1192
      %1226 = vst [vmem:[%s331] sm:$0xff] %v1194
      %1227 = vst [vmem:[%s331 + $0x8] sm:$0xff] %v1195
      %1228 = vst [vmem:[%s331 + $0x10] sm:$0xff] %v1196
      %1229 = vst [vmem:[%s331 + $0x18] sm:$0xff] %v1197
      %1230 = vst [vmem:[%s331 + $0x20] sm:$0xff] %v1198
      %1231 = vst [vmem:[%s331 + $0x28] sm:$0xff] %v1199
      %1232 = vst [vmem:[%s331 + $0x30] sm:$0xff] %v1200
      %1233 = vst [vmem:[%s331 + $0x38] sm:$0xff] %v1201
      %1234 = vst [vmem:[%s331 + $0x40] sm:$0xff] %v1202
      %1235 = vst [vmem:[%s331 + $0x48] sm:$0xff] %v1203
      %1236 = vst [vmem:[%s331 + $0x50] sm:$0xff] %v1204
      %1237 = vst [vmem:[%s331 + $0x58] sm:$0xff] %v1205
      %1238 = vst [vmem:[%s331 + $0x60] sm:$0xff] %v1206
      %1239 = vst [vmem:[%s331 + $0x68] sm:$0xff] %v1207
      %1240 = vst [vmem:[%s331 + $0x70] sm:$0xff] %v1208
      %1241 = vst [vmem:[%s331 + $0x78] sm:$0xff] %v1209
      %s1242 = smul.u32 8, %s22
      %s1243 = smul.u32 4, %s21
      %p1244 = scmp.lt.s32.totalorder %s20, 1
      %s1245 = scalar_select %p1244, %s20, 1
      %p1246 = scmp.lt.s32.totalorder %s1242, 7
      %s1247 = scalar_select %p1246, %s1242, 7
      %p1248 = scmp.lt.s32.totalorder %s1243, 3
      %s1249 = scalar_select %p1248, %s1243, 3
      %s1250 = smul.addr %s1247, 4
      %s1251 = sadd.s32 %s1249, %s1250
      %s1252 = smul.addr %s1245, 32
      %s1253 = sadd.s32 %s1251, %s1252
      %s1254 = smul.addr %s1253, 4
      %s1255 = scalar_lea.vmem %s4, %s1254
      // Predicated region
      $region37: #{lstm_model_forward.7} parent=35 // pred_check
        %p1256 = pneg %p164
      $region38: #{lstm_model_forward.7} parent=35 // pred_check_branch
        %1258 = sbr.rel (%p1256) target = $region40
      $region39: #{lstm_model_forward.7} parent=35 // pred_region
        %s1259 = smul.u32 8, %s22
        %s1260 = smul.u32 4, %s21
      $region40: #{lstm_model_forward.7} parent=35 // pred_fallthru
        _
    $region36: #{lstm_model_forward.7} parent=5 // pred_fallthru
      _
    %p1261 = scmp.le.s32.totalorder 2, %s10
    // Predicated region
    $region41: #{lstm_model_forward.7} parent=5 // pred_check
      %p1262 = pneg %p1261
    $region42: #{lstm_model_forward.7} parent=5 // pred_check_branch
      %1264 = sbr.rel (%p1262) target = $region44
    $region43: #{lstm_model_forward.7} parent=5 // pred_region
      %s1265 = ssub.s32 %s10, 2
      // Predicated region
      $region45: #{lstm_model_forward.7} parent=43 // pred_check
        %p1266 = pneg %p170
      $region46: #{lstm_model_forward.7} parent=43 // pred_check_branch
        %1268 = sbr.rel (%p1266) target = $region48
      $region47: #{lstm_model_forward.7} parent=43 // pred_region
        %s1269 = smul.u32 8, %s25
        %s1270 = smul.u32 4, %s24
        %p1271 = scmp.lt.s32.totalorder %s23, 1
        %s1272 = scalar_select %p1271, %s23, 1
        %p1273 = scmp.lt.s32.totalorder %s1269, 7
        %s1274 = scalar_select %p1273, %s1269, 7
        %p1275 = scmp.lt.s32.totalorder %s1270, 3
        %s1276 = scalar_select %p1275, %s1270, 3
        %s1277 = smul.addr %s1274, 4
        %s1278 = sadd.s32 %s1276, %s1277
        %s1279 = smul.addr %s1272, 32
        %s1280 = sadd.s32 %s1278, %s1279
        %s1281 = smul.addr %s1280, 4
        %s1282 = scalar_lea.vmem %s4, %s1281
      $region48: #{lstm_model_forward.7} parent=43 // pred_fallthru
        _
    $region44: #{lstm_model_forward.7} parent=5 // pred_fallthru
      _
  $region6: #{lstm_model_forward.7} parent=0 // loop_footer
    %s14 = sadd.s32 1, %s10
  $region7: #{lstm_model_forward.7} parent=0 // loop_footer_branch
    %9 = sbr.rel target = $region3
  $region8: #{lstm_model_forward.7} parent=0 // loop_exit
    _

// kernel: lstm_model_forward.6
$region0: #{lstm_model_forward.6}
  #allocation0 [shape = 'u32[]', space=smem, size = 0x4, offset = 0x4, fixed_abs, tag = 'smem constant byte address 0x4 - core index']
  #allocation1 [shape = 'u32[144,128]{1,0:T(1,128)}', space=vmem, size = 0x12000, scoped, tag = 'internal scratch']
  #allocation2 [shape = 'f32[8,128]{1,0:T(8,128)}', space=vmem, size = 0x1000, scoped, tag = 'scratch operand']
  #allocation3 [shape = 'f32[8,128]{1,0:T(8,128)}', space=vmem, size = 0x1000, scoped, tag = 'scratch operand']
  #allocation4 [shape = 'f32[8,128]{1,0:T(8,128)}', space=vmem, size = 0x1000, scoped, tag = 'scratch operand']
  #allocation5 [shape = 'f32[8,128]{1,0:T(8,128)}', space=vmem, size = 0x1000, scoped, tag = 'scratch operand']
  %s0 = inlined_call_operand.vmem [shape: bf16[2,8,8,512], index: 0, kind: input, shape index: {}, may-alias: {0,1}]
  %s1 = inlined_call_operand.vmem [shape: bf16[2,8,8,512], index: 1, kind: input, shape index: {}, may-alias: {0,1}]
  %s2 = inlined_call_operand.vmem [shape: bf16[2,128,512], index: 2, kind: input, shape index: {}]
  %s3 = inlined_call_operand.vmem [shape: bf16[8,8,128], index: 3, kind: output, shape index: {0}]
  %s4 = inlined_call_operand.vmem [shape: bf16[8,8,128], index: 4, kind: output, shape index: {1}]
  %5 = xla_tuple %s3, %s4
  %s6 = sld [smem:[#allocation0]]
  $region34: #{lstm_model_forward.6} parent=0
    _
  %s8 = ssub.s32 1, %s6
  %s9 = scalar_select 0, %s8, %s6
  // Predicated region
  $region2: #{lstm_model_forward.6} parent=0 // pred_check
    _
  $region3: #{lstm_model_forward.6} parent=0 // pred_check_branch
    %11 = sbr.rel (0) target = $region5
  $region4: #{lstm_model_forward.6} parent=0 // pred_region
    _
  $region5: #{lstm_model_forward.6} parent=0 // pred_fallthru
    _
  // Predicated region
  $region6: #{lstm_model_forward.6} parent=0 // pred_check
    _
  $region7: #{lstm_model_forward.6} parent=0 // pred_check_branch
    %13 = sbr.rel (0) target = $region9
  $region8: #{lstm_model_forward.6} parent=0 // pred_region
    %s14 = ssub.s32 0, 0
    %s15 = smul.u32 8, %s14
    %p16 = scmp.lt.s32.totalorder %s15, 7
    %s17 = scalar_select %p16, %s15, 7
    %s18 = smul.addr %s17, 4
    %s19 = sadd.s32 %s18, 32
    %s20 = smul.addr %s19, 4
    %s21 = scalar_lea.vmem %s1, %s20
    %s22 = ssub.s32 0, 0
    %s23 = smul.u32 8, %s22
  $region9: #{lstm_model_forward.6} parent=0 // pred_fallthru
    _
  // Predicated region
  $region10: #{lstm_model_forward.6} parent=0 // pred_check
    _
  $region11: #{lstm_model_forward.6} parent=0 // pred_check_branch
    %25 = sbr.rel (0) target = $region13
  $region12: #{lstm_model_forward.6} parent=0 // pred_region
    _
  $region13: #{lstm_model_forward.6} parent=0 // pred_fallthru
    _
  %s26 = ssub.s32 0, 0
  %s27 = smul.u32 8, %s26
  %p28 = scmp.lt.s32.totalorder %s27, 7
  %s29 = scalar_select %p28, %s27, 7
  %s30 = smul.addr %s29, 4
  %s31 = sadd.s32 %s30, 32
  %s32 = smul.addr %s31, 4
  %s33 = scalar_lea.vmem %s1, %s32
  %s34 = ssub.s32 0, 0
  %s35 = smul.u32 8, %s34
  %p36 = scmp.lt.s32.totalorder %s35, 7
  %s37 = scalar_select %p36, %s35, 7
  %s38 = smul.addr %s37, 4
  %s39 = scalar_lea.vmem %s4, %s38
  %s40 = ssub.s32 0, 0
  %s41 = smul.u32 8, %s40
  %p42 = scmp.lt.s32.totalorder %s41, 7
  %s43 = scalar_select %p42, %s41, 7
  %s44 = smul.addr %s43, 4
  %s45 = sadd.s32 %s44, 32
  %s46 = smul.addr %s45, 4
  %s47 = scalar_lea.vmem %s1, %s46
  %s48 = ssub.s32 0, 0
  %s49 = smul.u32 8, %s48
  %s50 = ssub.s32 0, 0
  %s51 = smul.u32 8, %s50
  %p52 = scmp.lt.s32.totalorder %s51, 7
  %s53 = scalar_select %p52, %s51, 7
  %s54 = smul.addr %s53, 4
  %s55 = scalar_lea.vmem %s4, %s54
  %s56 = ssub.s32 0, 0
  %s57 = smul.u32 8, %s56
  %p59 = scmp.eq.s32.totalorder 0, 0
  // Predicated region
  $region14: #{lstm_model_forward.6} parent=0 // pred_check
    %p60 = pneg %p59
  $region15: #{lstm_model_forward.6} parent=0 // pred_check_branch
    %62 = sbr.rel (%p60) target = $region17
  $region16: #{lstm_model_forward.6} parent=0 // pred_region
    %63 = vst [vmem:[#allocation2] sm:$0xff] 0.0
    %64 = vst [vmem:[#allocation3] sm:$0xff] 0.0
    %65 = vst [vmem:[#allocation4] sm:$0xff] 0.0
    %66 = vst [vmem:[#allocation5] sm:$0xff] 0.0
  $region17: #{lstm_model_forward.6} parent=0 // pred_fallthru
    _
  %v67 = vld [vmem:[%s2] sm:$0xff]
  %v68 = vld [vmem:[%s2 + $0x8] sm:$0xff]
  %v69 = vld [vmem:[%s2 + $0x10] sm:$0xff]
  %v70 = vld [vmem:[%s2 + $0x18] sm:$0xff]
  %v71 = vld [vmem:[%s2 + $0x20] sm:$0xff]
  %v72 = vld [vmem:[%s2 + $0x28] sm:$0xff]
  %v73 = vld [vmem:[%s2 + $0x30] sm:$0xff]
  %v74 = vld [vmem:[%s2 + $0x38] sm:$0xff]
  %v75 = vld [vmem:[%s2 + $0x40] sm:$0xff]
  %v76 = vld [vmem:[%s2 + $0x48] sm:$0xff]
  %v77 = vld [vmem:[%s2 + $0x50] sm:$0xff]
  %v78 = vld [vmem:[%s2 + $0x58] sm:$0xff]
  %v79 = vld [vmem:[%s2 + $0x60] sm:$0xff]
  %v80 = vld [vmem:[%s2 + $0x68] sm:$0xff]
  %v81 = vld [vmem:[%s2 + $0x70] sm:$0xff]
  %v82 = vld [vmem:[%s2 + $0x78] sm:$0xff]
  %v83 = vld [vmem:[%s2 + $0x80] sm:$0xff]
  %v84 = vld [vmem:[%s2 + $0x88] sm:$0xff]
  %v85 = vld [vmem:[%s2 + $0x90] sm:$0xff]
  %v86 = vld [vmem:[%s2 + $0x98] sm:$0xff]
  %v87 = vld [vmem:[%s2 + $0xa0] sm:$0xff]
  %v88 = vld [vmem:[%s2 + $0xa8] sm:$0xff]
  %v89 = vld [vmem:[%s2 + $0xb0] sm:$0xff]
  %v90 = vld [vmem:[%s2 + $0xb8] sm:$0xff]
  %v91 = vld [vmem:[%s2 + $0xc0] sm:$0xff]
  %v92 = vld [vmem:[%s2 + $0xc8] sm:$0xff]
  %v93 = vld [vmem:[%s2 + $0xd0] sm:$0xff]
  %v94 = vld [vmem:[%s2 + $0xd8] sm:$0xff]
  %v95 = vld [vmem:[%s2 + $0xe0] sm:$0xff]
  %v96 = vld [vmem:[%s2 + $0xe8] sm:$0xff]
  %v97 = vld [vmem:[%s2 + $0xf0] sm:$0xff]
  %v98 = vld [vmem:[%s2 + $0xf8] sm:$0xff]
  %s99 = scalar_lea.vmem %s2, 256
  %v100 = vld [vmem:[%s99] sm:$0xff]
  %v101 = vld [vmem:[%s99 + $0x8] sm:$0xff]
  %v102 = vld [vmem:[%s99 + $0x10] sm:$0xff]
  %v103 = vld [vmem:[%s99 + $0x18] sm:$0xff]
  %v104 = vld [vmem:[%s99 + $0x20] sm:$0xff]
  %v105 = vld [vmem:[%s99 + $0x28] sm:$0xff]
  %v106 = vld [vmem:[%s99 + $0x30] sm:$0xff]
  %v107 = vld [vmem:[%s99 + $0x38] sm:$0xff]
  %v108 = vld [vmem:[%s99 + $0x40] sm:$0xff]
  %v109 = vld [vmem:[%s99 + $0x48] sm:$0xff]
  %v110 = vld [vmem:[%s99 + $0x50] sm:$0xff]
  %v111 = vld [vmem:[%s99 + $0x58] sm:$0xff]
  %v112 = vld [vmem:[%s99 + $0x60] sm:$0xff]
  %v113 = vld [vmem:[%s99 + $0x68] sm:$0xff]
  %v114 = vld [vmem:[%s99 + $0x70] sm:$0xff]
  %v115 = vld [vmem:[%s99 + $0x78] sm:$0xff]
  %v116 = vld [vmem:[%s99 + $0x80] sm:$0xff]
  %v117 = vld [vmem:[%s99 + $0x88] sm:$0xff]
  %v118 = vld [vmem:[%s99 + $0x90] sm:$0xff]
  %v119 = vld [vmem:[%s99 + $0x98] sm:$0xff]
  %v120 = vld [vmem:[%s99 + $0xa0] sm:$0xff]
  %v121 = vld [vmem:[%s99 + $0xa8] sm:$0xff]
  %v122 = vld [vmem:[%s99 + $0xb0] sm:$0xff]
  %v123 = vld [vmem:[%s99 + $0xb8] sm:$0xff]
  %v124 = vld [vmem:[%s99 + $0xc0] sm:$0xff]
  %v125 = vld [vmem:[%s99 + $0xc8] sm:$0xff]
  %v126 = vld [vmem:[%s99 + $0xd0] sm:$0xff]
  %v127 = vld [vmem:[%s99 + $0xd8] sm:$0xff]
  %v128 = vld [vmem:[%s99 + $0xe0] sm:$0xff]
  %v129 = vld [vmem:[%s99 + $0xe8] sm:$0xff]
  %v130 = vld [vmem:[%s99 + $0xf0] sm:$0xff]
  %v131 = vld [vmem:[%s99 + $0xf8] sm:$0xff]
  %v132 = vld [vmem:[%s0] sm:$0xff]
  %v133 = vld [vmem:[%s0 + $0x8] sm:$0xff]
  %v134 = vld [vmem:[#allocation2] sm:$0xff]
  %v135 = vld [vmem:[#allocation3] sm:$0xff]
  %v136 = vunpack.c.l.bf16 %v132
  %v137 = vunpack.c.h.bf16 %v132
  %v138 = vunpack.c.l.bf16 %v133
  %v139 = vunpack.c.h.bf16 %v133
  %v140 = vpack.c.bf16 %v134, %v134
  %v173 = vunpack.c.l.b16 %v67
  %v174 = vunpack.c.h.b16 %v67
  %v175 = vunpack.c.l.b16 %v68
  %v176 = vunpack.c.h.b16 %v68
  %v177 = vunpack.c.l.b16 %v69
  %v178 = vunpack.c.h.b16 %v69
  %v179 = vunpack.c.l.b16 %v70
  %v180 = vunpack.c.h.b16 %v70
  %v181 = vunpack.c.l.b16 %v71
  %v182 = vunpack.c.h.b16 %v71
  %v183 = vunpack.c.l.b16 %v72
  %v184 = vunpack.c.h.b16 %v72
  %v185 = vunpack.c.l.b16 %v73
  %v186 = vunpack.c.h.b16 %v73
  %v187 = vunpack.c.l.b16 %v74
  %v188 = vunpack.c.h.b16 %v74
  %v189 = vunpack.c.l.b16 %v75
  %v190 = vunpack.c.h.b16 %v75
  %v191 = vunpack.c.l.b16 %v76
  %v192 = vunpack.c.h.b16 %v76
  %v193 = vunpack.c.l.b16 %v77
  %v194 = vunpack.c.h.b16 %v77
  %v195 = vunpack.c.l.b16 %v78
  %v196 = vunpack.c.h.b16 %v78
  %v197 = vunpack.c.l.b16 %v79
  %v198 = vunpack.c.h.b16 %v79
  %v199 = vunpack.c.l.b16 %v80
  %v200 = vunpack.c.h.b16 %v80
  %v201 = vunpack.c.l.b16 %v81
  %v202 = vunpack.c.h.b16 %v81
  %v203 = vunpack.c.l.b16 %v82
  %v204 = vunpack.c.h.b16 %v82
  %v205 = vunpack.c.l.b16 %v83
  %v206 = vunpack.c.h.b16 %v83
  %v207 = vunpack.c.l.b16 %v84
  %v208 = vunpack.c.h.b16 %v84
  %v209 = vunpack.c.l.b16 %v85
  %v210 = vunpack.c.h.b16 %v85
  %v211 = vunpack.c.l.b16 %v86
  %v212 = vunpack.c.h.b16 %v86
  %v213 = vunpack.c.l.b16 %v87
  %v214 = vunpack.c.h.b16 %v87
  %v215 = vunpack.c.l.b16 %v88
  %v216 = vunpack.c.h.b16 %v88
  %v217 = vunpack.c.l.b16 %v89
  %v218 = vunpack.c.h.b16 %v89
  %v219 = vunpack.c.l.b16 %v90
  %v220 = vunpack.c.h.b16 %v90
  %v221 = vunpack.c.l.b16 %v91
  %v222 = vunpack.c.h.b16 %v91
  %v223 = vunpack.c.l.b16 %v92
  %v224 = vunpack.c.h.b16 %v92
  %v225 = vunpack.c.l.b16 %v93
  %v226 = vunpack.c.h.b16 %v93
  %v227 = vunpack.c.l.b16 %v94
  %v228 = vunpack.c.h.b16 %v94
  %v229 = vunpack.c.l.b16 %v95
  %v230 = vunpack.c.h.b16 %v95
  %v231 = vunpack.c.l.b16 %v96
  %v232 = vunpack.c.h.b16 %v96
  %v233 = vunpack.c.l.b16 %v97
  %v234 = vunpack.c.h.b16 %v97
  %v235 = vunpack.c.l.b16 %v98
  %v236 = vunpack.c.h.b16 %v98
  %v237 = vpack.c.b16 %v177, %v173
  %v238 = vpack.c.b16 %v178, %v174
  %v239 = vpack.c.b16 %v179, %v175
  %v240 = vpack.c.b16 %v180, %v176
  %v241 = vpack.c.b16 %v185, %v181
  %v242 = vpack.c.b16 %v186, %v182
  %v243 = vpack.c.b16 %v187, %v183
  %v244 = vpack.c.b16 %v188, %v184
  %v245 = vpack.c.b16 %v193, %v189
  %v246 = vpack.c.b16 %v194, %v190
  %v247 = vpack.c.b16 %v195, %v191
  %v248 = vpack.c.b16 %v196, %v192
  %v249 = vpack.c.b16 %v201, %v197
  %v250 = vpack.c.b16 %v202, %v198
  %v251 = vpack.c.b16 %v203, %v199
  %v252 = vpack.c.b16 %v204, %v200
  %v253 = vpack.c.b16 %v209, %v205
  %v254 = vpack.c.b16 %v210, %v206
  %v255 = vpack.c.b16 %v211, %v207
  %v256 = vpack.c.b16 %v212, %v208
  %v257 = vpack.c.b16 %v217, %v213
  %v258 = vpack.c.b16 %v218, %v214
  %v259 = vpack.c.b16 %v219, %v215
  %v260 = vpack.c.b16 %v220, %v216
  %v261 = vpack.c.b16 %v225, %v221
  %v262 = vpack.c.b16 %v226, %v222
  %v263 = vpack.c.b16 %v227, %v223
  %v264 = vpack.c.b16 %v228, %v224
  %v265 = vpack.c.b16 %v233, %v229
  %v266 = vpack.c.b16 %v234, %v230
  %v267 = vpack.c.b16 %v235, %v231
  %v268 = vpack.c.b16 %v236, %v232
  %301 = vmatprep.subr.bf16.mxu0 %v238
  %302 = vmatpush1.bf16.msra.mxu0 %v237
  %303 = vmatprep.subr.bf16.mxu0 %v242
  %304 = vmatpush1.bf16.msra.mxu0 %v241
  %305 = vmatprep.subr.bf16.mxu0 %v246
  %306 = vmatpush1.bf16.msra.mxu0 %v245
  %307 = vmatprep.subr.bf16.mxu0 %v250
  %308 = vmatpush1.bf16.msra.mxu0 %v249
  %309 = vmatprep.subr.bf16.mxu0 %v254
  %310 = vmatpush1.bf16.msra.mxu0 %v253
  %311 = vmatprep.subr.bf16.mxu0 %v258
  %312 = vmatpush1.bf16.msra.mxu0 %v257
  %313 = vmatprep.subr.bf16.mxu0 %v262
  %314 = vmatpush1.bf16.msra.mxu0 %v261
  %315 = vmatprep.subr.bf16.mxu0 %v266
  %316 = vmatpush1.bf16.msra.mxu0 %v265
  %317 = vmatprep.subr.bf16.mxu0 0
  %318 = vmatpush1.bf16.msra.mxu0 0
  %319 = vmatprep.subr.bf16.mxu0 0
  %320 = vmatpush1.bf16.msra.mxu0 0
  %321 = vmatprep.subr.bf16.mxu0 0
  %322 = vmatpush1.bf16.msra.mxu0 0
  %323 = vmatprep.subr.bf16.mxu0 0
  %324 = vmatpush1.bf16.msra.mxu0 0
  %325 = vmatprep.subr.bf16.mxu0 0
  %326 = vmatpush1.bf16.msra.mxu0 0
  %327 = vmatprep.subr.bf16.mxu0 0
  %328 = vmatpush1.bf16.msra.mxu0 0
  %329 = vmatprep.subr.bf16.mxu0 0
  %330 = vmatpush1.bf16.msra.mxu0 0
  %331 = vmatprep.subr.bf16.mxu0 0
  %332 = vmatpush1.bf16.msra.mxu0 0
  %333 = vmatprep.mubr.bf16.mxu0 0
  %334 = vmatmul.mubr.bf16.gmra.mrb[0].mxu0 %v140
  %v335 = vpop.f32.mrb[0].mxu0
  %v336 = vadd.f32 0.0, %v335
  %v337 = vpop.f32.mrb[0].mxu0
  %v338 = vadd.f32 0.0, %v337
  %v339 = vpop.f32.mrb[0].mxu0
  %v340 = vpop.f32.mrb[0].mxu0
  %341 = vdwg.mxu0
  %342 = vmatprep.subr.bf16.mxu0 %v240
  %343 = vmatpush1.bf16.msra.mxu0 %v239
  %344 = vmatprep.subr.bf16.mxu0 %v244
  %345 = vmatpush1.bf16.msra.mxu0 %v243
  %346 = vmatprep.subr.bf16.mxu0 %v248
  %347 = vmatpush1.bf16.msra.mxu0 %v247
  %348 = vmatprep.subr.bf16.mxu0 %v252
  %349 = vmatpush1.bf16.msra.mxu0 %v251
  %350 = vmatprep.subr.bf16.mxu0 %v256
  %351 = vmatpush1.bf16.msra.mxu0 %v255
  %352 = vmatprep.subr.bf16.mxu0 %v260
  %353 = vmatpush1.bf16.msra.mxu0 %v259
  %354 = vmatprep.subr.bf16.mxu0 %v264
  %355 = vmatpush1.bf16.msra.mxu0 %v263
  %356 = vmatprep.subr.bf16.mxu0 %v268
  %357 = vmatpush1.bf16.msra.mxu0 %v267
  %358 = vmatprep.subr.bf16.mxu0 0
  %359 = vmatpush1.bf16.msra.mxu0 0
  %360 = vmatprep.subr.bf16.mxu0 0
  %361 = vmatpush1.bf16.msra.mxu0 0
  %362 = vmatprep.subr.bf16.mxu0 0
  %363 = vmatpush1.bf16.msra.mxu0 0
  %364 = vmatprep.subr.bf16.mxu0 0
  %365 = vmatpush1.bf16.msra.mxu0 0
  %366 = vmatprep.subr.bf16.mxu0 0
  %367 = vmatpush1.bf16.msra.mxu0 0
  %368 = vmatprep.subr.bf16.mxu0 0
  %369 = vmatpush1.bf16.msra.mxu0 0
  %370 = vmatprep.subr.bf16.mxu0 0
  %371 = vmatpush1.bf16.msra.mxu0 0
  %372 = vmatprep.subr.bf16.mxu0 0
  %373 = vmatpush1.bf16.msra.mxu0 0
  %374 = vmatprep.mubr.bf16.mxu0 0
  %375 = vmatmul.mubr.bf16.gmra.mrb[0].mxu0 %v140
  %v376 = vpop.f32.mrb[0].mxu0
  %v377 = vadd.f32 0.0, %v376
  %v378 = vpop.f32.mrb[0].mxu0
  %v379 = vadd.f32 0.0, %v378
  %v380 = vpop.f32.mrb[0].mxu0
  %v381 = vpop.f32.mrb[0].mxu0
  %382 = vdwg.mxu0
  %v383 = vadd.f32 %v136, %v336
  %v384 = vadd.f32 %v137, %v338
  %v385 = vadd.f32 %v138, %v377
  %v386 = vadd.f32 %v139, %v379
  %v387 = vxor.u32 %v383, 2147483648
  %v388 = vmul.f32 %v387, 1.442695
  %v389 = vpow.pop %v388
  %v390 = vadd.f32 %v389, 1.0
  %v391 = vrcp.pop %v390
  %v392 = vmul.f32 1.0, %v391
  %v393 = vxor.u32 %v384, 2147483648
  %v394 = vmul.f32 %v393, 1.442695
  %v395 = vpow.pop %v394
  %v396 = vadd.f32 %v395, 1.0
  %v397 = vrcp.pop %v396
  %v398 = vmul.f32 1.0, %v397
  %v399 = vtanh.pop %v385
  %v400 = vxor.u32 %v386, 2147483648
  %v401 = vmul.f32 %v400, 1.442695
  %v402 = vpow.pop %v401
  %v403 = vadd.f32 %v402, 1.0
  %v404 = vrcp.pop %v403
  %v405 = vmul.f32 1.0, %v404
  %v406 = vmul.f32 %v398, %v135
  %v407 = vmul.f32 %v392, %v399
  %v408 = vadd.f32 %v406, %v407
  %v409 = vtanh.pop %v408
  %v410 = vmul.f32 %v405, %v409
  %411 = vst [vmem:[#allocation2] sm:$0xff] %v410
  %412 = vst [vmem:[#allocation3] sm:$0xff] %v408
  %v413 = vpack.c.bf16 %v410, %v410
  %414 = vst [vmem:[%s3] sm:$0xf] %v413
  %s415 = scalar_lea.vmem %s47, 112
  %v416 = vld [vmem:[%s415] sm:$0xff]
  %v417 = vld [vmem:[%s415 + $0x8] sm:$0xff]
  %v418 = vld [vmem:[#allocation4] sm:$0xff]
  %v419 = vld [vmem:[#allocation5] sm:$0xff]
  %v420 = vunpack.c.l.bf16 %v416
  %v421 = vunpack.c.h.bf16 %v416
  %v422 = vunpack.c.l.bf16 %v417
  %v423 = vunpack.c.h.bf16 %v417
  %v424 = vpack.c.bf16 %v418, %v418
  %v457 = vunpack.c.l.b16 %v100
  %v458 = vunpack.c.h.b16 %v100
  %v459 = vunpack.c.l.b16 %v101
  %v460 = vunpack.c.h.b16 %v101
  %v461 = vunpack.c.l.b16 %v102
  %v462 = vunpack.c.h.b16 %v102
  %v463 = vunpack.c.l.b16 %v103
  %v464 = vunpack.c.h.b16 %v103
  %v465 = vunpack.c.l.b16 %v104
  %v466 = vunpack.c.h.b16 %v104
  %v467 = vunpack.c.l.b16 %v105
  %v468 = vunpack.c.h.b16 %v105
  %v469 = vunpack.c.l.b16 %v106
  %v470 = vunpack.c.h.b16 %v106
  %v471 = vunpack.c.l.b16 %v107
  %v472 = vunpack.c.h.b16 %v107
  %v473 = vunpack.c.l.b16 %v108
  %v474 = vunpack.c.h.b16 %v108
  %v475 = vunpack.c.l.b16 %v109
  %v476 = vunpack.c.h.b16 %v109
  %v477 = vunpack.c.l.b16 %v110
  %v478 = vunpack.c.h.b16 %v110
  %v479 = vunpack.c.l.b16 %v111
  %v480 = vunpack.c.h.b16 %v111
  %v481 = vunpack.c.l.b16 %v112
  %v482 = vunpack.c.h.b16 %v112
  %v483 = vunpack.c.l.b16 %v113
  %v484 = vunpack.c.h.b16 %v113
  %v485 = vunpack.c.l.b16 %v114
  %v486 = vunpack.c.h.b16 %v114
  %v487 = vunpack.c.l.b16 %v115
  %v488 = vunpack.c.h.b16 %v115
  %v489 = vunpack.c.l.b16 %v116
  %v490 = vunpack.c.h.b16 %v116
  %v491 = vunpack.c.l.b16 %v117
  %v492 = vunpack.c.h.b16 %v117
  %v493 = vunpack.c.l.b16 %v118
  %v494 = vunpack.c.h.b16 %v118
  %v495 = vunpack.c.l.b16 %v119
  %v496 = vunpack.c.h.b16 %v119
  %v497 = vunpack.c.l.b16 %v120
  %v498 = vunpack.c.h.b16 %v120
  %v499 = vunpack.c.l.b16 %v121
  %v500 = vunpack.c.h.b16 %v121
  %v501 = vunpack.c.l.b16 %v122
  %v502 = vunpack.c.h.b16 %v122
  %v503 = vunpack.c.l.b16 %v123
  %v504 = vunpack.c.h.b16 %v123
  %v505 = vunpack.c.l.b16 %v124
  %v506 = vunpack.c.h.b16 %v124
  %v507 = vunpack.c.l.b16 %v125
  %v508 = vunpack.c.h.b16 %v125
  %v509 = vunpack.c.l.b16 %v126
  %v510 = vunpack.c.h.b16 %v126
  %v511 = vunpack.c.l.b16 %v127
  %v512 = vunpack.c.h.b16 %v127
  %v513 = vunpack.c.l.b16 %v128
  %v514 = vunpack.c.h.b16 %v128
  %v515 = vunpack.c.l.b16 %v129
  %v516 = vunpack.c.h.b16 %v129
  %v517 = vunpack.c.l.b16 %v130
  %v518 = vunpack.c.h.b16 %v130
  %v519 = vunpack.c.l.b16 %v131
  %v520 = vunpack.c.h.b16 %v131
  %v521 = vpack.c.b16 %v461, %v457
  %v522 = vpack.c.b16 %v462, %v458
  %v523 = vpack.c.b16 %v463, %v459
  %v524 = vpack.c.b16 %v464, %v460
  %v525 = vpack.c.b16 %v469, %v465
  %v526 = vpack.c.b16 %v470, %v466
  %v527 = vpack.c.b16 %v471, %v467
  %v528 = vpack.c.b16 %v472, %v468
  %v529 = vpack.c.b16 %v477, %v473
  %v530 = vpack.c.b16 %v478, %v474
  %v531 = vpack.c.b16 %v479, %v475
  %v532 = vpack.c.b16 %v480, %v476
  %v533 = vpack.c.b16 %v485, %v481
  %v534 = vpack.c.b16 %v486, %v482
  %v535 = vpack.c.b16 %v487, %v483
  %v536 = vpack.c.b16 %v488, %v484
  %v537 = vpack.c.b16 %v493, %v489
  %v538 = vpack.c.b16 %v494, %v490
  %v539 = vpack.c.b16 %v495, %v491
  %v540 = vpack.c.b16 %v496, %v492
  %v541 = vpack.c.b16 %v501, %v497
  %v542 = vpack.c.b16 %v502, %v498
  %v543 = vpack.c.b16 %v503, %v499
  %v544 = vpack.c.b16 %v504, %v500
  %v545 = vpack.c.b16 %v509, %v505
  %v546 = vpack.c.b16 %v510, %v506
  %v547 = vpack.c.b16 %v511, %v507
  %v548 = vpack.c.b16 %v512, %v508
  %v549 = vpack.c.b16 %v517, %v513
  %v550 = vpack.c.b16 %v518, %v514
  %v551 = vpack.c.b16 %v519, %v515
  %v552 = vpack.c.b16 %v520, %v516
  %585 = vmatprep.subr.bf16.mxu0 %v522
  %586 = vmatpush1.bf16.msra.mxu0 %v521
  %587 = vmatprep.subr.bf16.mxu0 %v526
  %588 = vmatpush1.bf16.msra.mxu0 %v525
  %589 = vmatprep.subr.bf16.mxu0 %v530
  %590 = vmatpush1.bf16.msra.mxu0 %v529
  %591 = vmatprep.subr.bf16.mxu0 %v534
  %592 = vmatpush1.bf16.msra.mxu0 %v533
  %593 = vmatprep.subr.bf16.mxu0 %v538
  %594 = vmatpush1.bf16.msra.mxu0 %v537
  %595 = vmatprep.subr.bf16.mxu0 %v542
  %596 = vmatpush1.bf16.msra.mxu0 %v541
  %597 = vmatprep.subr.bf16.mxu0 %v546
  %598 = vmatpush1.bf16.msra.mxu0 %v545
  %599 = vmatprep.subr.bf16.mxu0 %v550
  %600 = vmatpush1.bf16.msra.mxu0 %v549
  %601 = vmatprep.subr.bf16.mxu0 0
  %602 = vmatpush1.bf16.msra.mxu0 0
  %603 = vmatprep.subr.bf16.mxu0 0
  %604 = vmatpush1.bf16.msra.mxu0 0
  %605 = vmatprep.subr.bf16.mxu0 0
  %606 = vmatpush1.bf16.msra.mxu0 0
  %607 = vmatprep.subr.bf16.mxu0 0
  %608 = vmatpush1.bf16.msra.mxu0 0
  %609 = vmatprep.subr.bf16.mxu0 0
  %610 = vmatpush1.bf16.msra.mxu0 0
  %611 = vmatprep.subr.bf16.mxu0 0
  %612 = vmatpush1.bf16.msra.mxu0 0
  %613 = vmatprep.subr.bf16.mxu0 0
  %614 = vmatpush1.bf16.msra.mxu0 0
  %615 = vmatprep.subr.bf16.mxu0 0
  %616 = vmatpush1.bf16.msra.mxu0 0
  %617 = vmatprep.mubr.bf16.mxu0 0
  %618 = vmatmul.mubr.bf16.gmra.mrb[0].mxu0 %v424
  %v619 = vpop.f32.mrb[0].mxu0
  %v620 = vadd.f32 0.0, %v619
  %v621 = vpop.f32.mrb[0].mxu0
  %v622 = vadd.f32 0.0, %v621
  %v623 = vpop.f32.mrb[0].mxu0
  %v624 = vpop.f32.mrb[0].mxu0
  %625 = vdwg.mxu0
  %626 = vmatprep.subr.bf16.mxu0 %v524
  %627 = vmatpush1.bf16.msra.mxu0 %v523
  %628 = vmatprep.subr.bf16.mxu0 %v528
  %629 = vmatpush1.bf16.msra.mxu0 %v527
  %630 = vmatprep.subr.bf16.mxu0 %v532
  %631 = vmatpush1.bf16.msra.mxu0 %v531
  %632 = vmatprep.subr.bf16.mxu0 %v536
  %633 = vmatpush1.bf16.msra.mxu0 %v535
  %634 = vmatprep.subr.bf16.mxu0 %v540
  %635 = vmatpush1.bf16.msra.mxu0 %v539
  %636 = vmatprep.subr.bf16.mxu0 %v544
  %637 = vmatpush1.bf16.msra.mxu0 %v543
  %638 = vmatprep.subr.bf16.mxu0 %v548
  %639 = vmatpush1.bf16.msra.mxu0 %v547
  %640 = vmatprep.subr.bf16.mxu0 %v552
  %641 = vmatpush1.bf16.msra.mxu0 %v551
  %642 = vmatprep.subr.bf16.mxu0 0
  %643 = vmatpush1.bf16.msra.mxu0 0
  %644 = vmatprep.subr.bf16.mxu0 0
  %645 = vmatpush1.bf16.msra.mxu0 0
  %646 = vmatprep.subr.bf16.mxu0 0
  %647 = vmatpush1.bf16.msra.mxu0 0
  %648 = vmatprep.subr.bf16.mxu0 0
  %649 = vmatpush1.bf16.msra.mxu0 0
  %650 = vmatprep.subr.bf16.mxu0 0
  %651 = vmatpush1.bf16.msra.mxu0 0
  %652 = vmatprep.subr.bf16.mxu0 0
  %653 = vmatpush1.bf16.msra.mxu0 0
  %654 = vmatprep.subr.bf16.mxu0 0
  %655 = vmatpush1.bf16.msra.mxu0 0
  %656 = vmatprep.subr.bf16.mxu0 0
  %657 = vmatpush1.bf16.msra.mxu0 0
  %658 = vmatprep.mubr.bf16.mxu0 0
  %659 = vmatmul.mubr.bf16.gmra.mrb[0].mxu0 %v424
  %v660 = vpop.f32.mrb[0].mxu0
  %v661 = vadd.f32 0.0, %v660
  %v662 = vpop.f32.mrb[0].mxu0
  %v663 = vadd.f32 0.0, %v662
  %v664 = vpop.f32.mrb[0].mxu0
  %v665 = vpop.f32.mrb[0].mxu0
  %666 = vdwg.mxu0
  %v667 = vadd.f32 %v420, %v620
  %v668 = vadd.f32 %v421, %v622
  %v669 = vadd.f32 %v422, %v661
  %v670 = vadd.f32 %v423, %v663
  %v671 = vxor.u32 %v667, 2147483648
  %v672 = vmul.f32 %v671, 1.442695
  %v673 = vpow.pop %v672
  %v674 = vadd.f32 %v673, 1.0
  %v675 = vrcp.pop %v674
  %v676 = vmul.f32 1.0, %v675
  %v677 = vxor.u32 %v668, 2147483648
  %v678 = vmul.f32 %v677, 1.442695
  %v679 = vpow.pop %v678
  %v680 = vadd.f32 %v679, 1.0
  %v681 = vrcp.pop %v680
  %v682 = vmul.f32 1.0, %v681
  %v683 = vtanh.pop %v669
  %v684 = vxor.u32 %v670, 2147483648
  %v685 = vmul.f32 %v684, 1.442695
  %v686 = vpow.pop %v685
  %v687 = vadd.f32 %v686, 1.0
  %v688 = vrcp.pop %v687
  %v689 = vmul.f32 1.0, %v688
  %v690 = vmul.f32 %v682, %v419
  %v691 = vmul.f32 %v676, %v683
  %v692 = vadd.f32 %v690, %v691
  %v693 = vtanh.pop %v692
  %v694 = vmul.f32 %v689, %v693
  %695 = vst [vmem:[#allocation4] sm:$0xff] %v694
  %696 = vst [vmem:[#allocation5] sm:$0xff] %v692
  %v697 = vpack.c.bf16 %v694, %v694
  %s698 = scalar_lea.vmem %s55, 28
  %699 = vst [vmem:[%s698] sm:$0xf] %v697
  %s700 = scalar_lea.vmem %s0, 16
  %v701 = vld [vmem:[%s700] sm:$0xff]
  %v702 = vld [vmem:[%s700 + $0x8] sm:$0xff]
  %v703 = vld [vmem:[#allocation2] sm:$0xff]
  %v704 = vld [vmem:[#allocation3] sm:$0xff]
  %v705 = vunpack.c.l.bf16 %v701
  %v706 = vunpack.c.h.bf16 %v701
  %v707 = vunpack.c.l.bf16 %v702
  %v708 = vunpack.c.h.bf16 %v702
  %v709 = vpack.c.bf16 %v703, %v703
  %710 = vmatprep.subr.bf16.mxu0 %v238
  %711 = vmatpush1.bf16.msra.mxu0 %v237
  %712 = vmatprep.subr.bf16.mxu0 %v242
  %713 = vmatpush1.bf16.msra.mxu0 %v241
  %714 = vmatprep.subr.bf16.mxu0 %v246
  %715 = vmatpush1.bf16.msra.mxu0 %v245
  %716 = vmatprep.subr.bf16.mxu0 %v250
  %717 = vmatpush1.bf16.msra.mxu0 %v249
  %718 = vmatprep.subr.bf16.mxu0 %v254
  %719 = vmatpush1.bf16.msra.mxu0 %v253
  %720 = vmatprep.subr.bf16.mxu0 %v258
  %721 = vmatpush1.bf16.msra.mxu0 %v257
  %722 = vmatprep.subr.bf16.mxu0 %v262
  %723 = vmatpush1.bf16.msra.mxu0 %v261
  %724 = vmatprep.subr.bf16.mxu0 %v266
  %725 = vmatpush1.bf16.msra.mxu0 %v265
  %726 = vmatprep.subr.bf16.mxu0 0
  %727 = vmatpush1.bf16.msra.mxu0 0
  %728 = vmatprep.subr.bf16.mxu0 0
  %729 = vmatpush1.bf16.msra.mxu0 0
  %730 = vmatprep.subr.bf16.mxu0 0
  %731 = vmatpush1.bf16.msra.mxu0 0
  %732 = vmatprep.subr.bf16.mxu0 0
  %733 = vmatpush1.bf16.msra.mxu0 0
  %734 = vmatprep.subr.bf16.mxu0 0
  %735 = vmatpush1.bf16.msra.mxu0 0
  %736 = vmatprep.subr.bf16.mxu0 0
  %737 = vmatpush1.bf16.msra.mxu0 0
  %738 = vmatprep.subr.bf16.mxu0 0
  %739 = vmatpush1.bf16.msra.mxu0 0
  %740 = vmatprep.subr.bf16.mxu0 0
  %741 = vmatpush1.bf16.msra.mxu0 0
  %742 = vmatprep.mubr.bf16.mxu0 0
  %743 = vmatmul.mubr.bf16.gmra.mrb[0].mxu0 %v709
  %v744 = vpop.f32.mrb[0].mxu0
  %v745 = vadd.f32 0.0, %v744
  %v746 = vpop.f32.mrb[0].mxu0
  %v747 = vadd.f32 0.0, %v746
  %v748 = vpop.f32.mrb[0].mxu0
  %v749 = vpop.f32.mrb[0].mxu0
  %750 = vdwg.mxu0
  %751 = vmatprep.subr.bf16.mxu0 %v240
  %752 = vmatpush1.bf16.msra.mxu0 %v239
  %753 = vmatprep.subr.bf16.mxu0 %v244
  %754 = vmatpush1.bf16.msra.mxu0 %v243
  %755 = vmatprep.subr.bf16.mxu0 %v248
  %756 = vmatpush1.bf16.msra.mxu0 %v247
  %757 = vmatprep.subr.bf16.mxu0 %v252
  %758 = vmatpush1.bf16.msra.mxu0 %v251
  %759 = vmatprep.subr.bf16.mxu0 %v256
  %760 = vmatpush1.bf16.msra.mxu0 %v255
  %761 = vmatprep.subr.bf16.mxu0 %v260
  %762 = vmatpush1.bf16.msra.mxu0 %v259
  %763 = vmatprep.subr.bf16.mxu0 %v264
  %764 = vmatpush1.bf16.msra.mxu0 %v263
  %765 = vmatprep.subr.bf16.mxu0 %v268
  %766 = vmatpush1.bf16.msra.mxu0 %v267
  %767 = vmatprep.subr.bf16.mxu0 0
  %768 = vmatpush1.bf16.msra.mxu0 0
  %769 = vmatprep.subr.bf16.mxu0 0
  %770 = vmatpush1.bf16.msra.mxu0 0
  %771 = vmatprep.subr.bf16.mxu0 0
  %772 = vmatpush1.bf16.msra.mxu0 0
  %773 = vmatprep.subr.bf16.mxu0 0
  %774 = vmatpush1.bf16.msra.mxu0 0
  %775 = vmatprep.subr.bf16.mxu0 0
  %776 = vmatpush1.bf16.msra.mxu0 0
  %777 = vmatprep.subr.bf16.mxu0 0
  %778 = vmatpush1.bf16.msra.mxu0 0
  %779 = vmatprep.subr.bf16.mxu0 0
  %780 = vmatpush1.bf16.msra.mxu0 0
  %781 = vmatprep.subr.bf16.mxu0 0
  %782 = vmatpush1.bf16.msra.mxu0 0
  %783 = vmatprep.mubr.bf16.mxu0 0
  %784 = vmatmul.mubr.bf16.gmra.mrb[0].mxu0 %v709
  %v785 = vpop.f32.mrb[0].mxu0
  %v786 = vadd.f32 0.0, %v785
  %v787 = vpop.f32.mrb[0].mxu0
  %v788 = vadd.f32 0.0, %v787
  %v789 = vpop.f32.mrb[0].mxu0
  %v790 = vpop.f32.mrb[0].mxu0
  %791 = vdwg.mxu0
  %v792 = vadd.f32 %v705, %v745
  %v793 = vadd.f32 %v706, %v747
  %v794 = vadd.f32 %v707, %v786
  %v795 = vadd.f32 %v708, %v788
  %v796 = vxor.u32 %v792, 2147483648
  %v797 = vmul.f32 %v796, 1.442695
  %v798 = vpow.pop %v797
  %v799 = vadd.f32 %v798, 1.0
  %v800 = vrcp.pop %v799
  %v801 = vmul.f32 1.0, %v800
  %v802 = vxor.u32 %v793, 2147483648
  %v803 = vmul.f32 %v802, 1.442695
  %v804 = vpow.pop %v803
  %v805 = vadd.f32 %v804, 1.0
  %v806 = vrcp.pop %v805
  %v807 = vmul.f32 1.0, %v806
  %v808 = vtanh.pop %v794
  %v809 = vxor.u32 %v795, 2147483648
  %v810 = vmul.f32 %v809, 1.442695
  %v811 = vpow.pop %v810
  %v812 = vadd.f32 %v811, 1.0
  %v813 = vrcp.pop %v812
  %v814 = vmul.f32 1.0, %v813
  %v815 = vmul.f32 %v807, %v704
  %v816 = vmul.f32 %v801, %v808
  %v817 = vadd.f32 %v815, %v816
  %v818 = vtanh.pop %v817
  %v819 = vmul.f32 %v814, %v818
  %820 = vst [vmem:[#allocation2] sm:$0xff] %v819
  %821 = vst [vmem:[#allocation3] sm:$0xff] %v817
  %v822 = vpack.c.bf16 %v819, %v819
  %s823 = scalar_lea.vmem %s3, 4
  %824 = vst [vmem:[%s823] sm:$0xf] %v822
  %s825 = scalar_lea.vmem %s47, 96
  %v826 = vld [vmem:[%s825] sm:$0xff]
  %v827 = vld [vmem:[%s825 + $0x8] sm:$0xff]
  %v828 = vld [vmem:[#allocation4] sm:$0xff]
  %v829 = vld [vmem:[#allocation5] sm:$0xff]
  %v830 = vunpack.c.l.bf16 %v826
  %v831 = vunpack.c.h.bf16 %v826
  %v832 = vunpack.c.l.bf16 %v827
  %v833 = vunpack.c.h.bf16 %v827
  %v834 = vpack.c.bf16 %v828, %v828
  %835 = vmatprep.subr.bf16.mxu0 %v522
  %836 = vmatpush1.bf16.msra.mxu0 %v521
  %837 = vmatprep.subr.bf16.mxu0 %v526
  %838 = vmatpush1.bf16.msra.mxu0 %v525
  %839 = vmatprep.subr.bf16.mxu0 %v530
  %840 = vmatpush1.bf16.msra.mxu0 %v529
  %841 = vmatprep.subr.bf16.mxu0 %v534
  %842 = vmatpush1.bf16.msra.mxu0 %v533
  %843 = vmatprep.subr.bf16.mxu0 %v538
  %844 = vmatpush1.bf16.msra.mxu0 %v537
  %845 = vmatprep.subr.bf16.mxu0 %v542
  %846 = vmatpush1.bf16.msra.mxu0 %v541
  %847 = vmatprep.subr.bf16.mxu0 %v546
  %848 = vmatpush1.bf16.msra.mxu0 %v545
  %849 = vmatprep.subr.bf16.mxu0 %v550
  %850 = vmatpush1.bf16.msra.mxu0 %v549
  %851 = vmatprep.subr.bf16.mxu0 0
  %852 = vmatpush1.bf16.msra.mxu0 0
  %853 = vmatprep.subr.bf16.mxu0 0
  %854 = vmatpush1.bf16.msra.mxu0 0
  %855 = vmatprep.subr.bf16.mxu0 0
  %856 = vmatpush1.bf16.msra.mxu0 0
  %857 = vmatprep.subr.bf16.mxu0 0
  %858 = vmatpush1.bf16.msra.mxu0 0
  %859 = vmatprep.subr.bf16.mxu0 0
  %860 = vmatpush1.bf16.msra.mxu0 0
  %861 = vmatprep.subr.bf16.mxu0 0
  %862 = vmatpush1.bf16.msra.mxu0 0
  %863 = vmatprep.subr.bf16.mxu0 0
  %864 = vmatpush1.bf16.msra.mxu0 0
  %865 = vmatprep.subr.bf16.mxu0 0
  %866 = vmatpush1.bf16.msra.mxu0 0
  %867 = vmatprep.mubr.bf16.mxu0 0
  %868 = vmatmul.mubr.bf16.gmra.mrb[0].mxu0 %v834
  %v869 = vpop.f32.mrb[0].mxu0
  %v870 = vadd.f32 0.0, %v869
  %v871 = vpop.f32.mrb[0].mxu0
  %v872 = vadd.f32 0.0, %v871
  %v873 = vpop.f32.mrb[0].mxu0
  %v874 = vpop.f32.mrb[0].mxu0
  %875 = vdwg.mxu0
  %876 = vmatprep.subr.bf16.mxu0 %v524
  %877 = vmatpush1.bf16.msra.mxu0 %v523
  %878 = vmatprep.subr.bf16.mxu0 %v528
  %879 = vmatpush1.bf16.msra.mxu0 %v527
  %880 = vmatprep.subr.bf16.mxu0 %v532
  %881 = vmatpush1.bf16.msra.mxu0 %v531
  %882 = vmatprep.subr.bf16.mxu0 %v536
  %883 = vmatpush1.bf16.msra.mxu0 %v535
  %884 = vmatprep.subr.bf16.mxu0 %v540
  %885 = vmatpush1.bf16.msra.mxu0 %v539
  %886 = vmatprep.subr.bf16.mxu0 %v544
  %887 = vmatpush1.bf16.msra.mxu0 %v543
  %888 = vmatprep.subr.bf16.mxu0 %v548
  %889 = vmatpush1.bf16.msra.mxu0 %v547
  %890 = vmatprep.subr.bf16.mxu0 %v552
  %891 = vmatpush1.bf16.msra.mxu0 %v551
  %892 = vmatprep.subr.bf16.mxu0 0
  %893 = vmatpush1.bf16.msra.mxu0 0
  %894 = vmatprep.subr.bf16.mxu0 0
  %895 = vmatpush1.bf16.msra.mxu0 0
  %896 = vmatprep.subr.bf16.mxu0 0
  %897 = vmatpush1.bf16.msra.mxu0 0
  %898 = vmatprep.subr.bf16.mxu0 0
  %899 = vmatpush1.bf16.msra.mxu0 0
  %900 = vmatprep.subr.bf16.mxu0 0
  %901 = vmatpush1.bf16.msra.mxu0 0
  %902 = vmatprep.subr.bf16.mxu0 0
  %903 = vmatpush1.bf16.msra.mxu0 0
  %904 = vmatprep.subr.bf16.mxu0 0
  %905 = vmatpush1.bf16.msra.mxu0 0
  %906 = vmatprep.subr.bf16.mxu0 0
  %907 = vmatpush1.bf16.msra.mxu0 0
  %908 = vmatprep.mubr.bf16.mxu0 0
  %909 = vmatmul.mubr.bf16.gmra.mrb[0].mxu0 %v834
  %v910 = vpop.f32.mrb[0].mxu0
  %v911 = vadd.f32 0.0, %v910
  %v912 = vpop.f32.mrb[0].mxu0
  %v913 = vadd.f32 0.0, %v912
  %v914 = vpop.f32.mrb[0].mxu0
  %v915 = vpop.f32.mrb[0].mxu0
  %916 = vdwg.mxu0
  %v917 = vadd.f32 %v830, %v870
  %v918 = vadd.f32 %v831, %v872
  %v919 = vadd.f32 %v832, %v911
  %v920 = vadd.f32 %v833, %v913
  %v921 = vxor.u32 %v917, 2147483648
  %v922 = vmul.f32 %v921, 1.442695
  %v923 = vpow.pop %v922
  %v924 = vadd.f32 %v923, 1.0
  %v925 = vrcp.pop %v924
  %v926 = vmul.f32 1.0, %v925
  %v927 = vxor.u32 %v918, 2147483648
  %v928 = vmul.f32 %v927, 1.442695
  %v929 = vpow.pop %v928
  %v930 = vadd.f32 %v929, 1.0
  %v931 = vrcp.pop %v930
  %v932 = vmul.f32 1.0, %v931
  %v933 = vtanh.pop %v919
  %v934 = vxor.u32 %v920, 2147483648
  %v935 = vmul.f32 %v934, 1.442695
  %v936 = vpow.pop %v935
  %v937 = vadd.f32 %v936, 1.0
  %v938 = vrcp.pop %v937
  %v939 = vmul.f32 1.0, %v938
  %v940 = vmul.f32 %v932, %v829
  %v941 = vmul.f32 %v926, %v933
  %v942 = vadd.f32 %v940, %v941
  %v943 = vtanh.pop %v942
  %v944 = vmul.f32 %v939, %v943
  %945 = vst [vmem:[#allocation4] sm:$0xff] %v944
  %946 = vst [vmem:[#allocation5] sm:$0xff] %v942
  %v947 = vpack.c.bf16 %v944, %v944
  %s948 = scalar_lea.vmem %s55, 24
  %949 = vst [vmem:[%s948] sm:$0xf] %v947
  %s950 = scalar_lea.vmem %s0, 32
  %v951 = vld [vmem:[%s950] sm:$0xff]
  %v952 = vld [vmem:[%s950 + $0x8] sm:$0xff]
  %v953 = vld [vmem:[#allocation2] sm:$0xff]
  %v954 = vld [vmem:[#allocation3] sm:$0xff]
  %v955 = vunpack.c.l.bf16 %v951
  %v956 = vunpack.c.h.bf16 %v951
  %v957 = vunpack.c.l.bf16 %v952
  %v958 = vunpack.c.h.bf16 %v952
  %v959 = vpack.c.bf16 %v953, %v953
  %960 = vmatprep.subr.bf16.mxu0 %v238
  %961 = vmatpush1.bf16.msra.mxu0 %v237
  %962 = vmatprep.subr.bf16.mxu0 %v242
  %963 = vmatpush1.bf16.msra.mxu0 %v241
  %964 = vmatprep.subr.bf16.mxu0 %v246
  %965 = vmatpush1.bf16.msra.mxu0 %v245
  %966 = vmatprep.subr.bf16.mxu0 %v250
  %967 = vmatpush1.bf16.msra.mxu0 %v249
  %968 = vmatprep.subr.bf16.mxu0 %v254
  %969 = vmatpush1.bf16.msra.mxu0 %v253
  %970 = vmatprep.subr.bf16.mxu0 %v258
  %971 = vmatpush1.bf16.msra.mxu0 %v257
  %972 = vmatprep.subr.bf16.mxu0 %v262
  %973 = vmatpush1.bf16.msra.mxu0 %v261
  %974 = vmatprep.subr.bf16.mxu0 %v266
  %975 = vmatpush1.bf16.msra.mxu0 %v265
  %976 = vmatprep.subr.bf16.mxu0 0
  %977 = vmatpush1.bf16.msra.mxu0 0
  %978 = vmatprep.subr.bf16.mxu0 0
  %979 = vmatpush1.bf16.msra.mxu0 0
  %980 = vmatprep.subr.bf16.mxu0 0
  %981 = vmatpush1.bf16.msra.mxu0 0
  %982 = vmatprep.subr.bf16.mxu0 0
  %983 = vmatpush1.bf16.msra.mxu0 0
  %984 = vmatprep.subr.bf16.mxu0 0
  %985 = vmatpush1.bf16.msra.mxu0 0
  %986 = vmatprep.subr.bf16.mxu0 0
  %987 = vmatpush1.bf16.msra.mxu0 0
  %988 = vmatprep.subr.bf16.mxu0 0
  %989 = vmatpush1.bf16.msra.mxu0 0
  %990 = vmatprep.subr.bf16.mxu0 0
  %991 = vmatpush1.bf16.msra.mxu0 0
  %992 = vmatprep.mubr.bf16.mxu0 0
  %993 = vmatmul.mubr.bf16.gmra.mrb[0].mxu0 %v959
  %v994 = vpop.f32.mrb[0].mxu0
  %v995 = vadd.f32 0.0, %v994
  %v996 = vpop.f32.mrb[0].mxu0
  %v997 = vadd.f32 0.0, %v996
  %v998 = vpop.f32.mrb[0].mxu0
  %v999 = vpop.f32.mrb[0].mxu0
  %1000 = vdwg.mxu0
  %1001 = vmatprep.subr.bf16.mxu0 %v240
  %1002 = vmatpush1.bf16.msra.mxu0 %v239
  %1003 = vmatprep.subr.bf16.mxu0 %v244
  %1004 = vmatpush1.bf16.msra.mxu0 %v243
  %1005 = vmatprep.subr.bf16.mxu0 %v248
  %1006 = vmatpush1.bf16.msra.mxu0 %v247
  %1007 = vmatprep.subr.bf16.mxu0 %v252
  %1008 = vmatpush1.bf16.msra.mxu0 %v251
  %1009 = vmatprep.subr.bf16.mxu0 %v256
  %1010 = vmatpush1.bf16.msra.mxu0 %v255
  %1011 = vmatprep.subr.bf16.mxu0 %v260
  %1012 = vmatpush1.bf16.msra.mxu0 %v259
  %1013 = vmatprep.subr.bf16.mxu0 %v264
  %1014 = vmatpush1.bf16.msra.mxu0 %v263
  %1015 = vmatprep.subr.bf16.mxu0 %v268
  %1016 = vmatpush1.bf16.msra.mxu0 %v267
  %1017 = vmatprep.subr.bf16.mxu0 0
  %1018 = vmatpush1.bf16.msra.mxu0 0
  %1019 = vmatprep.subr.bf16.mxu0 0
  %1020 = vmatpush1.bf16.msra.mxu0 0
  %1021 = vmatprep.subr.bf16.mxu0 0
  %1022 = vmatpush1.bf16.msra.mxu0 0
  %1023 = vmatprep.subr.bf16.mxu0 0
  %1024 = vmatpush1.bf16.msra.mxu0 0
  %1025 = vmatprep.subr.bf16.mxu0 0
  %1026 = vmatpush1.bf16.msra.mxu0 0
  %1027 = vmatprep.subr.bf16.mxu0 0
  %1028 = vmatpush1.bf16.msra.mxu0 0
  %1029 = vmatprep.subr.bf16.mxu0 0
  %1030 = vmatpush1.bf16.msra.mxu0 0
  %1031 = vmatprep.subr.bf16.mxu0 0
  %1032 = vmatpush1.bf16.msra.mxu0 0
  %1033 = vmatprep.mubr.bf16.mxu0 0
  %1034 = vmatmul.mubr.bf16.gmra.mrb[0].mxu0 %v959
  %v1035 = vpop.f32.mrb[0].mxu0
  %v1036 = vadd.f32 0.0, %v1035
  %v1037 = vpop.f32.mrb[0].mxu0
  %v1038 = vadd.f32 0.0, %v1037
  %v1039 = vpop.f32.mrb[0].mxu0
  %v1040 = vpop.f32.mrb[0].mxu0
  %1041 = vdwg.mxu0
  %v1042 = vadd.f32 %v955, %v995
  %v1043 = vadd.f32 %v956, %v997
  %v1044 = vadd.f32 %v957, %v1036
  %v1045 = vadd.f32 %v958, %v1038
  %v1046 = vxor.u32 %v1042, 2147483648
  %v1047 = vmul.f32 %v1046, 1.442695
  %v1048 = vpow.pop %v1047
  %v1049 = vadd.f32 %v1048, 1.0
  %v1050 = vrcp.pop %v1049
  %v1051 = vmul.f32 1.0, %v1050
  %v1052 = vxor.u32 %v1043, 2147483648
  %v1053 = vmul.f32 %v1052, 1.442695
  %v1054 = vpow.pop %v1053
  %v1055 = vadd.f32 %v1054, 1.0
  %v1056 = vrcp.pop %v1055
  %v1057 = vmul.f32 1.0, %v1056
  %v1058 = vtanh.pop %v1044
  %v1059 = vxor.u32 %v1045, 2147483648
  %v1060 = vmul.f32 %v1059, 1.442695
  %v1061 = vpow.pop %v1060
  %v1062 = vadd.f32 %v1061, 1.0
  %v1063 = vrcp.pop %v1062
  %v1064 = vmul.f32 1.0, %v1063
  %v1065 = vmul.f32 %v1057, %v954
  %v1066 = vmul.f32 %v1051, %v1058
  %v1067 = vadd.f32 %v1065, %v1066
  %v1068 = vtanh.pop %v1067
  %v1069 = vmul.f32 %v1064, %v1068
  %1070 = vst [vmem:[#allocation2] sm:$0xff] %v1069
  %1071 = vst [vmem:[#allocation3] sm:$0xff] %v1067
  %v1072 = vpack.c.bf16 %v1069, %v1069
  %s1073 = scalar_lea.vmem %s3, 8
  %1074 = vst [vmem:[%s1073] sm:$0xf] %v1072
  %s1075 = scalar_lea.vmem %s47, 80
  %v1076 = vld [vmem:[%s1075] sm:$0xff]
  %v1077 = vld [vmem:[%s1075 + $0x8] sm:$0xff]
  %v1078 = vld [vmem:[#allocation4] sm:$0xff]
  %v1079 = vld [vmem:[#allocation5] sm:$0xff]
  %v1080 = vunpack.c.l.bf16 %v1076
  %v1081 = vunpack.c.h.bf16 %v1076
  %v1082 = vunpack.c.l.bf16 %v1077
  %v1083 = vunpack.c.h.bf16 %v1077
  %v1084 = vpack.c.bf16 %v1078, %v1078
  %1085 = vmatprep.subr.bf16.mxu0 %v522
  %1086 = vmatpush1.bf16.msra.mxu0 %v521
  %1087 = vmatprep.subr.bf16.mxu0 %v526
  %1088 = vmatpush1.bf16.msra.mxu0 %v525
  %1089 = vmatprep.subr.bf16.mxu0 %v530
  %1090 = vmatpush1.bf16.msra.mxu0 %v529
  %1091 = vmatprep.subr.bf16.mxu0 %v534
  %1092 = vmatpush1.bf16.msra.mxu0 %v533
  %1093 = vmatprep.subr.bf16.mxu0 %v538
  %1094 = vmatpush1.bf16.msra.mxu0 %v537
  %1095 = vmatprep.subr.bf16.mxu0 %v542
  %1096 = vmatpush1.bf16.msra.mxu0 %v541
  %1097 = vmatprep.subr.bf16.mxu0 %v546
  %1098 = vmatpush1.bf16.msra.mxu0 %v545
  %1099 = vmatprep.subr.bf16.mxu0 %v550
  %1100 = vmatpush1.bf16.msra.mxu0 %v549
  %1101 = vmatprep.subr.bf16.mxu0 0
  %1102 = vmatpush1.bf16.msra.mxu0 0
  %1103 = vmatprep.subr.bf16.mxu0 0
  %1104 = vmatpush1.bf16.msra.mxu0 0
  %1105 = vmatprep.subr.bf16.mxu0 0
  %1106 = vmatpush1.bf16.msra.mxu0 0
  %1107 = vmatprep.subr.bf16.mxu0 0
  %1108 = vmatpush1.bf16.msra.mxu0 0
  %1109 = vmatprep.subr.bf16.mxu0 0
  %1110 = vmatpush1.bf16.msra.mxu0 0
  %1111 = vmatprep.subr.bf16.mxu0 0
  %1112 = vmatpush1.bf16.msra.mxu0 0
  %1113 = vmatprep.subr.bf16.mxu0 0
  %1114 = vmatpush1.bf16.msra.mxu0 0
  %1115 = vmatprep.subr.bf16.mxu0 0
  %1116 = vmatpush1.bf16.msra.mxu0 0
  %1117 = vmatprep.mubr.bf16.mxu0 0
  %1118 = vmatmul.mubr.bf16.gmra.mrb[0].mxu0 %v1084
  %v1119 = vpop.f32.mrb[0].mxu0
  %v1120 = vadd.f32 0.0, %v1119
  %v1121 = vpop.f32.mrb[0].mxu0
  %v1122 = vadd.f32 0.0, %v1121
  %v1123 = vpop.f32.mrb[0].mxu0
  %v1124 = vpop.f32.mrb[0].mxu0
  %1125 = vdwg.mxu0
  %1126 = vmatprep.subr.bf16.mxu0 %v524
  %1127 = vmatpush1.bf16.msra.mxu0 %v523
  %1128 = vmatprep.subr.bf16.mxu0 %v528
  %1129 = vmatpush1.bf16.msra.mxu0 %v527
  %1130 = vmatprep.subr.bf16.mxu0 %v532
  %1131 = vmatpush1.bf16.msra.mxu0 %v531
  %1132 = vmatprep.subr.bf16.mxu0 %v536
  %1133 = vmatpush1.bf16.msra.mxu0 %v535
  %1134 = vmatprep.subr.bf16.mxu0 %v540
  %1135 = vmatpush1.bf16.msra.mxu0 %v539
  %1136 = vmatprep.subr.bf16.mxu0 %v544
  %1137 = vmatpush1.bf16.msra.mxu0 %v543
  %1138 = vmatprep.subr.bf16.mxu0 %v548
  %1139 = vmatpush1.bf16.msra.mxu0 %v547
  %1140 = vmatprep.subr.bf16.mxu0 %v552
  %1141 = vmatpush1.bf16.msra.mxu0 %v551
  %1142 = vmatprep.subr.bf16.mxu0 0
  %1143 = vmatpush1.bf16.msra.mxu0 0
  %1144 = vmatprep.subr.bf16.mxu0 0
  %1145 = vmatpush1.bf16.msra.mxu0 0
  %1146 = vmatprep.subr.bf16.mxu0 0
  %1147 = vmatpush1.bf16.msra.mxu0 0
  %1148 = vmatprep.subr.bf16.mxu0 0
  %1149 = vmatpush1.bf16.msra.mxu0 0
  %1150 = vmatprep.subr.bf16.mxu0 0
  %1151 = vmatpush1.bf16.msra.mxu0 0
  %1152 = vmatprep.subr.bf16.mxu0 0
  %1153 = vmatpush1.bf16.msra.mxu0 0
  %1154 = vmatprep.subr.bf16.mxu0 0
  %1155 = vmatpush1.bf16.msra.mxu0 0
  %1156 = vmatprep.subr.bf16.mxu0 0
  %1157 = vmatpush1.bf16.msra.mxu0 0
  %1158 = vmatprep.mubr.bf16.mxu0 0
  %1159 = vmatmul.mubr.bf16.gmra.mrb[0].mxu0 %v1084
  %v1160 = vpop.f32.mrb[0].mxu0
  %v1161 = vadd.f32 0.0, %v1160
  %v1162 = vpop.f32.mrb[0].mxu0
  %v1163 = vadd.f32 0.0, %v1162
  %v1164 = vpop.f32.mrb[0].mxu0
  %v1165 = vpop.f32.mrb[0].mxu0
  %1166 = vdwg.mxu0
  %v1167 = vadd.f32 %v1080, %v1120
  %v1168 = vadd.f32 %v1081, %v1122
  %v1169 = vadd.f32 %v1082, %v1161
  %v1170 = vadd.f32 %v1083, %v1163
  %v1171 = vxor.u32 %v1167, 2147483648
  %v1172 = vmul.f32 %v1171, 1.442695
  %v1173 = vpow.pop %v1172
  %v1174 = vadd.f32 %v1173, 1.0
  %v1175 = vrcp.pop %v1174
  %v1176 = vmul.f32 1.0, %v1175
  %v1177 = vxor.u32 %v1168, 2147483648
  %v1178 = vmul.f32 %v1177, 1.442695
  %v1179 = vpow.pop %v1178
  %v1180 = vadd.f32 %v1179, 1.0
  %v1181 = vrcp.pop %v1180
  %v1182 = vmul.f32 1.0, %v1181
  %v1183 = vtanh.pop %v1169
  %v1184 = vxor.u32 %v1170, 2147483648
  %v1185 = vmul.f32 %v1184, 1.442695
  %v1186 = vpow.pop %v1185
  %v1187 = vadd.f32 %v1186, 1.0
  %v1188 = vrcp.pop %v1187
  %v1189 = vmul.f32 1.0, %v1188
  %v1190 = vmul.f32 %v1182, %v1079
  %v1191 = vmul.f32 %v1176, %v1183
  %v1192 = vadd.f32 %v1190, %v1191
  %v1193 = vtanh.pop %v1192
  %v1194 = vmul.f32 %v1189, %v1193
  %1195 = vst [vmem:[#allocation4] sm:$0xff] %v1194
  %1196 = vst [vmem:[#allocation5] sm:$0xff] %v1192
  %v1197 = vpack.c.bf16 %v1194, %v1194
  %s1198 = scalar_lea.vmem %s55, 20
  %1199 = vst [vmem:[%s1198] sm:$0xf] %v1197
  %s1200 = scalar_lea.vmem %s0, 48
  %v1201 = vld [vmem:[%s1200] sm:$0xff]
  %v1202 = vld [vmem:[%s1200 + $0x8] sm:$0xff]
  %v1203 = vld [vmem:[#allocation2] sm:$0xff]
  %v1204 = vld [vmem:[#allocation3] sm:$0xff]
  %v1205 = vunpack.c.l.bf16 %v1201
  %v1206 = vunpack.c.h.bf16 %v1201
  %v1207 = vunpack.c.l.bf16 %v1202
  %v1208 = vunpack.c.h.bf16 %v1202
  %v1209 = vpack.c.bf16 %v1203, %v1203
  %1210 = vmatprep.subr.bf16.mxu0 %v238
  %1211 = vmatpush1.bf16.msra.mxu0 %v237
  %1212 = vmatprep.subr.bf16.mxu0 %v242
  %1213 = vmatpush1.bf16.msra.mxu0 %v241
  %1214 = vmatprep.subr.bf16.mxu0 %v246
  %1215 = vmatpush1.bf16.msra.mxu0 %v245
  %1216 = vmatprep.subr.bf16.mxu0 %v250
  %1217 = vmatpush1.bf16.msra.mxu0 %v249
  %1218 = vmatprep.subr.bf16.mxu0 %v254
  %1219 = vmatpush1.bf16.msra.mxu0 %v253
  %1220 = vmatprep.subr.bf16.mxu0 %v258
  %1221 = vmatpush1.bf16.msra.mxu0 %v257
  %1222 = vmatprep.subr.bf16.mxu0 %v262
  %1223 = vmatpush1.bf16.msra.mxu0 %v261
  %1224 = vmatprep.subr.bf16.mxu0 %v266
  %1225 = vmatpush1.bf16.msra.mxu0 %v265
  %1226 = vmatprep.subr.bf16.mxu0 0
  %1227 = vmatpush1.bf16.msra.mxu0 0
  %1228 = vmatprep.subr.bf16.mxu0 0
  %1229 = vmatpush1.bf16.msra.mxu0 0
  %1230 = vmatprep.subr.bf16.mxu0 0
  %1231 = vmatpush1.bf16.msra.mxu0 0
  %1232 = vmatprep.subr.bf16.mxu0 0
  %1233 = vmatpush1.bf16.msra.mxu0 0
  %1234 = vmatprep.subr.bf16.mxu0 0
  %1235 = vmatpush1.bf16.msra.mxu0 0
  %1236 = vmatprep.subr.bf16.mxu0 0
  %1237 = vmatpush1.bf16.msra.mxu0 0
  %1238 = vmatprep.subr.bf16.mxu0 0
  %1239 = vmatpush1.bf16.msra.mxu0 0
  %1240 = vmatprep.subr.bf16.mxu0 0
  %1241 = vmatpush1.bf16.msra.mxu0 0
  %1242 = vmatprep.mubr.bf16.mxu0 0
  %1243 = vmatmul.mubr.bf16.gmra.mrb[0].mxu0 %v1209
  %v1244 = vpop.f32.mrb[0].mxu0
  %v1245 = vadd.f32 0.0, %v1244
  %v1246 = vpop.f32.mrb[0].mxu0
  %v1247 = vadd.f32 0.0, %v1246
  %v1248 = vpop.f32.mrb[0].mxu0
  %v1249 = vpop.f32.mrb[0].mxu0
  %1250 = vdwg.mxu0
  %1251 = vmatprep.subr.bf16.mxu0 %v240
  %1252 = vmatpush1.bf16.msra.mxu0 %v239
  %1253 = vmatprep.subr.bf16.mxu0 %v244
  %1254 = vmatpush1.bf16.msra.mxu0 %v243
  %1255 = vmatprep.subr.bf16.mxu0 %v248
  %1256 = vmatpush1.bf16.msra.mxu0 %v247
  %1257 = vmatprep.subr.bf16.mxu0 %v252
  %1258 = vmatpush1.bf16.msra.mxu0 %v251
  %1259 = vmatprep.subr.bf16.mxu0 %v256
  %1260 = vmatpush1.bf16.msra.mxu0 %v255
  %1261 = vmatprep.subr.bf16.mxu0 %v260
  %1262 = vmatpush1.bf16.msra.mxu0 %v259
  %1263 = vmatprep.subr.bf16.mxu0 %v264
  %1264 = vmatpush1.bf16.msra.mxu0 %v263
  %1265 = vmatprep.subr.bf16.mxu0 %v268
  %1266 = vmatpush1.bf16.msra.mxu0 %v267
  %1267 = vmatprep.subr.bf16.mxu0 0
  %1268 = vmatpush1.bf16.msra.mxu0 0
  %1269 = vmatprep.subr.bf16.mxu0 0
  %1270 = vmatpush1.bf16.msra.mxu0 0
  %1271 = vmatprep.subr.bf16.mxu0 0
  %1272 = vmatpush1.bf16.msra.mxu0 0
  %1273 = vmatprep.subr.bf16.mxu0 0
  %1274 = vmatpush1.bf16.msra.mxu0 0
  %1275 = vmatprep.subr.bf16.mxu0 0
  %1276 = vmatpush1.bf16.msra.mxu0 0
  %1277 = vmatprep.subr.bf16.mxu0 0
  %1278 = vmatpush1.bf16.msra.mxu0 0
  %1279 = vmatprep.subr.bf16.mxu0 0
  %1280 = vmatpush1.bf16.msra.mxu0 0
  %1281 = vmatprep.subr.bf16.mxu0 0
  %1282 = vmatpush1.bf16.msra.mxu0 0
  %1283 = vmatprep.mubr.bf16.mxu0 0
  %1284 = vmatmul.mubr.bf16.gmra.mrb[0].mxu0 %v1209
  %v1285 = vpop.f32.mrb[0].mxu0
  %v1286 = vadd.f32 0.0, %v1285
  %v1287 = vpop.f32.mrb[0].mxu0
  %v1288 = vadd.f32 0.0, %v1287
  %v1289 = vpop.f32.mrb[0].mxu0
  %v1290 = vpop.f32.mrb[0].mxu0
  %1291 = vdwg.mxu0
  %v1292 = vadd.f32 %v1205, %v1245
  %v1293 = vadd.f32 %v1206, %v1247
  %v1294 = vadd.f32 %v1207, %v1286
  %v1295 = vadd.f32 %v1208, %v1288
  %v1296 = vxor.u32 %v1292, 2147483648
  %v1297 = vmul.f32 %v1296, 1.442695
  %v1298 = vpow.pop %v1297
  %v1299 = vadd.f32 %v1298, 1.0
  %v1300 = vrcp.pop %v1299
  %v1301 = vmul.f32 1.0, %v1300
  %v1302 = vxor.u32 %v1293, 2147483648
  %v1303 = vmul.f32 %v1302, 1.442695
  %v1304 = vpow.pop %v1303
  %v1305 = vadd.f32 %v1304, 1.0
  %v1306 = vrcp.pop %v1305
  %v1307 = vmul.f32 1.0, %v1306
  %v1308 = vtanh.pop %v1294
  %v1309 = vxor.u32 %v1295, 2147483648
  %v1310 = vmul.f32 %v1309, 1.442695
  %v1311 = vpow.pop %v1310
  %v1312 = vadd.f32 %v1311, 1.0
  %v1313 = vrcp.pop %v1312
  %v1314 = vmul.f32 1.0, %v1313
  %v1315 = vmul.f32 %v1307, %v1204
  %v1316 = vmul.f32 %v1301, %v1308
  %v1317 = vadd.f32 %v1315, %v1316
  %v1318 = vtanh.pop %v1317
  %v1319 = vmul.f32 %v1314, %v1318
  %1320 = vst [vmem:[#allocation2] sm:$0xff] %v1319
  %1321 = vst [vmem:[#allocation3] sm:$0xff] %v1317
  %v1322 = vpack.c.bf16 %v1319, %v1319
  %s1323 = scalar_lea.vmem %s3, 12
  %1324 = vst [vmem:[%s1323] sm:$0xf] %v1322
  %s1325 = scalar_lea.vmem %s47, 64
  %v1326 = vld [vmem:[%s1325] sm:$0xff]
  %v1327 = vld [vmem:[%s1325 + $0x8] sm:$0xff]
  %v1328 = vld [vmem:[#allocation4] sm:$0xff]
  %v1329 = vld [vmem:[#allocation5] sm:$0xff]
  %v1330 = vunpack.c.l.bf16 %v1326
  %v1331 = vunpack.c.h.bf16 %v1326
  %v1332 = vunpack.c.l.bf16 %v1327
  %v1333 = vunpack.c.h.bf16 %v1327
  %v1334 = vpack.c.bf16 %v1328, %v1328
  %1335 = vmatprep.subr.bf16.mxu0 %v522
  %1336 = vmatpush1.bf16.msra.mxu0 %v521
  %1337 = vmatprep.subr.bf16.mxu0 %v526
  %1338 = vmatpush1.bf16.msra.mxu0 %v525
  %1339 = vmatprep.subr.bf16.mxu0 %v530
  %1340 = vmatpush1.bf16.msra.mxu0 %v529
  %1341 = vmatprep.subr.bf16.mxu0 %v534
  %1342 = vmatpush1.bf16.msra.mxu0 %v533
  %1343 = vmatprep.subr.bf16.mxu0 %v538
  %1344 = vmatpush1.bf16.msra.mxu0 %v537
  %1345 = vmatprep.subr.bf16.mxu0 %v542
  %1346 = vmatpush1.bf16.msra.mxu0 %v541
  %1347 = vmatprep.subr.bf16.mxu0 %v546
  %1348 = vmatpush1.bf16.msra.mxu0 %v545
  %1349 = vmatprep.subr.bf16.mxu0 %v550
  %1350 = vmatpush1.bf16.msra.mxu0 %v549
  %1351 = vmatprep.subr.bf16.mxu0 0
  %1352 = vmatpush1.bf16.msra.mxu0 0
  %1353 = vmatprep.subr.bf16.mxu0 0
  %1354 = vmatpush1.bf16.msra.mxu0 0
  %1355 = vmatprep.subr.bf16.mxu0 0
  %1356 = vmatpush1.bf16.msra.mxu0 0
  %1357 = vmatprep.subr.bf16.mxu0 0
  %1358 = vmatpush1.bf16.msra.mxu0 0
  %1359 = vmatprep.subr.bf16.mxu0 0
  %1360 = vmatpush1.bf16.msra.mxu0 0
  %1361 = vmatprep.subr.bf16.mxu0 0
  %1362 = vmatpush1.bf16.msra.mxu0 0
  %1363 = vmatprep.subr.bf16.mxu0 0
  %1364 = vmatpush1.bf16.msra.mxu0 0
  %1365 = vmatprep.subr.bf16.mxu0 0
  %1366 = vmatpush1.bf16.msra.mxu0 0
  %1367 = vmatprep.mubr.bf16.mxu0 0
  %1368 = vmatmul.mubr.bf16.gmra.mrb[0].mxu0 %v1334
  %v1369 = vpop.f32.mrb[0].mxu0
  %v1370 = vadd.f32 0.0, %v1369
  %v1371 = vpop.f32.mrb[0].mxu0
  %v1372 = vadd.f32 0.0, %v1371
  %v1373 = vpop.f32.mrb[0].mxu0
  %v1374 = vpop.f32.mrb[0].mxu0
  %1375 = vdwg.mxu0
  %1376 = vmatprep.subr.bf16.mxu0 %v524
  %1377 = vmatpush1.bf16.msra.mxu0 %v523
  %1378 = vmatprep.subr.bf16.mxu0 %v528
  %1379 = vmatpush1.bf16.msra.mxu0 %v527
  %1380 = vmatprep.subr.bf16.mxu0 %v532
  %1381 = vmatpush1.bf16.msra.mxu0 %v531
  %1382 = vmatprep.subr.bf16.mxu0 %v536
  %1383 = vmatpush1.bf16.msra.mxu0 %v535
  %1384 = vmatprep.subr.bf16.mxu0 %v540
  %1385 = vmatpush1.bf16.msra.mxu0 %v539
  %1386 = vmatprep.subr.bf16.mxu0 %v544
  %1387 = vmatpush1.bf16.msra.mxu0 %v543
  %1388 = vmatprep.subr.bf16.mxu0 %v548
  %1389 = vmatpush1.bf16.msra.mxu0 %v547
  %1390 = vmatprep.subr.bf16.mxu0 %v552
  %1391 = vmatpush1.bf16.msra.mxu0 %v551
  %1392 = vmatprep.subr.bf16.mxu0 0
  %1393 = vmatpush1.bf16.msra.mxu0 0
  %1394 = vmatprep.subr.bf16.mxu0 0
  %1395 = vmatpush1.bf16.msra.mxu0 0
  %1396 = vmatprep.subr.bf16.mxu0 0
  %1397 = vmatpush1.bf16.msra.mxu0 0
  %1398 = vmatprep.subr.bf16.mxu0 0
  %1399 = vmatpush1.bf16.msra.mxu0 0
  %1400 = vmatprep.subr.bf16.mxu0 0
  %1401 = vmatpush1.bf16.msra.mxu0 0
  %1402 = vmatprep.subr.bf16.mxu0 0
  %1403 = vmatpush1.bf16.msra.mxu0 0
  %1404 = vmatprep.subr.bf16.mxu0 0
  %1405 = vmatpush1.bf16.msra.mxu0 0
  %1406 = vmatprep.subr.bf16.mxu0 0
  %1407 = vmatpush1.bf16.msra.mxu0 0
  %1408 = vmatprep.mubr.bf16.mxu0 0
  %1409 = vmatmul.mubr.bf16.gmra.mrb[0].mxu0 %v1334
  %v1410 = vpop.f32.mrb[0].mxu0
  %v1411 = vadd.f32 0.0, %v1410
  %v1412 = vpop.f32.mrb[0].mxu0
  %v1413 = vadd.f32 0.0, %v1412
  %v1414 = vpop.f32.mrb[0].mxu0
  %v1415 = vpop.f32.mrb[0].mxu0
  %1416 = vdwg.mxu0
  %v1417 = vadd.f32 %v1330, %v1370
  %v1418 = vadd.f32 %v1331, %v1372
  %v1419 = vadd.f32 %v1332, %v1411
  %v1420 = vadd.f32 %v1333, %v1413
  %v1421 = vxor.u32 %v1417, 2147483648
  %v1422 = vmul.f32 %v1421, 1.442695
  %v1423 = vpow.pop %v1422
  %v1424 = vadd.f32 %v1423, 1.0
  %v1425 = vrcp.pop %v1424
  %v1426 = vmul.f32 1.0, %v1425
  %v1427 = vxor.u32 %v1418, 2147483648
  %v1428 = vmul.f32 %v1427, 1.442695
  %v1429 = vpow.pop %v1428
  %v1430 = vadd.f32 %v1429, 1.0
  %v1431 = vrcp.pop %v1430
  %v1432 = vmul.f32 1.0, %v1431
  %v1433 = vtanh.pop %v1419
  %v1434 = vxor.u32 %v1420, 2147483648
  %v1435 = vmul.f32 %v1434, 1.442695
  %v1436 = vpow.pop %v1435
  %v1437 = vadd.f32 %v1436, 1.0
  %v1438 = vrcp.pop %v1437
  %v1439 = vmul.f32 1.0, %v1438
  %v1440 = vmul.f32 %v1432, %v1329
  %v1441 = vmul.f32 %v1426, %v1433
  %v1442 = vadd.f32 %v1440, %v1441
  %v1443 = vtanh.pop %v1442
  %v1444 = vmul.f32 %v1439, %v1443
  %1445 = vst [vmem:[#allocation4] sm:$0xff] %v1444
  %1446 = vst [vmem:[#allocation5] sm:$0xff] %v1442
  %v1447 = vpack.c.bf16 %v1444, %v1444
  %s1448 = scalar_lea.vmem %s55, 16
  %1449 = vst [vmem:[%s1448] sm:$0xf] %v1447
  %s1450 = scalar_lea.vmem %s0, 64
  %v1451 = vld [vmem:[%s1450] sm:$0xff]
  %v1452 = vld [vmem:[%s1450 + $0x8] sm:$0xff]
  %v1453 = vld [vmem:[#allocation2] sm:$0xff]
  %v1454 = vld [vmem:[#allocation3] sm:$0xff]
  %v1455 = vunpack.c.l.bf16 %v1451
  %v1456 = vunpack.c.h.bf16 %v1451
  %v1457 = vunpack.c.l.bf16 %v1452
  %v1458 = vunpack.c.h.bf16 %v1452
  %v1459 = vpack.c.bf16 %v1453, %v1453
  %1460 = vmatprep.subr.bf16.mxu0 %v238
  %1461 = vmatpush1.bf16.msra.mxu0 %v237
  %1462 = vmatprep.subr.bf16.mxu0 %v242
  %1463 = vmatpush1.bf16.msra.mxu0 %v241
  %1464 = vmatprep.subr.bf16.mxu0 %v246
  %1465 = vmatpush1.bf16.msra.mxu0 %v245
  %1466 = vmatprep.subr.bf16.mxu0 %v250
  %1467 = vmatpush1.bf16.msra.mxu0 %v249
  %1468 = vmatprep.subr.bf16.mxu0 %v254
  %1469 = vmatpush1.bf16.msra.mxu0 %v253
  %1470 = vmatprep.subr.bf16.mxu0 %v258
  %1471 = vmatpush1.bf16.msra.mxu0 %v257
  %1472 = vmatprep.subr.bf16.mxu0 %v262
  %1473 = vmatpush1.bf16.msra.mxu0 %v261
  %1474 = vmatprep.subr.bf16.mxu0 %v266
  %1475 = vmatpush1.bf16.msra.mxu0 %v265
  %1476 = vmatprep.subr.bf16.mxu0 0
  %1477 = vmatpush1.bf16.msra.mxu0 0
  %1478 = vmatprep.subr.bf16.mxu0 0
  %1479 = vmatpush1.bf16.msra.mxu0 0
  %1480 = vmatprep.subr.bf16.mxu0 0
  %1481 = vmatpush1.bf16.msra.mxu0 0
  %1482 = vmatprep.subr.bf16.mxu0 0
  %1483 = vmatpush1.bf16.msra.mxu0 0
  %1484 = vmatprep.subr.bf16.mxu0 0
  %1485 = vmatpush1.bf16.msra.mxu0 0
  %1486 = vmatprep.subr.bf16.mxu0 0
  %1487 = vmatpush1.bf16.msra.mxu0 0
  %1488 = vmatprep.subr.bf16.mxu0 0
  %1489 = vmatpush1.bf16.msra.mxu0 0
  %1490 = vmatprep.subr.bf16.mxu0 0
  %1491 = vmatpush1.bf16.msra.mxu0 0
  %1492 = vmatprep.mubr.bf16.mxu0 0
  %1493 = vmatmul.mubr.bf16.gmra.mrb[0].mxu0 %v1459
  %v1494 = vpop.f32.mrb[0].mxu0
  %v1495 = vadd.f32 0.0, %v1494
  %v1496 = vpop.f32.mrb[0].mxu0
  %v1497 = vadd.f32 0.0, %v1496
  %v1498 = vpop.f32.mrb[0].mxu0
  %v1499 = vpop.f32.mrb[0].mxu0
  %1500 = vdwg.mxu0
  %1501 = vmatprep.subr.bf16.mxu0 %v240
  %1502 = vmatpush1.bf16.msra.mxu0 %v239
  %1503 = vmatprep.subr.bf16.mxu0 %v244
  %1504 = vmatpush1.bf16.msra.mxu0 %v243
  %1505 = vmatprep.subr.bf16.mxu0 %v248
  %1506 = vmatpush1.bf16.msra.mxu0 %v247
  %1507 = vmatprep.subr.bf16.mxu0 %v252
  %1508 = vmatpush1.bf16.msra.mxu0 %v251
  %1509 = vmatprep.subr.bf16.mxu0 %v256
  %1510 = vmatpush1.bf16.msra.mxu0 %v255
  %1511 = vmatprep.subr.bf16.mxu0 %v260
  %1512 = vmatpush1.bf16.msra.mxu0 %v259
  %1513 = vmatprep.subr.bf16.mxu0 %v264
  %1514 = vmatpush1.bf16.msra.mxu0 %v263
  %1515 = vmatprep.subr.bf16.mxu0 %v268
  %1516 = vmatpush1.bf16.msra.mxu0 %v267
  %1517 = vmatprep.subr.bf16.mxu0 0
  %1518 = vmatpush1.bf16.msra.mxu0 0
  %1519 = vmatprep.subr.bf16.mxu0 0
  %1520 = vmatpush1.bf16.msra.mxu0 0
  %1521 = vmatprep.subr.bf16.mxu0 0
  %1522 = vmatpush1.bf16.msra.mxu0 0
  %1523 = vmatprep.subr.bf16.mxu0 0
  %1524 = vmatpush1.bf16.msra.mxu0 0
  %1525 = vmatprep.subr.bf16.mxu0 0
  %1526 = vmatpush1.bf16.msra.mxu0 0
  %1527 = vmatprep.subr.bf16.mxu0 0
  %1528 = vmatpush1.bf16.msra.mxu0 0
  %1529 = vmatprep.subr.bf16.mxu0 0
  %1530 = vmatpush1.bf16.msra.mxu0 0
  %1531 = vmatprep.subr.bf16.mxu0 0
  %1532 = vmatpush1.bf16.msra.mxu0 0
  %1533 = vmatprep.mubr.bf16.mxu0 0
  %1534 = vmatmul.mubr.bf16.gmra.mrb[0].mxu0 %v1459
  %v1535 = vpop.f32.mrb[0].mxu0
  %v1536 = vadd.f32 0.0, %v1535
  %v1537 = vpop.f32.mrb[0].mxu0
  %v1538 = vadd.f32 0.0, %v1537
  %v1539 = vpop.f32.mrb[0].mxu0
  %v1540 = vpop.f32.mrb[0].mxu0
  %1541 = vdwg.mxu0
  %v1542 = vadd.f32 %v1455, %v1495
  %v1543 = vadd.f32 %v1456, %v1497
  %v1544 = vadd.f32 %v1457, %v1536
  %v1545 = vadd.f32 %v1458, %v1538
  %v1546 = vxor.u32 %v1542, 2147483648
  %v1547 = vmul.f32 %v1546, 1.442695
  %v1548 = vpow.pop %v1547
  %v1549 = vadd.f32 %v1548, 1.0
  %v1550 = vrcp.pop %v1549
  %v1551 = vmul.f32 1.0, %v1550
  %v1552 = vxor.u32 %v1543, 2147483648
  %v1553 = vmul.f32 %v1552, 1.442695
  %v1554 = vpow.pop %v1553
  %v1555 = vadd.f32 %v1554, 1.0
  %v1556 = vrcp.pop %v1555
  %v1557 = vmul.f32 1.0, %v1556
  %v1558 = vtanh.pop %v1544
  %v1559 = vxor.u32 %v1545, 2147483648
  %v1560 = vmul.f32 %v1559, 1.442695
  %v1561 = vpow.pop %v1560
  %v1562 = vadd.f32 %v1561, 1.0
  %v1563 = vrcp.pop %v1562
  %v1564 = vmul.f32 1.0, %v1563
  %v1565 = vmul.f32 %v1557, %v1454
  %v1566 = vmul.f32 %v1551, %v1558
  %v1567 = vadd.f32 %v1565, %v1566
  %v1568 = vtanh.pop %v1567
  %v1569 = vmul.f32 %v1564, %v1568
  %1570 = vst [vmem:[#allocation2] sm:$0xff] %v1569
  %1571 = vst [vmem:[#allocation3] sm:$0xff] %v1567
  %v1572 = vpack.c.bf16 %v1569, %v1569
  %s1573 = scalar_lea.vmem %s3, 16
  %1574 = vst [vmem:[%s1573] sm:$0xf] %v1572
  %s1575 = scalar_lea.vmem %s47, 48
  %v1576 = vld [vmem:[%s1575] sm:$0xff]
  %v1577 = vld [vmem:[%s1575 + $0x8] sm:$0xff]
  %v1578 = vld [vmem:[#allocation4] sm:$0xff]
  %v1579 = vld [vmem:[#allocation5] sm:$0xff]
  %v1580 = vunpack.c.l.bf16 %v1576
  %v1581 = vunpack.c.h.bf16 %v1576
  %v1582 = vunpack.c.l.bf16 %v1577
  %v1583 = vunpack.c.h.bf16 %v1577
  %v1584 = vpack.c.bf16 %v1578, %v1578
  %1585 = vmatprep.subr.bf16.mxu0 %v522
  %1586 = vmatpush1.bf16.msra.mxu0 %v521
  %1587 = vmatprep.subr.bf16.mxu0 %v526
  %1588 = vmatpush1.bf16.msra.mxu0 %v525
  %1589 = vmatprep.subr.bf16.mxu0 %v530
  %1590 = vmatpush1.bf16.msra.mxu0 %v529
  %1591 = vmatprep.subr.bf16.mxu0 %v534
  %1592 = vmatpush1.bf16.msra.mxu0 %v533
  %1593 = vmatprep.subr.bf16.mxu0 %v538
  %1594 = vmatpush1.bf16.msra.mxu0 %v537
  %1595 = vmatprep.subr.bf16.mxu0 %v542
  %1596 = vmatpush1.bf16.msra.mxu0 %v541
  %1597 = vmatprep.subr.bf16.mxu0 %v546
  %1598 = vmatpush1.bf16.msra.mxu0 %v545
  %1599 = vmatprep.subr.bf16.mxu0 %v550
  %1600 = vmatpush1.bf16.msra.mxu0 %v549
  %1601 = vmatprep.subr.bf16.mxu0 0
  %1602 = vmatpush1.bf16.msra.mxu0 0
  %1603 = vmatprep.subr.bf16.mxu0 0
  %1604 = vmatpush1.bf16.msra.mxu0 0
  %1605 = vmatprep.subr.bf16.mxu0 0
  %1606 = vmatpush1.bf16.msra.mxu0 0
  %1607 = vmatprep.subr.bf16.mxu0 0
  %1608 = vmatpush1.bf16.msra.mxu0 0
  %1609 = vmatprep.subr.bf16.mxu0 0
  %1610 = vmatpush1.bf16.msra.mxu0 0
  %1611 = vmatprep.subr.bf16.mxu0 0
  %1612 = vmatpush1.bf16.msra.mxu0 0
  %1613 = vmatprep.subr.bf16.mxu0 0
  %1614 = vmatpush1.bf16.msra.mxu0 0
  %1615 = vmatprep.subr.bf16.mxu0 0
  %1616 = vmatpush1.bf16.msra.mxu0 0
  %1617 = vmatprep.mubr.bf16.mxu0 0
  %1618 = vmatmul.mubr.bf16.gmra.mrb[0].mxu0 %v1584
  %v1619 = vpop.f32.mrb[0].mxu0
  %v1620 = vadd.f32 0.0, %v1619
  %v1621 = vpop.f32.mrb[0].mxu0
  %v1622 = vadd.f32 0.0, %v1621
  %v1623 = vpop.f32.mrb[0].mxu0
  %v1624 = vpop.f32.mrb[0].mxu0
  %1625 = vdwg.mxu0
  %1626 = vmatprep.subr.bf16.mxu0 %v524
  %1627 = vmatpush1.bf16.msra.mxu0 %v523
  %1628 = vmatprep.subr.bf16.mxu0 %v528
  %1629 = vmatpush1.bf16.msra.mxu0 %v527
  %1630 = vmatprep.subr.bf16.mxu0 %v532
  %1631 = vmatpush1.bf16.msra.mxu0 %v531
  %1632 = vmatprep.subr.bf16.mxu0 %v536
  %1633 = vmatpush1.bf16.msra.mxu0 %v535
  %1634 = vmatprep.subr.bf16.mxu0 %v540
  %1635 = vmatpush1.bf16.msra.mxu0 %v539
  %1636 = vmatprep.subr.bf16.mxu0 %v544
  %1637 = vmatpush1.bf16.msra.mxu0 %v543
  %1638 = vmatprep.subr.bf16.mxu0 %v548
  %1639 = vmatpush1.bf16.msra.mxu0 %v547
  %1640 = vmatprep.subr.bf16.mxu0 %v552
  %1641 = vmatpush1.bf16.msra.mxu0 %v551
  %1642 = vmatprep.subr.bf16.mxu0 0
  %1643 = vmatpush1.bf16.msra.mxu0 0
  %1644 = vmatprep.subr.bf16.mxu0 0
  %1645 = vmatpush1.bf16.msra.mxu0 0
  %1646 = vmatprep.subr.bf16.mxu0 0
  %1647 = vmatpush1.bf16.msra.mxu0 0
  %1648 = vmatprep.subr.bf16.mxu0 0
  %1649 = vmatpush1.bf16.msra.mxu0 0
  %1650 = vmatprep.subr.bf16.mxu0 0
  %1651 = vmatpush1.bf16.msra.mxu0 0
  %1652 = vmatprep.subr.bf16.mxu0 0
  %1653 = vmatpush1.bf16.msra.mxu0 0
  %1654 = vmatprep.subr.bf16.mxu0 0
  %1655 = vmatpush1.bf16.msra.mxu0 0
  %1656 = vmatprep.subr.bf16.mxu0 0
  %1657 = vmatpush1.bf16.msra.mxu0 0
  %1658 = vmatprep.mubr.bf16.mxu0 0
  %1659 = vmatmul.mubr.bf16.gmra.mrb[0].mxu0 %v1584
  %v1660 = vpop.f32.mrb[0].mxu0
  %v1661 = vadd.f32 0.0, %v1660
  %v1662 = vpop.f32.mrb[0].mxu0
  %v1663 = vadd.f32 0.0, %v1662
  %v1664 = vpop.f32.mrb[0].mxu0
  %v1665 = vpop.f32.mrb[0].mxu0
  %1666 = vdwg.mxu0
  %v1667 = vadd.f32 %v1580, %v1620
  %v1668 = vadd.f32 %v1581, %v1622
  %v1669 = vadd.f32 %v1582, %v1661
  %v1670 = vadd.f32 %v1583, %v1663
  %v1671 = vxor.u32 %v1667, 2147483648
  %v1672 = vmul.f32 %v1671, 1.442695
  %v1673 = vpow.pop %v1672
  %v1674 = vadd.f32 %v1673, 1.0
  %v1675 = vrcp.pop %v1674
  %v1676 = vmul.f32 1.0, %v1675
  %v1677 = vxor.u32 %v1668, 2147483648
  %v1678 = vmul.f32 %v1677, 1.442695
  %v1679 = vpow.pop %v1678
  %v1680 = vadd.f32 %v1679, 1.0
  %v1681 = vrcp.pop %v1680
  %v1682 = vmul.f32 1.0, %v1681
  %v1683 = vtanh.pop %v1669
  %v1684 = vxor.u32 %v1670, 2147483648
  %v1685 = vmul.f32 %v1684, 1.442695
  %v1686 = vpow.pop %v1685
  %v1687 = vadd.f32 %v1686, 1.0
  %v1688 = vrcp.pop %v1687
  %v1689 = vmul.f32 1.0, %v1688
  %v1690 = vmul.f32 %v1682, %v1579
  %v1691 = vmul.f32 %v1676, %v1683
  %v1692 = vadd.f32 %v1690, %v1691
  %v1693 = vtanh.pop %v1692
  %v1694 = vmul.f32 %v1689, %v1693
  %1695 = vst [vmem:[#allocation4] sm:$0xff] %v1694
  %1696 = vst [vmem:[#allocation5] sm:$0xff] %v1692
  %v1697 = vpack.c.bf16 %v1694, %v1694
  %s1698 = scalar_lea.vmem %s55, 12
  %1699 = vst [vmem:[%s1698] sm:$0xf] %v1697
  %s1700 = scalar_lea.vmem %s0, 80
  %v1701 = vld [vmem:[%s1700] sm:$0xff]
  %v1702 = vld [vmem:[%s1700 + $0x8] sm:$0xff]
  %v1703 = vld [vmem:[#allocation2] sm:$0xff]
  %v1704 = vld [vmem:[#allocation3] sm:$0xff]
  %v1705 = vunpack.c.l.bf16 %v1701
  %v1706 = vunpack.c.h.bf16 %v1701
  %v1707 = vunpack.c.l.bf16 %v1702
  %v1708 = vunpack.c.h.bf16 %v1702
  %v1709 = vpack.c.bf16 %v1703, %v1703
  %1710 = vmatprep.subr.bf16.mxu0 %v238
  %1711 = vmatpush1.bf16.msra.mxu0 %v237
  %1712 = vmatprep.subr.bf16.mxu0 %v242
  %1713 = vmatpush1.bf16.msra.mxu0 %v241
  %1714 = vmatprep.subr.bf16.mxu0 %v246
  %1715 = vmatpush1.bf16.msra.mxu0 %v245
  %1716 = vmatprep.subr.bf16.mxu0 %v250
  %1717 = vmatpush1.bf16.msra.mxu0 %v249
  %1718 = vmatprep.subr.bf16.mxu0 %v254
  %1719 = vmatpush1.bf16.msra.mxu0 %v253
  %1720 = vmatprep.subr.bf16.mxu0 %v258
  %1721 = vmatpush1.bf16.msra.mxu0 %v257
  %1722 = vmatprep.subr.bf16.mxu0 %v262
  %1723 = vmatpush1.bf16.msra.mxu0 %v261
  %1724 = vmatprep.subr.bf16.mxu0 %v266
  %1725 = vmatpush1.bf16.msra.mxu0 %v265
  %1726 = vmatprep.subr.bf16.mxu0 0
  %1727 = vmatpush1.bf16.msra.mxu0 0
  %1728 = vmatprep.subr.bf16.mxu0 0
  %1729 = vmatpush1.bf16.msra.mxu0 0
  %1730 = vmatprep.subr.bf16.mxu0 0
  %1731 = vmatpush1.bf16.msra.mxu0 0
  %1732 = vmatprep.subr.bf16.mxu0 0
  %1733 = vmatpush1.bf16.msra.mxu0 0
  %1734 = vmatprep.subr.bf16.mxu0 0
  %1735 = vmatpush1.bf16.msra.mxu0 0
  %1736 = vmatprep.subr.bf16.mxu0 0
  %1737 = vmatpush1.bf16.msra.mxu0 0
  %1738 = vmatprep.subr.bf16.mxu0 0
  %1739 = vmatpush1.bf16.msra.mxu0 0
  %1740 = vmatprep.subr.bf16.mxu0 0
  %1741 = vmatpush1.bf16.msra.mxu0 0
  %1742 = vmatprep.mubr.bf16.mxu0 0
  %1743 = vmatmul.mubr.bf16.gmra.mrb[0].mxu0 %v1709
  %v1744 = vpop.f32.mrb[0].mxu0
  %v1745 = vadd.f32 0.0, %v1744
  %v1746 = vpop.f32.mrb[0].mxu0
  %v1747 = vadd.f32 0.0, %v1746
  %v1748 = vpop.f32.mrb[0].mxu0
  %v1749 = vpop.f32.mrb[0].mxu0
  %1750 = vdwg.mxu0
  %1751 = vmatprep.subr.bf16.mxu0 %v240
  %1752 = vmatpush1.bf16.msra.mxu0 %v239
  %1753 = vmatprep.subr.bf16.mxu0 %v244
  %1754 = vmatpush1.bf16.msra.mxu0 %v243
  %1755 = vmatprep.subr.bf16.mxu0 %v248
  %1756 = vmatpush1.bf16.msra.mxu0 %v247
  %1757 = vmatprep.subr.bf16.mxu0 %v252
  %1758 = vmatpush1.bf16.msra.mxu0 %v251
  %1759 = vmatprep.subr.bf16.mxu0 %v256
  %1760 = vmatpush1.bf16.msra.mxu0 %v255
  %1761 = vmatprep.subr.bf16.mxu0 %v260
  %1762 = vmatpush1.bf16.msra.mxu0 %v259
  %1763 = vmatprep.subr.bf16.mxu0 %v264
  %1764 = vmatpush1.bf16.msra.mxu0 %v263
  %1765 = vmatprep.subr.bf16.mxu0 %v268
  %1766 = vmatpush1.bf16.msra.mxu0 %v267
  %1767 = vmatprep.subr.bf16.mxu0 0
  %1768 = vmatpush1.bf16.msra.mxu0 0
  %1769 = vmatprep.subr.bf16.mxu0 0
  %1770 = vmatpush1.bf16.msra.mxu0 0
  %1771 = vmatprep.subr.bf16.mxu0 0
  %1772 = vmatpush1.bf16.msra.mxu0 0
  %1773 = vmatprep.subr.bf16.mxu0 0
  %1774 = vmatpush1.bf16.msra.mxu0 0
  %1775 = vmatprep.subr.bf16.mxu0 0
  %1776 = vmatpush1.bf16.msra.mxu0 0
  %1777 = vmatprep.subr.bf16.mxu0 0
  %1778 = vmatpush1.bf16.msra.mxu0 0
  %1779 = vmatprep.subr.bf16.mxu0 0
  %1780 = vmatpush1.bf16.msra.mxu0 0
  %1781 = vmatprep.subr.bf16.mxu0 0
  %1782 = vmatpush1.bf16.msra.mxu0 0
  %1783 = vmatprep.mubr.bf16.mxu0 0
  %1784 = vmatmul.mubr.bf16.gmra.mrb[0].mxu0 %v1709
  %v1785 = vpop.f32.mrb[0].mxu0
  %v1786 = vadd.f32 0.0, %v1785
  %v1787 = vpop.f32.mrb[0].mxu0
  %v1788 = vadd.f32 0.0, %v1787
  %v1789 = vpop.f32.mrb[0].mxu0
  %v1790 = vpop.f32.mrb[0].mxu0
  %1791 = vdwg.mxu0
  %v1792 = vadd.f32 %v1705, %v1745
  %v1793 = vadd.f32 %v1706, %v1747
  %v1794 = vadd.f32 %v1707, %v1786
  %v1795 = vadd.f32 %v1708, %v1788
  %v1796 = vxor.u32 %v1792, 2147483648
  %v1797 = vmul.f32 %v1796, 1.442695
  %v1798 = vpow.pop %v1797
  %v1799 = vadd.f32 %v1798, 1.0
  %v1800 = vrcp.pop %v1799
  %v1801 = vmul.f32 1.0, %v1800
  %v1802 = vxor.u32 %v1793, 2147483648
  %v1803 = vmul.f32 %v1802, 1.442695
  %v1804 = vpow.pop %v1803
  %v1805 = vadd.f32 %v1804, 1.0
  %v1806 = vrcp.pop %v1805
  %v1807 = vmul.f32 1.0, %v1806
  %v1808 = vtanh.pop %v1794
  %v1809 = vxor.u32 %v1795, 2147483648
  %v1810 = vmul.f32 %v1809, 1.442695
  %v1811 = vpow.pop %v1810
  %v1812 = vadd.f32 %v1811, 1.0
  %v1813 = vrcp.pop %v1812
  %v1814 = vmul.f32 1.0, %v1813
  %v1815 = vmul.f32 %v1807, %v1704
  %v1816 = vmul.f32 %v1801, %v1808
  %v1817 = vadd.f32 %v1815, %v1816
  %v1818 = vtanh.pop %v1817
  %v1819 = vmul.f32 %v1814, %v1818
  %1820 = vst [vmem:[#allocation2] sm:$0xff] %v1819
  %1821 = vst [vmem:[#allocation3] sm:$0xff] %v1817
  %v1822 = vpack.c.bf16 %v1819, %v1819
  %s1823 = scalar_lea.vmem %s3, 20
  %1824 = vst [vmem:[%s1823] sm:$0xf] %v1822
  %s1825 = scalar_lea.vmem %s47, 32
  %v1826 = vld [vmem:[%s1825] sm:$0xff]
  %v1827 = vld [vmem:[%s1825 + $0x8] sm:$0xff]
  %v1828 = vld [vmem:[#allocation4] sm:$0xff]
  %v1829 = vld [vmem:[#allocation5] sm:$0xff]
  %v1830 = vunpack.c.l.bf16 %v1826
  %v1831 = vunpack.c.h.bf16 %v1826
  %v1832 = vunpack.c.l.bf16 %v1827
  %v1833 = vunpack.c.h.bf16 %v1827
  %v1834 = vpack.c.bf16 %v1828, %v1828
  %1835 = vmatprep.subr.bf16.mxu0 %v522
  %1836 = vmatpush1.bf16.msra.mxu0 %v521
  %1837 = vmatprep.subr.bf16.mxu0 %v526
  %1838 = vmatpush1.bf16.msra.mxu0 %v525
  %1839 = vmatprep.subr.bf16.mxu0 %v530
  %1840 = vmatpush1.bf16.msra.mxu0 %v529
  %1841 = vmatprep.subr.bf16.mxu0 %v534
  %1842 = vmatpush1.bf16.msra.mxu0 %v533
  %1843 = vmatprep.subr.bf16.mxu0 %v538
  %1844 = vmatpush1.bf16.msra.mxu0 %v537
  %1845 = vmatprep.subr.bf16.mxu0 %v542
  %1846 = vmatpush1.bf16.msra.mxu0 %v541
  %1847 = vmatprep.subr.bf16.mxu0 %v546
  %1848 = vmatpush1.bf16.msra.mxu0 %v545
  %1849 = vmatprep.subr.bf16.mxu0 %v550
  %1850 = vmatpush1.bf16.msra.mxu0 %v549
  %1851 = vmatprep.subr.bf16.mxu0 0
  %1852 = vmatpush1.bf16.msra.mxu0 0
  %1853 = vmatprep.subr.bf16.mxu0 0
  %1854 = vmatpush1.bf16.msra.mxu0 0
  %1855 = vmatprep.subr.bf16.mxu0 0
  %1856 = vmatpush1.bf16.msra.mxu0 0
  %1857 = vmatprep.subr.bf16.mxu0 0
  %1858 = vmatpush1.bf16.msra.mxu0 0
  %1859 = vmatprep.subr.bf16.mxu0 0
  %1860 = vmatpush1.bf16.msra.mxu0 0
  %1861 = vmatprep.subr.bf16.mxu0 0
  %1862 = vmatpush1.bf16.msra.mxu0 0
  %1863 = vmatprep.subr.bf16.mxu0 0
  %1864 = vmatpush1.bf16.msra.mxu0 0
  %1865 = vmatprep.subr.bf16.mxu0 0
  %1866 = vmatpush1.bf16.msra.mxu0 0
  %1867 = vmatprep.mubr.bf16.mxu0 0
  %1868 = vmatmul.mubr.bf16.gmra.mrb[0].mxu0 %v1834
  %v1869 = vpop.f32.mrb[0].mxu0
  %v1870 = vadd.f32 0.0, %v1869
  %v1871 = vpop.f32.mrb[0].mxu0
  %v1872 = vadd.f32 0.0, %v1871
  %v1873 = vpop.f32.mrb[0].mxu0
  %v1874 = vpop.f32.mrb[0].mxu0
  %1875 = vdwg.mxu0
  %1876 = vmatprep.subr.bf16.mxu0 %v524
  %1877 = vmatpush1.bf16.msra.mxu0 %v523
  %1878 = vmatprep.subr.bf16.mxu0 %v528
  %1879 = vmatpush1.bf16.msra.mxu0 %v527
  %1880 = vmatprep.subr.bf16.mxu0 %v532
  %1881 = vmatpush1.bf16.msra.mxu0 %v531
  %1882 = vmatprep.subr.bf16.mxu0 %v536
  %1883 = vmatpush1.bf16.msra.mxu0 %v535
  %1884 = vmatprep.subr.bf16.mxu0 %v540
  %1885 = vmatpush1.bf16.msra.mxu0 %v539
  %1886 = vmatprep.subr.bf16.mxu0 %v544
  %1887 = vmatpush1.bf16.msra.mxu0 %v543
  %1888 = vmatprep.subr.bf16.mxu0 %v548
  %1889 = vmatpush1.bf16.msra.mxu0 %v547
  %1890 = vmatprep.subr.bf16.mxu0 %v552
  %1891 = vmatpush1.bf16.msra.mxu0 %v551
  %1892 = vmatprep.subr.bf16.mxu0 0
  %1893 = vmatpush1.bf16.msra.mxu0 0
  %1894 = vmatprep.subr.bf16.mxu0 0
  %1895 = vmatpush1.bf16.msra.mxu0 0
  %1896 = vmatprep.subr.bf16.mxu0 0
  %1897 = vmatpush1.bf16.msra.mxu0 0
  %1898 = vmatprep.subr.bf16.mxu0 0
  %1899 = vmatpush1.bf16.msra.mxu0 0
  %1900 = vmatprep.subr.bf16.mxu0 0
  %1901 = vmatpush1.bf16.msra.mxu0 0
  %1902 = vmatprep.subr.bf16.mxu0 0
  %1903 = vmatpush1.bf16.msra.mxu0 0
  %1904 = vmatprep.subr.bf16.mxu0 0
  %1905 = vmatpush1.bf16.msra.mxu0 0
  %1906 = vmatprep.subr.bf16.mxu0 0
  %1907 = vmatpush1.bf16.msra.mxu0 0
  %1908 = vmatprep.mubr.bf16.mxu0 0
  %1909 = vmatmul.mubr.bf16.gmra.mrb[0].mxu0 %v1834
  %v1910 = vpop.f32.mrb[0].mxu0
  %v1911 = vadd.f32 0.0, %v1910
  %v1912 = vpop.f32.mrb[0].mxu0
  %v1913 = vadd.f32 0.0, %v1912
  %v1914 = vpop.f32.mrb[0].mxu0
  %v1915 = vpop.f32.mrb[0].mxu0
  %1916 = vdwg.mxu0
  %v1917 = vadd.f32 %v1830, %v1870
  %v1918 = vadd.f32 %v1831, %v1872
  %v1919 = vadd.f32 %v1832, %v1911
  %v1920 = vadd.f32 %v1833, %v1913
  %v1921 = vxor.u32 %v1917, 2147483648
  %v1922 = vmul.f32 %v1921, 1.442695
  %v1923 = vpow.pop %v1922
  %v1924 = vadd.f32 %v1923, 1.0
  %v1925 = vrcp.pop %v1924
  %v1926 = vmul.f32 1.0, %v1925
  %v1927 = vxor.u32 %v1918, 2147483648
  %v1928 = vmul.f32 %v1927, 1.442695
  %v1929 = vpow.pop %v1928
  %v1930 = vadd.f32 %v1929, 1.0
  %v1931 = vrcp.pop %v1930
  %v1932 = vmul.f32 1.0, %v1931
  %v1933 = vtanh.pop %v1919
  %v1934 = vxor.u32 %v1920, 2147483648
  %v1935 = vmul.f32 %v1934, 1.442695
  %v1936 = vpow.pop %v1935
  %v1937 = vadd.f32 %v1936, 1.0
  %v1938 = vrcp.pop %v1937
  %v1939 = vmul.f32 1.0, %v1938
  %v1940 = vmul.f32 %v1932, %v1829
  %v1941 = vmul.f32 %v1926, %v1933
  %v1942 = vadd.f32 %v1940, %v1941
  %v1943 = vtanh.pop %v1942
  %v1944 = vmul.f32 %v1939, %v1943
  %1945 = vst [vmem:[#allocation4] sm:$0xff] %v1944
  %1946 = vst [vmem:[#allocation5] sm:$0xff] %v1942
  %v1947 = vpack.c.bf16 %v1944, %v1944
  %s1948 = scalar_lea.vmem %s55, 8
  %1949 = vst [vmem:[%s1948] sm:$0xf] %v1947
  %s1950 = scalar_lea.vmem %s0, 96
  %v1951 = vld [vmem:[%s1950] sm:$0xff]
  %v1952 = vld [vmem:[%s1950 + $0x8] sm:$0xff]
  %v1953 = vld [vmem:[#allocation2] sm:$0xff]
  %v1954 = vld [vmem:[#allocation3] sm:$0xff]
  %v1955 = vunpack.c.l.bf16 %v1951
  %v1956 = vunpack.c.h.bf16 %v1951
  %v1957 = vunpack.c.l.bf16 %v1952
  %v1958 = vunpack.c.h.bf16 %v1952
  %v1959 = vpack.c.bf16 %v1953, %v1953
  %1960 = vmatprep.subr.bf16.mxu0 %v238
  %1961 = vmatpush1.bf16.msra.mxu0 %v237
  %1962 = vmatprep.subr.bf16.mxu0 %v242
  %1963 = vmatpush1.bf16.msra.mxu0 %v241
  %1964 = vmatprep.subr.bf16.mxu0 %v246
  %1965 = vmatpush1.bf16.msra.mxu0 %v245
  %1966 = vmatprep.subr.bf16.mxu0 %v250
  %1967 = vmatpush1.bf16.msra.mxu0 %v249
  %1968 = vmatprep.subr.bf16.mxu0 %v254
  %1969 = vmatpush1.bf16.msra.mxu0 %v253
  %1970 = vmatprep.subr.bf16.mxu0 %v258
  %1971 = vmatpush1.bf16.msra.mxu0 %v257
  %1972 = vmatprep.subr.bf16.mxu0 %v262
  %1973 = vmatpush1.bf16.msra.mxu0 %v261
  %1974 = vmatprep.subr.bf16.mxu0 %v266
  %1975 = vmatpush1.bf16.msra.mxu0 %v265
  %1976 = vmatprep.subr.bf16.mxu0 0
  %1977 = vmatpush1.bf16.msra.mxu0 0
  %1978 = vmatprep.subr.bf16.mxu0 0
  %1979 = vmatpush1.bf16.msra.mxu0 0
  %1980 = vmatprep.subr.bf16.mxu0 0
  %1981 = vmatpush1.bf16.msra.mxu0 0
  %1982 = vmatprep.subr.bf16.mxu0 0
  %1983 = vmatpush1.bf16.msra.mxu0 0
  %1984 = vmatprep.subr.bf16.mxu0 0
  %1985 = vmatpush1.bf16.msra.mxu0 0
  %1986 = vmatprep.subr.bf16.mxu0 0
  %1987 = vmatpush1.bf16.msra.mxu0 0
  %1988 = vmatprep.subr.bf16.mxu0 0
  %1989 = vmatpush1.bf16.msra.mxu0 0
  %1990 = vmatprep.subr.bf16.mxu0 0
  %1991 = vmatpush1.bf16.msra.mxu0 0
  %1992 = vmatprep.mubr.bf16.mxu0 0
  %1993 = vmatmul.mubr.bf16.gmra.mrb[0].mxu0 %v1959
  %v1994 = vpop.f32.mrb[0].mxu0
  %v1995 = vadd.f32 0.0, %v1994
  %v1996 = vpop.f32.mrb[0].mxu0
  %v1997 = vadd.f32 0.0, %v1996
  %v1998 = vpop.f32.mrb[0].mxu0
  %v1999 = vpop.f32.mrb[0].mxu0
  %2000 = vdwg.mxu0
  %2001 = vmatprep.subr.bf16.mxu0 %v240
  %2002 = vmatpush1.bf16.msra.mxu0 %v239
  %2003 = vmatprep.subr.bf16.mxu0 %v244
  %2004 = vmatpush1.bf16.msra.mxu0 %v243
  %2005 = vmatprep.subr.bf16.mxu0 %v248
  %2006 = vmatpush1.bf16.msra.mxu0 %v247
  %2007 = vmatprep.subr.bf16.mxu0 %v252
  %2008 = vmatpush1.bf16.msra.mxu0 %v251
  %2009 = vmatprep.subr.bf16.mxu0 %v256
  %2010 = vmatpush1.bf16.msra.mxu0 %v255
  %2011 = vmatprep.subr.bf16.mxu0 %v260
  %2012 = vmatpush1.bf16.msra.mxu0 %v259
  %2013 = vmatprep.subr.bf16.mxu0 %v264
  %2014 = vmatpush1.bf16.msra.mxu0 %v263
  %2015 = vmatprep.subr.bf16.mxu0 %v268
  %2016 = vmatpush1.bf16.msra.mxu0 %v267
  %2017 = vmatprep.subr.bf16.mxu0 0
  %2018 = vmatpush1.bf16.msra.mxu0 0
  %2019 = vmatprep.subr.bf16.mxu0 0
  %2020 = vmatpush1.bf16.msra.mxu0 0
  %2021 = vmatprep.subr.bf16.mxu0 0
  %2022 = vmatpush1.bf16.msra.mxu0 0
  %2023 = vmatprep.subr.bf16.mxu0 0
  %2024 = vmatpush1.bf16.msra.mxu0 0
  %2025 = vmatprep.subr.bf16.mxu0 0
  %2026 = vmatpush1.bf16.msra.mxu0 0
  %2027 = vmatprep.subr.bf16.mxu0 0
  %2028 = vmatpush1.bf16.msra.mxu0 0
  %2029 = vmatprep.subr.bf16.mxu0 0
  %2030 = vmatpush1.bf16.msra.mxu0 0
  %2031 = vmatprep.subr.bf16.mxu0 0
  %2032 = vmatpush1.bf16.msra.mxu0 0
  %2033 = vmatprep.mubr.bf16.mxu0 0
  %2034 = vmatmul.mubr.bf16.gmra.mrb[0].mxu0 %v1959
  %v2035 = vpop.f32.mrb[0].mxu0
  %v2036 = vadd.f32 0.0, %v2035
  %v2037 = vpop.f32.mrb[0].mxu0
  %v2038 = vadd.f32 0.0, %v2037
  %v2039 = vpop.f32.mrb[0].mxu0
  %v2040 = vpop.f32.mrb[0].mxu0
  %2041 = vdwg.mxu0
  %v2042 = vadd.f32 %v1955, %v1995
  %v2043 = vadd.f32 %v1956, %v1997
  %v2044 = vadd.f32 %v1957, %v2036
  %v2045 = vadd.f32 %v1958, %v2038
  %v2046 = vxor.u32 %v2042, 2147483648
  %v2047 = vmul.f32 %v2046, 1.442695
  %v2048 = vpow.pop %v2047
  %v2049 = vadd.f32 %v2048, 1.0
  %v2050 = vrcp.pop %v2049
  %v2051 = vmul.f32 1.0, %v2050
  %v2052 = vxor.u32 %v2043, 2147483648
  %v2053 = vmul.f32 %v2052, 1.442695
  %v2054 = vpow.pop %v2053
  %v2055 = vadd.f32 %v2054, 1.0
  %v2056 = vrcp.pop %v2055
  %v2057 = vmul.f32 1.0, %v2056
  %v2058 = vtanh.pop %v2044
  %v2059 = vxor.u32 %v2045, 2147483648
  %v2060 = vmul.f32 %v2059, 1.442695
  %v2061 = vpow.pop %v2060
  %v2062 = vadd.f32 %v2061, 1.0
  %v2063 = vrcp.pop %v2062
  %v2064 = vmul.f32 1.0, %v2063
  %v2065 = vmul.f32 %v2057, %v1954
  %v2066 = vmul.f32 %v2051, %v2058
  %v2067 = vadd.f32 %v2065, %v2066
  %v2068 = vtanh.pop %v2067
  %v2069 = vmul.f32 %v2064, %v2068
  %2070 = vst [vmem:[#allocation2] sm:$0xff] %v2069
  %2071 = vst [vmem:[#allocation3] sm:$0xff] %v2067
  %v2072 = vpack.c.bf16 %v2069, %v2069
  %s2073 = scalar_lea.vmem %s3, 24
  %2074 = vst [vmem:[%s2073] sm:$0xf] %v2072
  %s2075 = scalar_lea.vmem %s47, 16
  %v2076 = vld [vmem:[%s2075] sm:$0xff]
  %v2077 = vld [vmem:[%s2075 + $0x8] sm:$0xff]
  %v2078 = vld [vmem:[#allocation4] sm:$0xff]
  %v2079 = vld [vmem:[#allocation5] sm:$0xff]
  %v2080 = vunpack.c.l.bf16 %v2076
  %v2081 = vunpack.c.h.bf16 %v2076
  %v2082 = vunpack.c.l.bf16 %v2077
  %v2083 = vunpack.c.h.bf16 %v2077
  %v2084 = vpack.c.bf16 %v2078, %v2078
  %2085 = vmatprep.subr.bf16.mxu0 %v522
  %2086 = vmatpush1.bf16.msra.mxu0 %v521
  %2087 = vmatprep.subr.bf16.mxu0 %v526
  %2088 = vmatpush1.bf16.msra.mxu0 %v525
  %2089 = vmatprep.subr.bf16.mxu0 %v530
  %2090 = vmatpush1.bf16.msra.mxu0 %v529
  %2091 = vmatprep.subr.bf16.mxu0 %v534
  %2092 = vmatpush1.bf16.msra.mxu0 %v533
  %2093 = vmatprep.subr.bf16.mxu0 %v538
  %2094 = vmatpush1.bf16.msra.mxu0 %v537
  %2095 = vmatprep.subr.bf16.mxu0 %v542
  %2096 = vmatpush1.bf16.msra.mxu0 %v541
  %2097 = vmatprep.subr.bf16.mxu0 %v546
  %2098 = vmatpush1.bf16.msra.mxu0 %v545
  %2099 = vmatprep.subr.bf16.mxu0 %v550
  %2100 = vmatpush1.bf16.msra.mxu0 %v549
  %2101 = vmatprep.subr.bf16.mxu0 0
  %2102 = vmatpush1.bf16.msra.mxu0 0
  %2103 = vmatprep.subr.bf16.mxu0 0
  %2104 = vmatpush1.bf16.msra.mxu0 0
  %2105 = vmatprep.subr.bf16.mxu0 0
  %2106 = vmatpush1.bf16.msra.mxu0 0
  %2107 = vmatprep.subr.bf16.mxu0 0
  %2108 = vmatpush1.bf16.msra.mxu0 0
  %2109 = vmatprep.subr.bf16.mxu0 0
  %2110 = vmatpush1.bf16.msra.mxu0 0
  %2111 = vmatprep.subr.bf16.mxu0 0
  %2112 = vmatpush1.bf16.msra.mxu0 0
  %2113 = vmatprep.subr.bf16.mxu0 0
  %2114 = vmatpush1.bf16.msra.mxu0 0
  %2115 = vmatprep.subr.bf16.mxu0 0
  %2116 = vmatpush1.bf16.msra.mxu0 0
  %2117 = vmatprep.mubr.bf16.mxu0 0
  %2118 = vmatmul.mubr.bf16.gmra.mrb[0].mxu0 %v2084
  %v2119 = vpop.f32.mrb[0].mxu0
  %v2120 = vadd.f32 0.0, %v2119
  %v2121 = vpop.f32.mrb[0].mxu0
  %v2122 = vadd.f32 0.0, %v2121
  %v2123 = vpop.f32.mrb[0].mxu0
  %v2124 = vpop.f32.mrb[0].mxu0
  %2125 = vdwg.mxu0
  %2126 = vmatprep.subr.bf16.mxu0 %v524
  %2127 = vmatpush1.bf16.msra.mxu0 %v523
  %2128 = vmatprep.subr.bf16.mxu0 %v528
  %2129 = vmatpush1.bf16.msra.mxu0 %v527
  %2130 = vmatprep.subr.bf16.mxu0 %v532
  %2131 = vmatpush1.bf16.msra.mxu0 %v531
  %2132 = vmatprep.subr.bf16.mxu0 %v536
  %2133 = vmatpush1.bf16.msra.mxu0 %v535
  %2134 = vmatprep.subr.bf16.mxu0 %v540
  %2135 = vmatpush1.bf16.msra.mxu0 %v539
  %2136 = vmatprep.subr.bf16.mxu0 %v544
  %2137 = vmatpush1.bf16.msra.mxu0 %v543
  %2138 = vmatprep.subr.bf16.mxu0 %v548
  %2139 = vmatpush1.bf16.msra.mxu0 %v547
  %2140 = vmatprep.subr.bf16.mxu0 %v552
  %2141 = vmatpush1.bf16.msra.mxu0 %v551
  %2142 = vmatprep.subr.bf16.mxu0 0
  %2143 = vmatpush1.bf16.msra.mxu0 0
  %2144 = vmatprep.subr.bf16.mxu0 0
  %2145 = vmatpush1.bf16.msra.mxu0 0
  %2146 = vmatprep.subr.bf16.mxu0 0
  %2147 = vmatpush1.bf16.msra.mxu0 0
  %2148 = vmatprep.subr.bf16.mxu0 0
  %2149 = vmatpush1.bf16.msra.mxu0 0
  %2150 = vmatprep.subr.bf16.mxu0 0
  %2151 = vmatpush1.bf16.msra.mxu0 0
  %2152 = vmatprep.subr.bf16.mxu0 0
  %2153 = vmatpush1.bf16.msra.mxu0 0
  %2154 = vmatprep.subr.bf16.mxu0 0
  %2155 = vmatpush1.bf16.msra.mxu0 0
  %2156 = vmatprep.subr.bf16.mxu0 0
  %2157 = vmatpush1.bf16.msra.mxu0 0
  %2158 = vmatprep.mubr.bf16.mxu0 0
  %2159 = vmatmul.mubr.bf16.gmra.mrb[0].mxu0 %v2084
  %v2160 = vpop.f32.mrb[0].mxu0
  %v2161 = vadd.f32 0.0, %v2160
  %v2162 = vpop.f32.mrb[0].mxu0
  %v2163 = vadd.f32 0.0, %v2162
  %v2164 = vpop.f32.mrb[0].mxu0
  %v2165 = vpop.f32.mrb[0].mxu0
  %2166 = vdwg.mxu0
  %v2167 = vadd.f32 %v2080, %v2120
  %v2168 = vadd.f32 %v2081, %v2122
  %v2169 = vadd.f32 %v2082, %v2161
  %v2170 = vadd.f32 %v2083, %v2163
  %v2171 = vxor.u32 %v2167, 2147483648
  %v2172 = vmul.f32 %v2171, 1.442695
  %v2173 = vpow.pop %v2172
  %v2174 = vadd.f32 %v2173, 1.0
  %v2175 = vrcp.pop %v2174
  %v2176 = vmul.f32 1.0, %v2175
  %v2177 = vxor.u32 %v2168, 2147483648
  %v2178 = vmul.f32 %v2177, 1.442695
  %v2179 = vpow.pop %v2178
  %v2180 = vadd.f32 %v2179, 1.0
  %v2181 = vrcp.pop %v2180
  %v2182 = vmul.f32 1.0, %v2181
  %v2183 = vtanh.pop %v2169
  %v2184 = vxor.u32 %v2170, 2147483648
  %v2185 = vmul.f32 %v2184, 1.442695
  %v2186 = vpow.pop %v2185
  %v2187 = vadd.f32 %v2186, 1.0
  %v2188 = vrcp.pop %v2187
  %v2189 = vmul.f32 1.0, %v2188
  %v2190 = vmul.f32 %v2182, %v2079
  %v2191 = vmul.f32 %v2176, %v2183
  %v2192 = vadd.f32 %v2190, %v2191
  %v2193 = vtanh.pop %v2192
  %v2194 = vmul.f32 %v2189, %v2193
  %2195 = vst [vmem:[#allocation4] sm:$0xff] %v2194
  %2196 = vst [vmem:[#allocation5] sm:$0xff] %v2192
  %v2197 = vpack.c.bf16 %v2194, %v2194
  %s2198 = scalar_lea.vmem %s55, 4
  %2199 = vst [vmem:[%s2198] sm:$0xf] %v2197
  %s2200 = scalar_lea.vmem %s0, 112
  %v2201 = vld [vmem:[%s2200] sm:$0xff]
  %v2202 = vld [vmem:[%s2200 + $0x8] sm:$0xff]
  %v2203 = vld [vmem:[#allocation2] sm:$0xff]
  %v2204 = vld [vmem:[#allocation3] sm:$0xff]
  %v2205 = vunpack.c.l.bf16 %v2201
  %v2206 = vunpack.c.h.bf16 %v2201
  %v2207 = vunpack.c.l.bf16 %v2202
  %v2208 = vunpack.c.h.bf16 %v2202
  %v2209 = vpack.c.bf16 %v2203, %v2203
  %2210 = vmatprep.subr.bf16.mxu0 %v238
  %2211 = vmatpush1.bf16.msra.mxu0 %v237
  %2212 = vmatprep.subr.bf16.mxu0 %v242
  %2213 = vmatpush1.bf16.msra.mxu0 %v241
  %2214 = vmatprep.subr.bf16.mxu0 %v246
  %2215 = vmatpush1.bf16.msra.mxu0 %v245
  %2216 = vmatprep.subr.bf16.mxu0 %v250
  %2217 = vmatpush1.bf16.msra.mxu0 %v249
  %2218 = vmatprep.subr.bf16.mxu0 %v254
  %2219 = vmatpush1.bf16.msra.mxu0 %v253
  %2220 = vmatprep.subr.bf16.mxu0 %v258
  %2221 = vmatpush1.bf16.msra.mxu0 %v257
  %2222 = vmatprep.subr.bf16.mxu0 %v262
  %2223 = vmatpush1.bf16.msra.mxu0 %v261
  %2224 = vmatprep.subr.bf16.mxu0 %v266
  %2225 = vmatpush1.bf16.msra.mxu0 %v265
  %2226 = vmatprep.subr.bf16.mxu0 0
  %2227 = vmatpush1.bf16.msra.mxu0 0
  %2228 = vmatprep.subr.bf16.mxu0 0
  %2229 = vmatpush1.bf16.msra.mxu0 0
  %2230 = vmatprep.subr.bf16.mxu0 0
  %2231 = vmatpush1.bf16.msra.mxu0 0
  %2232 = vmatprep.subr.bf16.mxu0 0
  %2233 = vmatpush1.bf16.msra.mxu0 0
  %2234 = vmatprep.subr.bf16.mxu0 0
  %2235 = vmatpush1.bf16.msra.mxu0 0
  %2236 = vmatprep.subr.bf16.mxu0 0
  %2237 = vmatpush1.bf16.msra.mxu0 0
  %2238 = vmatprep.subr.bf16.mxu0 0
  %2239 = vmatpush1.bf16.msra.mxu0 0
  %2240 = vmatprep.subr.bf16.mxu0 0
  %2241 = vmatpush1.bf16.msra.mxu0 0
  %2242 = vmatprep.mubr.bf16.mxu0 0
  %2243 = vmatmul.mubr.bf16.gmra.mrb[0].mxu0 %v2209
  %v2244 = vpop.f32.mrb[0].mxu0
  %v2245 = vadd.f32 0.0, %v2244
  %v2246 = vpop.f32.mrb[0].mxu0
  %v2247 = vadd.f32 0.0, %v2246
  %v2248 = vpop.f32.mrb[0].mxu0
  %v2249 = vpop.f32.mrb[0].mxu0
  %2250 = vdwg.mxu0
  %2251 = vmatprep.subr.bf16.mxu0 %v240
  %2252 = vmatpush1.bf16.msra.mxu0 %v239
  %2253 = vmatprep.subr.bf16.mxu0 %v244
  %2254 = vmatpush1.bf16.msra.mxu0 %v243
  %2255 = vmatprep.subr.bf16.mxu0 %v248
  %2256 = vmatpush1.bf16.msra.mxu0 %v247
  %2257 = vmatprep.subr.bf16.mxu0 %v252
  %2258 = vmatpush1.bf16.msra.mxu0 %v251
  %2259 = vmatprep.subr.bf16.mxu0 %v256
  %2260 = vmatpush1.bf16.msra.mxu0 %v255
  %2261 = vmatprep.subr.bf16.mxu0 %v260
  %2262 = vmatpush1.bf16.msra.mxu0 %v259
  %2263 = vmatprep.subr.bf16.mxu0 %v264
  %2264 = vmatpush1.bf16.msra.mxu0 %v263
  %2265 = vmatprep.subr.bf16.mxu0 %v268
  %2266 = vmatpush1.bf16.msra.mxu0 %v267
  %2267 = vmatprep.subr.bf16.mxu0 0
  %2268 = vmatpush1.bf16.msra.mxu0 0
  %2269 = vmatprep.subr.bf16.mxu0 0
  %2270 = vmatpush1.bf16.msra.mxu0 0
  %2271 = vmatprep.subr.bf16.mxu0 0
  %2272 = vmatpush1.bf16.msra.mxu0 0
  %2273 = vmatprep.subr.bf16.mxu0 0
  %2274 = vmatpush1.bf16.msra.mxu0 0
  %2275 = vmatprep.subr.bf16.mxu0 0
  %2276 = vmatpush1.bf16.msra.mxu0 0
  %2277 = vmatprep.subr.bf16.mxu0 0
  %2278 = vmatpush1.bf16.msra.mxu0 0
  %2279 = vmatprep.subr.bf16.mxu0 0
  %2280 = vmatpush1.bf16.msra.mxu0 0
  %2281 = vmatprep.subr.bf16.mxu0 0
  %2282 = vmatpush1.bf16.msra.mxu0 0
  %2283 = vmatprep.mubr.bf16.mxu0 0
  %2284 = vmatmul.mubr.bf16.gmra.mrb[0].mxu0 %v2209
  %v2285 = vpop.f32.mrb[0].mxu0
  %v2286 = vadd.f32 0.0, %v2285
  %v2287 = vpop.f32.mrb[0].mxu0
  %v2288 = vadd.f32 0.0, %v2287
  %v2289 = vpop.f32.mrb[0].mxu0
  %v2290 = vpop.f32.mrb[0].mxu0
  %2291 = vdwg.mxu0
  %v2292 = vadd.f32 %v2205, %v2245
  %v2293 = vadd.f32 %v2206, %v2247
  %v2294 = vadd.f32 %v2207, %v2286
  %v2295 = vadd.f32 %v2208, %v2288
  %v2296 = vxor.u32 %v2292, 2147483648
  %v2297 = vmul.f32 %v2296, 1.442695
  %v2298 = vpow.pop %v2297
  %v2299 = vadd.f32 %v2298, 1.0
  %v2300 = vrcp.pop %v2299
  %v2301 = vmul.f32 1.0, %v2300
  %v2302 = vxor.u32 %v2293, 2147483648
  %v2303 = vmul.f32 %v2302, 1.442695
  %v2304 = vpow.pop %v2303
  %v2305 = vadd.f32 %v2304, 1.0
  %v2306 = vrcp.pop %v2305
  %v2307 = vmul.f32 1.0, %v2306
  %v2308 = vtanh.pop %v2294
  %v2309 = vxor.u32 %v2295, 2147483648
  %v2310 = vmul.f32 %v2309, 1.442695
  %v2311 = vpow.pop %v2310
  %v2312 = vadd.f32 %v2311, 1.0
  %v2313 = vrcp.pop %v2312
  %v2314 = vmul.f32 1.0, %v2313
  %v2315 = vmul.f32 %v2307, %v2204
  %v2316 = vmul.f32 %v2301, %v2308
  %v2317 = vadd.f32 %v2315, %v2316
  %v2318 = vtanh.pop %v2317
  %v2319 = vmul.f32 %v2314, %v2318
  %2320 = vst [vmem:[#allocation2] sm:$0xff] %v2319
  %2321 = vst [vmem:[#allocation3] sm:$0xff] %v2317
  %v2322 = vpack.c.bf16 %v2319, %v2319
  %s2323 = scalar_lea.vmem %s3, 28
  %2324 = vst [vmem:[%s2323] sm:$0xf] %v2322
  %v2325 = vld [vmem:[%s47] sm:$0xff]
  %v2326 = vld [vmem:[%s47 + $0x8] sm:$0xff]
  %v2327 = vld [vmem:[#allocation4] sm:$0xff]
  %v2328 = vld [vmem:[#allocation5] sm:$0xff]
  %v2329 = vunpack.c.l.bf16 %v2325
  %v2330 = vunpack.c.h.bf16 %v2325
  %v2331 = vunpack.c.l.bf16 %v2326
  %v2332 = vunpack.c.h.bf16 %v2326
  %v2333 = vpack.c.bf16 %v2327, %v2327
  %2334 = vmatprep.subr.bf16.mxu0 %v522
  %2335 = vmatpush1.bf16.msra.mxu0 %v521
  %2336 = vmatprep.subr.bf16.mxu0 %v526
  %2337 = vmatpush1.bf16.msra.mxu0 %v525
  %2338 = vmatprep.subr.bf16.mxu0 %v530
  %2339 = vmatpush1.bf16.msra.mxu0 %v529
  %2340 = vmatprep.subr.bf16.mxu0 %v534
  %2341 = vmatpush1.bf16.msra.mxu0 %v533
  %2342 = vmatprep.subr.bf16.mxu0 %v538
  %2343 = vmatpush1.bf16.msra.mxu0 %v537
  %2344 = vmatprep.subr.bf16.mxu0 %v542
  %2345 = vmatpush1.bf16.msra.mxu0 %v541
  %2346 = vmatprep.subr.bf16.mxu0 %v546
  %2347 = vmatpush1.bf16.msra.mxu0 %v545
  %2348 = vmatprep.subr.bf16.mxu0 %v550
  %2349 = vmatpush1.bf16.msra.mxu0 %v549
  %2350 = vmatprep.subr.bf16.mxu0 0
  %2351 = vmatpush1.bf16.msra.mxu0 0
  %2352 = vmatprep.subr.bf16.mxu0 0
  %2353 = vmatpush1.bf16.msra.mxu0 0
  %2354 = vmatprep.subr.bf16.mxu0 0
  %2355 = vmatpush1.bf16.msra.mxu0 0
  %2356 = vmatprep.subr.bf16.mxu0 0
  %2357 = vmatpush1.bf16.msra.mxu0 0
  %2358 = vmatprep.subr.bf16.mxu0 0
  %2359 = vmatpush1.bf16.msra.mxu0 0
  %2360 = vmatprep.subr.bf16.mxu0 0
  %2361 = vmatpush1.bf16.msra.mxu0 0
  %2362 = vmatprep.subr.bf16.mxu0 0
  %2363 = vmatpush1.bf16.msra.mxu0 0
  %2364 = vmatprep.subr.bf16.mxu0 0
  %2365 = vmatpush1.bf16.msra.mxu0 0
  %2366 = vmatprep.mubr.bf16.mxu0 0
  %2367 = vmatmul.mubr.bf16.gmra.mrb[0].mxu0 %v2333
  %v2368 = vpop.f32.mrb[0].mxu0
  %v2369 = vadd.f32 0.0, %v2368
  %v2370 = vpop.f32.mrb[0].mxu0
  %v2371 = vadd.f32 0.0, %v2370
  %v2372 = vpop.f32.mrb[0].mxu0
  %v2373 = vpop.f32.mrb[0].mxu0
  %2374 = vdwg.mxu0
  %2375 = vmatprep.subr.bf16.mxu0 %v524
  %2376 = vmatpush1.bf16.msra.mxu0 %v523
  %2377 = vmatprep.subr.bf16.mxu0 %v528
  %2378 = vmatpush1.bf16.msra.mxu0 %v527
  %2379 = vmatprep.subr.bf16.mxu0 %v532
  %2380 = vmatpush1.bf16.msra.mxu0 %v531
  %2381 = vmatprep.subr.bf16.mxu0 %v536
  %2382 = vmatpush1.bf16.msra.mxu0 %v535
  %2383 = vmatprep.subr.bf16.mxu0 %v540
  %2384 = vmatpush1.bf16.msra.mxu0 %v539
  %2385 = vmatprep.subr.bf16.mxu0 %v544
  %2386 = vmatpush1.bf16.msra.mxu0 %v543
  %2387 = vmatprep.subr.bf16.mxu0 %v548
  %2388 = vmatpush1.bf16.msra.mxu0 %v547
  %2389 = vmatprep.subr.bf16.mxu0 %v552
  %2390 = vmatpush1.bf16.msra.mxu0 %v551
  %2391 = vmatprep.subr.bf16.mxu0 0
  %2392 = vmatpush1.bf16.msra.mxu0 0
  %2393 = vmatprep.subr.bf16.mxu0 0
  %2394 = vmatpush1.bf16.msra.mxu0 0
  %2395 = vmatprep.subr.bf16.mxu0 0
  %2396 = vmatpush1.bf16.msra.mxu0 0
  %2397 = vmatprep.subr.bf16.mxu0 0
  %2398 = vmatpush1.bf16.msra.mxu0 0
  %2399 = vmatprep.subr.bf16.mxu0 0
  %2400 = vmatpush1.bf16.msra.mxu0 0
  %2401 = vmatprep.subr.bf16.mxu0 0
  %2402 = vmatpush1.bf16.msra.mxu0 0
  %2403 = vmatprep.subr.bf16.mxu0 0
  %2404 = vmatpush1.bf16.msra.mxu0 0
  %2405 = vmatprep.subr.bf16.mxu0 0
  %2406 = vmatpush1.bf16.msra.mxu0 0
  %2407 = vmatprep.mubr.bf16.mxu0 0
  %2408 = vmatmul.mubr.bf16.gmra.mrb[0].mxu0 %v2333
  %v2409 = vpop.f32.mrb[0].mxu0
  %v2410 = vadd.f32 0.0, %v2409
  %v2411 = vpop.f32.mrb[0].mxu0
  %v2412 = vadd.f32 0.0, %v2411
  %v2413 = vpop.f32.mrb[0].mxu0
  %v2414 = vpop.f32.mrb[0].mxu0
  %2415 = vdwg.mxu0
  %v2416 = vadd.f32 %v2329, %v2369
  %v2417 = vadd.f32 %v2330, %v2371
  %v2418 = vadd.f32 %v2331, %v2410
  %v2419 = vadd.f32 %v2332, %v2412
  %v2420 = vxor.u32 %v2416, 2147483648
  %v2421 = vmul.f32 %v2420, 1.442695
  %v2422 = vpow.pop %v2421
  %v2423 = vadd.f32 %v2422, 1.0
  %v2424 = vrcp.pop %v2423
  %v2425 = vmul.f32 1.0, %v2424
  %v2426 = vxor.u32 %v2417, 2147483648
  %v2427 = vmul.f32 %v2426, 1.442695
  %v2428 = vpow.pop %v2427
  %v2429 = vadd.f32 %v2428, 1.0
  %v2430 = vrcp.pop %v2429
  %v2431 = vmul.f32 1.0, %v2430
  %v2432 = vtanh.pop %v2418
  %v2433 = vxor.u32 %v2419, 2147483648
  %v2434 = vmul.f32 %v2433, 1.442695
  %v2435 = vpow.pop %v2434
  %v2436 = vadd.f32 %v2435, 1.0
  %v2437 = vrcp.pop %v2436
  %v2438 = vmul.f32 1.0, %v2437
  %v2439 = vmul.f32 %v2431, %v2328
  %v2440 = vmul.f32 %v2425, %v2432
  %v2441 = vadd.f32 %v2439, %v2440
  %v2442 = vtanh.pop %v2441
  %v2443 = vmul.f32 %v2438, %v2442
  %2444 = vst [vmem:[#allocation4] sm:$0xff] %v2443
  %2445 = vst [vmem:[#allocation5] sm:$0xff] %v2441
  %v2446 = vpack.c.bf16 %v2443, %v2443
  %2447 = vst [vmem:[%s55] sm:$0xf] %v2446
  %s2448 = ssub.s32 0, 0
  %s2449 = smul.u32 8, %s2448
  %p2450 = scmp.lt.s32.totalorder %s2449, 7
  %s2451 = scalar_select %p2450, %s2449, 7
  %s2452 = smul.addr %s2451, 4
  %s2453 = scalar_lea.vmem %s4, %s2452
  // Predicated region
  $region18: #{lstm_model_forward.6} parent=0 // pred_check
    _
  $region19: #{lstm_model_forward.6} parent=0 // pred_check_branch
    %2455 = sbr.rel (0) target = $region21
  $region20: #{lstm_model_forward.6} parent=0 // pred_region
    _
  $region21: #{lstm_model_forward.6} parent=0 // pred_fallthru
    _
  // Predicated region
  $region22: #{lstm_model_forward.6} parent=0 // pred_check
    _
  $region23: #{lstm_model_forward.6} parent=0 // pred_check_branch
    %2457 = sbr.rel (0) target = $region25
  $region24: #{lstm_model_forward.6} parent=0 // pred_region
    %s2458 = ssub.s32 0, 0
    %s2459 = smul.u32 8, %s2458
  $region25: #{lstm_model_forward.6} parent=0 // pred_fallthru
    _
  // Predicated region
  $region26: #{lstm_model_forward.6} parent=0 // pred_check
    _
  $region27: #{lstm_model_forward.6} parent=0 // pred_check_branch
    %2461 = sbr.rel (0) target = $region29
  $region28: #{lstm_model_forward.6} parent=0 // pred_region
    _
  $region29: #{lstm_model_forward.6} parent=0 // pred_fallthru
    _
  // Predicated region
  $region30: #{lstm_model_forward.6} parent=0 // pred_check
    _
  $region31: #{lstm_model_forward.6} parent=0 // pred_check_branch
    %2463 = sbr.rel (0) target = $region33
  $region32: #{lstm_model_forward.6} parent=0 // pred_region
    %s2464 = ssub.s32 0, 0
    %s2465 = smul.u32 8, %s2464
    %p2466 = scmp.lt.s32.totalorder %s2465, 7
    %s2467 = scalar_select %p2466, %s2465, 7
    %s2468 = smul.addr %s2467, 4
    %s2469 = scalar_lea.vmem %s4, %s2468
  $region33: #{lstm_model_forward.6} parent=0 // pred_fallthru
    _

</llo_original>
